<compile_context>
chip_gen: v7x
topology: tpu7x:2x2x1
jax: 0.10.0
libtpu: 0.0.40
codegen_flags: <defaults>
</compile_context>

<pallas_src>
import math
import numpy as np
import jax
import jax.numpy as jnp
from jax import lax
from jax.experimental import pallas as pl
from jax.experimental.pallas import tpu as pltpu


def _pick_tile_n(hwd):
    """Largest fc_o output-column tile <= 512 that is a multiple of 128 and divides HWD."""
    if hwd % 128 != 0:
        return hwd                      # single full-width tile (full-dim rule)
    for t in (512, 256, 128):
        if hwd % t == 0:
            return min(hwd, t)
    return hwd


def channel_attention_forward(x, conv_w, conv_b, fc_w, fc_b, kernel_size=3):
    bs, c, h, w, d = x.shape
    k = kernel_size
    pad = (k - 1) // 2
    hwd = h * w * d
    hp, wp, dp = h + 2 * pad, w + 2 * pad, d + 2 * pad
    nk3 = k * k * k
    scale = 1.0 / math.sqrt(float(hwd))

    tile_n = _pick_tile_n(hwd)
    n_tiles = hwd // tile_n

    # ---- glue (plain JAX): channels-last + zero pad, weight re-layout, bf16 casts ----
    xl = jnp.transpose(x, (0, 2, 3, 4, 1))                                   # (bs,H,W,D,C)
    xp = jnp.pad(xl, ((0, 0), (pad, pad), (pad, pad), (pad, pad), (0, 0)))
    xp = xp.astype(jnp.bfloat16)                                             # (bs,Hp,Wp,Dp,C)

    # conv weight (Cout, Cin, kh, kw, kd) -> (k^3, Cin, Cout)
    w_r = jnp.transpose(conv_w, (2, 3, 4, 1, 0)).reshape(nk3, c, c).astype(jnp.bfloat16)
    b_conv = conv_b.reshape(1, c).astype(jnp.float32)

    fc_wt = jnp.transpose(fc_w).astype(jnp.bfloat16)                         # (HWD_in, HWD_out)
    b_fc = fc_b.reshape(1, hwd).astype(jnp.float32)

    def kernel(xp_ref, wc_ref, bc_ref, fcw_ref, fcb_ref, o_ref, attv_ref):
        j = pl.program_id(1)

        @pl.when(j == 0)
        def _():
            # ---- Conv3d as 27 shifted-slice matmuls (f32 accumulation) ----
            acc = jnp.zeros((hwd, c), jnp.float32)
            for kh in range(k):
                for kw in range(k):
                    for kd in range(k):
                        patch = xp_ref[0, kh:kh + h, kw:kw + w, kd:kd + d, :]
                        patch = patch.reshape(hwd, c)                        # (HWD, C) bf16
                        acc = acc + jnp.dot(patch, wc_ref[kh * k * k + kw * k + kd],
                                            preferred_element_type=jnp.float32)
            y = acc + bc_ref[...]                                            # (HWD, C) f32

            # ---- SimplifiedScaledDotProductAttention, h=1, q=k=v = y^T (C, HWD) ----
            y_bf = y.astype(jnp.bfloat16)                                    # (HWD, C)
            yt_bf = y.T.astype(jnp.bfloat16)                                 # (C, HWD) one transpose, reused
            att = jnp.dot(yt_bf, y_bf, preferred_element_type=jnp.float32)   # (C, C)
            att = att * scale
            att = att - jnp.max(att, axis=-1, keepdims=True)
            att = jnp.exp(att)
            att = att * pl.reciprocal(jnp.sum(att, axis=-1, keepdims=True), approx=True)
            # TODO(synk): nn.Dropout(p=0.1) on att is identity in eval mode; omitted.
            out = jnp.dot(att.astype(jnp.bfloat16), yt_bf,
                          preferred_element_type=jnp.float32)                # (C, HWD)
            attv_ref[...] = out.astype(jnp.bfloat16)

        # ---- fc_o tile: (C, HWD) @ (HWD, TILE_N); attention result reused from scratch ----
        fc = jnp.dot(attv_ref[...], fcw_ref[...], preferred_element_type=jnp.float32)
        o_ref[0] = (fc + fcb_ref[...]).astype(o_ref.dtype)

    return pl.pallas_call(
        kernel,
        out_shape=jax.ShapeDtypeStruct((bs, c, hwd), x.dtype),
        grid_spec=pltpu.PrefetchScalarGridSpec(
            num_scalar_prefetch=0,
            grid=(bs, n_tiles),
            in_specs=[
                pl.BlockSpec((1, hp, wp, dp, c), lambda b, j: (b, 0, 0, 0, 0)),  # padded x (per batch)
                pl.BlockSpec((nk3, c, c), lambda b, j: (0, 0, 0)),               # conv weight (resident)
                pl.BlockSpec((1, c), lambda b, j: (0, 0)),                       # conv bias
                pl.BlockSpec((hwd, tile_n), lambda b, j: (0, j)),                # fc_o weight^T, N-tiled
                pl.BlockSpec((1, tile_n), lambda b, j: (0, j)),                  # fc_o bias tile
            ],
            out_specs=pl.BlockSpec((1, c, tile_n), lambda b, j: (b, 0, j)),
            scratch_shapes=[pltpu.VMEM((c, hwd), jnp.bfloat16)],                 # att @ v (per batch)
        ),
        compiler_params=pltpu.CompilerParams(
            dimension_semantics=("parallel", "arbitrary")),
    )(xp, w_r, b_conv, fc_wt, b_fc)


def _reference(x, conv_w, conv_b, fc_w, fc_b):
    """Pure-JAX f32 reference of the PyTorch forward (eval mode)."""
    bs, c, h, w, d = x.shape
    y = lax.conv_general_dilated(
        x, conv_w, window_strides=(1, 1, 1),
        padding=[(1, 1), (1, 1), (1, 1)],
        dimension_numbers=("NCDHW", "OIDHW", "NCDHW"))
    y = y + conv_b.reshape(1, c, 1, 1, 1)
    y = y.reshape(bs, c, -1)                                   # (bs, C, HWD)
    dk = y.shape[-1]
    att = jnp.einsum("bnf,bmf->bnm", y, y) / np.sqrt(dk)
    att = jax.nn.softmax(att, axis=-1)
    out = jnp.einsum("bnm,bmf->bnf", att, y)
    out = jnp.einsum("bnf,gf->bng", out, fc_w) + fc_b
    return out


if __name__ == "__main__":
    # Small, consistent shapes: d_model=C=8, H=W=4, D=8  -> H*W*D = 128
    bs, c, H, W, D = 2, 8, 4, 4, 8
    hwd = H * W * D

    key = jax.random.PRNGKey(0)
    k1, k2, k3, k4, k5 = jax.random.split(key, 5)
    x = jax.random.normal(k1, (bs, c, H, W, D), jnp.float32)
    # deterministic synthetic parameters (shapes from the module's __init__)
    conv_w = 0.1 * jax.random.normal(k2, (c, c, 3, 3, 3), jnp.float32)   # Conv3d weight
    conv_b = 0.1 * jax.random.normal(k3, (c,), jnp.float32)              # Conv3d bias
    fc_w = 0.1 * jax.random.normal(k4, (hwd, hwd), jnp.float32)          # fc_o weight
    fc_b = 0.1 * jax.random.normal(k5, (hwd,), jnp.float32)              # fc_o bias

    out = channel_attention_forward(x, conv_w, conv_b, fc_w, fc_b)
    out = jax.block_until_ready(out)

    ref = _reference(x, conv_w, conv_b, fc_w, fc_b)
    assert out.shape == (bs, c, hwd)
    # bf16 MXU operands (f32 accumulation) -> relaxed tolerance vs the f32 reference.
    np.testing.assert_allclose(np.asarray(out), np.asarray(ref), rtol=3e-2, atol=3e-2)
    print("KERNEL_OK")
</pallas_src>

<mosaic_0001>
module attributes {stable_mosaic.version = 11 : i64} {
  func.func @kernel(%arg0: i32, %arg1: i32, %arg2: memref<1x6x6x10x8xbf16, #tpu.memory_space<vmem>>, %arg3: memref<27x8x8xbf16, #tpu.memory_space<vmem>>, %arg4: memref<1x8xf32, #tpu.memory_space<vmem>>, %arg5: memref<128x128xbf16, #tpu.memory_space<vmem>>, %arg6: memref<1x128xf32, #tpu.memory_space<vmem>>, %arg7: memref<1x8x128xf32, #tpu.memory_space<vmem>>, %arg8: memref<8x128xbf16, #tpu.memory_space<vmem>>) attributes {dimension_semantics = [#tpu.dimension_semantics<parallel>, #tpu.dimension_semantics<arbitrary>], iteration_bounds = array<i64: 2, 1>, scalar_prefetch = 0 : i64, scratch_operands = 1 : i64, tpu.core_type = #tpu.core_type<tc>, window_params = [{transform_indices = @transform_0, window_bounds = array<i64: 1, 6, 6, 10, 8>}, {pipeline_mode = #tpu.pipeline_mode<synchronous>, transform_indices = @transform_1, window_bounds = array<i64: 27, 8, 8>}, {pipeline_mode = #tpu.pipeline_mode<synchronous>, transform_indices = @transform_2, window_bounds = array<i64: 1, 8>}, {transform_indices = @transform_3, window_bounds = array<i64: 128, 128>}, {transform_indices = @transform_4, window_bounds = array<i64: 1, 128>}, {transform_indices = @transform_5, window_bounds = array<i64: 1, 8, 128>}]} {
    %c0_i32 = arith.constant 0 : i32
    %0 = arith.cmpi eq, %arg1, %c0_i32 : i32
    %1 = arith.extui %0 : i1 to i32
    %c0_i32_0 = arith.constant 0 : i32
    %2 = arith.cmpi ne, %1, %c0_i32_0 : i32
    scf.if %2 {
      %cst_9 = arith.constant 0.000000e+00 : f32
      %12 = vector.broadcast %cst_9 : f32 to vector<128x8xf32>
      %c0_10 = arith.constant 0 : index
      %c0_11 = arith.constant 0 : index
      %c0_12 = arith.constant 0 : index
      %c0_13 = arith.constant 0 : index
      %c0_14 = arith.constant 0 : index
      %13 = vector.load %arg2[%c0_10, %c0_11, %c0_12, %c0_13, %c0_14] : memref<1x6x6x10x8xbf16, #tpu.memory_space<vmem>>, vector<1x4x4x8x8xbf16>
      %14 = vector.shape_cast %13 : vector<1x4x4x8x8xbf16> to vector<4x4x8x8xbf16>
      %15 = vector.shape_cast %14 : vector<4x4x8x8xbf16> to vector<128x8xbf16>
      %c0_15 = arith.constant 0 : index
      %c0_16 = arith.constant 0 : index
      %c0_17 = arith.constant 0 : index
      %16 = vector.load %arg3[%c0_15, %c0_16, %c0_17] : memref<27x8x8xbf16, #tpu.memory_space<vmem>>, vector<1x8x8xbf16>
      %17 = vector.shape_cast %16 : vector<1x8x8xbf16> to vector<8x8xbf16>
      %cst_18 = arith.constant dense<0.000000e+00> : vector<128x8xf32>
      %18 = tpu.matmul %15, %17, %cst_18 {dimension_numbers = #tpu.dot_dimension_numbers<[1], [0], [0], [1], [0, 0, 1, 1], [], []>} : vector<128x8xbf16>, vector<8x8xbf16>, vector<128x8xf32> -> vector<128x8xf32>
      %19 = arith.addf %12, %18 : vector<128x8xf32>
      %c0_19 = arith.constant 0 : index
      %c0_20 = arith.constant 0 : index
      %c0_21 = arith.constant 0 : index
      %c1 = arith.constant 1 : index
      %c0_22 = arith.constant 0 : index
      %20 = vector.load %arg2[%c0_19, %c0_20, %c0_21, %c1, %c0_22] : memref<1x6x6x10x8xbf16, #tpu.memory_space<vmem>>, vector<1x4x4x8x8xbf16>
      %21 = vector.shape_cast %20 : vector<1x4x4x8x8xbf16> to vector<4x4x8x8xbf16>
      %22 = vector.shape_cast %21 : vector<4x4x8x8xbf16> to vector<128x8xbf16>
      %c1_23 = arith.constant 1 : index
      %c0_24 = arith.constant 0 : index
      %c0_25 = arith.constant 0 : index
      %23 = vector.load %arg3[%c1_23, %c0_24, %c0_25] : memref<27x8x8xbf16, #tpu.memory_space<vmem>>, vector<1x8x8xbf16>
      %24 = vector.shape_cast %23 : vector<1x8x8xbf16> to vector<8x8xbf16>
      %cst_26 = arith.constant dense<0.000000e+00> : vector<128x8xf32>
      %25 = tpu.matmul %22, %24, %cst_26 {dimension_numbers = #tpu.dot_dimension_numbers<[1], [0], [0], [1], [0, 0, 1, 1], [], []>} : vector<128x8xbf16>, vector<8x8xbf16>, vector<128x8xf32> -> vector<128x8xf32>
      %26 = arith.addf %19, %25 : vector<128x8xf32>
      %c0_27 = arith.constant 0 : index
      %c0_28 = arith.constant 0 : index
      %c0_29 = arith.constant 0 : index
      %c2 = arith.constant 2 : index
      %c0_30 = arith.constant 0 : index
      %27 = vector.load %arg2[%c0_27, %c0_28, %c0_29, %c2, %c0_30] : memref<1x6x6x10x8xbf16, #tpu.memory_space<vmem>>, vector<1x4x4x8x8xbf16>
      %28 = vector.shape_cast %27 : vector<1x4x4x8x8xbf16> to vector<4x4x8x8xbf16>
      %29 = vector.shape_cast %28 : vector<4x4x8x8xbf16> to vector<128x8xbf16>
      %c2_31 = arith.constant 2 : index
      %c0_32 = arith.constant 0 : index
      %c0_33 = arith.constant 0 : index
      %30 = vector.load %arg3[%c2_31, %c0_32, %c0_33] : memref<27x8x8xbf16, #tpu.memory_space<vmem>>, vector<1x8x8xbf16>
      %31 = vector.shape_cast %30 : vector<1x8x8xbf16> to vector<8x8xbf16>
      %cst_34 = arith.constant dense<0.000000e+00> : vector<128x8xf32>
      %32 = tpu.matmul %29, %31, %cst_34 {dimension_numbers = #tpu.dot_dimension_numbers<[1], [0], [0], [1], [0, 0, 1, 1], [], []>} : vector<128x8xbf16>, vector<8x8xbf16>, vector<128x8xf32> -> vector<128x8xf32>
      %33 = arith.addf %26, %32 : vector<128x8xf32>
      %c0_35 = arith.constant 0 : index
      %c0_36 = arith.constant 0 : index
      %c1_37 = arith.constant 1 : index
      %c0_38 = arith.constant 0 : index
      %c0_39 = arith.constant 0 : index
      %34 = vector.load %arg2[%c0_35, %c0_36, %c1_37, %c0_38, %c0_39] : memref<1x6x6x10x8xbf16, #tpu.memory_space<vmem>>, vector<1x4x4x8x8xbf16>
      %35 = vector.shape_cast %34 : vector<1x4x4x8x8xbf16> to vector<4x4x8x8xbf16>
      %36 = vector.shape_cast %35 : vector<4x4x8x8xbf16> to vector<128x8xbf16>
      %c3 = arith.constant 3 : index
      %c0_40 = arith.constant 0 : index
      %c0_41 = arith.constant 0 : index
      %37 = vector.load %arg3[%c3, %c0_40, %c0_41] : memref<27x8x8xbf16, #tpu.memory_space<vmem>>, vector<1x8x8xbf16>
      %38 = vector.shape_cast %37 : vector<1x8x8xbf16> to vector<8x8xbf16>
      %cst_42 = arith.constant dense<0.000000e+00> : vector<128x8xf32>
      %39 = tpu.matmul %36, %38, %cst_42 {dimension_numbers = #tpu.dot_dimension_numbers<[1], [0], [0], [1], [0, 0, 1, 1], [], []>} : vector<128x8xbf16>, vector<8x8xbf16>, vector<128x8xf32> -> vector<128x8xf32>
      %40 = arith.addf %33, %39 : vector<128x8xf32>
      %c0_43 = arith.constant 0 : index
      %c0_44 = arith.constant 0 : index
      %c1_45 = arith.constant 1 : index
      %c1_46 = arith.constant 1 : index
      %c0_47 = arith.constant 0 : index
      %41 = vector.load %arg2[%c0_43, %c0_44, %c1_45, %c1_46, %c0_47] : memref<1x6x6x10x8xbf16, #tpu.memory_space<vmem>>, vector<1x4x4x8x8xbf16>
      %42 = vector.shape_cast %41 : vector<1x4x4x8x8xbf16> to vector<4x4x8x8xbf16>
      %43 = vector.shape_cast %42 : vector<4x4x8x8xbf16> to vector<128x8xbf16>
      %c4 = arith.constant 4 : index
      %c0_48 = arith.constant 0 : index
      %c0_49 = arith.constant 0 : index
      %44 = vector.load %arg3[%c4, %c0_48, %c0_49] : memref<27x8x8xbf16, #tpu.memory_space<vmem>>, vector<1x8x8xbf16>
      %45 = vector.shape_cast %44 : vector<1x8x8xbf16> to vector<8x8xbf16>
      %cst_50 = arith.constant dense<0.000000e+00> : vector<128x8xf32>
      %46 = tpu.matmul %43, %45, %cst_50 {dimension_numbers = #tpu.dot_dimension_numbers<[1], [0], [0], [1], [0, 0, 1, 1], [], []>} : vector<128x8xbf16>, vector<8x8xbf16>, vector<128x8xf32> -> vector<128x8xf32>
      %47 = arith.addf %40, %46 : vector<128x8xf32>
      %c0_51 = arith.constant 0 : index
      %c0_52 = arith.constant 0 : index
      %c1_53 = arith.constant 1 : index
      %c2_54 = arith.constant 2 : index
      %c0_55 = arith.constant 0 : index
      %48 = vector.load %arg2[%c0_51, %c0_52, %c1_53, %c2_54, %c0_55] : memref<1x6x6x10x8xbf16, #tpu.memory_space<vmem>>, vector<1x4x4x8x8xbf16>
      %49 = vector.shape_cast %48 : vector<1x4x4x8x8xbf16> to vector<4x4x8x8xbf16>
      %50 = vector.shape_cast %49 : vector<4x4x8x8xbf16> to vector<128x8xbf16>
      %c5 = arith.constant 5 : index
      %c0_56 = arith.constant 0 : index
      %c0_57 = arith.constant 0 : index
      %51 = vector.load %arg3[%c5, %c0_56, %c0_57] : memref<27x8x8xbf16, #tpu.memory_space<vmem>>, vector<1x8x8xbf16>
      %52 = vector.shape_cast %51 : vector<1x8x8xbf16> to vector<8x8xbf16>
      %cst_58 = arith.constant dense<0.000000e+00> : vector<128x8xf32>
      %53 = tpu.matmul %50, %52, %cst_58 {dimension_numbers = #tpu.dot_dimension_numbers<[1], [0], [0], [1], [0, 0, 1, 1], [], []>} : vector<128x8xbf16>, vector<8x8xbf16>, vector<128x8xf32> -> vector<128x8xf32>
      %54 = arith.addf %47, %53 : vector<128x8xf32>
      %c0_59 = arith.constant 0 : index
      %c0_60 = arith.constant 0 : index
      %c2_61 = arith.constant 2 : index
      %c0_62 = arith.constant 0 : index
      %c0_63 = arith.constant 0 : index
      %55 = vector.load %arg2[%c0_59, %c0_60, %c2_61, %c0_62, %c0_63] : memref<1x6x6x10x8xbf16, #tpu.memory_space<vmem>>, vector<1x4x4x8x8xbf16>
      %56 = vector.shape_cast %55 : vector<1x4x4x8x8xbf16> to vector<4x4x8x8xbf16>
      %57 = vector.shape_cast %56 : vector<4x4x8x8xbf16> to vector<128x8xbf16>
      %c6 = arith.constant 6 : index
      %c0_64 = arith.constant 0 : index
      %c0_65 = arith.constant 0 : index
      %58 = vector.load %arg3[%c6, %c0_64, %c0_65] : memref<27x8x8xbf16, #tpu.memory_space<vmem>>, vector<1x8x8xbf16>
      %59 = vector.shape_cast %58 : vector<1x8x8xbf16> to vector<8x8xbf16>
      %cst_66 = arith.constant dense<0.000000e+00> : vector<128x8xf32>
      %60 = tpu.matmul %57, %59, %cst_66 {dimension_numbers = #tpu.dot_dimension_numbers<[1], [0], [0], [1], [0, 0, 1, 1], [], []>} : vector<128x8xbf16>, vector<8x8xbf16>, vector<128x8xf32> -> vector<128x8xf32>
      %61 = arith.addf %54, %60 : vector<128x8xf32>
      %c0_67 = arith.constant 0 : index
      %c0_68 = arith.constant 0 : index
      %c2_69 = arith.constant 2 : index
      %c1_70 = arith.constant 1 : index
      %c0_71 = arith.constant 0 : index
      %62 = vector.load %arg2[%c0_67, %c0_68, %c2_69, %c1_70, %c0_71] : memref<1x6x6x10x8xbf16, #tpu.memory_space<vmem>>, vector<1x4x4x8x8xbf16>
      %63 = vector.shape_cast %62 : vector<1x4x4x8x8xbf16> to vector<4x4x8x8xbf16>
      %64 = vector.shape_cast %63 : vector<4x4x8x8xbf16> to vector<128x8xbf16>
      %c7 = arith.constant 7 : index
      %c0_72 = arith.constant 0 : index
      %c0_73 = arith.constant 0 : index
      %65 = vector.load %arg3[%c7, %c0_72, %c0_73] : memref<27x8x8xbf16, #tpu.memory_space<vmem>>, vector<1x8x8xbf16>
      %66 = vector.shape_cast %65 : vector<1x8x8xbf16> to vector<8x8xbf16>
      %cst_74 = arith.constant dense<0.000000e+00> : vector<128x8xf32>
      %67 = tpu.matmul %64, %66, %cst_74 {dimension_numbers = #tpu.dot_dimension_numbers<[1], [0], [0], [1], [0, 0, 1, 1], [], []>} : vector<128x8xbf16>, vector<8x8xbf16>, vector<128x8xf32> -> vector<128x8xf32>
      %68 = arith.addf %61, %67 : vector<128x8xf32>
      %c0_75 = arith.constant 0 : index
      %c0_76 = arith.constant 0 : index
      %c2_77 = arith.constant 2 : index
      %c2_78 = arith.constant 2 : index
      %c0_79 = arith.constant 0 : index
      %69 = vector.load %arg2[%c0_75, %c0_76, %c2_77, %c2_78, %c0_79] : memref<1x6x6x10x8xbf16, #tpu.memory_space<vmem>>, vector<1x4x4x8x8xbf16>
      %70 = vector.shape_cast %69 : vector<1x4x4x8x8xbf16> to vector<4x4x8x8xbf16>
      %71 = vector.shape_cast %70 : vector<4x4x8x8xbf16> to vector<128x8xbf16>
      %c8 = arith.constant 8 : index
      %c0_80 = arith.constant 0 : index
      %c0_81 = arith.constant 0 : index
      %72 = vector.load %arg3[%c8, %c0_80, %c0_81] : memref<27x8x8xbf16, #tpu.memory_space<vmem>>, vector<1x8x8xbf16>
      %73 = vector.shape_cast %72 : vector<1x8x8xbf16> to vector<8x8xbf16>
      %cst_82 = arith.constant dense<0.000000e+00> : vector<128x8xf32>
      %74 = tpu.matmul %71, %73, %cst_82 {dimension_numbers = #tpu.dot_dimension_numbers<[1], [0], [0], [1], [0, 0, 1, 1], [], []>} : vector<128x8xbf16>, vector<8x8xbf16>, vector<128x8xf32> -> vector<128x8xf32>
      %75 = arith.addf %68, %74 : vector<128x8xf32>
      %c0_83 = arith.constant 0 : index
      %c1_84 = arith.constant 1 : index
      %c0_85 = arith.constant 0 : index
      %c0_86 = arith.constant 0 : index
      %c0_87 = arith.constant 0 : index
      %76 = vector.load %arg2[%c0_83, %c1_84, %c0_85, %c0_86, %c0_87] : memref<1x6x6x10x8xbf16, #tpu.memory_space<vmem>>, vector<1x4x4x8x8xbf16>
      %77 = vector.shape_cast %76 : vector<1x4x4x8x8xbf16> to vector<4x4x8x8xbf16>
      %78 = vector.shape_cast %77 : vector<4x4x8x8xbf16> to vector<128x8xbf16>
      %c9 = arith.constant 9 : index
      %c0_88 = arith.constant 0 : index
      %c0_89 = arith.constant 0 : index
      %79 = vector.load %arg3[%c9, %c0_88, %c0_89] : memref<27x8x8xbf16, #tpu.memory_space<vmem>>, vector<1x8x8xbf16>
      %80 = vector.shape_cast %79 : vector<1x8x8xbf16> to vector<8x8xbf16>
      %cst_90 = arith.constant dense<0.000000e+00> : vector<128x8xf32>
      %81 = tpu.matmul %78, %80, %cst_90 {dimension_numbers = #tpu.dot_dimension_numbers<[1], [0], [0], [1], [0, 0, 1, 1], [], []>} : vector<128x8xbf16>, vector<8x8xbf16>, vector<128x8xf32> -> vector<128x8xf32>
      %82 = arith.addf %75, %81 : vector<128x8xf32>
      %c0_91 = arith.constant 0 : index
      %c1_92 = arith.constant 1 : index
      %c0_93 = arith.constant 0 : index
      %c1_94 = arith.constant 1 : index
      %c0_95 = arith.constant 0 : index
      %83 = vector.load %arg2[%c0_91, %c1_92, %c0_93, %c1_94, %c0_95] : memref<1x6x6x10x8xbf16, #tpu.memory_space<vmem>>, vector<1x4x4x8x8xbf16>
      %84 = vector.shape_cast %83 : vector<1x4x4x8x8xbf16> to vector<4x4x8x8xbf16>
      %85 = vector.shape_cast %84 : vector<4x4x8x8xbf16> to vector<128x8xbf16>
      %c10 = arith.constant 10 : index
      %c0_96 = arith.constant 0 : index
      %c0_97 = arith.constant 0 : index
      %86 = vector.load %arg3[%c10, %c0_96, %c0_97] : memref<27x8x8xbf16, #tpu.memory_space<vmem>>, vector<1x8x8xbf16>
      %87 = vector.shape_cast %86 : vector<1x8x8xbf16> to vector<8x8xbf16>
      %cst_98 = arith.constant dense<0.000000e+00> : vector<128x8xf32>
      %88 = tpu.matmul %85, %87, %cst_98 {dimension_numbers = #tpu.dot_dimension_numbers<[1], [0], [0], [1], [0, 0, 1, 1], [], []>} : vector<128x8xbf16>, vector<8x8xbf16>, vector<128x8xf32> -> vector<128x8xf32>
      %89 = arith.addf %82, %88 : vector<128x8xf32>
      %c0_99 = arith.constant 0 : index
      %c1_100 = arith.constant 1 : index
      %c0_101 = arith.constant 0 : index
      %c2_102 = arith.constant 2 : index
      %c0_103 = arith.constant 0 : index
      %90 = vector.load %arg2[%c0_99, %c1_100, %c0_101, %c2_102, %c0_103] : memref<1x6x6x10x8xbf16, #tpu.memory_space<vmem>>, vector<1x4x4x8x8xbf16>
      %91 = vector.shape_cast %90 : vector<1x4x4x8x8xbf16> to vector<4x4x8x8xbf16>
      %92 = vector.shape_cast %91 : vector<4x4x8x8xbf16> to vector<128x8xbf16>
      %c11 = arith.constant 11 : index
      %c0_104 = arith.constant 0 : index
      %c0_105 = arith.constant 0 : index
      %93 = vector.load %arg3[%c11, %c0_104, %c0_105] : memref<27x8x8xbf16, #tpu.memory_space<vmem>>, vector<1x8x8xbf16>
      %94 = vector.shape_cast %93 : vector<1x8x8xbf16> to vector<8x8xbf16>
      %cst_106 = arith.constant dense<0.000000e+00> : vector<128x8xf32>
      %95 = tpu.matmul %92, %94, %cst_106 {dimension_numbers = #tpu.dot_dimension_numbers<[1], [0], [0], [1], [0, 0, 1, 1], [], []>} : vector<128x8xbf16>, vector<8x8xbf16>, vector<128x8xf32> -> vector<128x8xf32>
      %96 = arith.addf %89, %95 : vector<128x8xf32>
      %c0_107 = arith.constant 0 : index
      %c1_108 = arith.constant 1 : index
      %c1_109 = arith.constant 1 : index
      %c0_110 = arith.constant 0 : index
      %c0_111 = arith.constant 0 : index
      %97 = vector.load %arg2[%c0_107, %c1_108, %c1_109, %c0_110, %c0_111] : memref<1x6x6x10x8xbf16, #tpu.memory_space<vmem>>, vector<1x4x4x8x8xbf16>
      %98 = vector.shape_cast %97 : vector<1x4x4x8x8xbf16> to vector<4x4x8x8xbf16>
      %99 = vector.shape_cast %98 : vector<4x4x8x8xbf16> to vector<128x8xbf16>
      %c12 = arith.constant 12 : index
      %c0_112 = arith.constant 0 : index
      %c0_113 = arith.constant 0 : index
      %100 = vector.load %arg3[%c12, %c0_112, %c0_113] : memref<27x8x8xbf16, #tpu.memory_space<vmem>>, vector<1x8x8xbf16>
      %101 = vector.shape_cast %100 : vector<1x8x8xbf16> to vector<8x8xbf16>
      %cst_114 = arith.constant dense<0.000000e+00> : vector<128x8xf32>
      %102 = tpu.matmul %99, %101, %cst_114 {dimension_numbers = #tpu.dot_dimension_numbers<[1], [0], [0], [1], [0, 0, 1, 1], [], []>} : vector<128x8xbf16>, vector<8x8xbf16>, vector<128x8xf32> -> vector<128x8xf32>
      %103 = arith.addf %96, %102 : vector<128x8xf32>
      %c0_115 = arith.constant 0 : index
      %c1_116 = arith.constant 1 : index
      %c1_117 = arith.constant 1 : index
      %c1_118 = arith.constant 1 : index
      %c0_119 = arith.constant 0 : index
      %104 = vector.load %arg2[%c0_115, %c1_116, %c1_117, %c1_118, %c0_119] : memref<1x6x6x10x8xbf16, #tpu.memory_space<vmem>>, vector<1x4x4x8x8xbf16>
      %105 = vector.shape_cast %104 : vector<1x4x4x8x8xbf16> to vector<4x4x8x8xbf16>
      %106 = vector.shape_cast %105 : vector<4x4x8x8xbf16> to vector<128x8xbf16>
      %c13 = arith.constant 13 : index
      %c0_120 = arith.constant 0 : index
      %c0_121 = arith.constant 0 : index
      %107 = vector.load %arg3[%c13, %c0_120, %c0_121] : memref<27x8x8xbf16, #tpu.memory_space<vmem>>, vector<1x8x8xbf16>
      %108 = vector.shape_cast %107 : vector<1x8x8xbf16> to vector<8x8xbf16>
      %cst_122 = arith.constant dense<0.000000e+00> : vector<128x8xf32>
      %109 = tpu.matmul %106, %108, %cst_122 {dimension_numbers = #tpu.dot_dimension_numbers<[1], [0], [0], [1], [0, 0, 1, 1], [], []>} : vector<128x8xbf16>, vector<8x8xbf16>, vector<128x8xf32> -> vector<128x8xf32>
      %110 = arith.addf %103, %109 : vector<128x8xf32>
      %c0_123 = arith.constant 0 : index
      %c1_124 = arith.constant 1 : index
      %c1_125 = arith.constant 1 : index
      %c2_126 = arith.constant 2 : index
      %c0_127 = arith.constant 0 : index
      %111 = vector.load %arg2[%c0_123, %c1_124, %c1_125, %c2_126, %c0_127] : memref<1x6x6x10x8xbf16, #tpu.memory_space<vmem>>, vector<1x4x4x8x8xbf16>
      %112 = vector.shape_cast %111 : vector<1x4x4x8x8xbf16> to vector<4x4x8x8xbf16>
      %113 = vector.shape_cast %112 : vector<4x4x8x8xbf16> to vector<128x8xbf16>
      %c14 = arith.constant 14 : index
      %c0_128 = arith.constant 0 : index
      %c0_129 = arith.constant 0 : index
      %114 = vector.load %arg3[%c14, %c0_128, %c0_129] : memref<27x8x8xbf16, #tpu.memory_space<vmem>>, vector<1x8x8xbf16>
      %115 = vector.shape_cast %114 : vector<1x8x8xbf16> to vector<8x8xbf16>
      %cst_130 = arith.constant dense<0.000000e+00> : vector<128x8xf32>
      %116 = tpu.matmul %113, %115, %cst_130 {dimension_numbers = #tpu.dot_dimension_numbers<[1], [0], [0], [1], [0, 0, 1, 1], [], []>} : vector<128x8xbf16>, vector<8x8xbf16>, vector<128x8xf32> -> vector<128x8xf32>
      %117 = arith.addf %110, %116 : vector<128x8xf32>
      %c0_131 = arith.constant 0 : index
      %c1_132 = arith.constant 1 : index
      %c2_133 = arith.constant 2 : index
      %c0_134 = arith.constant 0 : index
      %c0_135 = arith.constant 0 : index
      %118 = vector.load %arg2[%c0_131, %c1_132, %c2_133, %c0_134, %c0_135] : memref<1x6x6x10x8xbf16, #tpu.memory_space<vmem>>, vector<1x4x4x8x8xbf16>
      %119 = vector.shape_cast %118 : vector<1x4x4x8x8xbf16> to vector<4x4x8x8xbf16>
      %120 = vector.shape_cast %119 : vector<4x4x8x8xbf16> to vector<128x8xbf16>
      %c15 = arith.constant 15 : index
      %c0_136 = arith.constant 0 : index
      %c0_137 = arith.constant 0 : index
      %121 = vector.load %arg3[%c15, %c0_136, %c0_137] : memref<27x8x8xbf16, #tpu.memory_space<vmem>>, vector<1x8x8xbf16>
      %122 = vector.shape_cast %121 : vector<1x8x8xbf16> to vector<8x8xbf16>
      %cst_138 = arith.constant dense<0.000000e+00> : vector<128x8xf32>
      %123 = tpu.matmul %120, %122, %cst_138 {dimension_numbers = #tpu.dot_dimension_numbers<[1], [0], [0], [1], [0, 0, 1, 1], [], []>} : vector<128x8xbf16>, vector<8x8xbf16>, vector<128x8xf32> -> vector<128x8xf32>
      %124 = arith.addf %117, %123 : vector<128x8xf32>
      %c0_139 = arith.constant 0 : index
      %c1_140 = arith.constant 1 : index
      %c2_141 = arith.constant 2 : index
      %c1_142 = arith.constant 1 : index
      %c0_143 = arith.constant 0 : index
      %125 = vector.load %arg2[%c0_139, %c1_140, %c2_141, %c1_142, %c0_143] : memref<1x6x6x10x8xbf16, #tpu.memory_space<vmem>>, vector<1x4x4x8x8xbf16>
      %126 = vector.shape_cast %125 : vector<1x4x4x8x8xbf16> to vector<4x4x8x8xbf16>
      %127 = vector.shape_cast %126 : vector<4x4x8x8xbf16> to vector<128x8xbf16>
      %c16 = arith.constant 16 : index
      %c0_144 = arith.constant 0 : index
      %c0_145 = arith.constant 0 : index
      %128 = vector.load %arg3[%c16, %c0_144, %c0_145] : memref<27x8x8xbf16, #tpu.memory_space<vmem>>, vector<1x8x8xbf16>
      %129 = vector.shape_cast %128 : vector<1x8x8xbf16> to vector<8x8xbf16>
      %cst_146 = arith.constant dense<0.000000e+00> : vector<128x8xf32>
      %130 = tpu.matmul %127, %129, %cst_146 {dimension_numbers = #tpu.dot_dimension_numbers<[1], [0], [0], [1], [0, 0, 1, 1], [], []>} : vector<128x8xbf16>, vector<8x8xbf16>, vector<128x8xf32> -> vector<128x8xf32>
      %131 = arith.addf %124, %130 : vector<128x8xf32>
      %c0_147 = arith.constant 0 : index
      %c1_148 = arith.constant 1 : index
      %c2_149 = arith.constant 2 : index
      %c2_150 = arith.constant 2 : index
      %c0_151 = arith.constant 0 : index
      %132 = vector.load %arg2[%c0_147, %c1_148, %c2_149, %c2_150, %c0_151] : memref<1x6x6x10x8xbf16, #tpu.memory_space<vmem>>, vector<1x4x4x8x8xbf16>
      %133 = vector.shape_cast %132 : vector<1x4x4x8x8xbf16> to vector<4x4x8x8xbf16>
      %134 = vector.shape_cast %133 : vector<4x4x8x8xbf16> to vector<128x8xbf16>
      %c17 = arith.constant 17 : index
      %c0_152 = arith.constant 0 : index
      %c0_153 = arith.constant 0 : index
      %135 = vector.load %arg3[%c17, %c0_152, %c0_153] : memref<27x8x8xbf16, #tpu.memory_space<vmem>>, vector<1x8x8xbf16>
      %136 = vector.shape_cast %135 : vector<1x8x8xbf16> to vector<8x8xbf16>
      %cst_154 = arith.constant dense<0.000000e+00> : vector<128x8xf32>
      %137 = tpu.matmul %134, %136, %cst_154 {dimension_numbers = #tpu.dot_dimension_numbers<[1], [0], [0], [1], [0, 0, 1, 1], [], []>} : vector<128x8xbf16>, vector<8x8xbf16>, vector<128x8xf32> -> vector<128x8xf32>
      %138 = arith.addf %131, %137 : vector<128x8xf32>
      %c0_155 = arith.constant 0 : index
      %c2_156 = arith.constant 2 : index
      %c0_157 = arith.constant 0 : index
      %c0_158 = arith.constant 0 : index
      %c0_159 = arith.constant 0 : index
      %139 = vector.load %arg2[%c0_155, %c2_156, %c0_157, %c0_158, %c0_159] : memref<1x6x6x10x8xbf16, #tpu.memory_space<vmem>>, vector<1x4x4x8x8xbf16>
      %140 = vector.shape_cast %139 : vector<1x4x4x8x8xbf16> to vector<4x4x8x8xbf16>
      %141 = vector.shape_cast %140 : vector<4x4x8x8xbf16> to vector<128x8xbf16>
      %c18 = arith.constant 18 : index
      %c0_160 = arith.constant 0 : index
      %c0_161 = arith.constant 0 : index
      %142 = vector.load %arg3[%c18, %c0_160, %c0_161] : memref<27x8x8xbf16, #tpu.memory_space<vmem>>, vector<1x8x8xbf16>
      %143 = vector.shape_cast %142 : vector<1x8x8xbf16> to vector<8x8xbf16>
      %cst_162 = arith.constant dense<0.000000e+00> : vector<128x8xf32>
      %144 = tpu.matmul %141, %143, %cst_162 {dimension_numbers = #tpu.dot_dimension_numbers<[1], [0], [0], [1], [0, 0, 1, 1], [], []>} : vector<128x8xbf16>, vector<8x8xbf16>, vector<128x8xf32> -> vector<128x8xf32>
      %145 = arith.addf %138, %144 : vector<128x8xf32>
      %c0_163 = arith.constant 0 : index
      %c2_164 = arith.constant 2 : index
      %c0_165 = arith.constant 0 : index
      %c1_166 = arith.constant 1 : index
      %c0_167 = arith.constant 0 : index
      %146 = vector.load %arg2[%c0_163, %c2_164, %c0_165, %c1_166, %c0_167] : memref<1x6x6x10x8xbf16, #tpu.memory_space<vmem>>, vector<1x4x4x8x8xbf16>
      %147 = vector.shape_cast %146 : vector<1x4x4x8x8xbf16> to vector<4x4x8x8xbf16>
      %148 = vector.shape_cast %147 : vector<4x4x8x8xbf16> to vector<128x8xbf16>
      %c19 = arith.constant 19 : index
      %c0_168 = arith.constant 0 : index
      %c0_169 = arith.constant 0 : index
      %149 = vector.load %arg3[%c19, %c0_168, %c0_169] : memref<27x8x8xbf16, #tpu.memory_space<vmem>>, vector<1x8x8xbf16>
      %150 = vector.shape_cast %149 : vector<1x8x8xbf16> to vector<8x8xbf16>
      %cst_170 = arith.constant dense<0.000000e+00> : vector<128x8xf32>
      %151 = tpu.matmul %148, %150, %cst_170 {dimension_numbers = #tpu.dot_dimension_numbers<[1], [0], [0], [1], [0, 0, 1, 1], [], []>} : vector<128x8xbf16>, vector<8x8xbf16>, vector<128x8xf32> -> vector<128x8xf32>
      %152 = arith.addf %145, %151 : vector<128x8xf32>
      %c0_171 = arith.constant 0 : index
      %c2_172 = arith.constant 2 : index
      %c0_173 = arith.constant 0 : index
      %c2_174 = arith.constant 2 : index
      %c0_175 = arith.constant 0 : index
      %153 = vector.load %arg2[%c0_171, %c2_172, %c0_173, %c2_174, %c0_175] : memref<1x6x6x10x8xbf16, #tpu.memory_space<vmem>>, vector<1x4x4x8x8xbf16>
      %154 = vector.shape_cast %153 : vector<1x4x4x8x8xbf16> to vector<4x4x8x8xbf16>
      %155 = vector.shape_cast %154 : vector<4x4x8x8xbf16> to vector<128x8xbf16>
      %c20 = arith.constant 20 : index
      %c0_176 = arith.constant 0 : index
      %c0_177 = arith.constant 0 : index
      %156 = vector.load %arg3[%c20, %c0_176, %c0_177] : memref<27x8x8xbf16, #tpu.memory_space<vmem>>, vector<1x8x8xbf16>
      %157 = vector.shape_cast %156 : vector<1x8x8xbf16> to vector<8x8xbf16>
      %cst_178 = arith.constant dense<0.000000e+00> : vector<128x8xf32>
      %158 = tpu.matmul %155, %157, %cst_178 {dimension_numbers = #tpu.dot_dimension_numbers<[1], [0], [0], [1], [0, 0, 1, 1], [], []>} : vector<128x8xbf16>, vector<8x8xbf16>, vector<128x8xf32> -> vector<128x8xf32>
      %159 = arith.addf %152, %158 : vector<128x8xf32>
      %c0_179 = arith.constant 0 : index
      %c2_180 = arith.constant 2 : index
      %c1_181 = arith.constant 1 : index
      %c0_182 = arith.constant 0 : index
      %c0_183 = arith.constant 0 : index
      %160 = vector.load %arg2[%c0_179, %c2_180, %c1_181, %c0_182, %c0_183] : memref<1x6x6x10x8xbf16, #tpu.memory_space<vmem>>, vector<1x4x4x8x8xbf16>
      %161 = vector.shape_cast %160 : vector<1x4x4x8x8xbf16> to vector<4x4x8x8xbf16>
      %162 = vector.shape_cast %161 : vector<4x4x8x8xbf16> to vector<128x8xbf16>
      %c21 = arith.constant 21 : index
      %c0_184 = arith.constant 0 : index
      %c0_185 = arith.constant 0 : index
      %163 = vector.load %arg3[%c21, %c0_184, %c0_185] : memref<27x8x8xbf16, #tpu.memory_space<vmem>>, vector<1x8x8xbf16>
      %164 = vector.shape_cast %163 : vector<1x8x8xbf16> to vector<8x8xbf16>
      %cst_186 = arith.constant dense<0.000000e+00> : vector<128x8xf32>
      %165 = tpu.matmul %162, %164, %cst_186 {dimension_numbers = #tpu.dot_dimension_numbers<[1], [0], [0], [1], [0, 0, 1, 1], [], []>} : vector<128x8xbf16>, vector<8x8xbf16>, vector<128x8xf32> -> vector<128x8xf32>
      %166 = arith.addf %159, %165 : vector<128x8xf32>
      %c0_187 = arith.constant 0 : index
      %c2_188 = arith.constant 2 : index
      %c1_189 = arith.constant 1 : index
      %c1_190 = arith.constant 1 : index
      %c0_191 = arith.constant 0 : index
      %167 = vector.load %arg2[%c0_187, %c2_188, %c1_189, %c1_190, %c0_191] : memref<1x6x6x10x8xbf16, #tpu.memory_space<vmem>>, vector<1x4x4x8x8xbf16>
      %168 = vector.shape_cast %167 : vector<1x4x4x8x8xbf16> to vector<4x4x8x8xbf16>
      %169 = vector.shape_cast %168 : vector<4x4x8x8xbf16> to vector<128x8xbf16>
      %c22 = arith.constant 22 : index
      %c0_192 = arith.constant 0 : index
      %c0_193 = arith.constant 0 : index
      %170 = vector.load %arg3[%c22, %c0_192, %c0_193] : memref<27x8x8xbf16, #tpu.memory_space<vmem>>, vector<1x8x8xbf16>
      %171 = vector.shape_cast %170 : vector<1x8x8xbf16> to vector<8x8xbf16>
      %cst_194 = arith.constant dense<0.000000e+00> : vector<128x8xf32>
      %172 = tpu.matmul %169, %171, %cst_194 {dimension_numbers = #tpu.dot_dimension_numbers<[1], [0], [0], [1], [0, 0, 1, 1], [], []>} : vector<128x8xbf16>, vector<8x8xbf16>, vector<128x8xf32> -> vector<128x8xf32>
      %173 = arith.addf %166, %172 : vector<128x8xf32>
      %c0_195 = arith.constant 0 : index
      %c2_196 = arith.constant 2 : index
      %c1_197 = arith.constant 1 : index
      %c2_198 = arith.constant 2 : index
      %c0_199 = arith.constant 0 : index
      %174 = vector.load %arg2[%c0_195, %c2_196, %c1_197, %c2_198, %c0_199] : memref<1x6x6x10x8xbf16, #tpu.memory_space<vmem>>, vector<1x4x4x8x8xbf16>
      %175 = vector.shape_cast %174 : vector<1x4x4x8x8xbf16> to vector<4x4x8x8xbf16>
      %176 = vector.shape_cast %175 : vector<4x4x8x8xbf16> to vector<128x8xbf16>
      %c23 = arith.constant 23 : index
      %c0_200 = arith.constant 0 : index
      %c0_201 = arith.constant 0 : index
      %177 = vector.load %arg3[%c23, %c0_200, %c0_201] : memref<27x8x8xbf16, #tpu.memory_space<vmem>>, vector<1x8x8xbf16>
      %178 = vector.shape_cast %177 : vector<1x8x8xbf16> to vector<8x8xbf16>
      %cst_202 = arith.constant dense<0.000000e+00> : vector<128x8xf32>
      %179 = tpu.matmul %176, %178, %cst_202 {dimension_numbers = #tpu.dot_dimension_numbers<[1], [0], [0], [1], [0, 0, 1, 1], [], []>} : vector<128x8xbf16>, vector<8x8xbf16>, vector<128x8xf32> -> vector<128x8xf32>
      %180 = arith.addf %173, %179 : vector<128x8xf32>
      %c0_203 = arith.constant 0 : index
      %c2_204 = arith.constant 2 : index
      %c2_205 = arith.constant 2 : index
      %c0_206 = arith.constant 0 : index
      %c0_207 = arith.constant 0 : index
      %181 = vector.load %arg2[%c0_203, %c2_204, %c2_205, %c0_206, %c0_207] : memref<1x6x6x10x8xbf16, #tpu.memory_space<vmem>>, vector<1x4x4x8x8xbf16>
      %182 = vector.shape_cast %181 : vector<1x4x4x8x8xbf16> to vector<4x4x8x8xbf16>
      %183 = vector.shape_cast %182 : vector<4x4x8x8xbf16> to vector<128x8xbf16>
      %c24 = arith.constant 24 : index
      %c0_208 = arith.constant 0 : index
      %c0_209 = arith.constant 0 : index
      %184 = vector.load %arg3[%c24, %c0_208, %c0_209] : memref<27x8x8xbf16, #tpu.memory_space<vmem>>, vector<1x8x8xbf16>
      %185 = vector.shape_cast %184 : vector<1x8x8xbf16> to vector<8x8xbf16>
      %cst_210 = arith.constant dense<0.000000e+00> : vector<128x8xf32>
      %186 = tpu.matmul %183, %185, %cst_210 {dimension_numbers = #tpu.dot_dimension_numbers<[1], [0], [0], [1], [0, 0, 1, 1], [], []>} : vector<128x8xbf16>, vector<8x8xbf16>, vector<128x8xf32> -> vector<128x8xf32>
      %187 = arith.addf %180, %186 : vector<128x8xf32>
      %c0_211 = arith.constant 0 : index
      %c2_212 = arith.constant 2 : index
      %c2_213 = arith.constant 2 : index
      %c1_214 = arith.constant 1 : index
      %c0_215 = arith.constant 0 : index
      %188 = vector.load %arg2[%c0_211, %c2_212, %c2_213, %c1_214, %c0_215] : memref<1x6x6x10x8xbf16, #tpu.memory_space<vmem>>, vector<1x4x4x8x8xbf16>
      %189 = vector.shape_cast %188 : vector<1x4x4x8x8xbf16> to vector<4x4x8x8xbf16>
      %190 = vector.shape_cast %189 : vector<4x4x8x8xbf16> to vector<128x8xbf16>
      %c25 = arith.constant 25 : index
      %c0_216 = arith.constant 0 : index
      %c0_217 = arith.constant 0 : index
      %191 = vector.load %arg3[%c25, %c0_216, %c0_217] : memref<27x8x8xbf16, #tpu.memory_space<vmem>>, vector<1x8x8xbf16>
      %192 = vector.shape_cast %191 : vector<1x8x8xbf16> to vector<8x8xbf16>
      %cst_218 = arith.constant dense<0.000000e+00> : vector<128x8xf32>
      %193 = tpu.matmul %190, %192, %cst_218 {dimension_numbers = #tpu.dot_dimension_numbers<[1], [0], [0], [1], [0, 0, 1, 1], [], []>} : vector<128x8xbf16>, vector<8x8xbf16>, vector<128x8xf32> -> vector<128x8xf32>
      %194 = arith.addf %187, %193 : vector<128x8xf32>
      %c0_219 = arith.constant 0 : index
      %c2_220 = arith.constant 2 : index
      %c2_221 = arith.constant 2 : index
      %c2_222 = arith.constant 2 : index
      %c0_223 = arith.constant 0 : index
      %195 = vector.load %arg2[%c0_219, %c2_220, %c2_221, %c2_222, %c0_223] : memref<1x6x6x10x8xbf16, #tpu.memory_space<vmem>>, vector<1x4x4x8x8xbf16>
      %196 = vector.shape_cast %195 : vector<1x4x4x8x8xbf16> to vector<4x4x8x8xbf16>
      %197 = vector.shape_cast %196 : vector<4x4x8x8xbf16> to vector<128x8xbf16>
      %c26 = arith.constant 26 : index
      %c0_224 = arith.constant 0 : index
      %c0_225 = arith.constant 0 : index
      %198 = vector.load %arg3[%c26, %c0_224, %c0_225] : memref<27x8x8xbf16, #tpu.memory_space<vmem>>, vector<1x8x8xbf16>
      %199 = vector.shape_cast %198 : vector<1x8x8xbf16> to vector<8x8xbf16>
      %cst_226 = arith.constant dense<0.000000e+00> : vector<128x8xf32>
      %200 = tpu.matmul %197, %199, %cst_226 {dimension_numbers = #tpu.dot_dimension_numbers<[1], [0], [0], [1], [0, 0, 1, 1], [], []>} : vector<128x8xbf16>, vector<8x8xbf16>, vector<128x8xf32> -> vector<128x8xf32>
      %201 = arith.addf %194, %200 : vector<128x8xf32>
      %c0_227 = arith.constant 0 : index
      %c0_228 = arith.constant 0 : index
      %202 = vector.load %arg4[%c0_227, %c0_228] : memref<1x8xf32, #tpu.memory_space<vmem>>, vector<1x8xf32>
      %203 = vector.broadcast %202 : vector<1x8xf32> to vector<128x8xf32>
      %204 = arith.addf %201, %203 : vector<128x8xf32>
      %205 = arith.truncf %204 : vector<128x8xf32> to vector<128x8xbf16>
      %206 = tpu.transpose %204, [1, 0] : vector<128x8xf32> -> vector<8x128xf32>
      %207 = arith.truncf %206 : vector<8x128xf32> to vector<8x128xbf16>
      %cst_229 = arith.constant dense<0.000000e+00> : vector<8x8xf32>
      %208 = tpu.matmul %207, %205, %cst_229 {dimension_numbers = #tpu.dot_dimension_numbers<[1], [0], [0], [1], [0, 0, 1, 1], [], []>} : vector<8x128xbf16>, vector<128x8xbf16>, vector<8x8xf32> -> vector<8x8xf32>
      %cst_230 = arith.constant 0.0883883461 : f32
      %209 = vector.broadcast %cst_230 : f32 to vector<8x8xf32>
      %210 = arith.mulf %208, %209 : vector<8x8xf32>
      %cst_231 = arith.constant dense<0xFF800000> : vector<8xf32>
      %211 = vector.multi_reduction <maximumf>, %210, %cst_231 [1] : vector<8x8xf32> to vector<8xf32>
      %212 = vector.shape_cast %211 : vector<8xf32> to vector<8x1xf32>
      %213 = vector.broadcast %212 : vector<8x1xf32> to vector<8x8xf32>
      %214 = arith.subf %210, %213 : vector<8x8xf32>
      %215 = math.exp %214 : vector<8x8xf32>
      %cst_232 = arith.constant dense<0.000000e+00> : vector<8xf32>
      %216 = vector.multi_reduction <add>, %215, %cst_232 [1] : vector<8x8xf32> to vector<8xf32>
      %217 = vector.shape_cast %216 : vector<8xf32> to vector<8x1xf32>
      %218 = tpu.reciprocal %217 {approx = true} : vector<8x1xf32> -> vector<8x1xf32>
      %219 = vector.broadcast %218 : vector<8x1xf32> to vector<8x8xf32>
      %220 = arith.mulf %215, %219 : vector<8x8xf32>
      %221 = arith.truncf %220 : vector<8x8xf32> to vector<8x8xbf16>
      %cst_233 = arith.constant dense<0.000000e+00> : vector<8x128xf32>
      %222 = tpu.matmul %221, %207, %cst_233 {dimension_numbers = #tpu.dot_dimension_numbers<[1], [0], [0], [1], [0, 0, 1, 1], [], []>} : vector<8x8xbf16>, vector<8x128xbf16>, vector<8x128xf32> -> vector<8x128xf32>
      %223 = arith.truncf %222 : vector<8x128xf32> to vector<8x128xbf16>
      %c0_234 = arith.constant 0 : index
      %c0_235 = arith.constant 0 : index
      %224 = vector.load %arg8[%c0_234, %c0_235] : memref<8x128xbf16, #tpu.memory_space<vmem>>, vector<8x128xbf16>
      tpu.vector_store %arg8[%c0_234, %c0_235], %223 {strides = array<i32>} : memref<8x128xbf16, #tpu.memory_space<vmem>>, vector<8x128xbf16>,
    } else {
    }
    %c0 = arith.constant 0 : index
    %c0_1 = arith.constant 0 : index
    %3 = vector.load %arg8[%c0, %c0_1] : memref<8x128xbf16, #tpu.memory_space<vmem>>, vector<8x128xbf16>
    %c0_2 = arith.constant 0 : index
    %c0_3 = arith.constant 0 : index
    %4 = vector.load %arg5[%c0_2, %c0_3] : memref<128x128xbf16, #tpu.memory_space<vmem>>, vector<128x128xbf16>
    %cst = arith.constant dense<0.000000e+00> : vector<8x128xf32>
    %5 = tpu.matmul %3, %4, %cst {dimension_numbers = #tpu.dot_dimension_numbers<[1], [0], [0], [1], [0, 0, 1, 1], [], []>} : vector<8x128xbf16>, vector<128x128xbf16>, vector<8x128xf32> -> vector<8x128xf32>
    %c0_4 = arith.constant 0 : index
    %c0_5 = arith.constant 0 : index
    %6 = vector.load %arg6[%c0_4, %c0_5] : memref<1x128xf32, #tpu.memory_space<vmem>>, vector<1x128xf32>
    %7 = vector.broadcast %6 : vector<1x128xf32> to vector<8x128xf32>
    %8 = arith.addf %5, %7 : vector<8x128xf32>
    %c0_6 = arith.constant 0 : index
    %c0_7 = arith.constant 0 : index
    %c0_8 = arith.constant 0 : index
    %9 = vector.load %arg7[%c0_6, %c0_7, %c0_8] : memref<1x8x128xf32, #tpu.memory_space<vmem>>, vector<1x8x128xf32>
    %10 = vector.shape_cast %9 : vector<1x8x128xf32> to vector<8x128xf32>
    %11 = vector.shape_cast %8 : vector<8x128xf32> to vector<1x8x128xf32>
    tpu.vector_store %arg7[%c0_6, %c0_7, %c0_8], %11 {strides = array<i32>} : memref<1x8x128xf32, #tpu.memory_space<vmem>>, vector<1x8x128xf32>,
    return
  }
  func.func @transform_0(%arg0: i32, %arg1: i32) -> (i32, i32, i32, i32, i32) {
    %c0_i32 = arith.constant 0 : i32
    %c0_i32_0 = arith.constant 0 : i32
    %c0_i32_1 = arith.constant 0 : i32
    %c0_i32_2 = arith.constant 0 : i32
    %c0_i32_3 = arith.constant 0 : i32
    return %arg0, %c0_i32, %c0_i32_0, %c0_i32_1, %c0_i32_2 : i32, i32, i32, i32, i32
  }
  func.func @transform_1(%arg0: i32, %arg1: i32) -> (i32, i32, i32) {
    %c0_i32 = arith.constant 0 : i32
    %c0_i32_0 = arith.constant 0 : i32
    %c0_i32_1 = arith.constant 0 : i32
    %c0_i32_2 = arith.constant 0 : i32
    return %c0_i32, %c0_i32_0, %c0_i32_1 : i32, i32, i32
  }
  func.func @transform_2(%arg0: i32, %arg1: i32) -> (i32, i32) {
    %c0_i32 = arith.constant 0 : i32
    %c0_i32_0 = arith.constant 0 : i32
    %c0_i32_1 = arith.constant 0 : i32
    return %c0_i32, %c0_i32_0 : i32, i32
  }
  func.func @transform_3(%arg0: i32, %arg1: i32) -> (i32, i32) {
    %c0_i32 = arith.constant 0 : i32
    %c0_i32_0 = arith.constant 0 : i32
    return %c0_i32, %arg1 : i32, i32
  }
  func.func @transform_4(%arg0: i32, %arg1: i32) -> (i32, i32) {
    %c0_i32 = arith.constant 0 : i32
    %c0_i32_0 = arith.constant 0 : i32
    return %c0_i32, %arg1 : i32, i32
  }
  func.func @transform_5(%arg0: i32, %arg1: i32) -> (i32, i32, i32) {
    %c0_i32 = arith.constant 0 : i32
    %c0_i32_0 = arith.constant 0 : i32
    return %arg0, %c0_i32, %arg1 : i32, i32, i32
  }
}

</mosaic_0001>

<llo_original>
// kernel: tpu_custom_call.1
$region0: #{tpu_custom_call.1}
  #allocation0 [shape = 'u32[]', space=smem, size = 0x4, offset = 0x4, fixed_abs, tag = 'smem constant byte address 0x4 - core index']
  #allocation1 [shape = 'u32[144,128]{1,0:T(1,128)}', space=vmem, size = 0x12000, scoped, tag = 'internal scratch']
  #allocation2 [shape = 'bf16[8,128]{1,0:T(8,128)(2,1)}', space=vmem, size = 0x800, scoped, tag = 'scratch operand']
  %s0 = inlined_call_operand.vmem [shape: bf16[2,6,6,10,8], index: 0, kind: input, shape index: {}]
  %s1 = inlined_call_operand.vmem [shape: bf16[27,8,8], index: 1, kind: input, shape index: {}]
  %s2 = inlined_call_operand.vmem [shape: f32[1,8], index: 2, kind: input, shape index: {}]
  %s3 = inlined_call_operand.vmem [shape: bf16[128,128], index: 3, kind: input, shape index: {}]
  %s4 = inlined_call_operand.vmem [shape: f32[1,128], index: 4, kind: input, shape index: {}]
  %s5 = inlined_call_operand.hbm [shape: f32[2,8,128], index: 5, kind: output, shape index: {}]
  %s6 = sld [smem:[#allocation0]]
  $region57: #{tpu_custom_call.1} parent=0
    _
  %s8 = ssub.s32 1, %s6
  %s9 = scalar_select 0, %s8, %s6
  $region1: #{tpu_custom_call.1} parent=0
    #allocation3 [shape = 'u8[8192]{0}', space=vmem, size = 0x2000, scoped, tag = 'output window, operand 0']
    #allocation4 [shape = 's32[2]{0}', space=sflag, size = 0x8, scoped, tag = 'scoped memory for tpu_custom_call.1']
    %10 = vsyncpa [#allocation4], 0
    %s11 = scalar_lea.sflag [#allocation4], 1
    %12 = vsyncpa %s11, 0
    loop: start=0, step=1, limit=4
    $region2: #{tpu_custom_call.1} parent=1 // loop_pre_header
      _
    $region3: #{tpu_custom_call.1} parent=1 // loop_header
      %s14 = sphi 0, %s18
      %p15 = scmp.ge.s32.totalorder %s14, 4
      %s21 = sphi 0, %s33
      %s22 = sphi 0, %s29
      %s23 = sphi 0, %s21
      %s24 = sphi 0, %s22
      %s25 = sphi 0, %s23
      %s26 = sphi 0, %s24
      %s36 = sphi 0, %s38
      %s39 = sphi 0, %s36
      %s40 = sphi 0, %s39
      %s56 = sphi 0, %s40
      %s60 = sphi 0, %s60
      %s62 = sphi 0, %s60
      %s63 = sphi 0, %s62
      %s77 = sphi 0, %s63
      %s81 = sphi 0, %s81
      %s83 = sphi 0, %s81
      %s84 = sphi 0, %s83
      %s98 = sphi 0, %s84
      %s104 = sphi 0, %s106
      %s107 = sphi 0, %s104
      %s108 = sphi 0, %s107
      %s124 = sphi 0, %s108
      %s130 = sphi 0, %s132
      %s133 = sphi 0, %s130
      %s134 = sphi 0, %s133
      %s150 = sphi 0, %s134
      %s158 = sphi 0, %s160
      %s161 = sphi 0, %s158
      %s162 = sphi 0, %s161
      %s178 = sphi 0, %s162
    $region4: #{tpu_custom_call.1} parent=1 // loop_header_branch
      %17 = sbr.rel (%p15) target = $region8
    $region5: #{tpu_custom_call.1} parent=1 // loop_body
      %s19 = ssub.s32 %s14, 1
      %s20 = ssub.s32 %s14, 2
      %s27 = sadd.s32 1, %s22
      %p28 = scmp.ge.s32.totalorder %s27, 1
      %s29 = scalar_select %p28, 0, %s27
      %s30 = sadd.s32 1, %s21
      %s31 = scalar_select %p28, %s30, %s21
      %p32 = scmp.ge.s32.totalorder %s31, 2
      %s33 = scalar_select %p32, 0, %s31
      %s34 = ssub.s32 %s21, %s33
      %p35 = scmp.eq.s32.totalorder %s34, 0
      %s37 = sadd.s32 %s36, 1
      %s38 = scalar_select %p35, %s36, %s37
      %p41 = pneg %p35
      %p42 = scmp.eq.s32.totalorder %s14, 1
      %p43 = por %p41, %p42
      %p44 = scmp.ne.s32.totalorder %s36, %s39
      %p45 = scmp.eq.s32.totalorder %s14, 0
      %p46 = por %p44, %p45
      %p47 = scmp.ne.s32.totalorder %s36, %s39
      %p48 = scmp.eq.s32.totalorder %s19, 1
      %p49 = por %p47, %p48
      %p50 = scmp.ne.s32.totalorder %s39, %s40
      %p51 = scmp.eq.s32.totalorder %s19, 0
      %p52 = por %p50, %p51
      %p53 = scmp.ne.s32.totalorder %s39, %s40
      %p54 = scmp.eq.s32.totalorder %s20, 1
      %p55 = por %p53, %p54
      %p57 = scmp.ne.s32.totalorder %s40, %s56
      %p58 = scmp.eq.s32.totalorder %s20, 0
      %p59 = por %p57, %p58
      %s61 = sadd.s32 %s60, 1
      %p64 = scmp.eq.s32.totalorder %s14, 1
      %p65 = scmp.ne.s32.totalorder %s60, %s62
      %p66 = scmp.eq.s32.totalorder %s14, 0
      %p67 = por %p65, %p66
      %p68 = scmp.ne.s32.totalorder %s60, %s62
      %p69 = scmp.eq.s32.totalorder %s19, 1
      %p70 = por %p68, %p69
      %p71 = scmp.ne.s32.totalorder %s62, %s63
      %p72 = scmp.eq.s32.totalorder %s19, 0
      %p73 = por %p71, %p72
      %p74 = scmp.ne.s32.totalorder %s62, %s63
      %p75 = scmp.eq.s32.totalorder %s20, 1
      %p76 = por %p74, %p75
      %p78 = scmp.ne.s32.totalorder %s63, %s77
      %p79 = scmp.eq.s32.totalorder %s20, 0
      %p80 = por %p78, %p79
      %s82 = sadd.s32 %s81, 1
      %p85 = scmp.eq.s32.totalorder %s14, 1
      %p86 = scmp.ne.s32.totalorder %s81, %s83
      %p87 = scmp.eq.s32.totalorder %s14, 0
      %p88 = por %p86, %p87
      %p89 = scmp.ne.s32.totalorder %s81, %s83
      %p90 = scmp.eq.s32.totalorder %s19, 1
      %p91 = por %p89, %p90
      %p92 = scmp.ne.s32.totalorder %s83, %s84
      %p93 = scmp.eq.s32.totalorder %s19, 0
      %p94 = por %p92, %p93
      %p95 = scmp.ne.s32.totalorder %s83, %s84
      %p96 = scmp.eq.s32.totalorder %s20, 1
      %p97 = por %p95, %p96
      %p99 = scmp.ne.s32.totalorder %s84, %s98
      %p100 = scmp.eq.s32.totalorder %s20, 0
      %p101 = por %p99, %p100
      %s102 = ssub.s32 %s22, %s29
      %p103 = scmp.eq.s32.totalorder %s102, 0
      %s105 = sadd.s32 %s104, 1
      %s106 = scalar_select %p103, %s104, %s105
      %p109 = pneg %p103
      %p110 = scmp.eq.s32.totalorder %s14, 1
      %p111 = por %p109, %p110
      %p112 = scmp.ne.s32.totalorder %s104, %s107
      %p113 = scmp.eq.s32.totalorder %s14, 0
      %p114 = por %p112, %p113
      %p115 = scmp.ne.s32.totalorder %s104, %s107
      %p116 = scmp.eq.s32.totalorder %s19, 1
      %p117 = por %p115, %p116
      %p118 = scmp.ne.s32.totalorder %s107, %s108
      %p119 = scmp.eq.s32.totalorder %s19, 0
      %p120 = por %p118, %p119
      %p121 = scmp.ne.s32.totalorder %s107, %s108
      %p122 = scmp.eq.s32.totalorder %s20, 1
      %p123 = por %p121, %p122
      %p125 = scmp.ne.s32.totalorder %s108, %s124
      %p126 = scmp.eq.s32.totalorder %s20, 0
      %p127 = por %p125, %p126
      %s128 = ssub.s32 %s22, %s29
      %p129 = scmp.eq.s32.totalorder %s128, 0
      %s131 = sadd.s32 %s130, 1
      %s132 = scalar_select %p129, %s130, %s131
      %p135 = pneg %p129
      %p136 = scmp.eq.s32.totalorder %s14, 1
      %p137 = por %p135, %p136
      %p138 = scmp.ne.s32.totalorder %s130, %s133
      %p139 = scmp.eq.s32.totalorder %s14, 0
      %p140 = por %p138, %p139
      %p141 = scmp.ne.s32.totalorder %s130, %s133
      %p142 = scmp.eq.s32.totalorder %s19, 1
      %p143 = por %p141, %p142
      %p144 = scmp.ne.s32.totalorder %s133, %s134
      %p145 = scmp.eq.s32.totalorder %s19, 0
      %p146 = por %p144, %p145
      %p147 = scmp.ne.s32.totalorder %s133, %s134
      %p148 = scmp.eq.s32.totalorder %s20, 1
      %p149 = por %p147, %p148
      %p151 = scmp.ne.s32.totalorder %s134, %s150
      %p152 = scmp.eq.s32.totalorder %s20, 0
      %p153 = por %p151, %p152
      %s154 = ssub.s32 %s21, %s33
      %s155 = ssub.s32 %s22, %s29
      %s156 = sor.u32 %s154, %s155
      %p157 = scmp.eq.s32.totalorder %s156, 0
      %s159 = sadd.s32 %s158, 1
      %s160 = scalar_select %p157, %s158, %s159
      %p163 = pneg %p157
      %p164 = scmp.eq.s32.totalorder %s14, 1
      %p165 = por %p163, %p164
      %p166 = scmp.ne.s32.totalorder %s158, %s161
      %p167 = scmp.eq.s32.totalorder %s14, 0
      %p168 = por %p166, %p167
      %p169 = scmp.ne.s32.totalorder %s158, %s161
      %p170 = scmp.eq.s32.totalorder %s19, 1
      %p171 = por %p169, %p170
      %p172 = scmp.ne.s32.totalorder %s161, %s162
      %p173 = scmp.eq.s32.totalorder %s19, 0
      %p174 = por %p172, %p173
      %p175 = scmp.ne.s32.totalorder %s161, %s162
      %p176 = scmp.eq.s32.totalorder %s20, 1
      %p177 = por %p175, %p176
      %p179 = scmp.ne.s32.totalorder %s162, %s178
      %p180 = scmp.eq.s32.totalorder %s20, 0
      %p181 = por %p179, %p180
      %p182 = scmp.le.s32.totalorder 1, %s14
      %p183 = scmp.lt.s32.totalorder %s14, 3
      %p184 = pnand %p182, %p183
      %p185 = pneg %p184
      // Predicated region
      $region9: #{tpu_custom_call.1} parent=5 // pred_check
        _
      $region10: #{tpu_custom_call.1} parent=5 // pred_check_branch
        %187 = sbr.rel (%p184) target = $region12
      $region11: #{tpu_custom_call.1} parent=5 // pred_region
        %s188 = ssub.s32 %s14, 1
        // Predicated region
        $region13: #{tpu_custom_call.1} parent=11 // pred_check
          %p189 = pneg %p73
        $region14: #{tpu_custom_call.1} parent=11 // pred_check_branch
          %191 = sbr.rel (%p189) target = $region16
        $region15: #{tpu_custom_call.1} parent=11 // pred_region
          _
        $region16: #{tpu_custom_call.1} parent=11 // pred_fallthru
          _
        // Predicated region
        $region17: #{tpu_custom_call.1} parent=11 // pred_check
          %p192 = pneg %p94
        $region18: #{tpu_custom_call.1} parent=11 // pred_check_branch
          %194 = sbr.rel (%p192) target = $region20
        $region19: #{tpu_custom_call.1} parent=11 // pred_region
          _
        $region20: #{tpu_custom_call.1} parent=11 // pred_fallthru
          _
        // Predicated region
        $region21: #{tpu_custom_call.1} parent=11 // pred_check
          %p195 = pneg %p120
        $region22: #{tpu_custom_call.1} parent=11 // pred_check_branch
          %197 = sbr.rel (%p195) target = $region24
        $region23: #{tpu_custom_call.1} parent=11 // pred_region
          %p198 = scmp.lt.s32.totalorder %s24, 0
          %s199 = scalar_select %p198, %s24, 0
          %s200 = smul.addr %s199, 4
          %s201 = scalar_lea.vmem %s3, %s200
        $region24: #{tpu_custom_call.1} parent=11 // pred_fallthru
          _
        // Predicated region
        $region25: #{tpu_custom_call.1} parent=11 // pred_check
          %p202 = pneg %p146
        $region26: #{tpu_custom_call.1} parent=11 // pred_check_branch
          %204 = sbr.rel (%p202) target = $region28
        $region27: #{tpu_custom_call.1} parent=11 // pred_region
          %p205 = scmp.lt.s32.totalorder %s24, 0
          %s206 = scalar_select %p205, %s24, 0
          %s207 = scalar_lea.vmem %s4, %s206
        $region28: #{tpu_custom_call.1} parent=11 // pred_fallthru
          _
      $region12: #{tpu_custom_call.1} parent=5 // pred_fallthru
        _
      %p208 = scmp.lt.s32.totalorder %s14, 2
      // Predicated region
      $region29: #{tpu_custom_call.1} parent=5 // pred_check
        %p209 = pneg %p208
      $region30: #{tpu_custom_call.1} parent=5 // pred_check_branch
        %211 = sbr.rel (%p209) target = $region32
      $region31: #{tpu_custom_call.1} parent=5 // pred_region
        // Predicated region
        $region33: #{tpu_custom_call.1} parent=31 // pred_check
          %p212 = pneg %p46
        $region34: #{tpu_custom_call.1} parent=31 // pred_check_branch
          %214 = sbr.rel (%p212) target = $region36
        $region35: #{tpu_custom_call.1} parent=31 // pred_region
          %p215 = scmp.lt.s32.totalorder %s21, 1
          %s216 = scalar_select %p215, %s21, 1
          %s217 = smul.addr %s216, 72
          %s218 = smul.addr %s217, 4
          %s219 = scalar_lea.vmem %s0, %s218
        $region36: #{tpu_custom_call.1} parent=31 // pred_fallthru
          _
      $region32: #{tpu_custom_call.1} parent=5 // pred_fallthru
        _
      %p220 = scmp.le.s32.totalorder 1, %s14
      %p221 = scmp.lt.s32.totalorder %s14, 3
      %p222 = pnand %p220, %p221
      %p223 = pneg %p222
      // Predicated region
      $region37: #{tpu_custom_call.1} parent=5 // pred_check
        _
      $region38: #{tpu_custom_call.1} parent=5 // pred_check_branch
        %225 = sbr.rel (%p222) target = $region40
      $region39: #{tpu_custom_call.1} parent=5 // pred_region
        %s226 = ssub.s32 %s14, 1
        %p227 = scmp.lt.s32.totalorder %s23, 1
        %s228 = scalar_select %p227, %s23, 1
        %s229 = smul.addr %s228, 72
        %s230 = smul.addr %s229, 4
        %s231 = scalar_lea.vmem %s0, %s230
        %p232 = pneg %p52
        %p233 = pneg %p49
        %p234 = pneg %p73
        %p235 = pneg %p70
        %p236 = pneg %p94
        %p237 = pneg %p91
        %p238 = scmp.lt.s32.totalorder %s24, 0
        %s239 = scalar_select %p238, %s24, 0
        %s240 = smul.addr %s239, 4
        %s241 = scalar_lea.vmem %s3, %s240
        %p242 = pneg %p120
        %p243 = pneg %p117
        %p244 = scmp.lt.s32.totalorder %s24, 0
        %s245 = scalar_select %p244, %s24, 0
        %s246 = scalar_lea.vmem %s4, %s245
        %p247 = pneg %p146
        %p248 = pneg %p143
        %p249 = pneg %p174
        %p250 = pneg %p171
        %s251 = sand.u32 %s161, 1
        %s252 = scalar_lea.sflag [#allocation4], %s251
        %s253 = sand.u32 %s161, 1
        %s254 = smul.addr %s253, 8
        %s255 = scalar_lea.vmem [#allocation3], %s254
        %p256 = scmp.lt.s32.totalorder %s23, 1
        %s257 = scalar_select %p256, %s23, 1
        %s258 = smul.addr %s257, 72
        %s259 = smul.addr %s258, 4
        %s260 = scalar_lea.vmem %s0, %s259
        %p261 = scmp.lt.s32.totalorder %s24, 0
        %s262 = scalar_select %p261, %s24, 0
        %s263 = smul.addr %s262, 4
        %s264 = scalar_lea.vmem %s3, %s263
        %p265 = scmp.lt.s32.totalorder %s24, 0
        %s266 = scalar_select %p265, %s24, 0
        %s267 = scalar_lea.vmem %s4, %s266
        %p269 = scmp.eq.s32.totalorder %s24, 0
        // Predicated region
        $region41: #{tpu_custom_call.1} parent=39 // pred_check
          %p270 = pneg %p269
        $region42: #{tpu_custom_call.1} parent=39 // pred_check_branch
          %272 = sbr.rel (%p270) target = $region44
        $region43: #{tpu_custom_call.1} parent=39 // pred_region
          %v273 = vld [vmem:[%s260] sm:$0xf]
          %v274 = vld [vmem:[%s260 + $0x8] sm:$0xf]
          %v275 = vld [vmem:[%s260 + $0x10] sm:$0xf]
          %v276 = vld [vmem:[%s260 + $0x18] sm:$0xf]
          %v277 = vld [vmem:[%s260 + $0x30] sm:$0xf]
          %v278 = vld [vmem:[%s260 + $0x38] sm:$0xf]
          %v279 = vld [vmem:[%s260 + $0x40] sm:$0xf]
          %v280 = vld [vmem:[%s260 + $0x48] sm:$0xf]
          %v281 = vld [vmem:[%s260 + $0x60] sm:$0xf]
          %v282 = vld [vmem:[%s260 + $0x68] sm:$0xf]
          %v283 = vld [vmem:[%s260 + $0x70] sm:$0xf]
          %v284 = vld [vmem:[%s260 + $0x78] sm:$0xf]
          %v285 = vld [vmem:[%s260 + $0x90] sm:$0xf]
          %v286 = vld [vmem:[%s260 + $0x98] sm:$0xf]
          %v287 = vld [vmem:[%s260 + $0xa0] sm:$0xf]
          %v288 = vld [vmem:[%s260 + $0xa8] sm:$0xf]
          %v289 = vld [vmem:[%s1] sm:$0xf]
          %v290 = vld [vmem:[%s260 + $0x4] sm:$0x1]
          %v291 = vld [vmem:[%s260 + $0xc] sm:$0x1]
          %v292 = vld [vmem:[%s260 + $0x14] sm:$0x1]
          %v293 = vld [vmem:[%s260 + $0x1c] sm:$0x1]
          %v294 = vld [vmem:[%s260 + $0x34] sm:$0x1]
          %v295 = vld [vmem:[%s260 + $0x3c] sm:$0x1]
          %v296 = vld [vmem:[%s260 + $0x44] sm:$0x1]
          %v297 = vld [vmem:[%s260 + $0x4c] sm:$0x1]
          %v298 = vld [vmem:[%s260 + $0x64] sm:$0x1]
          %v299 = vld [vmem:[%s260 + $0x6c] sm:$0x1]
          %v300 = vld [vmem:[%s260 + $0x74] sm:$0x1]
          %v301 = vld [vmem:[%s260 + $0x7c] sm:$0x1]
          %v302 = vld [vmem:[%s260 + $0x94] sm:$0x1]
          %v303 = vld [vmem:[%s260 + $0x9c] sm:$0x1]
          %v304 = vld [vmem:[%s260 + $0xa4] sm:$0x1]
          %v305 = vld [vmem:[%s260 + $0xac] sm:$0x1]
          %vm306 = vsmask.f32 3328
          %vm307 = vsmask.f32 7440
          %vm308 = vmor %vm306, %vm307
          %v310 = vshrl.u32 %v273, 16
          %v312 = vrot.slane %v310, 4
          %v313 = vshll.u32 %v273, 16
          %v315 = vrot.slane %v313, 5
          %v316 = vor.u32 %v312, %v315
          %v317 = vrot.slane %v316, 4
          %v319 = vshll.u32 %v290, 16
          %v321 = vrot.slane %v319, 5
          %v322 = vsel %vm308, %v317, %v321
          %v324 = vshrl.u32 %v274, 16
          %v326 = vrot.slane %v324, 4
          %v327 = vshll.u32 %v274, 16
          %v329 = vrot.slane %v327, 5
          %v330 = vor.u32 %v326, %v329
          %v331 = vrot.slane %v330, 4
          %v333 = vshll.u32 %v291, 16
          %v335 = vrot.slane %v333, 5
          %v336 = vsel %vm308, %v331, %v335
          %v338 = vshrl.u32 %v275, 16
          %v340 = vrot.slane %v338, 4
          %v341 = vshll.u32 %v275, 16
          %v343 = vrot.slane %v341, 5
          %v344 = vor.u32 %v340, %v343
          %v345 = vrot.slane %v344, 4
          %v347 = vshll.u32 %v292, 16
          %v349 = vrot.slane %v347, 5
          %v350 = vsel %vm308, %v345, %v349
          %v352 = vshrl.u32 %v276, 16
          %v354 = vrot.slane %v352, 4
          %v355 = vshll.u32 %v276, 16
          %v357 = vrot.slane %v355, 5
          %v358 = vor.u32 %v354, %v357
          %v359 = vrot.slane %v358, 4
          %v361 = vshll.u32 %v293, 16
          %v363 = vrot.slane %v361, 5
          %v364 = vsel %vm308, %v359, %v363
          %v366 = vshrl.u32 %v277, 16
          %v368 = vrot.slane %v366, 4
          %v369 = vshll.u32 %v277, 16
          %v371 = vrot.slane %v369, 5
          %v372 = vor.u32 %v368, %v371
          %v373 = vrot.slane %v372, 4
          %v375 = vshll.u32 %v294, 16
          %v377 = vrot.slane %v375, 5
          %v378 = vsel %vm308, %v373, %v377
          %v380 = vshrl.u32 %v278, 16
          %v382 = vrot.slane %v380, 4
          %v383 = vshll.u32 %v278, 16
          %v385 = vrot.slane %v383, 5
          %v386 = vor.u32 %v382, %v385
          %v387 = vrot.slane %v386, 4
          %v389 = vshll.u32 %v295, 16
          %v391 = vrot.slane %v389, 5
          %v392 = vsel %vm308, %v387, %v391
          %v394 = vshrl.u32 %v279, 16
          %v396 = vrot.slane %v394, 4
          %v397 = vshll.u32 %v279, 16
          %v399 = vrot.slane %v397, 5
          %v400 = vor.u32 %v396, %v399
          %v401 = vrot.slane %v400, 4
          %v403 = vshll.u32 %v296, 16
          %v405 = vrot.slane %v403, 5
          %v406 = vsel %vm308, %v401, %v405
          %v408 = vshrl.u32 %v280, 16
          %v410 = vrot.slane %v408, 4
          %v411 = vshll.u32 %v280, 16
          %v413 = vrot.slane %v411, 5
          %v414 = vor.u32 %v410, %v413
          %v415 = vrot.slane %v414, 4
          %v417 = vshll.u32 %v297, 16
          %v419 = vrot.slane %v417, 5
          %v420 = vsel %vm308, %v415, %v419
          %v422 = vshrl.u32 %v281, 16
          %v424 = vrot.slane %v422, 4
          %v425 = vshll.u32 %v281, 16
          %v427 = vrot.slane %v425, 5
          %v428 = vor.u32 %v424, %v427
          %v429 = vrot.slane %v428, 4
          %v431 = vshll.u32 %v298, 16
          %v433 = vrot.slane %v431, 5
          %v434 = vsel %vm308, %v429, %v433
          %v436 = vshrl.u32 %v282, 16
          %v438 = vrot.slane %v436, 4
          %v439 = vshll.u32 %v282, 16
          %v441 = vrot.slane %v439, 5
          %v442 = vor.u32 %v438, %v441
          %v443 = vrot.slane %v442, 4
          %v445 = vshll.u32 %v299, 16
          %v447 = vrot.slane %v445, 5
          %v448 = vsel %vm308, %v443, %v447
          %v450 = vshrl.u32 %v283, 16
          %v452 = vrot.slane %v450, 4
          %v453 = vshll.u32 %v283, 16
          %v455 = vrot.slane %v453, 5
          %v456 = vor.u32 %v452, %v455
          %v457 = vrot.slane %v456, 4
          %v459 = vshll.u32 %v300, 16
          %v461 = vrot.slane %v459, 5
          %v462 = vsel %vm308, %v457, %v461
          %v464 = vshrl.u32 %v284, 16
          %v466 = vrot.slane %v464, 4
          %v467 = vshll.u32 %v284, 16
          %v469 = vrot.slane %v467, 5
          %v470 = vor.u32 %v466, %v469
          %v471 = vrot.slane %v470, 4
          %v473 = vshll.u32 %v301, 16
          %v475 = vrot.slane %v473, 5
          %v476 = vsel %vm308, %v471, %v475
          %v478 = vshrl.u32 %v285, 16
          %v480 = vrot.slane %v478, 4
          %v481 = vshll.u32 %v285, 16
          %v483 = vrot.slane %v481, 5
          %v484 = vor.u32 %v480, %v483
          %v485 = vrot.slane %v484, 4
          %v487 = vshll.u32 %v302, 16
          %v489 = vrot.slane %v487, 5
          %v490 = vsel %vm308, %v485, %v489
          %v492 = vshrl.u32 %v286, 16
          %v494 = vrot.slane %v492, 4
          %v495 = vshll.u32 %v286, 16
          %v497 = vrot.slane %v495, 5
          %v498 = vor.u32 %v494, %v497
          %v499 = vrot.slane %v498, 4
          %v501 = vshll.u32 %v303, 16
          %v503 = vrot.slane %v501, 5
          %v504 = vsel %vm308, %v499, %v503
          %v506 = vshrl.u32 %v287, 16
          %v508 = vrot.slane %v506, 4
          %v509 = vshll.u32 %v287, 16
          %v511 = vrot.slane %v509, 5
          %v512 = vor.u32 %v508, %v511
          %v513 = vrot.slane %v512, 4
          %v515 = vshll.u32 %v304, 16
          %v517 = vrot.slane %v515, 5
          %v518 = vsel %vm308, %v513, %v517
          %v520 = vshrl.u32 %v288, 16
          %v522 = vrot.slane %v520, 4
          %v523 = vshll.u32 %v288, 16
          %v525 = vrot.slane %v523, 5
          %v526 = vor.u32 %v522, %v525
          %v527 = vrot.slane %v526, 4
          %v529 = vshll.u32 %v305, 16
          %v531 = vrot.slane %v529, 5
          %v532 = vsel %vm308, %v527, %v531
          %s533 = scalar_lea.vmem %s1, 4
          %v534 = vld [vmem:[%s533] sm:$0xf]
          %v535 = vunpack.c.l.b16 %v322
          %v536 = vunpack.c.l.b16 %v336
          %v537 = vunpack.c.l.b16 %v350
          %v538 = vunpack.c.l.b16 %v364
          %v539 = vunpack.c.l.b16 %v378
          %v540 = vunpack.c.l.b16 %v392
          %v541 = vunpack.c.l.b16 %v406
          %v542 = vunpack.c.l.b16 %v420
          %v543 = vunpack.c.l.b16 %v434
          %v544 = vunpack.c.l.b16 %v448
          %v545 = vunpack.c.l.b16 %v462
          %v546 = vunpack.c.l.b16 %v476
          %v547 = vunpack.c.l.b16 %v490
          %v548 = vunpack.c.l.b16 %v504
          %v549 = vunpack.c.l.b16 %v518
          %v550 = vunpack.c.l.b16 %v532
          %v551 = vpack.c.b16 %v536, %v535
          %v552 = vpack.c.b16 %v538, %v537
          %v553 = vpack.c.b16 %v540, %v539
          %v554 = vpack.c.b16 %v542, %v541
          %v555 = vpack.c.b16 %v544, %v543
          %v556 = vpack.c.b16 %v546, %v545
          %v557 = vpack.c.b16 %v548, %v547
          %v558 = vpack.c.b16 %v550, %v549
          %vm559 = vcmask 64512
          %v561 = vsel %vm559, %v551, 0
          %v564 = vsel %vm559, %v552, 0
          %v567 = vsel %vm559, %v553, 0
          %v570 = vsel %vm559, %v554, 0
          %v573 = vsel %vm559, %v555, 0
          %v576 = vsel %vm559, %v556, 0
          %v579 = vsel %vm559, %v557, 0
          %v582 = vsel %vm559, %v558, 0
          %vm584 = vcmask 1043456
          %v586 = vsel %vm584, %v534, 0
          %588 = vmatprep.subr.bf16.mxu0 0
          %589 = vmatpush1.bf16.msra.mxu0 %v586
          %590 = vmatprep.subr.bf16.mxu0 0
          %591 = vmatpush1.bf16.msra.mxu0 0
          %592 = vmatprep.subr.bf16.mxu0 0
          %593 = vmatpush1.bf16.msra.mxu0 0
          %594 = vmatprep.subr.bf16.mxu0 0
          %595 = vmatpush1.bf16.msra.mxu0 0
          %596 = vmatprep.subr.bf16.mxu0 0
          %597 = vmatpush1.bf16.msra.mxu0 0
          %598 = vmatprep.subr.bf16.mxu0 0
          %599 = vmatpush1.bf16.msra.mxu0 0
          %600 = vmatprep.subr.bf16.mxu0 0
          %601 = vmatpush1.bf16.msra.mxu0 0
          %602 = vmatprep.subr.bf16.mxu0 0
          %603 = vmatpush1.bf16.msra.mxu0 0
          %604 = vmatprep.subr.bf16.mxu0 0
          %605 = vmatpush1.bf16.msra.mxu0 0
          %606 = vmatprep.subr.bf16.mxu0 0
          %607 = vmatpush1.bf16.msra.mxu0 0
          %608 = vmatprep.subr.bf16.mxu0 0
          %609 = vmatpush1.bf16.msra.mxu0 0
          %610 = vmatprep.subr.bf16.mxu0 0
          %611 = vmatpush1.bf16.msra.mxu0 0
          %612 = vmatprep.subr.bf16.mxu0 0
          %613 = vmatpush1.bf16.msra.mxu0 0
          %614 = vmatprep.subr.bf16.mxu0 0
          %615 = vmatpush1.bf16.msra.mxu0 0
          %616 = vmatprep.subr.bf16.mxu0 0
          %617 = vmatpush1.bf16.msra.mxu0 0
          %618 = vmatprep.subr.bf16.mxu0 0
          %619 = vmatpush1.bf16.msra.mxu0 0
          %620 = vmatprep.mubr.bf16.mxu0 0
          %621 = vmatmul.mubr.bf16.gmra.mrb[0].mxu0 %v561
          %v622 = vpop.f32.mrb[0].mxu0
          %v623 = vadd.f32 0.0, %v622
          %v624 = vpop.f32.mrb[0].mxu0
          %v625 = vpop.f32.mrb[0].mxu0
          %v626 = vadd.f32 0.0, %v625
          %v627 = vpop.f32.mrb[0].mxu0
          %628 = vmatprep.mubr.bf16.mxu0 0
          %629 = vmatmul.mubr.bf16.gmra.mrb[0].mxu0 %v564
          %v630 = vpop.f32.mrb[0].mxu0
          %v631 = vadd.f32 0.0, %v630
          %v632 = vpop.f32.mrb[0].mxu0
          %v633 = vpop.f32.mrb[0].mxu0
          %v634 = vadd.f32 0.0, %v633
          %v635 = vpop.f32.mrb[0].mxu0
          %636 = vmatprep.mubr.bf16.mxu0 0
          %637 = vmatmul.mubr.bf16.gmra.mrb[0].mxu0 %v567
          %v638 = vpop.f32.mrb[0].mxu0
          %v639 = vadd.f32 0.0, %v638
          %v640 = vpop.f32.mrb[0].mxu0
          %v641 = vpop.f32.mrb[0].mxu0
          %v642 = vadd.f32 0.0, %v641
          %v643 = vpop.f32.mrb[0].mxu0
          %644 = vmatprep.mubr.bf16.mxu0 0
          %645 = vmatmul.mubr.bf16.gmra.mrb[0].mxu0 %v570
          %v646 = vpop.f32.mrb[0].mxu0
          %v647 = vadd.f32 0.0, %v646
          %v648 = vpop.f32.mrb[0].mxu0
          %v649 = vpop.f32.mrb[0].mxu0
          %v650 = vadd.f32 0.0, %v649
          %v651 = vpop.f32.mrb[0].mxu0
          %652 = vmatprep.mubr.bf16.mxu0 0
          %653 = vmatmul.mubr.bf16.gmra.mrb[0].mxu0 %v573
          %v654 = vpop.f32.mrb[0].mxu0
          %v655 = vadd.f32 0.0, %v654
          %v656 = vpop.f32.mrb[0].mxu0
          %v657 = vpop.f32.mrb[0].mxu0
          %v658 = vadd.f32 0.0, %v657
          %v659 = vpop.f32.mrb[0].mxu0
          %660 = vmatprep.mubr.bf16.mxu0 0
          %661 = vmatmul.mubr.bf16.gmra.mrb[0].mxu0 %v576
          %v662 = vpop.f32.mrb[0].mxu0
          %v663 = vadd.f32 0.0, %v662
          %v664 = vpop.f32.mrb[0].mxu0
          %v665 = vpop.f32.mrb[0].mxu0
          %v666 = vadd.f32 0.0, %v665
          %v667 = vpop.f32.mrb[0].mxu0
          %668 = vmatprep.mubr.bf16.mxu0 0
          %669 = vmatmul.mubr.bf16.gmra.mrb[0].mxu0 %v579
          %v670 = vpop.f32.mrb[0].mxu0
          %v671 = vadd.f32 0.0, %v670
          %v672 = vpop.f32.mrb[0].mxu0
          %v673 = vpop.f32.mrb[0].mxu0
          %v674 = vadd.f32 0.0, %v673
          %v675 = vpop.f32.mrb[0].mxu0
          %676 = vmatprep.mubr.bf16.mxu0 0
          %677 = vmatmul.mubr.bf16.gmra.mrb[0].mxu0 %v582
          %v678 = vpop.f32.mrb[0].mxu0
          %v679 = vadd.f32 0.0, %v678
          %v680 = vpop.f32.mrb[0].mxu0
          %v681 = vpop.f32.mrb[0].mxu0
          %v682 = vadd.f32 0.0, %v681
          %v683 = vpop.f32.mrb[0].mxu0
          %684 = vdwg.mxu0
          %v701 = vunpack.c.l.b16 %v273
          %v702 = vunpack.c.l.b16 %v274
          %v703 = vunpack.c.l.b16 %v275
          %v704 = vunpack.c.l.b16 %v276
          %v705 = vunpack.c.l.b16 %v277
          %v706 = vunpack.c.l.b16 %v278
          %v707 = vunpack.c.l.b16 %v279
          %v708 = vunpack.c.l.b16 %v280
          %v709 = vunpack.c.l.b16 %v281
          %v710 = vunpack.c.l.b16 %v282
          %v711 = vunpack.c.l.b16 %v283
          %v712 = vunpack.c.l.b16 %v284
          %v713 = vunpack.c.l.b16 %v285
          %v714 = vunpack.c.l.b16 %v286
          %v715 = vunpack.c.l.b16 %v287
          %v716 = vunpack.c.l.b16 %v288
          %v717 = vpack.c.b16 %v702, %v701
          %v718 = vpack.c.b16 %v704, %v703
          %v719 = vpack.c.b16 %v706, %v705
          %v720 = vpack.c.b16 %v708, %v707
          %v721 = vpack.c.b16 %v710, %v709
          %v722 = vpack.c.b16 %v712, %v711
          %v723 = vpack.c.b16 %v714, %v713
          %v724 = vpack.c.b16 %v716, %v715
          %v726 = vsel %vm559, %v717, 0
          %v729 = vsel %vm559, %v718, 0
          %v732 = vsel %vm559, %v719, 0
          %v735 = vsel %vm559, %v720, 0
          %v738 = vsel %vm559, %v721, 0
          %v741 = vsel %vm559, %v722, 0
          %v744 = vsel %vm559, %v723, 0
          %v747 = vsel %vm559, %v724, 0
          %v750 = vsel %vm584, %v289, 0
          %752 = vmatprep.subr.bf16.mxu0 0
          %753 = vmatpush1.bf16.msra.mxu0 %v750
          %754 = vmatprep.subr.bf16.mxu0 0
          %755 = vmatpush1.bf16.msra.mxu0 0
          %756 = vmatprep.subr.bf16.mxu0 0
          %757 = vmatpush1.bf16.msra.mxu0 0
          %758 = vmatprep.subr.bf16.mxu0 0
          %759 = vmatpush1.bf16.msra.mxu0 0
          %760 = vmatprep.subr.bf16.mxu0 0
          %761 = vmatpush1.bf16.msra.mxu0 0
          %762 = vmatprep.subr.bf16.mxu0 0
          %763 = vmatpush1.bf16.msra.mxu0 0
          %764 = vmatprep.subr.bf16.mxu0 0
          %765 = vmatpush1.bf16.msra.mxu0 0
          %766 = vmatprep.subr.bf16.mxu0 0
          %767 = vmatpush1.bf16.msra.mxu0 0
          %768 = vmatprep.subr.bf16.mxu0 0
          %769 = vmatpush1.bf16.msra.mxu0 0
          %770 = vmatprep.subr.bf16.mxu0 0
          %771 = vmatpush1.bf16.msra.mxu0 0
          %772 = vmatprep.subr.bf16.mxu0 0
          %773 = vmatpush1.bf16.msra.mxu0 0
          %774 = vmatprep.subr.bf16.mxu0 0
          %775 = vmatpush1.bf16.msra.mxu0 0
          %776 = vmatprep.subr.bf16.mxu0 0
          %777 = vmatpush1.bf16.msra.mxu0 0
          %778 = vmatprep.subr.bf16.mxu0 0
          %779 = vmatpush1.bf16.msra.mxu0 0
          %780 = vmatprep.subr.bf16.mxu0 0
          %781 = vmatpush1.bf16.msra.mxu0 0
          %782 = vmatprep.subr.bf16.mxu0 0
          %783 = vmatpush1.bf16.msra.mxu0 0
          %784 = vmatprep.mubr.bf16.mxu0 0
          %785 = vmatmul.mubr.bf16.gmra.mrb[0].mxu0 %v726
          %v786 = vpop.f32.mrb[0].mxu0
          %v787 = vadd.f32 %v623, %v786
          %v788 = vpop.f32.mrb[0].mxu0
          %v789 = vpop.f32.mrb[0].mxu0
          %v790 = vadd.f32 %v626, %v789
          %v791 = vpop.f32.mrb[0].mxu0
          %792 = vmatprep.mubr.bf16.mxu0 0
          %793 = vmatmul.mubr.bf16.gmra.mrb[0].mxu0 %v729
          %v794 = vpop.f32.mrb[0].mxu0
          %v795 = vadd.f32 %v631, %v794
          %v796 = vpop.f32.mrb[0].mxu0
          %v797 = vpop.f32.mrb[0].mxu0
          %v798 = vadd.f32 %v634, %v797
          %v799 = vpop.f32.mrb[0].mxu0
          %800 = vmatprep.mubr.bf16.mxu0 0
          %801 = vmatmul.mubr.bf16.gmra.mrb[0].mxu0 %v732
          %v802 = vpop.f32.mrb[0].mxu0
          %v803 = vadd.f32 %v639, %v802
          %v804 = vpop.f32.mrb[0].mxu0
          %v805 = vpop.f32.mrb[0].mxu0
          %v806 = vadd.f32 %v642, %v805
          %v807 = vpop.f32.mrb[0].mxu0
          %808 = vmatprep.mubr.bf16.mxu0 0
          %809 = vmatmul.mubr.bf16.gmra.mrb[0].mxu0 %v735
          %v810 = vpop.f32.mrb[0].mxu0
          %v811 = vadd.f32 %v647, %v810
          %v812 = vpop.f32.mrb[0].mxu0
          %v813 = vpop.f32.mrb[0].mxu0
          %v814 = vadd.f32 %v650, %v813
          %v815 = vpop.f32.mrb[0].mxu0
          %816 = vmatprep.mubr.bf16.mxu0 0
          %817 = vmatmul.mubr.bf16.gmra.mrb[0].mxu0 %v738
          %v818 = vpop.f32.mrb[0].mxu0
          %v819 = vadd.f32 %v655, %v818
          %v820 = vpop.f32.mrb[0].mxu0
          %v821 = vpop.f32.mrb[0].mxu0
          %v822 = vadd.f32 %v658, %v821
          %v823 = vpop.f32.mrb[0].mxu0
          %824 = vmatprep.mubr.bf16.mxu0 0
          %825 = vmatmul.mubr.bf16.gmra.mrb[0].mxu0 %v741
          %v826 = vpop.f32.mrb[0].mxu0
          %v827 = vadd.f32 %v663, %v826
          %v828 = vpop.f32.mrb[0].mxu0
          %v829 = vpop.f32.mrb[0].mxu0
          %v830 = vadd.f32 %v666, %v829
          %v831 = vpop.f32.mrb[0].mxu0
          %832 = vmatprep.mubr.bf16.mxu0 0
          %833 = vmatmul.mubr.bf16.gmra.mrb[0].mxu0 %v744
          %v834 = vpop.f32.mrb[0].mxu0
          %v835 = vadd.f32 %v671, %v834
          %v836 = vpop.f32.mrb[0].mxu0
          %v837 = vpop.f32.mrb[0].mxu0
          %v838 = vadd.f32 %v674, %v837
          %v839 = vpop.f32.mrb[0].mxu0
          %840 = vmatprep.mubr.bf16.mxu0 0
          %841 = vmatmul.mubr.bf16.gmra.mrb[0].mxu0 %v747
          %v842 = vpop.f32.mrb[0].mxu0
          %v843 = vadd.f32 %v679, %v842
          %v844 = vpop.f32.mrb[0].mxu0
          %v845 = vpop.f32.mrb[0].mxu0
          %v846 = vadd.f32 %v682, %v845
          %v847 = vpop.f32.mrb[0].mxu0
          %848 = vdwg.mxu0
          %v849 = vld [vmem:[%s260] sm:$0xe]
          %v850 = vld [vmem:[%s260 + $0x8] sm:$0xe]
          %v851 = vld [vmem:[%s260 + $0x10] sm:$0xe]
          %v852 = vld [vmem:[%s260 + $0x18] sm:$0xe]
          %v853 = vld [vmem:[%s260 + $0x30] sm:$0xe]
          %v854 = vld [vmem:[%s260 + $0x38] sm:$0xe]
          %v855 = vld [vmem:[%s260 + $0x40] sm:$0xe]
          %v856 = vld [vmem:[%s260 + $0x48] sm:$0xe]
          %v857 = vld [vmem:[%s260 + $0x60] sm:$0xe]
          %v858 = vld [vmem:[%s260 + $0x68] sm:$0xe]
          %v859 = vld [vmem:[%s260 + $0x70] sm:$0xe]
          %v860 = vld [vmem:[%s260 + $0x78] sm:$0xe]
          %v861 = vld [vmem:[%s260 + $0x90] sm:$0xe]
          %v862 = vld [vmem:[%s260 + $0x98] sm:$0xe]
          %v863 = vld [vmem:[%s260 + $0xa0] sm:$0xe]
          %v864 = vld [vmem:[%s260 + $0xa8] sm:$0xe]
          %vm897 = vcmask 1042432
          %vm898 = vcmask 1046532
          %vm899 = vmor %vm897, %vm898
          %v900 = vrot.slane %v849, 5
          %v901 = vrot.slane %v900, 4
          %v902 = vrot.slane %v290, 5
          %v903 = vsel %vm899, %v901, %v902
          %v904 = vrot.slane %v850, 5
          %v905 = vrot.slane %v904, 4
          %v906 = vrot.slane %v291, 5
          %v907 = vsel %vm899, %v905, %v906
          %v908 = vrot.slane %v851, 5
          %v909 = vrot.slane %v908, 4
          %v910 = vrot.slane %v292, 5
          %v911 = vsel %vm899, %v909, %v910
          %v912 = vrot.slane %v852, 5
          %v913 = vrot.slane %v912, 4
          %v914 = vrot.slane %v293, 5
          %v915 = vsel %vm899, %v913, %v914
          %v916 = vrot.slane %v853, 5
          %v917 = vrot.slane %v916, 4
          %v918 = vrot.slane %v294, 5
          %v919 = vsel %vm899, %v917, %v918
          %v920 = vrot.slane %v854, 5
          %v921 = vrot.slane %v920, 4
          %v922 = vrot.slane %v295, 5
          %v923 = vsel %vm899, %v921, %v922
          %v924 = vrot.slane %v855, 5
          %v925 = vrot.slane %v924, 4
          %v926 = vrot.slane %v296, 5
          %v927 = vsel %vm899, %v925, %v926
          %v928 = vrot.slane %v856, 5
          %v929 = vrot.slane %v928, 4
          %v930 = vrot.slane %v297, 5
          %v931 = vsel %vm899, %v929, %v930
          %v932 = vrot.slane %v857, 5
          %v933 = vrot.slane %v932, 4
          %v934 = vrot.slane %v298, 5
          %v935 = vsel %vm899, %v933, %v934
          %v936 = vrot.slane %v858, 5
          %v937 = vrot.slane %v936, 4
          %v938 = vrot.slane %v299, 5
          %v939 = vsel %vm899, %v937, %v938
          %v940 = vrot.slane %v859, 5
          %v941 = vrot.slane %v940, 4
          %v942 = vrot.slane %v300, 5
          %v943 = vsel %vm899, %v941, %v942
          %v944 = vrot.slane %v860, 5
          %v945 = vrot.slane %v944, 4
          %v946 = vrot.slane %v301, 5
          %v947 = vsel %vm899, %v945, %v946
          %v948 = vrot.slane %v861, 5
          %v949 = vrot.slane %v948, 4
          %v950 = vrot.slane %v302, 5
          %v951 = vsel %vm899, %v949, %v950
          %v952 = vrot.slane %v862, 5
          %v953 = vrot.slane %v952, 4
          %v954 = vrot.slane %v303, 5
          %v955 = vsel %vm899, %v953, %v954
          %v956 = vrot.slane %v863, 5
          %v957 = vrot.slane %v956, 4
          %v958 = vrot.slane %v304, 5
          %v959 = vsel %vm899, %v957, %v958
          %v960 = vrot.slane %v864, 5
          %v961 = vrot.slane %v960, 4
          %v962 = vrot.slane %v305, 5
          %v963 = vsel %vm899, %v961, %v962
          %s964 = scalar_lea.vmem %s1, 8
          %v965 = vld [vmem:[%s964] sm:$0xf]
          %v966 = vunpack.c.l.b16 %v903
          %v967 = vunpack.c.l.b16 %v907
          %v968 = vunpack.c.l.b16 %v911
          %v969 = vunpack.c.l.b16 %v915
          %v970 = vunpack.c.l.b16 %v919
          %v971 = vunpack.c.l.b16 %v923
          %v972 = vunpack.c.l.b16 %v927
          %v973 = vunpack.c.l.b16 %v931
          %v974 = vunpack.c.l.b16 %v935
          %v975 = vunpack.c.l.b16 %v939
          %v976 = vunpack.c.l.b16 %v943
          %v977 = vunpack.c.l.b16 %v947
          %v978 = vunpack.c.l.b16 %v951
          %v979 = vunpack.c.l.b16 %v955
          %v980 = vunpack.c.l.b16 %v959
          %v981 = vunpack.c.l.b16 %v963
          %v982 = vpack.c.b16 %v967, %v966
          %v983 = vpack.c.b16 %v969, %v968
          %v984 = vpack.c.b16 %v971, %v970
          %v985 = vpack.c.b16 %v973, %v972
          %v986 = vpack.c.b16 %v975, %v974
          %v987 = vpack.c.b16 %v977, %v976
          %v988 = vpack.c.b16 %v979, %v978
          %v989 = vpack.c.b16 %v981, %v980
          %v991 = vsel %vm559, %v982, 0
          %v994 = vsel %vm559, %v983, 0
          %v997 = vsel %vm559, %v984, 0
          %v1000 = vsel %vm559, %v985, 0
          %v1003 = vsel %vm559, %v986, 0
          %v1006 = vsel %vm559, %v987, 0
          %v1009 = vsel %vm559, %v988, 0
          %v1012 = vsel %vm559, %v989, 0
          %v1015 = vsel %vm584, %v965, 0
          %1017 = vmatprep.subr.bf16.mxu0 0
          %1018 = vmatpush1.bf16.msra.mxu0 %v1015
          %1019 = vmatprep.subr.bf16.mxu0 0
          %1020 = vmatpush1.bf16.msra.mxu0 0
          %1021 = vmatprep.subr.bf16.mxu0 0
          %1022 = vmatpush1.bf16.msra.mxu0 0
          %1023 = vmatprep.subr.bf16.mxu0 0
          %1024 = vmatpush1.bf16.msra.mxu0 0
          %1025 = vmatprep.subr.bf16.mxu0 0
          %1026 = vmatpush1.bf16.msra.mxu0 0
          %1027 = vmatprep.subr.bf16.mxu0 0
          %1028 = vmatpush1.bf16.msra.mxu0 0
          %1029 = vmatprep.subr.bf16.mxu0 0
          %1030 = vmatpush1.bf16.msra.mxu0 0
          %1031 = vmatprep.subr.bf16.mxu0 0
          %1032 = vmatpush1.bf16.msra.mxu0 0
          %1033 = vmatprep.subr.bf16.mxu0 0
          %1034 = vmatpush1.bf16.msra.mxu0 0
          %1035 = vmatprep.subr.bf16.mxu0 0
          %1036 = vmatpush1.bf16.msra.mxu0 0
          %1037 = vmatprep.subr.bf16.mxu0 0
          %1038 = vmatpush1.bf16.msra.mxu0 0
          %1039 = vmatprep.subr.bf16.mxu0 0
          %1040 = vmatpush1.bf16.msra.mxu0 0
          %1041 = vmatprep.subr.bf16.mxu0 0
          %1042 = vmatpush1.bf16.msra.mxu0 0
          %1043 = vmatprep.subr.bf16.mxu0 0
          %1044 = vmatpush1.bf16.msra.mxu0 0
          %1045 = vmatprep.subr.bf16.mxu0 0
          %1046 = vmatpush1.bf16.msra.mxu0 0
          %1047 = vmatprep.subr.bf16.mxu0 0
          %1048 = vmatpush1.bf16.msra.mxu0 0
          %1049 = vmatprep.mubr.bf16.mxu0 0
          %1050 = vmatmul.mubr.bf16.gmra.mrb[0].mxu0 %v991
          %v1051 = vpop.f32.mrb[0].mxu0
          %v1052 = vadd.f32 0.0, %v1051
          %v1053 = vpop.f32.mrb[0].mxu0
          %v1054 = vpop.f32.mrb[0].mxu0
          %v1055 = vadd.f32 0.0, %v1054
          %v1056 = vpop.f32.mrb[0].mxu0
          %1057 = vmatprep.mubr.bf16.mxu0 0
          %1058 = vmatmul.mubr.bf16.gmra.mrb[0].mxu0 %v994
          %v1059 = vpop.f32.mrb[0].mxu0
          %v1060 = vadd.f32 0.0, %v1059
          %v1061 = vpop.f32.mrb[0].mxu0
          %v1062 = vpop.f32.mrb[0].mxu0
          %v1063 = vadd.f32 0.0, %v1062
          %v1064 = vpop.f32.mrb[0].mxu0
          %1065 = vmatprep.mubr.bf16.mxu0 0
          %1066 = vmatmul.mubr.bf16.gmra.mrb[0].mxu0 %v997
          %v1067 = vpop.f32.mrb[0].mxu0
          %v1068 = vadd.f32 0.0, %v1067
          %v1069 = vpop.f32.mrb[0].mxu0
          %v1070 = vpop.f32.mrb[0].mxu0
          %v1071 = vadd.f32 0.0, %v1070
          %v1072 = vpop.f32.mrb[0].mxu0
          %1073 = vmatprep.mubr.bf16.mxu0 0
          %1074 = vmatmul.mubr.bf16.gmra.mrb[0].mxu0 %v1000
          %v1075 = vpop.f32.mrb[0].mxu0
          %v1076 = vadd.f32 0.0, %v1075
          %v1077 = vpop.f32.mrb[0].mxu0
          %v1078 = vpop.f32.mrb[0].mxu0
          %v1079 = vadd.f32 0.0, %v1078
          %v1080 = vpop.f32.mrb[0].mxu0
          %1081 = vmatprep.mubr.bf16.mxu0 0
          %1082 = vmatmul.mubr.bf16.gmra.mrb[0].mxu0 %v1003
          %v1083 = vpop.f32.mrb[0].mxu0
          %v1084 = vadd.f32 0.0, %v1083
          %v1085 = vpop.f32.mrb[0].mxu0
          %v1086 = vpop.f32.mrb[0].mxu0
          %v1087 = vadd.f32 0.0, %v1086
          %v1088 = vpop.f32.mrb[0].mxu0
          %1089 = vmatprep.mubr.bf16.mxu0 0
          %1090 = vmatmul.mubr.bf16.gmra.mrb[0].mxu0 %v1006
          %v1091 = vpop.f32.mrb[0].mxu0
          %v1092 = vadd.f32 0.0, %v1091
          %v1093 = vpop.f32.mrb[0].mxu0
          %v1094 = vpop.f32.mrb[0].mxu0
          %v1095 = vadd.f32 0.0, %v1094
          %v1096 = vpop.f32.mrb[0].mxu0
          %1097 = vmatprep.mubr.bf16.mxu0 0
          %1098 = vmatmul.mubr.bf16.gmra.mrb[0].mxu0 %v1009
          %v1099 = vpop.f32.mrb[0].mxu0
          %v1100 = vadd.f32 0.0, %v1099
          %v1101 = vpop.f32.mrb[0].mxu0
          %v1102 = vpop.f32.mrb[0].mxu0
          %v1103 = vadd.f32 0.0, %v1102
          %v1104 = vpop.f32.mrb[0].mxu0
          %1105 = vmatprep.mubr.bf16.mxu0 0
          %1106 = vmatmul.mubr.bf16.gmra.mrb[0].mxu0 %v1012
          %v1107 = vpop.f32.mrb[0].mxu0
          %v1108 = vadd.f32 0.0, %v1107
          %v1109 = vpop.f32.mrb[0].mxu0
          %v1110 = vpop.f32.mrb[0].mxu0
          %v1111 = vadd.f32 0.0, %v1110
          %v1112 = vpop.f32.mrb[0].mxu0
          %1113 = vdwg.mxu0
          %v1114 = vadd.f32 %v787, %v1052
          %v1115 = vadd.f32 %v790, %v1055
          %v1116 = vadd.f32 %v795, %v1060
          %v1117 = vadd.f32 %v798, %v1063
          %v1118 = vadd.f32 %v803, %v1068
          %v1119 = vadd.f32 %v806, %v1071
          %v1120 = vadd.f32 %v811, %v1076
          %v1121 = vadd.f32 %v814, %v1079
          %v1122 = vadd.f32 %v819, %v1084
          %v1123 = vadd.f32 %v822, %v1087
          %v1124 = vadd.f32 %v827, %v1092
          %v1125 = vadd.f32 %v830, %v1095
          %v1126 = vadd.f32 %v835, %v1100
          %v1127 = vadd.f32 %v838, %v1103
          %v1128 = vadd.f32 %v843, %v1108
          %v1129 = vadd.f32 %v846, %v1111
          %s1130 = scalar_lea.vmem %s260, 8
          %v1131 = vld [vmem:[%s1130] sm:$0xf]
          %v1132 = vld [vmem:[%s1130 + $0x8] sm:$0xf]
          %v1133 = vld [vmem:[%s1130 + $0x10] sm:$0xf]
          %v1134 = vld [vmem:[%s1130 + $0x18] sm:$0xf]
          %v1135 = vld [vmem:[%s1130 + $0x30] sm:$0xf]
          %v1136 = vld [vmem:[%s1130 + $0x38] sm:$0xf]
          %v1137 = vld [vmem:[%s1130 + $0x40] sm:$0xf]
          %v1138 = vld [vmem:[%s1130 + $0x48] sm:$0xf]
          %v1139 = vld [vmem:[%s1130 + $0x60] sm:$0xf]
          %v1140 = vld [vmem:[%s1130 + $0x68] sm:$0xf]
          %v1141 = vld [vmem:[%s1130 + $0x70] sm:$0xf]
          %v1142 = vld [vmem:[%s1130 + $0x78] sm:$0xf]
          %v1143 = vld [vmem:[%s1130 + $0x90] sm:$0xf]
          %v1144 = vld [vmem:[%s1130 + $0x98] sm:$0xf]
          %v1145 = vld [vmem:[%s1130 + $0xa0] sm:$0xf]
          %v1146 = vld [vmem:[%s1130 + $0xa8] sm:$0xf]
          %s1147 = scalar_lea.vmem %s1, 12
          %v1148 = vld [vmem:[%s1147] sm:$0xf]
          %v1165 = vunpack.c.l.b16 %v1131
          %v1166 = vunpack.c.l.b16 %v1132
          %v1167 = vunpack.c.l.b16 %v1133
          %v1168 = vunpack.c.l.b16 %v1134
          %v1169 = vunpack.c.l.b16 %v1135
          %v1170 = vunpack.c.l.b16 %v1136
          %v1171 = vunpack.c.l.b16 %v1137
          %v1172 = vunpack.c.l.b16 %v1138
          %v1173 = vunpack.c.l.b16 %v1139
          %v1174 = vunpack.c.l.b16 %v1140
          %v1175 = vunpack.c.l.b16 %v1141
          %v1176 = vunpack.c.l.b16 %v1142
          %v1177 = vunpack.c.l.b16 %v1143
          %v1178 = vunpack.c.l.b16 %v1144
          %v1179 = vunpack.c.l.b16 %v1145
          %v1180 = vunpack.c.l.b16 %v1146
          %v1181 = vpack.c.b16 %v1166, %v1165
          %v1182 = vpack.c.b16 %v1168, %v1167
          %v1183 = vpack.c.b16 %v1170, %v1169
          %v1184 = vpack.c.b16 %v1172, %v1171
          %v1185 = vpack.c.b16 %v1174, %v1173
          %v1186 = vpack.c.b16 %v1176, %v1175
          %v1187 = vpack.c.b16 %v1178, %v1177
          %v1188 = vpack.c.b16 %v1180, %v1179
          %v1190 = vsel %vm559, %v1181, 0
          %v1193 = vsel %vm559, %v1182, 0
          %v1196 = vsel %vm559, %v1183, 0
          %v1199 = vsel %vm559, %v1184, 0
          %v1202 = vsel %vm559, %v1185, 0
          %v1205 = vsel %vm559, %v1186, 0
          %v1208 = vsel %vm559, %v1187, 0
          %v1211 = vsel %vm559, %v1188, 0
          %v1214 = vsel %vm584, %v1148, 0
          %1216 = vmatprep.subr.bf16.mxu0 0
          %1217 = vmatpush1.bf16.msra.mxu0 %v1214
          %1218 = vmatprep.subr.bf16.mxu0 0
          %1219 = vmatpush1.bf16.msra.mxu0 0
          %1220 = vmatprep.subr.bf16.mxu0 0
          %1221 = vmatpush1.bf16.msra.mxu0 0
          %1222 = vmatprep.subr.bf16.mxu0 0
          %1223 = vmatpush1.bf16.msra.mxu0 0
          %1224 = vmatprep.subr.bf16.mxu0 0
          %1225 = vmatpush1.bf16.msra.mxu0 0
          %1226 = vmatprep.subr.bf16.mxu0 0
          %1227 = vmatpush1.bf16.msra.mxu0 0
          %1228 = vmatprep.subr.bf16.mxu0 0
          %1229 = vmatpush1.bf16.msra.mxu0 0
          %1230 = vmatprep.subr.bf16.mxu0 0
          %1231 = vmatpush1.bf16.msra.mxu0 0
          %1232 = vmatprep.subr.bf16.mxu0 0
          %1233 = vmatpush1.bf16.msra.mxu0 0
          %1234 = vmatprep.subr.bf16.mxu0 0
          %1235 = vmatpush1.bf16.msra.mxu0 0
          %1236 = vmatprep.subr.bf16.mxu0 0
          %1237 = vmatpush1.bf16.msra.mxu0 0
          %1238 = vmatprep.subr.bf16.mxu0 0
          %1239 = vmatpush1.bf16.msra.mxu0 0
          %1240 = vmatprep.subr.bf16.mxu0 0
          %1241 = vmatpush1.bf16.msra.mxu0 0
          %1242 = vmatprep.subr.bf16.mxu0 0
          %1243 = vmatpush1.bf16.msra.mxu0 0
          %1244 = vmatprep.subr.bf16.mxu0 0
          %1245 = vmatpush1.bf16.msra.mxu0 0
          %1246 = vmatprep.subr.bf16.mxu0 0
          %1247 = vmatpush1.bf16.msra.mxu0 0
          %1248 = vmatprep.mubr.bf16.mxu0 0
          %1249 = vmatmul.mubr.bf16.gmra.mrb[0].mxu0 %v1190
          %v1250 = vpop.f32.mrb[0].mxu0
          %v1251 = vadd.f32 0.0, %v1250
          %v1252 = vpop.f32.mrb[0].mxu0
          %v1253 = vpop.f32.mrb[0].mxu0
          %v1254 = vadd.f32 0.0, %v1253
          %v1255 = vpop.f32.mrb[0].mxu0
          %1256 = vmatprep.mubr.bf16.mxu0 0
          %1257 = vmatmul.mubr.bf16.gmra.mrb[0].mxu0 %v1193
          %v1258 = vpop.f32.mrb[0].mxu0
          %v1259 = vadd.f32 0.0, %v1258
          %v1260 = vpop.f32.mrb[0].mxu0
          %v1261 = vpop.f32.mrb[0].mxu0
          %v1262 = vadd.f32 0.0, %v1261
          %v1263 = vpop.f32.mrb[0].mxu0
          %1264 = vmatprep.mubr.bf16.mxu0 0
          %1265 = vmatmul.mubr.bf16.gmra.mrb[0].mxu0 %v1196
          %v1266 = vpop.f32.mrb[0].mxu0
          %v1267 = vadd.f32 0.0, %v1266
          %v1268 = vpop.f32.mrb[0].mxu0
          %v1269 = vpop.f32.mrb[0].mxu0
          %v1270 = vadd.f32 0.0, %v1269
          %v1271 = vpop.f32.mrb[0].mxu0
          %1272 = vmatprep.mubr.bf16.mxu0 0
          %1273 = vmatmul.mubr.bf16.gmra.mrb[0].mxu0 %v1199
          %v1274 = vpop.f32.mrb[0].mxu0
          %v1275 = vadd.f32 0.0, %v1274
          %v1276 = vpop.f32.mrb[0].mxu0
          %v1277 = vpop.f32.mrb[0].mxu0
          %v1278 = vadd.f32 0.0, %v1277
          %v1279 = vpop.f32.mrb[0].mxu0
          %1280 = vmatprep.mubr.bf16.mxu0 0
          %1281 = vmatmul.mubr.bf16.gmra.mrb[0].mxu0 %v1202
          %v1282 = vpop.f32.mrb[0].mxu0
          %v1283 = vadd.f32 0.0, %v1282
          %v1284 = vpop.f32.mrb[0].mxu0
          %v1285 = vpop.f32.mrb[0].mxu0
          %v1286 = vadd.f32 0.0, %v1285
          %v1287 = vpop.f32.mrb[0].mxu0
          %1288 = vmatprep.mubr.bf16.mxu0 0
          %1289 = vmatmul.mubr.bf16.gmra.mrb[0].mxu0 %v1205
          %v1290 = vpop.f32.mrb[0].mxu0
          %v1291 = vadd.f32 0.0, %v1290
          %v1292 = vpop.f32.mrb[0].mxu0
          %v1293 = vpop.f32.mrb[0].mxu0
          %v1294 = vadd.f32 0.0, %v1293
          %v1295 = vpop.f32.mrb[0].mxu0
          %1296 = vmatprep.mubr.bf16.mxu0 0
          %1297 = vmatmul.mubr.bf16.gmra.mrb[0].mxu0 %v1208
          %v1298 = vpop.f32.mrb[0].mxu0
          %v1299 = vadd.f32 0.0, %v1298
          %v1300 = vpop.f32.mrb[0].mxu0
          %v1301 = vpop.f32.mrb[0].mxu0
          %v1302 = vadd.f32 0.0, %v1301
          %v1303 = vpop.f32.mrb[0].mxu0
          %1304 = vmatprep.mubr.bf16.mxu0 0
          %1305 = vmatmul.mubr.bf16.gmra.mrb[0].mxu0 %v1211
          %v1306 = vpop.f32.mrb[0].mxu0
          %v1307 = vadd.f32 0.0, %v1306
          %v1308 = vpop.f32.mrb[0].mxu0
          %v1309 = vpop.f32.mrb[0].mxu0
          %v1310 = vadd.f32 0.0, %v1309
          %v1311 = vpop.f32.mrb[0].mxu0
          %1312 = vdwg.mxu0
          %v1313 = vadd.f32 %v1114, %v1251
          %v1314 = vadd.f32 %v1115, %v1254
          %v1315 = vadd.f32 %v1116, %v1259
          %v1316 = vadd.f32 %v1117, %v1262
          %v1317 = vadd.f32 %v1118, %v1267
          %v1318 = vadd.f32 %v1119, %v1270
          %v1319 = vadd.f32 %v1120, %v1275
          %v1320 = vadd.f32 %v1121, %v1278
          %v1321 = vadd.f32 %v1122, %v1283
          %v1322 = vadd.f32 %v1123, %v1286
          %v1323 = vadd.f32 %v1124, %v1291
          %v1324 = vadd.f32 %v1125, %v1294
          %v1325 = vadd.f32 %v1126, %v1299
          %v1326 = vadd.f32 %v1127, %v1302
          %v1327 = vadd.f32 %v1128, %v1307
          %v1328 = vadd.f32 %v1129, %v1310
          %v1329 = vld [vmem:[%s1130] sm:$0xf]
          %v1330 = vld [vmem:[%s1130 + $0x4] sm:$0x1]
          %v1331 = vld [vmem:[%s1130 + $0x8] sm:$0xf]
          %v1332 = vld [vmem:[%s1130 + $0xc] sm:$0x1]
          %v1333 = vld [vmem:[%s1130 + $0x10] sm:$0xf]
          %v1334 = vld [vmem:[%s1130 + $0x14] sm:$0x1]
          %v1335 = vld [vmem:[%s1130 + $0x18] sm:$0xf]
          %v1336 = vld [vmem:[%s1130 + $0x1c] sm:$0x1]
          %v1337 = vld [vmem:[%s1130 + $0x30] sm:$0xf]
          %v1338 = vld [vmem:[%s1130 + $0x34] sm:$0x1]
          %v1339 = vld [vmem:[%s1130 + $0x38] sm:$0xf]
          %v1340 = vld [vmem:[%s1130 + $0x3c] sm:$0x1]
          %v1341 = vld [vmem:[%s1130 + $0x40] sm:$0xf]
          %v1342 = vld [vmem:[%s1130 + $0x44] sm:$0x1]
          %v1343 = vld [vmem:[%s1130 + $0x48] sm:$0xf]
          %v1344 = vld [vmem:[%s1130 + $0x4c] sm:$0x1]
          %v1345 = vld [vmem:[%s1130 + $0x60] sm:$0xf]
          %v1346 = vld [vmem:[%s1130 + $0x64] sm:$0x1]
          %v1347 = vld [vmem:[%s1130 + $0x68] sm:$0xf]
          %v1348 = vld [vmem:[%s1130 + $0x6c] sm:$0x1]
          %v1349 = vld [vmem:[%s1130 + $0x70] sm:$0xf]
          %v1350 = vld [vmem:[%s1130 + $0x74] sm:$0x1]
          %v1351 = vld [vmem:[%s1130 + $0x78] sm:$0xf]
          %v1352 = vld [vmem:[%s1130 + $0x7c] sm:$0x1]
          %v1353 = vld [vmem:[%s1130 + $0x90] sm:$0xf]
          %v1354 = vld [vmem:[%s1130 + $0x94] sm:$0x1]
          %v1355 = vld [vmem:[%s1130 + $0x98] sm:$0xf]
          %v1356 = vld [vmem:[%s1130 + $0x9c] sm:$0x1]
          %v1357 = vld [vmem:[%s1130 + $0xa0] sm:$0xf]
          %v1358 = vld [vmem:[%s1130 + $0xa4] sm:$0x1]
          %v1359 = vld [vmem:[%s1130 + $0xa8] sm:$0xf]
          %v1360 = vld [vmem:[%s1130 + $0xac] sm:$0x1]
          %v1362 = vshrl.u32 %v1329, 16
          %v1364 = vrot.slane %v1362, 4
          %v1365 = vshll.u32 %v1329, 16
          %v1367 = vrot.slane %v1365, 5
          %v1368 = vor.u32 %v1364, %v1367
          %v1369 = vrot.slane %v1368, 4
          %v1371 = vshll.u32 %v1330, 16
          %v1373 = vrot.slane %v1371, 5
          %v1374 = vsel %vm308, %v1369, %v1373
          %v1376 = vshrl.u32 %v1331, 16
          %v1378 = vrot.slane %v1376, 4
          %v1379 = vshll.u32 %v1331, 16
          %v1381 = vrot.slane %v1379, 5
          %v1382 = vor.u32 %v1378, %v1381
          %v1383 = vrot.slane %v1382, 4
          %v1385 = vshll.u32 %v1332, 16
          %v1387 = vrot.slane %v1385, 5
          %v1388 = vsel %vm308, %v1383, %v1387
          %v1390 = vshrl.u32 %v1333, 16
          %v1392 = vrot.slane %v1390, 4
          %v1393 = vshll.u32 %v1333, 16
          %v1395 = vrot.slane %v1393, 5
          %v1396 = vor.u32 %v1392, %v1395
          %v1397 = vrot.slane %v1396, 4
          %v1399 = vshll.u32 %v1334, 16
          %v1401 = vrot.slane %v1399, 5
          %v1402 = vsel %vm308, %v1397, %v1401
          %v1404 = vshrl.u32 %v1335, 16
          %v1406 = vrot.slane %v1404, 4
          %v1407 = vshll.u32 %v1335, 16
          %v1409 = vrot.slane %v1407, 5
          %v1410 = vor.u32 %v1406, %v1409
          %v1411 = vrot.slane %v1410, 4
          %v1413 = vshll.u32 %v1336, 16
          %v1415 = vrot.slane %v1413, 5
          %v1416 = vsel %vm308, %v1411, %v1415
          %v1418 = vshrl.u32 %v1337, 16
          %v1420 = vrot.slane %v1418, 4
          %v1421 = vshll.u32 %v1337, 16
          %v1423 = vrot.slane %v1421, 5
          %v1424 = vor.u32 %v1420, %v1423
          %v1425 = vrot.slane %v1424, 4
          %v1427 = vshll.u32 %v1338, 16
          %v1429 = vrot.slane %v1427, 5
          %v1430 = vsel %vm308, %v1425, %v1429
          %v1432 = vshrl.u32 %v1339, 16
          %v1434 = vrot.slane %v1432, 4
          %v1435 = vshll.u32 %v1339, 16
          %v1437 = vrot.slane %v1435, 5
          %v1438 = vor.u32 %v1434, %v1437
          %v1439 = vrot.slane %v1438, 4
          %v1441 = vshll.u32 %v1340, 16
          %v1443 = vrot.slane %v1441, 5
          %v1444 = vsel %vm308, %v1439, %v1443
          %v1446 = vshrl.u32 %v1341, 16
          %v1448 = vrot.slane %v1446, 4
          %v1449 = vshll.u32 %v1341, 16
          %v1451 = vrot.slane %v1449, 5
          %v1452 = vor.u32 %v1448, %v1451
          %v1453 = vrot.slane %v1452, 4
          %v1455 = vshll.u32 %v1342, 16
          %v1457 = vrot.slane %v1455, 5
          %v1458 = vsel %vm308, %v1453, %v1457
          %v1460 = vshrl.u32 %v1343, 16
          %v1462 = vrot.slane %v1460, 4
          %v1463 = vshll.u32 %v1343, 16
          %v1465 = vrot.slane %v1463, 5
          %v1466 = vor.u32 %v1462, %v1465
          %v1467 = vrot.slane %v1466, 4
          %v1469 = vshll.u32 %v1344, 16
          %v1471 = vrot.slane %v1469, 5
          %v1472 = vsel %vm308, %v1467, %v1471
          %v1474 = vshrl.u32 %v1345, 16
          %v1476 = vrot.slane %v1474, 4
          %v1477 = vshll.u32 %v1345, 16
          %v1479 = vrot.slane %v1477, 5
          %v1480 = vor.u32 %v1476, %v1479
          %v1481 = vrot.slane %v1480, 4
          %v1483 = vshll.u32 %v1346, 16
          %v1485 = vrot.slane %v1483, 5
          %v1486 = vsel %vm308, %v1481, %v1485
          %v1488 = vshrl.u32 %v1347, 16
          %v1490 = vrot.slane %v1488, 4
          %v1491 = vshll.u32 %v1347, 16
          %v1493 = vrot.slane %v1491, 5
          %v1494 = vor.u32 %v1490, %v1493
          %v1495 = vrot.slane %v1494, 4
          %v1497 = vshll.u32 %v1348, 16
          %v1499 = vrot.slane %v1497, 5
          %v1500 = vsel %vm308, %v1495, %v1499
          %v1502 = vshrl.u32 %v1349, 16
          %v1504 = vrot.slane %v1502, 4
          %v1505 = vshll.u32 %v1349, 16
          %v1507 = vrot.slane %v1505, 5
          %v1508 = vor.u32 %v1504, %v1507
          %v1509 = vrot.slane %v1508, 4
          %v1511 = vshll.u32 %v1350, 16
          %v1513 = vrot.slane %v1511, 5
          %v1514 = vsel %vm308, %v1509, %v1513
          %v1516 = vshrl.u32 %v1351, 16
          %v1518 = vrot.slane %v1516, 4
          %v1519 = vshll.u32 %v1351, 16
          %v1521 = vrot.slane %v1519, 5
          %v1522 = vor.u32 %v1518, %v1521
          %v1523 = vrot.slane %v1522, 4
          %v1525 = vshll.u32 %v1352, 16
          %v1527 = vrot.slane %v1525, 5
          %v1528 = vsel %vm308, %v1523, %v1527
          %v1530 = vshrl.u32 %v1353, 16
          %v1532 = vrot.slane %v1530, 4
          %v1533 = vshll.u32 %v1353, 16
          %v1535 = vrot.slane %v1533, 5
          %v1536 = vor.u32 %v1532, %v1535
          %v1537 = vrot.slane %v1536, 4
          %v1539 = vshll.u32 %v1354, 16
          %v1541 = vrot.slane %v1539, 5
          %v1542 = vsel %vm308, %v1537, %v1541
          %v1544 = vshrl.u32 %v1355, 16
          %v1546 = vrot.slane %v1544, 4
          %v1547 = vshll.u32 %v1355, 16
          %v1549 = vrot.slane %v1547, 5
          %v1550 = vor.u32 %v1546, %v1549
          %v1551 = vrot.slane %v1550, 4
          %v1553 = vshll.u32 %v1356, 16
          %v1555 = vrot.slane %v1553, 5
          %v1556 = vsel %vm308, %v1551, %v1555
          %v1558 = vshrl.u32 %v1357, 16
          %v1560 = vrot.slane %v1558, 4
          %v1561 = vshll.u32 %v1357, 16
          %v1563 = vrot.slane %v1561, 5
          %v1564 = vor.u32 %v1560, %v1563
          %v1565 = vrot.slane %v1564, 4
          %v1567 = vshll.u32 %v1358, 16
          %v1569 = vrot.slane %v1567, 5
          %v1570 = vsel %vm308, %v1565, %v1569
          %v1572 = vshrl.u32 %v1359, 16
          %v1574 = vrot.slane %v1572, 4
          %v1575 = vshll.u32 %v1359, 16
          %v1577 = vrot.slane %v1575, 5
          %v1578 = vor.u32 %v1574, %v1577
          %v1579 = vrot.slane %v1578, 4
          %v1581 = vshll.u32 %v1360, 16
          %v1583 = vrot.slane %v1581, 5
          %v1584 = vsel %vm308, %v1579, %v1583
          %s1585 = scalar_lea.vmem %s1, 16
          %v1586 = vld [vmem:[%s1585] sm:$0xf]
          %v1587 = vunpack.c.l.b16 %v1374
          %v1588 = vunpack.c.l.b16 %v1388
          %v1589 = vunpack.c.l.b16 %v1402
          %v1590 = vunpack.c.l.b16 %v1416
          %v1591 = vunpack.c.l.b16 %v1430
          %v1592 = vunpack.c.l.b16 %v1444
          %v1593 = vunpack.c.l.b16 %v1458
          %v1594 = vunpack.c.l.b16 %v1472
          %v1595 = vunpack.c.l.b16 %v1486
          %v1596 = vunpack.c.l.b16 %v1500
          %v1597 = vunpack.c.l.b16 %v1514
          %v1598 = vunpack.c.l.b16 %v1528
          %v1599 = vunpack.c.l.b16 %v1542
          %v1600 = vunpack.c.l.b16 %v1556
          %v1601 = vunpack.c.l.b16 %v1570
          %v1602 = vunpack.c.l.b16 %v1584
          %v1603 = vpack.c.b16 %v1588, %v1587
          %v1604 = vpack.c.b16 %v1590, %v1589
          %v1605 = vpack.c.b16 %v1592, %v1591
          %v1606 = vpack.c.b16 %v1594, %v1593
          %v1607 = vpack.c.b16 %v1596, %v1595
          %v1608 = vpack.c.b16 %v1598, %v1597
          %v1609 = vpack.c.b16 %v1600, %v1599
          %v1610 = vpack.c.b16 %v1602, %v1601
          %v1612 = vsel %vm559, %v1603, 0
          %v1615 = vsel %vm559, %v1604, 0
          %v1618 = vsel %vm559, %v1605, 0
          %v1621 = vsel %vm559, %v1606, 0
          %v1624 = vsel %vm559, %v1607, 0
          %v1627 = vsel %vm559, %v1608, 0
          %v1630 = vsel %vm559, %v1609, 0
          %v1633 = vsel %vm559, %v1610, 0
          %v1636 = vsel %vm584, %v1586, 0
          %1638 = vmatprep.subr.bf16.mxu0 0
          %1639 = vmatpush1.bf16.msra.mxu0 %v1636
          %1640 = vmatprep.subr.bf16.mxu0 0
          %1641 = vmatpush1.bf16.msra.mxu0 0
          %1642 = vmatprep.subr.bf16.mxu0 0
          %1643 = vmatpush1.bf16.msra.mxu0 0
          %1644 = vmatprep.subr.bf16.mxu0 0
          %1645 = vmatpush1.bf16.msra.mxu0 0
          %1646 = vmatprep.subr.bf16.mxu0 0
          %1647 = vmatpush1.bf16.msra.mxu0 0
          %1648 = vmatprep.subr.bf16.mxu0 0
          %1649 = vmatpush1.bf16.msra.mxu0 0
          %1650 = vmatprep.subr.bf16.mxu0 0
          %1651 = vmatpush1.bf16.msra.mxu0 0
          %1652 = vmatprep.subr.bf16.mxu0 0
          %1653 = vmatpush1.bf16.msra.mxu0 0
          %1654 = vmatprep.subr.bf16.mxu0 0
          %1655 = vmatpush1.bf16.msra.mxu0 0
          %1656 = vmatprep.subr.bf16.mxu0 0
          %1657 = vmatpush1.bf16.msra.mxu0 0
          %1658 = vmatprep.subr.bf16.mxu0 0
          %1659 = vmatpush1.bf16.msra.mxu0 0
          %1660 = vmatprep.subr.bf16.mxu0 0
          %1661 = vmatpush1.bf16.msra.mxu0 0
          %1662 = vmatprep.subr.bf16.mxu0 0
          %1663 = vmatpush1.bf16.msra.mxu0 0
          %1664 = vmatprep.subr.bf16.mxu0 0
          %1665 = vmatpush1.bf16.msra.mxu0 0
          %1666 = vmatprep.subr.bf16.mxu0 0
          %1667 = vmatpush1.bf16.msra.mxu0 0
          %1668 = vmatprep.subr.bf16.mxu0 0
          %1669 = vmatpush1.bf16.msra.mxu0 0
          %1670 = vmatprep.mubr.bf16.mxu0 0
          %1671 = vmatmul.mubr.bf16.gmra.mrb[0].mxu0 %v1612
          %v1672 = vpop.f32.mrb[0].mxu0
          %v1673 = vadd.f32 0.0, %v1672
          %v1674 = vpop.f32.mrb[0].mxu0
          %v1675 = vpop.f32.mrb[0].mxu0
          %v1676 = vadd.f32 0.0, %v1675
          %v1677 = vpop.f32.mrb[0].mxu0
          %1678 = vmatprep.mubr.bf16.mxu0 0
          %1679 = vmatmul.mubr.bf16.gmra.mrb[0].mxu0 %v1615
          %v1680 = vpop.f32.mrb[0].mxu0
          %v1681 = vadd.f32 0.0, %v1680
          %v1682 = vpop.f32.mrb[0].mxu0
          %v1683 = vpop.f32.mrb[0].mxu0
          %v1684 = vadd.f32 0.0, %v1683
          %v1685 = vpop.f32.mrb[0].mxu0
          %1686 = vmatprep.mubr.bf16.mxu0 0
          %1687 = vmatmul.mubr.bf16.gmra.mrb[0].mxu0 %v1618
          %v1688 = vpop.f32.mrb[0].mxu0
          %v1689 = vadd.f32 0.0, %v1688
          %v1690 = vpop.f32.mrb[0].mxu0
          %v1691 = vpop.f32.mrb[0].mxu0
          %v1692 = vadd.f32 0.0, %v1691
          %v1693 = vpop.f32.mrb[0].mxu0
          %1694 = vmatprep.mubr.bf16.mxu0 0
          %1695 = vmatmul.mubr.bf16.gmra.mrb[0].mxu0 %v1621
          %v1696 = vpop.f32.mrb[0].mxu0
          %v1697 = vadd.f32 0.0, %v1696
          %v1698 = vpop.f32.mrb[0].mxu0
          %v1699 = vpop.f32.mrb[0].mxu0
          %v1700 = vadd.f32 0.0, %v1699
          %v1701 = vpop.f32.mrb[0].mxu0
          %1702 = vmatprep.mubr.bf16.mxu0 0
          %1703 = vmatmul.mubr.bf16.gmra.mrb[0].mxu0 %v1624
          %v1704 = vpop.f32.mrb[0].mxu0
          %v1705 = vadd.f32 0.0, %v1704
          %v1706 = vpop.f32.mrb[0].mxu0
          %v1707 = vpop.f32.mrb[0].mxu0
          %v1708 = vadd.f32 0.0, %v1707
          %v1709 = vpop.f32.mrb[0].mxu0
          %1710 = vmatprep.mubr.bf16.mxu0 0
          %1711 = vmatmul.mubr.bf16.gmra.mrb[0].mxu0 %v1627
          %v1712 = vpop.f32.mrb[0].mxu0
          %v1713 = vadd.f32 0.0, %v1712
          %v1714 = vpop.f32.mrb[0].mxu0
          %v1715 = vpop.f32.mrb[0].mxu0
          %v1716 = vadd.f32 0.0, %v1715
          %v1717 = vpop.f32.mrb[0].mxu0
          %1718 = vmatprep.mubr.bf16.mxu0 0
          %1719 = vmatmul.mubr.bf16.gmra.mrb[0].mxu0 %v1630
          %v1720 = vpop.f32.mrb[0].mxu0
          %v1721 = vadd.f32 0.0, %v1720
          %v1722 = vpop.f32.mrb[0].mxu0
          %v1723 = vpop.f32.mrb[0].mxu0
          %v1724 = vadd.f32 0.0, %v1723
          %v1725 = vpop.f32.mrb[0].mxu0
          %1726 = vmatprep.mubr.bf16.mxu0 0
          %1727 = vmatmul.mubr.bf16.gmra.mrb[0].mxu0 %v1633
          %v1728 = vpop.f32.mrb[0].mxu0
          %v1729 = vadd.f32 0.0, %v1728
          %v1730 = vpop.f32.mrb[0].mxu0
          %v1731 = vpop.f32.mrb[0].mxu0
          %v1732 = vadd.f32 0.0, %v1731
          %v1733 = vpop.f32.mrb[0].mxu0
          %1734 = vdwg.mxu0
          %v1735 = vadd.f32 %v1313, %v1673
          %v1736 = vadd.f32 %v1314, %v1676
          %v1737 = vadd.f32 %v1315, %v1681
          %v1738 = vadd.f32 %v1316, %v1684
          %v1739 = vadd.f32 %v1317, %v1689
          %v1740 = vadd.f32 %v1318, %v1692
          %v1741 = vadd.f32 %v1319, %v1697
          %v1742 = vadd.f32 %v1320, %v1700
          %v1743 = vadd.f32 %v1321, %v1705
          %v1744 = vadd.f32 %v1322, %v1708
          %v1745 = vadd.f32 %v1323, %v1713
          %v1746 = vadd.f32 %v1324, %v1716
          %v1747 = vadd.f32 %v1325, %v1721
          %v1748 = vadd.f32 %v1326, %v1724
          %v1749 = vadd.f32 %v1327, %v1729
          %v1750 = vadd.f32 %v1328, %v1732
          %v1751 = vld [vmem:[%s1130] sm:$0xe]
          %v1752 = vld [vmem:[%s1130 + $0x8] sm:$0xe]
          %v1753 = vld [vmem:[%s1130 + $0x10] sm:$0xe]
          %v1754 = vld [vmem:[%s1130 + $0x18] sm:$0xe]
          %v1755 = vld [vmem:[%s1130 + $0x30] sm:$0xe]
          %v1756 = vld [vmem:[%s1130 + $0x38] sm:$0xe]
          %v1757 = vld [vmem:[%s1130 + $0x40] sm:$0xe]
          %v1758 = vld [vmem:[%s1130 + $0x48] sm:$0xe]
          %v1759 = vld [vmem:[%s1130 + $0x60] sm:$0xe]
          %v1760 = vld [vmem:[%s1130 + $0x68] sm:$0xe]
          %v1761 = vld [vmem:[%s1130 + $0x70] sm:$0xe]
          %v1762 = vld [vmem:[%s1130 + $0x78] sm:$0xe]
          %v1763 = vld [vmem:[%s1130 + $0x90] sm:$0xe]
          %v1764 = vld [vmem:[%s1130 + $0x98] sm:$0xe]
          %v1765 = vld [vmem:[%s1130 + $0xa0] sm:$0xe]
          %v1766 = vld [vmem:[%s1130 + $0xa8] sm:$0xe]
          %v1799 = vrot.slane %v1751, 5
          %v1800 = vrot.slane %v1799, 4
          %v1801 = vrot.slane %v1330, 5
          %v1802 = vsel %vm899, %v1800, %v1801
          %v1803 = vrot.slane %v1752, 5
          %v1804 = vrot.slane %v1803, 4
          %v1805 = vrot.slane %v1332, 5
          %v1806 = vsel %vm899, %v1804, %v1805
          %v1807 = vrot.slane %v1753, 5
          %v1808 = vrot.slane %v1807, 4
          %v1809 = vrot.slane %v1334, 5
          %v1810 = vsel %vm899, %v1808, %v1809
          %v1811 = vrot.slane %v1754, 5
          %v1812 = vrot.slane %v1811, 4
          %v1813 = vrot.slane %v1336, 5
          %v1814 = vsel %vm899, %v1812, %v1813
          %v1815 = vrot.slane %v1755, 5
          %v1816 = vrot.slane %v1815, 4
          %v1817 = vrot.slane %v1338, 5
          %v1818 = vsel %vm899, %v1816, %v1817
          %v1819 = vrot.slane %v1756, 5
          %v1820 = vrot.slane %v1819, 4
          %v1821 = vrot.slane %v1340, 5
          %v1822 = vsel %vm899, %v1820, %v1821
          %v1823 = vrot.slane %v1757, 5
          %v1824 = vrot.slane %v1823, 4
          %v1825 = vrot.slane %v1342, 5
          %v1826 = vsel %vm899, %v1824, %v1825
          %v1827 = vrot.slane %v1758, 5
          %v1828 = vrot.slane %v1827, 4
          %v1829 = vrot.slane %v1344, 5
          %v1830 = vsel %vm899, %v1828, %v1829
          %v1831 = vrot.slane %v1759, 5
          %v1832 = vrot.slane %v1831, 4
          %v1833 = vrot.slane %v1346, 5
          %v1834 = vsel %vm899, %v1832, %v1833
          %v1835 = vrot.slane %v1760, 5
          %v1836 = vrot.slane %v1835, 4
          %v1837 = vrot.slane %v1348, 5
          %v1838 = vsel %vm899, %v1836, %v1837
          %v1839 = vrot.slane %v1761, 5
          %v1840 = vrot.slane %v1839, 4
          %v1841 = vrot.slane %v1350, 5
          %v1842 = vsel %vm899, %v1840, %v1841
          %v1843 = vrot.slane %v1762, 5
          %v1844 = vrot.slane %v1843, 4
          %v1845 = vrot.slane %v1352, 5
          %v1846 = vsel %vm899, %v1844, %v1845
          %v1847 = vrot.slane %v1763, 5
          %v1848 = vrot.slane %v1847, 4
          %v1849 = vrot.slane %v1354, 5
          %v1850 = vsel %vm899, %v1848, %v1849
          %v1851 = vrot.slane %v1764, 5
          %v1852 = vrot.slane %v1851, 4
          %v1853 = vrot.slane %v1356, 5
          %v1854 = vsel %vm899, %v1852, %v1853
          %v1855 = vrot.slane %v1765, 5
          %v1856 = vrot.slane %v1855, 4
          %v1857 = vrot.slane %v1358, 5
          %v1858 = vsel %vm899, %v1856, %v1857
          %v1859 = vrot.slane %v1766, 5
          %v1860 = vrot.slane %v1859, 4
          %v1861 = vrot.slane %v1360, 5
          %v1862 = vsel %vm899, %v1860, %v1861
          %s1863 = scalar_lea.vmem %s1, 20
          %v1864 = vld [vmem:[%s1863] sm:$0xf]
          %v1865 = vunpack.c.l.b16 %v1802
          %v1866 = vunpack.c.l.b16 %v1806
          %v1867 = vunpack.c.l.b16 %v1810
          %v1868 = vunpack.c.l.b16 %v1814
          %v1869 = vunpack.c.l.b16 %v1818
          %v1870 = vunpack.c.l.b16 %v1822
          %v1871 = vunpack.c.l.b16 %v1826
          %v1872 = vunpack.c.l.b16 %v1830
          %v1873 = vunpack.c.l.b16 %v1834
          %v1874 = vunpack.c.l.b16 %v1838
          %v1875 = vunpack.c.l.b16 %v1842
          %v1876 = vunpack.c.l.b16 %v1846
          %v1877 = vunpack.c.l.b16 %v1850
          %v1878 = vunpack.c.l.b16 %v1854
          %v1879 = vunpack.c.l.b16 %v1858
          %v1880 = vunpack.c.l.b16 %v1862
          %v1881 = vpack.c.b16 %v1866, %v1865
          %v1882 = vpack.c.b16 %v1868, %v1867
          %v1883 = vpack.c.b16 %v1870, %v1869
          %v1884 = vpack.c.b16 %v1872, %v1871
          %v1885 = vpack.c.b16 %v1874, %v1873
          %v1886 = vpack.c.b16 %v1876, %v1875
          %v1887 = vpack.c.b16 %v1878, %v1877
          %v1888 = vpack.c.b16 %v1880, %v1879
          %v1890 = vsel %vm559, %v1881, 0
          %v1893 = vsel %vm559, %v1882, 0
          %v1896 = vsel %vm559, %v1883, 0
          %v1899 = vsel %vm559, %v1884, 0
          %v1902 = vsel %vm559, %v1885, 0
          %v1905 = vsel %vm559, %v1886, 0
          %v1908 = vsel %vm559, %v1887, 0
          %v1911 = vsel %vm559, %v1888, 0
          %v1914 = vsel %vm584, %v1864, 0
          %1916 = vmatprep.subr.bf16.mxu0 0
          %1917 = vmatpush1.bf16.msra.mxu0 %v1914
          %1918 = vmatprep.subr.bf16.mxu0 0
          %1919 = vmatpush1.bf16.msra.mxu0 0
          %1920 = vmatprep.subr.bf16.mxu0 0
          %1921 = vmatpush1.bf16.msra.mxu0 0
          %1922 = vmatprep.subr.bf16.mxu0 0
          %1923 = vmatpush1.bf16.msra.mxu0 0
          %1924 = vmatprep.subr.bf16.mxu0 0
          %1925 = vmatpush1.bf16.msra.mxu0 0
          %1926 = vmatprep.subr.bf16.mxu0 0
          %1927 = vmatpush1.bf16.msra.mxu0 0
          %1928 = vmatprep.subr.bf16.mxu0 0
          %1929 = vmatpush1.bf16.msra.mxu0 0
          %1930 = vmatprep.subr.bf16.mxu0 0
          %1931 = vmatpush1.bf16.msra.mxu0 0
          %1932 = vmatprep.subr.bf16.mxu0 0
          %1933 = vmatpush1.bf16.msra.mxu0 0
          %1934 = vmatprep.subr.bf16.mxu0 0
          %1935 = vmatpush1.bf16.msra.mxu0 0
          %1936 = vmatprep.subr.bf16.mxu0 0
          %1937 = vmatpush1.bf16.msra.mxu0 0
          %1938 = vmatprep.subr.bf16.mxu0 0
          %1939 = vmatpush1.bf16.msra.mxu0 0
          %1940 = vmatprep.subr.bf16.mxu0 0
          %1941 = vmatpush1.bf16.msra.mxu0 0
          %1942 = vmatprep.subr.bf16.mxu0 0
          %1943 = vmatpush1.bf16.msra.mxu0 0
          %1944 = vmatprep.subr.bf16.mxu0 0
          %1945 = vmatpush1.bf16.msra.mxu0 0
          %1946 = vmatprep.subr.bf16.mxu0 0
          %1947 = vmatpush1.bf16.msra.mxu0 0
          %1948 = vmatprep.mubr.bf16.mxu0 0
          %1949 = vmatmul.mubr.bf16.gmra.mrb[0].mxu0 %v1890
          %v1950 = vpop.f32.mrb[0].mxu0
          %v1951 = vadd.f32 0.0, %v1950
          %v1952 = vpop.f32.mrb[0].mxu0
          %v1953 = vpop.f32.mrb[0].mxu0
          %v1954 = vadd.f32 0.0, %v1953
          %v1955 = vpop.f32.mrb[0].mxu0
          %1956 = vmatprep.mubr.bf16.mxu0 0
          %1957 = vmatmul.mubr.bf16.gmra.mrb[0].mxu0 %v1893
          %v1958 = vpop.f32.mrb[0].mxu0
          %v1959 = vadd.f32 0.0, %v1958
          %v1960 = vpop.f32.mrb[0].mxu0
          %v1961 = vpop.f32.mrb[0].mxu0
          %v1962 = vadd.f32 0.0, %v1961
          %v1963 = vpop.f32.mrb[0].mxu0
          %1964 = vmatprep.mubr.bf16.mxu0 0
          %1965 = vmatmul.mubr.bf16.gmra.mrb[0].mxu0 %v1896
          %v1966 = vpop.f32.mrb[0].mxu0
          %v1967 = vadd.f32 0.0, %v1966
          %v1968 = vpop.f32.mrb[0].mxu0
          %v1969 = vpop.f32.mrb[0].mxu0
          %v1970 = vadd.f32 0.0, %v1969
          %v1971 = vpop.f32.mrb[0].mxu0
          %1972 = vmatprep.mubr.bf16.mxu0 0
          %1973 = vmatmul.mubr.bf16.gmra.mrb[0].mxu0 %v1899
          %v1974 = vpop.f32.mrb[0].mxu0
          %v1975 = vadd.f32 0.0, %v1974
          %v1976 = vpop.f32.mrb[0].mxu0
          %v1977 = vpop.f32.mrb[0].mxu0
          %v1978 = vadd.f32 0.0, %v1977
          %v1979 = vpop.f32.mrb[0].mxu0
          %1980 = vmatprep.mubr.bf16.mxu0 0
          %1981 = vmatmul.mubr.bf16.gmra.mrb[0].mxu0 %v1902
          %v1982 = vpop.f32.mrb[0].mxu0
          %v1983 = vadd.f32 0.0, %v1982
          %v1984 = vpop.f32.mrb[0].mxu0
          %v1985 = vpop.f32.mrb[0].mxu0
          %v1986 = vadd.f32 0.0, %v1985
          %v1987 = vpop.f32.mrb[0].mxu0
          %1988 = vmatprep.mubr.bf16.mxu0 0
          %1989 = vmatmul.mubr.bf16.gmra.mrb[0].mxu0 %v1905
          %v1990 = vpop.f32.mrb[0].mxu0
          %v1991 = vadd.f32 0.0, %v1990
          %v1992 = vpop.f32.mrb[0].mxu0
          %v1993 = vpop.f32.mrb[0].mxu0
          %v1994 = vadd.f32 0.0, %v1993
          %v1995 = vpop.f32.mrb[0].mxu0
          %1996 = vmatprep.mubr.bf16.mxu0 0
          %1997 = vmatmul.mubr.bf16.gmra.mrb[0].mxu0 %v1908
          %v1998 = vpop.f32.mrb[0].mxu0
          %v1999 = vadd.f32 0.0, %v1998
          %v2000 = vpop.f32.mrb[0].mxu0
          %v2001 = vpop.f32.mrb[0].mxu0
          %v2002 = vadd.f32 0.0, %v2001
          %v2003 = vpop.f32.mrb[0].mxu0
          %2004 = vmatprep.mubr.bf16.mxu0 0
          %2005 = vmatmul.mubr.bf16.gmra.mrb[0].mxu0 %v1911
          %v2006 = vpop.f32.mrb[0].mxu0
          %v2007 = vadd.f32 0.0, %v2006
          %v2008 = vpop.f32.mrb[0].mxu0
          %v2009 = vpop.f32.mrb[0].mxu0
          %v2010 = vadd.f32 0.0, %v2009
          %v2011 = vpop.f32.mrb[0].mxu0
          %2012 = vdwg.mxu0
          %v2013 = vadd.f32 %v1735, %v1951
          %v2014 = vadd.f32 %v1736, %v1954
          %v2015 = vadd.f32 %v1737, %v1959
          %v2016 = vadd.f32 %v1738, %v1962
          %v2017 = vadd.f32 %v1739, %v1967
          %v2018 = vadd.f32 %v1740, %v1970
          %v2019 = vadd.f32 %v1741, %v1975
          %v2020 = vadd.f32 %v1742, %v1978
          %v2021 = vadd.f32 %v1743, %v1983
          %v2022 = vadd.f32 %v1744, %v1986
          %v2023 = vadd.f32 %v1745, %v1991
          %v2024 = vadd.f32 %v1746, %v1994
          %v2025 = vadd.f32 %v1747, %v1999
          %v2026 = vadd.f32 %v1748, %v2002
          %v2027 = vadd.f32 %v1749, %v2007
          %v2028 = vadd.f32 %v1750, %v2010
          %s2029 = scalar_lea.vmem %s260, 16
          %v2030 = vld [vmem:[%s2029] sm:$0xf]
          %v2031 = vld [vmem:[%s2029 + $0x8] sm:$0xf]
          %v2032 = vld [vmem:[%s2029 + $0x10] sm:$0xf]
          %v2033 = vld [vmem:[%s2029 + $0x18] sm:$0xf]
          %v2034 = vld [vmem:[%s2029 + $0x30] sm:$0xf]
          %v2035 = vld [vmem:[%s2029 + $0x38] sm:$0xf]
          %v2036 = vld [vmem:[%s2029 + $0x40] sm:$0xf]
          %v2037 = vld [vmem:[%s2029 + $0x48] sm:$0xf]
          %v2038 = vld [vmem:[%s2029 + $0x60] sm:$0xf]
          %v2039 = vld [vmem:[%s2029 + $0x68] sm:$0xf]
          %v2040 = vld [vmem:[%s2029 + $0x70] sm:$0xf]
          %v2041 = vld [vmem:[%s2029 + $0x78] sm:$0xf]
          %v2042 = vld [vmem:[%s2029 + $0x90] sm:$0xf]
          %v2043 = vld [vmem:[%s2029 + $0x98] sm:$0xf]
          %v2044 = vld [vmem:[%s2029 + $0xa0] sm:$0xf]
          %v2045 = vld [vmem:[%s2029 + $0xa8] sm:$0xf]
          %s2046 = scalar_lea.vmem %s1, 24
          %v2047 = vld [vmem:[%s2046] sm:$0xf]
          %v2064 = vunpack.c.l.b16 %v2030
          %v2065 = vunpack.c.l.b16 %v2031
          %v2066 = vunpack.c.l.b16 %v2032
          %v2067 = vunpack.c.l.b16 %v2033
          %v2068 = vunpack.c.l.b16 %v2034
          %v2069 = vunpack.c.l.b16 %v2035
          %v2070 = vunpack.c.l.b16 %v2036
          %v2071 = vunpack.c.l.b16 %v2037
          %v2072 = vunpack.c.l.b16 %v2038
          %v2073 = vunpack.c.l.b16 %v2039
          %v2074 = vunpack.c.l.b16 %v2040
          %v2075 = vunpack.c.l.b16 %v2041
          %v2076 = vunpack.c.l.b16 %v2042
          %v2077 = vunpack.c.l.b16 %v2043
          %v2078 = vunpack.c.l.b16 %v2044
          %v2079 = vunpack.c.l.b16 %v2045
          %v2080 = vpack.c.b16 %v2065, %v2064
          %v2081 = vpack.c.b16 %v2067, %v2066
          %v2082 = vpack.c.b16 %v2069, %v2068
          %v2083 = vpack.c.b16 %v2071, %v2070
          %v2084 = vpack.c.b16 %v2073, %v2072
          %v2085 = vpack.c.b16 %v2075, %v2074
          %v2086 = vpack.c.b16 %v2077, %v2076
          %v2087 = vpack.c.b16 %v2079, %v2078
          %v2089 = vsel %vm559, %v2080, 0
          %v2092 = vsel %vm559, %v2081, 0
          %v2095 = vsel %vm559, %v2082, 0
          %v2098 = vsel %vm559, %v2083, 0
          %v2101 = vsel %vm559, %v2084, 0
          %v2104 = vsel %vm559, %v2085, 0
          %v2107 = vsel %vm559, %v2086, 0
          %v2110 = vsel %vm559, %v2087, 0
          %v2113 = vsel %vm584, %v2047, 0
          %2115 = vmatprep.subr.bf16.mxu0 0
          %2116 = vmatpush1.bf16.msra.mxu0 %v2113
          %2117 = vmatprep.subr.bf16.mxu0 0
          %2118 = vmatpush1.bf16.msra.mxu0 0
          %2119 = vmatprep.subr.bf16.mxu0 0
          %2120 = vmatpush1.bf16.msra.mxu0 0
          %2121 = vmatprep.subr.bf16.mxu0 0
          %2122 = vmatpush1.bf16.msra.mxu0 0
          %2123 = vmatprep.subr.bf16.mxu0 0
          %2124 = vmatpush1.bf16.msra.mxu0 0
          %2125 = vmatprep.subr.bf16.mxu0 0
          %2126 = vmatpush1.bf16.msra.mxu0 0
          %2127 = vmatprep.subr.bf16.mxu0 0
          %2128 = vmatpush1.bf16.msra.mxu0 0
          %2129 = vmatprep.subr.bf16.mxu0 0
          %2130 = vmatpush1.bf16.msra.mxu0 0
          %2131 = vmatprep.subr.bf16.mxu0 0
          %2132 = vmatpush1.bf16.msra.mxu0 0
          %2133 = vmatprep.subr.bf16.mxu0 0
          %2134 = vmatpush1.bf16.msra.mxu0 0
          %2135 = vmatprep.subr.bf16.mxu0 0
          %2136 = vmatpush1.bf16.msra.mxu0 0
          %2137 = vmatprep.subr.bf16.mxu0 0
          %2138 = vmatpush1.bf16.msra.mxu0 0
          %2139 = vmatprep.subr.bf16.mxu0 0
          %2140 = vmatpush1.bf16.msra.mxu0 0
          %2141 = vmatprep.subr.bf16.mxu0 0
          %2142 = vmatpush1.bf16.msra.mxu0 0
          %2143 = vmatprep.subr.bf16.mxu0 0
          %2144 = vmatpush1.bf16.msra.mxu0 0
          %2145 = vmatprep.subr.bf16.mxu0 0
          %2146 = vmatpush1.bf16.msra.mxu0 0
          %2147 = vmatprep.mubr.bf16.mxu0 0
          %2148 = vmatmul.mubr.bf16.gmra.mrb[0].mxu0 %v2089
          %v2149 = vpop.f32.mrb[0].mxu0
          %v2150 = vadd.f32 0.0, %v2149
          %v2151 = vpop.f32.mrb[0].mxu0
          %v2152 = vpop.f32.mrb[0].mxu0
          %v2153 = vadd.f32 0.0, %v2152
          %v2154 = vpop.f32.mrb[0].mxu0
          %2155 = vmatprep.mubr.bf16.mxu0 0
          %2156 = vmatmul.mubr.bf16.gmra.mrb[0].mxu0 %v2092
          %v2157 = vpop.f32.mrb[0].mxu0
          %v2158 = vadd.f32 0.0, %v2157
          %v2159 = vpop.f32.mrb[0].mxu0
          %v2160 = vpop.f32.mrb[0].mxu0
          %v2161 = vadd.f32 0.0, %v2160
          %v2162 = vpop.f32.mrb[0].mxu0
          %2163 = vmatprep.mubr.bf16.mxu0 0
          %2164 = vmatmul.mubr.bf16.gmra.mrb[0].mxu0 %v2095
          %v2165 = vpop.f32.mrb[0].mxu0
          %v2166 = vadd.f32 0.0, %v2165
          %v2167 = vpop.f32.mrb[0].mxu0
          %v2168 = vpop.f32.mrb[0].mxu0
          %v2169 = vadd.f32 0.0, %v2168
          %v2170 = vpop.f32.mrb[0].mxu0
          %2171 = vmatprep.mubr.bf16.mxu0 0
          %2172 = vmatmul.mubr.bf16.gmra.mrb[0].mxu0 %v2098
          %v2173 = vpop.f32.mrb[0].mxu0
          %v2174 = vadd.f32 0.0, %v2173
          %v2175 = vpop.f32.mrb[0].mxu0
          %v2176 = vpop.f32.mrb[0].mxu0
          %v2177 = vadd.f32 0.0, %v2176
          %v2178 = vpop.f32.mrb[0].mxu0
          %2179 = vmatprep.mubr.bf16.mxu0 0
          %2180 = vmatmul.mubr.bf16.gmra.mrb[0].mxu0 %v2101
          %v2181 = vpop.f32.mrb[0].mxu0
          %v2182 = vadd.f32 0.0, %v2181
          %v2183 = vpop.f32.mrb[0].mxu0
          %v2184 = vpop.f32.mrb[0].mxu0
          %v2185 = vadd.f32 0.0, %v2184
          %v2186 = vpop.f32.mrb[0].mxu0
          %2187 = vmatprep.mubr.bf16.mxu0 0
          %2188 = vmatmul.mubr.bf16.gmra.mrb[0].mxu0 %v2104
          %v2189 = vpop.f32.mrb[0].mxu0
          %v2190 = vadd.f32 0.0, %v2189
          %v2191 = vpop.f32.mrb[0].mxu0
          %v2192 = vpop.f32.mrb[0].mxu0
          %v2193 = vadd.f32 0.0, %v2192
          %v2194 = vpop.f32.mrb[0].mxu0
          %2195 = vmatprep.mubr.bf16.mxu0 0
          %2196 = vmatmul.mubr.bf16.gmra.mrb[0].mxu0 %v2107
          %v2197 = vpop.f32.mrb[0].mxu0
          %v2198 = vadd.f32 0.0, %v2197
          %v2199 = vpop.f32.mrb[0].mxu0
          %v2200 = vpop.f32.mrb[0].mxu0
          %v2201 = vadd.f32 0.0, %v2200
          %v2202 = vpop.f32.mrb[0].mxu0
          %2203 = vmatprep.mubr.bf16.mxu0 0
          %2204 = vmatmul.mubr.bf16.gmra.mrb[0].mxu0 %v2110
          %v2205 = vpop.f32.mrb[0].mxu0
          %v2206 = vadd.f32 0.0, %v2205
          %v2207 = vpop.f32.mrb[0].mxu0
          %v2208 = vpop.f32.mrb[0].mxu0
          %v2209 = vadd.f32 0.0, %v2208
          %v2210 = vpop.f32.mrb[0].mxu0
          %2211 = vdwg.mxu0
          %v2212 = vadd.f32 %v2013, %v2150
          %v2213 = vadd.f32 %v2014, %v2153
          %v2214 = vadd.f32 %v2015, %v2158
          %v2215 = vadd.f32 %v2016, %v2161
          %v2216 = vadd.f32 %v2017, %v2166
          %v2217 = vadd.f32 %v2018, %v2169
          %v2218 = vadd.f32 %v2019, %v2174
          %v2219 = vadd.f32 %v2020, %v2177
          %v2220 = vadd.f32 %v2021, %v2182
          %v2221 = vadd.f32 %v2022, %v2185
          %v2222 = vadd.f32 %v2023, %v2190
          %v2223 = vadd.f32 %v2024, %v2193
          %v2224 = vadd.f32 %v2025, %v2198
          %v2225 = vadd.f32 %v2026, %v2201
          %v2226 = vadd.f32 %v2027, %v2206
          %v2227 = vadd.f32 %v2028, %v2209
          %v2228 = vld [vmem:[%s2029] sm:$0xf]
          %v2229 = vld [vmem:[%s2029 + $0x4] sm:$0x1]
          %v2230 = vld [vmem:[%s2029 + $0x8] sm:$0xf]
          %v2231 = vld [vmem:[%s2029 + $0xc] sm:$0x1]
          %v2232 = vld [vmem:[%s2029 + $0x10] sm:$0xf]
          %v2233 = vld [vmem:[%s2029 + $0x14] sm:$0x1]
          %v2234 = vld [vmem:[%s2029 + $0x18] sm:$0xf]
          %v2235 = vld [vmem:[%s2029 + $0x1c] sm:$0x1]
          %v2236 = vld [vmem:[%s2029 + $0x30] sm:$0xf]
          %v2237 = vld [vmem:[%s2029 + $0x34] sm:$0x1]
          %v2238 = vld [vmem:[%s2029 + $0x38] sm:$0xf]
          %v2239 = vld [vmem:[%s2029 + $0x3c] sm:$0x1]
          %v2240 = vld [vmem:[%s2029 + $0x40] sm:$0xf]
          %v2241 = vld [vmem:[%s2029 + $0x44] sm:$0x1]
          %v2242 = vld [vmem:[%s2029 + $0x48] sm:$0xf]
          %v2243 = vld [vmem:[%s2029 + $0x4c] sm:$0x1]
          %v2244 = vld [vmem:[%s2029 + $0x60] sm:$0xf]
          %v2245 = vld [vmem:[%s2029 + $0x64] sm:$0x1]
          %v2246 = vld [vmem:[%s2029 + $0x68] sm:$0xf]
          %v2247 = vld [vmem:[%s2029 + $0x6c] sm:$0x1]
          %v2248 = vld [vmem:[%s2029 + $0x70] sm:$0xf]
          %v2249 = vld [vmem:[%s2029 + $0x74] sm:$0x1]
          %v2250 = vld [vmem:[%s2029 + $0x78] sm:$0xf]
          %v2251 = vld [vmem:[%s2029 + $0x7c] sm:$0x1]
          %v2252 = vld [vmem:[%s2029 + $0x90] sm:$0xf]
          %v2253 = vld [vmem:[%s2029 + $0x94] sm:$0x1]
          %v2254 = vld [vmem:[%s2029 + $0x98] sm:$0xf]
          %v2255 = vld [vmem:[%s2029 + $0x9c] sm:$0x1]
          %v2256 = vld [vmem:[%s2029 + $0xa0] sm:$0xf]
          %v2257 = vld [vmem:[%s2029 + $0xa4] sm:$0x1]
          %v2258 = vld [vmem:[%s2029 + $0xa8] sm:$0xf]
          %v2259 = vld [vmem:[%s2029 + $0xac] sm:$0x1]
          %v2261 = vshrl.u32 %v2228, 16
          %v2263 = vrot.slane %v2261, 4
          %v2264 = vshll.u32 %v2228, 16
          %v2266 = vrot.slane %v2264, 5
          %v2267 = vor.u32 %v2263, %v2266
          %v2268 = vrot.slane %v2267, 4
          %v2270 = vshll.u32 %v2229, 16
          %v2272 = vrot.slane %v2270, 5
          %v2273 = vsel %vm308, %v2268, %v2272
          %v2275 = vshrl.u32 %v2230, 16
          %v2277 = vrot.slane %v2275, 4
          %v2278 = vshll.u32 %v2230, 16
          %v2280 = vrot.slane %v2278, 5
          %v2281 = vor.u32 %v2277, %v2280
          %v2282 = vrot.slane %v2281, 4
          %v2284 = vshll.u32 %v2231, 16
          %v2286 = vrot.slane %v2284, 5
          %v2287 = vsel %vm308, %v2282, %v2286
          %v2289 = vshrl.u32 %v2232, 16
          %v2291 = vrot.slane %v2289, 4
          %v2292 = vshll.u32 %v2232, 16
          %v2294 = vrot.slane %v2292, 5
          %v2295 = vor.u32 %v2291, %v2294
          %v2296 = vrot.slane %v2295, 4
          %v2298 = vshll.u32 %v2233, 16
          %v2300 = vrot.slane %v2298, 5
          %v2301 = vsel %vm308, %v2296, %v2300
          %v2303 = vshrl.u32 %v2234, 16
          %v2305 = vrot.slane %v2303, 4
          %v2306 = vshll.u32 %v2234, 16
          %v2308 = vrot.slane %v2306, 5
          %v2309 = vor.u32 %v2305, %v2308
          %v2310 = vrot.slane %v2309, 4
          %v2312 = vshll.u32 %v2235, 16
          %v2314 = vrot.slane %v2312, 5
          %v2315 = vsel %vm308, %v2310, %v2314
          %v2317 = vshrl.u32 %v2236, 16
          %v2319 = vrot.slane %v2317, 4
          %v2320 = vshll.u32 %v2236, 16
          %v2322 = vrot.slane %v2320, 5
          %v2323 = vor.u32 %v2319, %v2322
          %v2324 = vrot.slane %v2323, 4
          %v2326 = vshll.u32 %v2237, 16
          %v2328 = vrot.slane %v2326, 5
          %v2329 = vsel %vm308, %v2324, %v2328
          %v2331 = vshrl.u32 %v2238, 16
          %v2333 = vrot.slane %v2331, 4
          %v2334 = vshll.u32 %v2238, 16
          %v2336 = vrot.slane %v2334, 5
          %v2337 = vor.u32 %v2333, %v2336
          %v2338 = vrot.slane %v2337, 4
          %v2340 = vshll.u32 %v2239, 16
          %v2342 = vrot.slane %v2340, 5
          %v2343 = vsel %vm308, %v2338, %v2342
          %v2345 = vshrl.u32 %v2240, 16
          %v2347 = vrot.slane %v2345, 4
          %v2348 = vshll.u32 %v2240, 16
          %v2350 = vrot.slane %v2348, 5
          %v2351 = vor.u32 %v2347, %v2350
          %v2352 = vrot.slane %v2351, 4
          %v2354 = vshll.u32 %v2241, 16
          %v2356 = vrot.slane %v2354, 5
          %v2357 = vsel %vm308, %v2352, %v2356
          %v2359 = vshrl.u32 %v2242, 16
          %v2361 = vrot.slane %v2359, 4
          %v2362 = vshll.u32 %v2242, 16
          %v2364 = vrot.slane %v2362, 5
          %v2365 = vor.u32 %v2361, %v2364
          %v2366 = vrot.slane %v2365, 4
          %v2368 = vshll.u32 %v2243, 16
          %v2370 = vrot.slane %v2368, 5
          %v2371 = vsel %vm308, %v2366, %v2370
          %v2373 = vshrl.u32 %v2244, 16
          %v2375 = vrot.slane %v2373, 4
          %v2376 = vshll.u32 %v2244, 16
          %v2378 = vrot.slane %v2376, 5
          %v2379 = vor.u32 %v2375, %v2378
          %v2380 = vrot.slane %v2379, 4
          %v2382 = vshll.u32 %v2245, 16
          %v2384 = vrot.slane %v2382, 5
          %v2385 = vsel %vm308, %v2380, %v2384
          %v2387 = vshrl.u32 %v2246, 16
          %v2389 = vrot.slane %v2387, 4
          %v2390 = vshll.u32 %v2246, 16
          %v2392 = vrot.slane %v2390, 5
          %v2393 = vor.u32 %v2389, %v2392
          %v2394 = vrot.slane %v2393, 4
          %v2396 = vshll.u32 %v2247, 16
          %v2398 = vrot.slane %v2396, 5
          %v2399 = vsel %vm308, %v2394, %v2398
          %v2401 = vshrl.u32 %v2248, 16
          %v2403 = vrot.slane %v2401, 4
          %v2404 = vshll.u32 %v2248, 16
          %v2406 = vrot.slane %v2404, 5
          %v2407 = vor.u32 %v2403, %v2406
          %v2408 = vrot.slane %v2407, 4
          %v2410 = vshll.u32 %v2249, 16
          %v2412 = vrot.slane %v2410, 5
          %v2413 = vsel %vm308, %v2408, %v2412
          %v2415 = vshrl.u32 %v2250, 16
          %v2417 = vrot.slane %v2415, 4
          %v2418 = vshll.u32 %v2250, 16
          %v2420 = vrot.slane %v2418, 5
          %v2421 = vor.u32 %v2417, %v2420
          %v2422 = vrot.slane %v2421, 4
          %v2424 = vshll.u32 %v2251, 16
          %v2426 = vrot.slane %v2424, 5
          %v2427 = vsel %vm308, %v2422, %v2426
          %v2429 = vshrl.u32 %v2252, 16
          %v2431 = vrot.slane %v2429, 4
          %v2432 = vshll.u32 %v2252, 16
          %v2434 = vrot.slane %v2432, 5
          %v2435 = vor.u32 %v2431, %v2434
          %v2436 = vrot.slane %v2435, 4
          %v2438 = vshll.u32 %v2253, 16
          %v2440 = vrot.slane %v2438, 5
          %v2441 = vsel %vm308, %v2436, %v2440
          %v2443 = vshrl.u32 %v2254, 16
          %v2445 = vrot.slane %v2443, 4
          %v2446 = vshll.u32 %v2254, 16
          %v2448 = vrot.slane %v2446, 5
          %v2449 = vor.u32 %v2445, %v2448
          %v2450 = vrot.slane %v2449, 4
          %v2452 = vshll.u32 %v2255, 16
          %v2454 = vrot.slane %v2452, 5
          %v2455 = vsel %vm308, %v2450, %v2454
          %v2457 = vshrl.u32 %v2256, 16
          %v2459 = vrot.slane %v2457, 4
          %v2460 = vshll.u32 %v2256, 16
          %v2462 = vrot.slane %v2460, 5
          %v2463 = vor.u32 %v2459, %v2462
          %v2464 = vrot.slane %v2463, 4
          %v2466 = vshll.u32 %v2257, 16
          %v2468 = vrot.slane %v2466, 5
          %v2469 = vsel %vm308, %v2464, %v2468
          %v2471 = vshrl.u32 %v2258, 16
          %v2473 = vrot.slane %v2471, 4
          %v2474 = vshll.u32 %v2258, 16
          %v2476 = vrot.slane %v2474, 5
          %v2477 = vor.u32 %v2473, %v2476
          %v2478 = vrot.slane %v2477, 4
          %v2480 = vshll.u32 %v2259, 16
          %v2482 = vrot.slane %v2480, 5
          %v2483 = vsel %vm308, %v2478, %v2482
          %s2484 = scalar_lea.vmem %s1, 28
          %v2485 = vld [vmem:[%s2484] sm:$0xf]
          %v2486 = vunpack.c.l.b16 %v2273
          %v2487 = vunpack.c.l.b16 %v2287
          %v2488 = vunpack.c.l.b16 %v2301
          %v2489 = vunpack.c.l.b16 %v2315
          %v2490 = vunpack.c.l.b16 %v2329
          %v2491 = vunpack.c.l.b16 %v2343
          %v2492 = vunpack.c.l.b16 %v2357
          %v2493 = vunpack.c.l.b16 %v2371
          %v2494 = vunpack.c.l.b16 %v2385
          %v2495 = vunpack.c.l.b16 %v2399
          %v2496 = vunpack.c.l.b16 %v2413
          %v2497 = vunpack.c.l.b16 %v2427
          %v2498 = vunpack.c.l.b16 %v2441
          %v2499 = vunpack.c.l.b16 %v2455
          %v2500 = vunpack.c.l.b16 %v2469
          %v2501 = vunpack.c.l.b16 %v2483
          %v2502 = vpack.c.b16 %v2487, %v2486
          %v2503 = vpack.c.b16 %v2489, %v2488
          %v2504 = vpack.c.b16 %v2491, %v2490
          %v2505 = vpack.c.b16 %v2493, %v2492
          %v2506 = vpack.c.b16 %v2495, %v2494
          %v2507 = vpack.c.b16 %v2497, %v2496
          %v2508 = vpack.c.b16 %v2499, %v2498
          %v2509 = vpack.c.b16 %v2501, %v2500
          %v2511 = vsel %vm559, %v2502, 0
          %v2514 = vsel %vm559, %v2503, 0
          %v2517 = vsel %vm559, %v2504, 0
          %v2520 = vsel %vm559, %v2505, 0
          %v2523 = vsel %vm559, %v2506, 0
          %v2526 = vsel %vm559, %v2507, 0
          %v2529 = vsel %vm559, %v2508, 0
          %v2532 = vsel %vm559, %v2509, 0
          %v2535 = vsel %vm584, %v2485, 0
          %2537 = vmatprep.subr.bf16.mxu0 0
          %2538 = vmatpush1.bf16.msra.mxu0 %v2535
          %2539 = vmatprep.subr.bf16.mxu0 0
          %2540 = vmatpush1.bf16.msra.mxu0 0
          %2541 = vmatprep.subr.bf16.mxu0 0
          %2542 = vmatpush1.bf16.msra.mxu0 0
          %2543 = vmatprep.subr.bf16.mxu0 0
          %2544 = vmatpush1.bf16.msra.mxu0 0
          %2545 = vmatprep.subr.bf16.mxu0 0
          %2546 = vmatpush1.bf16.msra.mxu0 0
          %2547 = vmatprep.subr.bf16.mxu0 0
          %2548 = vmatpush1.bf16.msra.mxu0 0
          %2549 = vmatprep.subr.bf16.mxu0 0
          %2550 = vmatpush1.bf16.msra.mxu0 0
          %2551 = vmatprep.subr.bf16.mxu0 0
          %2552 = vmatpush1.bf16.msra.mxu0 0
          %2553 = vmatprep.subr.bf16.mxu0 0
          %2554 = vmatpush1.bf16.msra.mxu0 0
          %2555 = vmatprep.subr.bf16.mxu0 0
          %2556 = vmatpush1.bf16.msra.mxu0 0
          %2557 = vmatprep.subr.bf16.mxu0 0
          %2558 = vmatpush1.bf16.msra.mxu0 0
          %2559 = vmatprep.subr.bf16.mxu0 0
          %2560 = vmatpush1.bf16.msra.mxu0 0
          %2561 = vmatprep.subr.bf16.mxu0 0
          %2562 = vmatpush1.bf16.msra.mxu0 0
          %2563 = vmatprep.subr.bf16.mxu0 0
          %2564 = vmatpush1.bf16.msra.mxu0 0
          %2565 = vmatprep.subr.bf16.mxu0 0
          %2566 = vmatpush1.bf16.msra.mxu0 0
          %2567 = vmatprep.subr.bf16.mxu0 0
          %2568 = vmatpush1.bf16.msra.mxu0 0
          %2569 = vmatprep.mubr.bf16.mxu0 0
          %2570 = vmatmul.mubr.bf16.gmra.mrb[0].mxu0 %v2511
          %v2571 = vpop.f32.mrb[0].mxu0
          %v2572 = vadd.f32 0.0, %v2571
          %v2573 = vpop.f32.mrb[0].mxu0
          %v2574 = vpop.f32.mrb[0].mxu0
          %v2575 = vadd.f32 0.0, %v2574
          %v2576 = vpop.f32.mrb[0].mxu0
          %2577 = vmatprep.mubr.bf16.mxu0 0
          %2578 = vmatmul.mubr.bf16.gmra.mrb[0].mxu0 %v2514
          %v2579 = vpop.f32.mrb[0].mxu0
          %v2580 = vadd.f32 0.0, %v2579
          %v2581 = vpop.f32.mrb[0].mxu0
          %v2582 = vpop.f32.mrb[0].mxu0
          %v2583 = vadd.f32 0.0, %v2582
          %v2584 = vpop.f32.mrb[0].mxu0
          %2585 = vmatprep.mubr.bf16.mxu0 0
          %2586 = vmatmul.mubr.bf16.gmra.mrb[0].mxu0 %v2517
          %v2587 = vpop.f32.mrb[0].mxu0
          %v2588 = vadd.f32 0.0, %v2587
          %v2589 = vpop.f32.mrb[0].mxu0
          %v2590 = vpop.f32.mrb[0].mxu0
          %v2591 = vadd.f32 0.0, %v2590
          %v2592 = vpop.f32.mrb[0].mxu0
          %2593 = vmatprep.mubr.bf16.mxu0 0
          %2594 = vmatmul.mubr.bf16.gmra.mrb[0].mxu0 %v2520
          %v2595 = vpop.f32.mrb[0].mxu0
          %v2596 = vadd.f32 0.0, %v2595
          %v2597 = vpop.f32.mrb[0].mxu0
          %v2598 = vpop.f32.mrb[0].mxu0
          %v2599 = vadd.f32 0.0, %v2598
          %v2600 = vpop.f32.mrb[0].mxu0
          %2601 = vmatprep.mubr.bf16.mxu0 0
          %2602 = vmatmul.mubr.bf16.gmra.mrb[0].mxu0 %v2523
          %v2603 = vpop.f32.mrb[0].mxu0
          %v2604 = vadd.f32 0.0, %v2603
          %v2605 = vpop.f32.mrb[0].mxu0
          %v2606 = vpop.f32.mrb[0].mxu0
          %v2607 = vadd.f32 0.0, %v2606
          %v2608 = vpop.f32.mrb[0].mxu0
          %2609 = vmatprep.mubr.bf16.mxu0 0
          %2610 = vmatmul.mubr.bf16.gmra.mrb[0].mxu0 %v2526
          %v2611 = vpop.f32.mrb[0].mxu0
          %v2612 = vadd.f32 0.0, %v2611
          %v2613 = vpop.f32.mrb[0].mxu0
          %v2614 = vpop.f32.mrb[0].mxu0
          %v2615 = vadd.f32 0.0, %v2614
          %v2616 = vpop.f32.mrb[0].mxu0
          %2617 = vmatprep.mubr.bf16.mxu0 0
          %2618 = vmatmul.mubr.bf16.gmra.mrb[0].mxu0 %v2529
          %v2619 = vpop.f32.mrb[0].mxu0
          %v2620 = vadd.f32 0.0, %v2619
          %v2621 = vpop.f32.mrb[0].mxu0
          %v2622 = vpop.f32.mrb[0].mxu0
          %v2623 = vadd.f32 0.0, %v2622
          %v2624 = vpop.f32.mrb[0].mxu0
          %2625 = vmatprep.mubr.bf16.mxu0 0
          %2626 = vmatmul.mubr.bf16.gmra.mrb[0].mxu0 %v2532
          %v2627 = vpop.f32.mrb[0].mxu0
          %v2628 = vadd.f32 0.0, %v2627
          %v2629 = vpop.f32.mrb[0].mxu0
          %v2630 = vpop.f32.mrb[0].mxu0
          %v2631 = vadd.f32 0.0, %v2630
          %v2632 = vpop.f32.mrb[0].mxu0
          %2633 = vdwg.mxu0
          %v2634 = vadd.f32 %v2212, %v2572
          %v2635 = vadd.f32 %v2213, %v2575
          %v2636 = vadd.f32 %v2214, %v2580
          %v2637 = vadd.f32 %v2215, %v2583
          %v2638 = vadd.f32 %v2216, %v2588
          %v2639 = vadd.f32 %v2217, %v2591
          %v2640 = vadd.f32 %v2218, %v2596
          %v2641 = vadd.f32 %v2219, %v2599
          %v2642 = vadd.f32 %v2220, %v2604
          %v2643 = vadd.f32 %v2221, %v2607
          %v2644 = vadd.f32 %v2222, %v2612
          %v2645 = vadd.f32 %v2223, %v2615
          %v2646 = vadd.f32 %v2224, %v2620
          %v2647 = vadd.f32 %v2225, %v2623
          %v2648 = vadd.f32 %v2226, %v2628
          %v2649 = vadd.f32 %v2227, %v2631
          %v2650 = vld [vmem:[%s2029] sm:$0xe]
          %v2651 = vld [vmem:[%s2029 + $0x8] sm:$0xe]
          %v2652 = vld [vmem:[%s2029 + $0x10] sm:$0xe]
          %v2653 = vld [vmem:[%s2029 + $0x18] sm:$0xe]
          %v2654 = vld [vmem:[%s2029 + $0x30] sm:$0xe]
          %v2655 = vld [vmem:[%s2029 + $0x38] sm:$0xe]
          %v2656 = vld [vmem:[%s2029 + $0x40] sm:$0xe]
          %v2657 = vld [vmem:[%s2029 + $0x48] sm:$0xe]
          %v2658 = vld [vmem:[%s2029 + $0x60] sm:$0xe]
          %v2659 = vld [vmem:[%s2029 + $0x68] sm:$0xe]
          %v2660 = vld [vmem:[%s2029 + $0x70] sm:$0xe]
          %v2661 = vld [vmem:[%s2029 + $0x78] sm:$0xe]
          %v2662 = vld [vmem:[%s2029 + $0x90] sm:$0xe]
          %v2663 = vld [vmem:[%s2029 + $0x98] sm:$0xe]
          %v2664 = vld [vmem:[%s2029 + $0xa0] sm:$0xe]
          %v2665 = vld [vmem:[%s2029 + $0xa8] sm:$0xe]
          %v2698 = vrot.slane %v2650, 5
          %v2699 = vrot.slane %v2698, 4
          %v2700 = vrot.slane %v2229, 5
          %v2701 = vsel %vm899, %v2699, %v2700
          %v2702 = vrot.slane %v2651, 5
          %v2703 = vrot.slane %v2702, 4
          %v2704 = vrot.slane %v2231, 5
          %v2705 = vsel %vm899, %v2703, %v2704
          %v2706 = vrot.slane %v2652, 5
          %v2707 = vrot.slane %v2706, 4
          %v2708 = vrot.slane %v2233, 5
          %v2709 = vsel %vm899, %v2707, %v2708
          %v2710 = vrot.slane %v2653, 5
          %v2711 = vrot.slane %v2710, 4
          %v2712 = vrot.slane %v2235, 5
          %v2713 = vsel %vm899, %v2711, %v2712
          %v2714 = vrot.slane %v2654, 5
          %v2715 = vrot.slane %v2714, 4
          %v2716 = vrot.slane %v2237, 5
          %v2717 = vsel %vm899, %v2715, %v2716
          %v2718 = vrot.slane %v2655, 5
          %v2719 = vrot.slane %v2718, 4
          %v2720 = vrot.slane %v2239, 5
          %v2721 = vsel %vm899, %v2719, %v2720
          %v2722 = vrot.slane %v2656, 5
          %v2723 = vrot.slane %v2722, 4
          %v2724 = vrot.slane %v2241, 5
          %v2725 = vsel %vm899, %v2723, %v2724
          %v2726 = vrot.slane %v2657, 5
          %v2727 = vrot.slane %v2726, 4
          %v2728 = vrot.slane %v2243, 5
          %v2729 = vsel %vm899, %v2727, %v2728
          %v2730 = vrot.slane %v2658, 5
          %v2731 = vrot.slane %v2730, 4
          %v2732 = vrot.slane %v2245, 5
          %v2733 = vsel %vm899, %v2731, %v2732
          %v2734 = vrot.slane %v2659, 5
          %v2735 = vrot.slane %v2734, 4
          %v2736 = vrot.slane %v2247, 5
          %v2737 = vsel %vm899, %v2735, %v2736
          %v2738 = vrot.slane %v2660, 5
          %v2739 = vrot.slane %v2738, 4
          %v2740 = vrot.slane %v2249, 5
          %v2741 = vsel %vm899, %v2739, %v2740
          %v2742 = vrot.slane %v2661, 5
          %v2743 = vrot.slane %v2742, 4
          %v2744 = vrot.slane %v2251, 5
          %v2745 = vsel %vm899, %v2743, %v2744
          %v2746 = vrot.slane %v2662, 5
          %v2747 = vrot.slane %v2746, 4
          %v2748 = vrot.slane %v2253, 5
          %v2749 = vsel %vm899, %v2747, %v2748
          %v2750 = vrot.slane %v2663, 5
          %v2751 = vrot.slane %v2750, 4
          %v2752 = vrot.slane %v2255, 5
          %v2753 = vsel %vm899, %v2751, %v2752
          %v2754 = vrot.slane %v2664, 5
          %v2755 = vrot.slane %v2754, 4
          %v2756 = vrot.slane %v2257, 5
          %v2757 = vsel %vm899, %v2755, %v2756
          %v2758 = vrot.slane %v2665, 5
          %v2759 = vrot.slane %v2758, 4
          %v2760 = vrot.slane %v2259, 5
          %v2761 = vsel %vm899, %v2759, %v2760
          %s2762 = scalar_lea.vmem %s1, 32
          %v2763 = vld [vmem:[%s2762] sm:$0xf]
          %v2764 = vunpack.c.l.b16 %v2701
          %v2765 = vunpack.c.l.b16 %v2705
          %v2766 = vunpack.c.l.b16 %v2709
          %v2767 = vunpack.c.l.b16 %v2713
          %v2768 = vunpack.c.l.b16 %v2717
          %v2769 = vunpack.c.l.b16 %v2721
          %v2770 = vunpack.c.l.b16 %v2725
          %v2771 = vunpack.c.l.b16 %v2729
          %v2772 = vunpack.c.l.b16 %v2733
          %v2773 = vunpack.c.l.b16 %v2737
          %v2774 = vunpack.c.l.b16 %v2741
          %v2775 = vunpack.c.l.b16 %v2745
          %v2776 = vunpack.c.l.b16 %v2749
          %v2777 = vunpack.c.l.b16 %v2753
          %v2778 = vunpack.c.l.b16 %v2757
          %v2779 = vunpack.c.l.b16 %v2761
          %v2780 = vpack.c.b16 %v2765, %v2764
          %v2781 = vpack.c.b16 %v2767, %v2766
          %v2782 = vpack.c.b16 %v2769, %v2768
          %v2783 = vpack.c.b16 %v2771, %v2770
          %v2784 = vpack.c.b16 %v2773, %v2772
          %v2785 = vpack.c.b16 %v2775, %v2774
          %v2786 = vpack.c.b16 %v2777, %v2776
          %v2787 = vpack.c.b16 %v2779, %v2778
          %v2789 = vsel %vm559, %v2780, 0
          %v2792 = vsel %vm559, %v2781, 0
          %v2795 = vsel %vm559, %v2782, 0
          %v2798 = vsel %vm559, %v2783, 0
          %v2801 = vsel %vm559, %v2784, 0
          %v2804 = vsel %vm559, %v2785, 0
          %v2807 = vsel %vm559, %v2786, 0
          %v2810 = vsel %vm559, %v2787, 0
          %v2813 = vsel %vm584, %v2763, 0
          %2815 = vmatprep.subr.bf16.mxu0 0
          %2816 = vmatpush1.bf16.msra.mxu0 %v2813
          %2817 = vmatprep.subr.bf16.mxu0 0
          %2818 = vmatpush1.bf16.msra.mxu0 0
          %2819 = vmatprep.subr.bf16.mxu0 0
          %2820 = vmatpush1.bf16.msra.mxu0 0
          %2821 = vmatprep.subr.bf16.mxu0 0
          %2822 = vmatpush1.bf16.msra.mxu0 0
          %2823 = vmatprep.subr.bf16.mxu0 0
          %2824 = vmatpush1.bf16.msra.mxu0 0
          %2825 = vmatprep.subr.bf16.mxu0 0
          %2826 = vmatpush1.bf16.msra.mxu0 0
          %2827 = vmatprep.subr.bf16.mxu0 0
          %2828 = vmatpush1.bf16.msra.mxu0 0
          %2829 = vmatprep.subr.bf16.mxu0 0
          %2830 = vmatpush1.bf16.msra.mxu0 0
          %2831 = vmatprep.subr.bf16.mxu0 0
          %2832 = vmatpush1.bf16.msra.mxu0 0
          %2833 = vmatprep.subr.bf16.mxu0 0
          %2834 = vmatpush1.bf16.msra.mxu0 0
          %2835 = vmatprep.subr.bf16.mxu0 0
          %2836 = vmatpush1.bf16.msra.mxu0 0
          %2837 = vmatprep.subr.bf16.mxu0 0
          %2838 = vmatpush1.bf16.msra.mxu0 0
          %2839 = vmatprep.subr.bf16.mxu0 0
          %2840 = vmatpush1.bf16.msra.mxu0 0
          %2841 = vmatprep.subr.bf16.mxu0 0
          %2842 = vmatpush1.bf16.msra.mxu0 0
          %2843 = vmatprep.subr.bf16.mxu0 0
          %2844 = vmatpush1.bf16.msra.mxu0 0
          %2845 = vmatprep.subr.bf16.mxu0 0
          %2846 = vmatpush1.bf16.msra.mxu0 0
          %2847 = vmatprep.mubr.bf16.mxu0 0
          %2848 = vmatmul.mubr.bf16.gmra.mrb[0].mxu0 %v2789
          %v2849 = vpop.f32.mrb[0].mxu0
          %v2850 = vadd.f32 0.0, %v2849
          %v2851 = vpop.f32.mrb[0].mxu0
          %v2852 = vpop.f32.mrb[0].mxu0
          %v2853 = vadd.f32 0.0, %v2852
          %v2854 = vpop.f32.mrb[0].mxu0
          %2855 = vmatprep.mubr.bf16.mxu0 0
          %2856 = vmatmul.mubr.bf16.gmra.mrb[0].mxu0 %v2792
          %v2857 = vpop.f32.mrb[0].mxu0
          %v2858 = vadd.f32 0.0, %v2857
          %v2859 = vpop.f32.mrb[0].mxu0
          %v2860 = vpop.f32.mrb[0].mxu0
          %v2861 = vadd.f32 0.0, %v2860
          %v2862 = vpop.f32.mrb[0].mxu0
          %2863 = vmatprep.mubr.bf16.mxu0 0
          %2864 = vmatmul.mubr.bf16.gmra.mrb[0].mxu0 %v2795
          %v2865 = vpop.f32.mrb[0].mxu0
          %v2866 = vadd.f32 0.0, %v2865
          %v2867 = vpop.f32.mrb[0].mxu0
          %v2868 = vpop.f32.mrb[0].mxu0
          %v2869 = vadd.f32 0.0, %v2868
          %v2870 = vpop.f32.mrb[0].mxu0
          %2871 = vmatprep.mubr.bf16.mxu0 0
          %2872 = vmatmul.mubr.bf16.gmra.mrb[0].mxu0 %v2798
          %v2873 = vpop.f32.mrb[0].mxu0
          %v2874 = vadd.f32 0.0, %v2873
          %v2875 = vpop.f32.mrb[0].mxu0
          %v2876 = vpop.f32.mrb[0].mxu0
          %v2877 = vadd.f32 0.0, %v2876
          %v2878 = vpop.f32.mrb[0].mxu0
          %2879 = vmatprep.mubr.bf16.mxu0 0
          %2880 = vmatmul.mubr.bf16.gmra.mrb[0].mxu0 %v2801
          %v2881 = vpop.f32.mrb[0].mxu0
          %v2882 = vadd.f32 0.0, %v2881
          %v2883 = vpop.f32.mrb[0].mxu0
          %v2884 = vpop.f32.mrb[0].mxu0
          %v2885 = vadd.f32 0.0, %v2884
          %v2886 = vpop.f32.mrb[0].mxu0
          %2887 = vmatprep.mubr.bf16.mxu0 0
          %2888 = vmatmul.mubr.bf16.gmra.mrb[0].mxu0 %v2804
          %v2889 = vpop.f32.mrb[0].mxu0
          %v2890 = vadd.f32 0.0, %v2889
          %v2891 = vpop.f32.mrb[0].mxu0
          %v2892 = vpop.f32.mrb[0].mxu0
          %v2893 = vadd.f32 0.0, %v2892
          %v2894 = vpop.f32.mrb[0].mxu0
          %2895 = vmatprep.mubr.bf16.mxu0 0
          %2896 = vmatmul.mubr.bf16.gmra.mrb[0].mxu0 %v2807
          %v2897 = vpop.f32.mrb[0].mxu0
          %v2898 = vadd.f32 0.0, %v2897
          %v2899 = vpop.f32.mrb[0].mxu0
          %v2900 = vpop.f32.mrb[0].mxu0
          %v2901 = vadd.f32 0.0, %v2900
          %v2902 = vpop.f32.mrb[0].mxu0
          %2903 = vmatprep.mubr.bf16.mxu0 0
          %2904 = vmatmul.mubr.bf16.gmra.mrb[0].mxu0 %v2810
          %v2905 = vpop.f32.mrb[0].mxu0
          %v2906 = vadd.f32 0.0, %v2905
          %v2907 = vpop.f32.mrb[0].mxu0
          %v2908 = vpop.f32.mrb[0].mxu0
          %v2909 = vadd.f32 0.0, %v2908
          %v2910 = vpop.f32.mrb[0].mxu0
          %2911 = vdwg.mxu0
          %v2912 = vadd.f32 %v2634, %v2850
          %v2913 = vadd.f32 %v2635, %v2853
          %v2914 = vadd.f32 %v2636, %v2858
          %v2915 = vadd.f32 %v2637, %v2861
          %v2916 = vadd.f32 %v2638, %v2866
          %v2917 = vadd.f32 %v2639, %v2869
          %v2918 = vadd.f32 %v2640, %v2874
          %v2919 = vadd.f32 %v2641, %v2877
          %v2920 = vadd.f32 %v2642, %v2882
          %v2921 = vadd.f32 %v2643, %v2885
          %v2922 = vadd.f32 %v2644, %v2890
          %v2923 = vadd.f32 %v2645, %v2893
          %v2924 = vadd.f32 %v2646, %v2898
          %v2925 = vadd.f32 %v2647, %v2901
          %v2926 = vadd.f32 %v2648, %v2906
          %v2927 = vadd.f32 %v2649, %v2909
          %s2928 = scalar_lea.vmem %s260, 48
          %v2929 = vld [vmem:[%s2928] sm:$0xf]
          %v2930 = vld [vmem:[%s2928 + $0x8] sm:$0xf]
          %v2931 = vld [vmem:[%s2928 + $0x10] sm:$0xf]
          %v2932 = vld [vmem:[%s2928 + $0x18] sm:$0xf]
          %v2933 = vld [vmem:[%s2928 + $0x30] sm:$0xf]
          %v2934 = vld [vmem:[%s2928 + $0x38] sm:$0xf]
          %v2935 = vld [vmem:[%s2928 + $0x40] sm:$0xf]
          %v2936 = vld [vmem:[%s2928 + $0x48] sm:$0xf]
          %v2937 = vld [vmem:[%s2928 + $0x60] sm:$0xf]
          %v2938 = vld [vmem:[%s2928 + $0x68] sm:$0xf]
          %v2939 = vld [vmem:[%s2928 + $0x70] sm:$0xf]
          %v2940 = vld [vmem:[%s2928 + $0x78] sm:$0xf]
          %v2941 = vld [vmem:[%s2928 + $0x90] sm:$0xf]
          %v2942 = vld [vmem:[%s2928 + $0x98] sm:$0xf]
          %v2943 = vld [vmem:[%s2928 + $0xa0] sm:$0xf]
          %v2944 = vld [vmem:[%s2928 + $0xa8] sm:$0xf]
          %s2945 = scalar_lea.vmem %s1, 36
          %v2946 = vld [vmem:[%s2945] sm:$0xf]
          %v2963 = vunpack.c.l.b16 %v2929
          %v2964 = vunpack.c.l.b16 %v2930
          %v2965 = vunpack.c.l.b16 %v2931
          %v2966 = vunpack.c.l.b16 %v2932
          %v2967 = vunpack.c.l.b16 %v2933
          %v2968 = vunpack.c.l.b16 %v2934
          %v2969 = vunpack.c.l.b16 %v2935
          %v2970 = vunpack.c.l.b16 %v2936
          %v2971 = vunpack.c.l.b16 %v2937
          %v2972 = vunpack.c.l.b16 %v2938
          %v2973 = vunpack.c.l.b16 %v2939
          %v2974 = vunpack.c.l.b16 %v2940
          %v2975 = vunpack.c.l.b16 %v2941
          %v2976 = vunpack.c.l.b16 %v2942
          %v2977 = vunpack.c.l.b16 %v2943
          %v2978 = vunpack.c.l.b16 %v2944
          %v2979 = vpack.c.b16 %v2964, %v2963
          %v2980 = vpack.c.b16 %v2966, %v2965
          %v2981 = vpack.c.b16 %v2968, %v2967
          %v2982 = vpack.c.b16 %v2970, %v2969
          %v2983 = vpack.c.b16 %v2972, %v2971
          %v2984 = vpack.c.b16 %v2974, %v2973
          %v2985 = vpack.c.b16 %v2976, %v2975
          %v2986 = vpack.c.b16 %v2978, %v2977
          %v2988 = vsel %vm559, %v2979, 0
          %v2991 = vsel %vm559, %v2980, 0
          %v2994 = vsel %vm559, %v2981, 0
          %v2997 = vsel %vm559, %v2982, 0
          %v3000 = vsel %vm559, %v2983, 0
          %v3003 = vsel %vm559, %v2984, 0
          %v3006 = vsel %vm559, %v2985, 0
          %v3009 = vsel %vm559, %v2986, 0
          %v3012 = vsel %vm584, %v2946, 0
          %3014 = vmatprep.subr.bf16.mxu0 0
          %3015 = vmatpush1.bf16.msra.mxu0 %v3012
          %3016 = vmatprep.subr.bf16.mxu0 0
          %3017 = vmatpush1.bf16.msra.mxu0 0
          %3018 = vmatprep.subr.bf16.mxu0 0
          %3019 = vmatpush1.bf16.msra.mxu0 0
          %3020 = vmatprep.subr.bf16.mxu0 0
          %3021 = vmatpush1.bf16.msra.mxu0 0
          %3022 = vmatprep.subr.bf16.mxu0 0
          %3023 = vmatpush1.bf16.msra.mxu0 0
          %3024 = vmatprep.subr.bf16.mxu0 0
          %3025 = vmatpush1.bf16.msra.mxu0 0
          %3026 = vmatprep.subr.bf16.mxu0 0
          %3027 = vmatpush1.bf16.msra.mxu0 0
          %3028 = vmatprep.subr.bf16.mxu0 0
          %3029 = vmatpush1.bf16.msra.mxu0 0
          %3030 = vmatprep.subr.bf16.mxu0 0
          %3031 = vmatpush1.bf16.msra.mxu0 0
          %3032 = vmatprep.subr.bf16.mxu0 0
          %3033 = vmatpush1.bf16.msra.mxu0 0
          %3034 = vmatprep.subr.bf16.mxu0 0
          %3035 = vmatpush1.bf16.msra.mxu0 0
          %3036 = vmatprep.subr.bf16.mxu0 0
          %3037 = vmatpush1.bf16.msra.mxu0 0
          %3038 = vmatprep.subr.bf16.mxu0 0
          %3039 = vmatpush1.bf16.msra.mxu0 0
          %3040 = vmatprep.subr.bf16.mxu0 0
          %3041 = vmatpush1.bf16.msra.mxu0 0
          %3042 = vmatprep.subr.bf16.mxu0 0
          %3043 = vmatpush1.bf16.msra.mxu0 0
          %3044 = vmatprep.subr.bf16.mxu0 0
          %3045 = vmatpush1.bf16.msra.mxu0 0
          %3046 = vmatprep.mubr.bf16.mxu0 0
          %3047 = vmatmul.mubr.bf16.gmra.mrb[0].mxu0 %v2988
          %v3048 = vpop.f32.mrb[0].mxu0
          %v3049 = vadd.f32 0.0, %v3048
          %v3050 = vpop.f32.mrb[0].mxu0
          %v3051 = vpop.f32.mrb[0].mxu0
          %v3052 = vadd.f32 0.0, %v3051
          %v3053 = vpop.f32.mrb[0].mxu0
          %3054 = vmatprep.mubr.bf16.mxu0 0
          %3055 = vmatmul.mubr.bf16.gmra.mrb[0].mxu0 %v2991
          %v3056 = vpop.f32.mrb[0].mxu0
          %v3057 = vadd.f32 0.0, %v3056
          %v3058 = vpop.f32.mrb[0].mxu0
          %v3059 = vpop.f32.mrb[0].mxu0
          %v3060 = vadd.f32 0.0, %v3059
          %v3061 = vpop.f32.mrb[0].mxu0
          %3062 = vmatprep.mubr.bf16.mxu0 0
          %3063 = vmatmul.mubr.bf16.gmra.mrb[0].mxu0 %v2994
          %v3064 = vpop.f32.mrb[0].mxu0
          %v3065 = vadd.f32 0.0, %v3064
          %v3066 = vpop.f32.mrb[0].mxu0
          %v3067 = vpop.f32.mrb[0].mxu0
          %v3068 = vadd.f32 0.0, %v3067
          %v3069 = vpop.f32.mrb[0].mxu0
          %3070 = vmatprep.mubr.bf16.mxu0 0
          %3071 = vmatmul.mubr.bf16.gmra.mrb[0].mxu0 %v2997
          %v3072 = vpop.f32.mrb[0].mxu0
          %v3073 = vadd.f32 0.0, %v3072
          %v3074 = vpop.f32.mrb[0].mxu0
          %v3075 = vpop.f32.mrb[0].mxu0
          %v3076 = vadd.f32 0.0, %v3075
          %v3077 = vpop.f32.mrb[0].mxu0
          %3078 = vmatprep.mubr.bf16.mxu0 0
          %3079 = vmatmul.mubr.bf16.gmra.mrb[0].mxu0 %v3000
          %v3080 = vpop.f32.mrb[0].mxu0
          %v3081 = vadd.f32 0.0, %v3080
          %v3082 = vpop.f32.mrb[0].mxu0
          %v3083 = vpop.f32.mrb[0].mxu0
          %v3084 = vadd.f32 0.0, %v3083
          %v3085 = vpop.f32.mrb[0].mxu0
          %3086 = vmatprep.mubr.bf16.mxu0 0
          %3087 = vmatmul.mubr.bf16.gmra.mrb[0].mxu0 %v3003
          %v3088 = vpop.f32.mrb[0].mxu0
          %v3089 = vadd.f32 0.0, %v3088
          %v3090 = vpop.f32.mrb[0].mxu0
          %v3091 = vpop.f32.mrb[0].mxu0
          %v3092 = vadd.f32 0.0, %v3091
          %v3093 = vpop.f32.mrb[0].mxu0
          %3094 = vmatprep.mubr.bf16.mxu0 0
          %3095 = vmatmul.mubr.bf16.gmra.mrb[0].mxu0 %v3006
          %v3096 = vpop.f32.mrb[0].mxu0
          %v3097 = vadd.f32 0.0, %v3096
          %v3098 = vpop.f32.mrb[0].mxu0
          %v3099 = vpop.f32.mrb[0].mxu0
          %v3100 = vadd.f32 0.0, %v3099
          %v3101 = vpop.f32.mrb[0].mxu0
          %3102 = vmatprep.mubr.bf16.mxu0 0
          %3103 = vmatmul.mubr.bf16.gmra.mrb[0].mxu0 %v3009
          %v3104 = vpop.f32.mrb[0].mxu0
          %v3105 = vadd.f32 0.0, %v3104
          %v3106 = vpop.f32.mrb[0].mxu0
          %v3107 = vpop.f32.mrb[0].mxu0
          %v3108 = vadd.f32 0.0, %v3107
          %v3109 = vpop.f32.mrb[0].mxu0
          %3110 = vdwg.mxu0
          %v3111 = vadd.f32 %v2912, %v3049
          %v3112 = vadd.f32 %v2913, %v3052
          %v3113 = vadd.f32 %v2914, %v3057
          %v3114 = vadd.f32 %v2915, %v3060
          %v3115 = vadd.f32 %v2916, %v3065
          %v3116 = vadd.f32 %v2917, %v3068
          %v3117 = vadd.f32 %v2918, %v3073
          %v3118 = vadd.f32 %v2919, %v3076
          %v3119 = vadd.f32 %v2920, %v3081
          %v3120 = vadd.f32 %v2921, %v3084
          %v3121 = vadd.f32 %v2922, %v3089
          %v3122 = vadd.f32 %v2923, %v3092
          %v3123 = vadd.f32 %v2924, %v3097
          %v3124 = vadd.f32 %v2925, %v3100
          %v3125 = vadd.f32 %v2926, %v3105
          %v3126 = vadd.f32 %v2927, %v3108
          %v3127 = vld [vmem:[%s2928] sm:$0xf]
          %v3128 = vld [vmem:[%s2928 + $0x4] sm:$0x1]
          %v3129 = vld [vmem:[%s2928 + $0x8] sm:$0xf]
          %v3130 = vld [vmem:[%s2928 + $0xc] sm:$0x1]
          %v3131 = vld [vmem:[%s2928 + $0x10] sm:$0xf]
          %v3132 = vld [vmem:[%s2928 + $0x14] sm:$0x1]
          %v3133 = vld [vmem:[%s2928 + $0x18] sm:$0xf]
          %v3134 = vld [vmem:[%s2928 + $0x1c] sm:$0x1]
          %v3135 = vld [vmem:[%s2928 + $0x30] sm:$0xf]
          %v3136 = vld [vmem:[%s2928 + $0x34] sm:$0x1]
          %v3137 = vld [vmem:[%s2928 + $0x38] sm:$0xf]
          %v3138 = vld [vmem:[%s2928 + $0x3c] sm:$0x1]
          %v3139 = vld [vmem:[%s2928 + $0x40] sm:$0xf]
          %v3140 = vld [vmem:[%s2928 + $0x44] sm:$0x1]
          %v3141 = vld [vmem:[%s2928 + $0x48] sm:$0xf]
          %v3142 = vld [vmem:[%s2928 + $0x4c] sm:$0x1]
          %v3143 = vld [vmem:[%s2928 + $0x60] sm:$0xf]
          %v3144 = vld [vmem:[%s2928 + $0x64] sm:$0x1]
          %v3145 = vld [vmem:[%s2928 + $0x68] sm:$0xf]
          %v3146 = vld [vmem:[%s2928 + $0x6c] sm:$0x1]
          %v3147 = vld [vmem:[%s2928 + $0x70] sm:$0xf]
          %v3148 = vld [vmem:[%s2928 + $0x74] sm:$0x1]
          %v3149 = vld [vmem:[%s2928 + $0x78] sm:$0xf]
          %v3150 = vld [vmem:[%s2928 + $0x7c] sm:$0x1]
          %v3151 = vld [vmem:[%s2928 + $0x90] sm:$0xf]
          %v3152 = vld [vmem:[%s2928 + $0x94] sm:$0x1]
          %v3153 = vld [vmem:[%s2928 + $0x98] sm:$0xf]
          %v3154 = vld [vmem:[%s2928 + $0x9c] sm:$0x1]
          %v3155 = vld [vmem:[%s2928 + $0xa0] sm:$0xf]
          %v3156 = vld [vmem:[%s2928 + $0xa4] sm:$0x1]
          %v3157 = vld [vmem:[%s2928 + $0xa8] sm:$0xf]
          %v3158 = vld [vmem:[%s2928 + $0xac] sm:$0x1]
          %v3160 = vshrl.u32 %v3127, 16
          %v3162 = vrot.slane %v3160, 4
          %v3163 = vshll.u32 %v3127, 16
          %v3165 = vrot.slane %v3163, 5
          %v3166 = vor.u32 %v3162, %v3165
          %v3167 = vrot.slane %v3166, 4
          %v3169 = vshll.u32 %v3128, 16
          %v3171 = vrot.slane %v3169, 5
          %v3172 = vsel %vm308, %v3167, %v3171
          %v3174 = vshrl.u32 %v3129, 16
          %v3176 = vrot.slane %v3174, 4
          %v3177 = vshll.u32 %v3129, 16
          %v3179 = vrot.slane %v3177, 5
          %v3180 = vor.u32 %v3176, %v3179
          %v3181 = vrot.slane %v3180, 4
          %v3183 = vshll.u32 %v3130, 16
          %v3185 = vrot.slane %v3183, 5
          %v3186 = vsel %vm308, %v3181, %v3185
          %v3188 = vshrl.u32 %v3131, 16
          %v3190 = vrot.slane %v3188, 4
          %v3191 = vshll.u32 %v3131, 16
          %v3193 = vrot.slane %v3191, 5
          %v3194 = vor.u32 %v3190, %v3193
          %v3195 = vrot.slane %v3194, 4
          %v3197 = vshll.u32 %v3132, 16
          %v3199 = vrot.slane %v3197, 5
          %v3200 = vsel %vm308, %v3195, %v3199
          %v3202 = vshrl.u32 %v3133, 16
          %v3204 = vrot.slane %v3202, 4
          %v3205 = vshll.u32 %v3133, 16
          %v3207 = vrot.slane %v3205, 5
          %v3208 = vor.u32 %v3204, %v3207
          %v3209 = vrot.slane %v3208, 4
          %v3211 = vshll.u32 %v3134, 16
          %v3213 = vrot.slane %v3211, 5
          %v3214 = vsel %vm308, %v3209, %v3213
          %v3216 = vshrl.u32 %v3135, 16
          %v3218 = vrot.slane %v3216, 4
          %v3219 = vshll.u32 %v3135, 16
          %v3221 = vrot.slane %v3219, 5
          %v3222 = vor.u32 %v3218, %v3221
          %v3223 = vrot.slane %v3222, 4
          %v3225 = vshll.u32 %v3136, 16
          %v3227 = vrot.slane %v3225, 5
          %v3228 = vsel %vm308, %v3223, %v3227
          %v3230 = vshrl.u32 %v3137, 16
          %v3232 = vrot.slane %v3230, 4
          %v3233 = vshll.u32 %v3137, 16
          %v3235 = vrot.slane %v3233, 5
          %v3236 = vor.u32 %v3232, %v3235
          %v3237 = vrot.slane %v3236, 4
          %v3239 = vshll.u32 %v3138, 16
          %v3241 = vrot.slane %v3239, 5
          %v3242 = vsel %vm308, %v3237, %v3241
          %v3244 = vshrl.u32 %v3139, 16
          %v3246 = vrot.slane %v3244, 4
          %v3247 = vshll.u32 %v3139, 16
          %v3249 = vrot.slane %v3247, 5
          %v3250 = vor.u32 %v3246, %v3249
          %v3251 = vrot.slane %v3250, 4
          %v3253 = vshll.u32 %v3140, 16
          %v3255 = vrot.slane %v3253, 5
          %v3256 = vsel %vm308, %v3251, %v3255
          %v3258 = vshrl.u32 %v3141, 16
          %v3260 = vrot.slane %v3258, 4
          %v3261 = vshll.u32 %v3141, 16
          %v3263 = vrot.slane %v3261, 5
          %v3264 = vor.u32 %v3260, %v3263
          %v3265 = vrot.slane %v3264, 4
          %v3267 = vshll.u32 %v3142, 16
          %v3269 = vrot.slane %v3267, 5
          %v3270 = vsel %vm308, %v3265, %v3269
          %v3272 = vshrl.u32 %v3143, 16
          %v3274 = vrot.slane %v3272, 4
          %v3275 = vshll.u32 %v3143, 16
          %v3277 = vrot.slane %v3275, 5
          %v3278 = vor.u32 %v3274, %v3277
          %v3279 = vrot.slane %v3278, 4
          %v3281 = vshll.u32 %v3144, 16
          %v3283 = vrot.slane %v3281, 5
          %v3284 = vsel %vm308, %v3279, %v3283
          %v3286 = vshrl.u32 %v3145, 16
          %v3288 = vrot.slane %v3286, 4
          %v3289 = vshll.u32 %v3145, 16
          %v3291 = vrot.slane %v3289, 5
          %v3292 = vor.u32 %v3288, %v3291
          %v3293 = vrot.slane %v3292, 4
          %v3295 = vshll.u32 %v3146, 16
          %v3297 = vrot.slane %v3295, 5
          %v3298 = vsel %vm308, %v3293, %v3297
          %v3300 = vshrl.u32 %v3147, 16
          %v3302 = vrot.slane %v3300, 4
          %v3303 = vshll.u32 %v3147, 16
          %v3305 = vrot.slane %v3303, 5
          %v3306 = vor.u32 %v3302, %v3305
          %v3307 = vrot.slane %v3306, 4
          %v3309 = vshll.u32 %v3148, 16
          %v3311 = vrot.slane %v3309, 5
          %v3312 = vsel %vm308, %v3307, %v3311
          %v3314 = vshrl.u32 %v3149, 16
          %v3316 = vrot.slane %v3314, 4
          %v3317 = vshll.u32 %v3149, 16
          %v3319 = vrot.slane %v3317, 5
          %v3320 = vor.u32 %v3316, %v3319
          %v3321 = vrot.slane %v3320, 4
          %v3323 = vshll.u32 %v3150, 16
          %v3325 = vrot.slane %v3323, 5
          %v3326 = vsel %vm308, %v3321, %v3325
          %v3328 = vshrl.u32 %v3151, 16
          %v3330 = vrot.slane %v3328, 4
          %v3331 = vshll.u32 %v3151, 16
          %v3333 = vrot.slane %v3331, 5
          %v3334 = vor.u32 %v3330, %v3333
          %v3335 = vrot.slane %v3334, 4
          %v3337 = vshll.u32 %v3152, 16
          %v3339 = vrot.slane %v3337, 5
          %v3340 = vsel %vm308, %v3335, %v3339
          %v3342 = vshrl.u32 %v3153, 16
          %v3344 = vrot.slane %v3342, 4
          %v3345 = vshll.u32 %v3153, 16
          %v3347 = vrot.slane %v3345, 5
          %v3348 = vor.u32 %v3344, %v3347
          %v3349 = vrot.slane %v3348, 4
          %v3351 = vshll.u32 %v3154, 16
          %v3353 = vrot.slane %v3351, 5
          %v3354 = vsel %vm308, %v3349, %v3353
          %v3356 = vshrl.u32 %v3155, 16
          %v3358 = vrot.slane %v3356, 4
          %v3359 = vshll.u32 %v3155, 16
          %v3361 = vrot.slane %v3359, 5
          %v3362 = vor.u32 %v3358, %v3361
          %v3363 = vrot.slane %v3362, 4
          %v3365 = vshll.u32 %v3156, 16
          %v3367 = vrot.slane %v3365, 5
          %v3368 = vsel %vm308, %v3363, %v3367
          %v3370 = vshrl.u32 %v3157, 16
          %v3372 = vrot.slane %v3370, 4
          %v3373 = vshll.u32 %v3157, 16
          %v3375 = vrot.slane %v3373, 5
          %v3376 = vor.u32 %v3372, %v3375
          %v3377 = vrot.slane %v3376, 4
          %v3379 = vshll.u32 %v3158, 16
          %v3381 = vrot.slane %v3379, 5
          %v3382 = vsel %vm308, %v3377, %v3381
          %s3383 = scalar_lea.vmem %s1, 40
          %v3384 = vld [vmem:[%s3383] sm:$0xf]
          %v3385 = vunpack.c.l.b16 %v3172
          %v3386 = vunpack.c.l.b16 %v3186
          %v3387 = vunpack.c.l.b16 %v3200
          %v3388 = vunpack.c.l.b16 %v3214
          %v3389 = vunpack.c.l.b16 %v3228
          %v3390 = vunpack.c.l.b16 %v3242
          %v3391 = vunpack.c.l.b16 %v3256
          %v3392 = vunpack.c.l.b16 %v3270
          %v3393 = vunpack.c.l.b16 %v3284
          %v3394 = vunpack.c.l.b16 %v3298
          %v3395 = vunpack.c.l.b16 %v3312
          %v3396 = vunpack.c.l.b16 %v3326
          %v3397 = vunpack.c.l.b16 %v3340
          %v3398 = vunpack.c.l.b16 %v3354
          %v3399 = vunpack.c.l.b16 %v3368
          %v3400 = vunpack.c.l.b16 %v3382
          %v3401 = vpack.c.b16 %v3386, %v3385
          %v3402 = vpack.c.b16 %v3388, %v3387
          %v3403 = vpack.c.b16 %v3390, %v3389
          %v3404 = vpack.c.b16 %v3392, %v3391
          %v3405 = vpack.c.b16 %v3394, %v3393
          %v3406 = vpack.c.b16 %v3396, %v3395
          %v3407 = vpack.c.b16 %v3398, %v3397
          %v3408 = vpack.c.b16 %v3400, %v3399
          %v3410 = vsel %vm559, %v3401, 0
          %v3413 = vsel %vm559, %v3402, 0
          %v3416 = vsel %vm559, %v3403, 0
          %v3419 = vsel %vm559, %v3404, 0
          %v3422 = vsel %vm559, %v3405, 0
          %v3425 = vsel %vm559, %v3406, 0
          %v3428 = vsel %vm559, %v3407, 0
          %v3431 = vsel %vm559, %v3408, 0
          %v3434 = vsel %vm584, %v3384, 0
          %3436 = vmatprep.subr.bf16.mxu0 0
          %3437 = vmatpush1.bf16.msra.mxu0 %v3434
          %3438 = vmatprep.subr.bf16.mxu0 0
          %3439 = vmatpush1.bf16.msra.mxu0 0
          %3440 = vmatprep.subr.bf16.mxu0 0
          %3441 = vmatpush1.bf16.msra.mxu0 0
          %3442 = vmatprep.subr.bf16.mxu0 0
          %3443 = vmatpush1.bf16.msra.mxu0 0
          %3444 = vmatprep.subr.bf16.mxu0 0
          %3445 = vmatpush1.bf16.msra.mxu0 0
          %3446 = vmatprep.subr.bf16.mxu0 0
          %3447 = vmatpush1.bf16.msra.mxu0 0
          %3448 = vmatprep.subr.bf16.mxu0 0
          %3449 = vmatpush1.bf16.msra.mxu0 0
          %3450 = vmatprep.subr.bf16.mxu0 0
          %3451 = vmatpush1.bf16.msra.mxu0 0
          %3452 = vmatprep.subr.bf16.mxu0 0
          %3453 = vmatpush1.bf16.msra.mxu0 0
          %3454 = vmatprep.subr.bf16.mxu0 0
          %3455 = vmatpush1.bf16.msra.mxu0 0
          %3456 = vmatprep.subr.bf16.mxu0 0
          %3457 = vmatpush1.bf16.msra.mxu0 0
          %3458 = vmatprep.subr.bf16.mxu0 0
          %3459 = vmatpush1.bf16.msra.mxu0 0
          %3460 = vmatprep.subr.bf16.mxu0 0
          %3461 = vmatpush1.bf16.msra.mxu0 0
          %3462 = vmatprep.subr.bf16.mxu0 0
          %3463 = vmatpush1.bf16.msra.mxu0 0
          %3464 = vmatprep.subr.bf16.mxu0 0
          %3465 = vmatpush1.bf16.msra.mxu0 0
          %3466 = vmatprep.subr.bf16.mxu0 0
          %3467 = vmatpush1.bf16.msra.mxu0 0
          %3468 = vmatprep.mubr.bf16.mxu0 0
          %3469 = vmatmul.mubr.bf16.gmra.mrb[0].mxu0 %v3410
          %v3470 = vpop.f32.mrb[0].mxu0
          %v3471 = vadd.f32 0.0, %v3470
          %v3472 = vpop.f32.mrb[0].mxu0
          %v3473 = vpop.f32.mrb[0].mxu0
          %v3474 = vadd.f32 0.0, %v3473
          %v3475 = vpop.f32.mrb[0].mxu0
          %3476 = vmatprep.mubr.bf16.mxu0 0
          %3477 = vmatmul.mubr.bf16.gmra.mrb[0].mxu0 %v3413
          %v3478 = vpop.f32.mrb[0].mxu0
          %v3479 = vadd.f32 0.0, %v3478
          %v3480 = vpop.f32.mrb[0].mxu0
          %v3481 = vpop.f32.mrb[0].mxu0
          %v3482 = vadd.f32 0.0, %v3481
          %v3483 = vpop.f32.mrb[0].mxu0
          %3484 = vmatprep.mubr.bf16.mxu0 0
          %3485 = vmatmul.mubr.bf16.gmra.mrb[0].mxu0 %v3416
          %v3486 = vpop.f32.mrb[0].mxu0
          %v3487 = vadd.f32 0.0, %v3486
          %v3488 = vpop.f32.mrb[0].mxu0
          %v3489 = vpop.f32.mrb[0].mxu0
          %v3490 = vadd.f32 0.0, %v3489
          %v3491 = vpop.f32.mrb[0].mxu0
          %3492 = vmatprep.mubr.bf16.mxu0 0
          %3493 = vmatmul.mubr.bf16.gmra.mrb[0].mxu0 %v3419
          %v3494 = vpop.f32.mrb[0].mxu0
          %v3495 = vadd.f32 0.0, %v3494
          %v3496 = vpop.f32.mrb[0].mxu0
          %v3497 = vpop.f32.mrb[0].mxu0
          %v3498 = vadd.f32 0.0, %v3497
          %v3499 = vpop.f32.mrb[0].mxu0
          %3500 = vmatprep.mubr.bf16.mxu0 0
          %3501 = vmatmul.mubr.bf16.gmra.mrb[0].mxu0 %v3422
          %v3502 = vpop.f32.mrb[0].mxu0
          %v3503 = vadd.f32 0.0, %v3502
          %v3504 = vpop.f32.mrb[0].mxu0
          %v3505 = vpop.f32.mrb[0].mxu0
          %v3506 = vadd.f32 0.0, %v3505
          %v3507 = vpop.f32.mrb[0].mxu0
          %3508 = vmatprep.mubr.bf16.mxu0 0
          %3509 = vmatmul.mubr.bf16.gmra.mrb[0].mxu0 %v3425
          %v3510 = vpop.f32.mrb[0].mxu0
          %v3511 = vadd.f32 0.0, %v3510
          %v3512 = vpop.f32.mrb[0].mxu0
          %v3513 = vpop.f32.mrb[0].mxu0
          %v3514 = vadd.f32 0.0, %v3513
          %v3515 = vpop.f32.mrb[0].mxu0
          %3516 = vmatprep.mubr.bf16.mxu0 0
          %3517 = vmatmul.mubr.bf16.gmra.mrb[0].mxu0 %v3428
          %v3518 = vpop.f32.mrb[0].mxu0
          %v3519 = vadd.f32 0.0, %v3518
          %v3520 = vpop.f32.mrb[0].mxu0
          %v3521 = vpop.f32.mrb[0].mxu0
          %v3522 = vadd.f32 0.0, %v3521
          %v3523 = vpop.f32.mrb[0].mxu0
          %3524 = vmatprep.mubr.bf16.mxu0 0
          %3525 = vmatmul.mubr.bf16.gmra.mrb[0].mxu0 %v3431
          %v3526 = vpop.f32.mrb[0].mxu0
          %v3527 = vadd.f32 0.0, %v3526
          %v3528 = vpop.f32.mrb[0].mxu0
          %v3529 = vpop.f32.mrb[0].mxu0
          %v3530 = vadd.f32 0.0, %v3529
          %v3531 = vpop.f32.mrb[0].mxu0
          %3532 = vdwg.mxu0
          %v3533 = vadd.f32 %v3111, %v3471
          %v3534 = vadd.f32 %v3112, %v3474
          %v3535 = vadd.f32 %v3113, %v3479
          %v3536 = vadd.f32 %v3114, %v3482
          %v3537 = vadd.f32 %v3115, %v3487
          %v3538 = vadd.f32 %v3116, %v3490
          %v3539 = vadd.f32 %v3117, %v3495
          %v3540 = vadd.f32 %v3118, %v3498
          %v3541 = vadd.f32 %v3119, %v3503
          %v3542 = vadd.f32 %v3120, %v3506
          %v3543 = vadd.f32 %v3121, %v3511
          %v3544 = vadd.f32 %v3122, %v3514
          %v3545 = vadd.f32 %v3123, %v3519
          %v3546 = vadd.f32 %v3124, %v3522
          %v3547 = vadd.f32 %v3125, %v3527
          %v3548 = vadd.f32 %v3126, %v3530
          %v3549 = vld [vmem:[%s2928] sm:$0xe]
          %v3550 = vld [vmem:[%s2928 + $0x8] sm:$0xe]
          %v3551 = vld [vmem:[%s2928 + $0x10] sm:$0xe]
          %v3552 = vld [vmem:[%s2928 + $0x18] sm:$0xe]
          %v3553 = vld [vmem:[%s2928 + $0x30] sm:$0xe]
          %v3554 = vld [vmem:[%s2928 + $0x38] sm:$0xe]
          %v3555 = vld [vmem:[%s2928 + $0x40] sm:$0xe]
          %v3556 = vld [vmem:[%s2928 + $0x48] sm:$0xe]
          %v3557 = vld [vmem:[%s2928 + $0x60] sm:$0xe]
          %v3558 = vld [vmem:[%s2928 + $0x68] sm:$0xe]
          %v3559 = vld [vmem:[%s2928 + $0x70] sm:$0xe]
          %v3560 = vld [vmem:[%s2928 + $0x78] sm:$0xe]
          %v3561 = vld [vmem:[%s2928 + $0x90] sm:$0xe]
          %v3562 = vld [vmem:[%s2928 + $0x98] sm:$0xe]
          %v3563 = vld [vmem:[%s2928 + $0xa0] sm:$0xe]
          %v3564 = vld [vmem:[%s2928 + $0xa8] sm:$0xe]
          %v3597 = vrot.slane %v3549, 5
          %v3598 = vrot.slane %v3597, 4
          %v3599 = vrot.slane %v3128, 5
          %v3600 = vsel %vm899, %v3598, %v3599
          %v3601 = vrot.slane %v3550, 5
          %v3602 = vrot.slane %v3601, 4
          %v3603 = vrot.slane %v3130, 5
          %v3604 = vsel %vm899, %v3602, %v3603
          %v3605 = vrot.slane %v3551, 5
          %v3606 = vrot.slane %v3605, 4
          %v3607 = vrot.slane %v3132, 5
          %v3608 = vsel %vm899, %v3606, %v3607
          %v3609 = vrot.slane %v3552, 5
          %v3610 = vrot.slane %v3609, 4
          %v3611 = vrot.slane %v3134, 5
          %v3612 = vsel %vm899, %v3610, %v3611
          %v3613 = vrot.slane %v3553, 5
          %v3614 = vrot.slane %v3613, 4
          %v3615 = vrot.slane %v3136, 5
          %v3616 = vsel %vm899, %v3614, %v3615
          %v3617 = vrot.slane %v3554, 5
          %v3618 = vrot.slane %v3617, 4
          %v3619 = vrot.slane %v3138, 5
          %v3620 = vsel %vm899, %v3618, %v3619
          %v3621 = vrot.slane %v3555, 5
          %v3622 = vrot.slane %v3621, 4
          %v3623 = vrot.slane %v3140, 5
          %v3624 = vsel %vm899, %v3622, %v3623
          %v3625 = vrot.slane %v3556, 5
          %v3626 = vrot.slane %v3625, 4
          %v3627 = vrot.slane %v3142, 5
          %v3628 = vsel %vm899, %v3626, %v3627
          %v3629 = vrot.slane %v3557, 5
          %v3630 = vrot.slane %v3629, 4
          %v3631 = vrot.slane %v3144, 5
          %v3632 = vsel %vm899, %v3630, %v3631
          %v3633 = vrot.slane %v3558, 5
          %v3634 = vrot.slane %v3633, 4
          %v3635 = vrot.slane %v3146, 5
          %v3636 = vsel %vm899, %v3634, %v3635
          %v3637 = vrot.slane %v3559, 5
          %v3638 = vrot.slane %v3637, 4
          %v3639 = vrot.slane %v3148, 5
          %v3640 = vsel %vm899, %v3638, %v3639
          %v3641 = vrot.slane %v3560, 5
          %v3642 = vrot.slane %v3641, 4
          %v3643 = vrot.slane %v3150, 5
          %v3644 = vsel %vm899, %v3642, %v3643
          %v3645 = vrot.slane %v3561, 5
          %v3646 = vrot.slane %v3645, 4
          %v3647 = vrot.slane %v3152, 5
          %v3648 = vsel %vm899, %v3646, %v3647
          %v3649 = vrot.slane %v3562, 5
          %v3650 = vrot.slane %v3649, 4
          %v3651 = vrot.slane %v3154, 5
          %v3652 = vsel %vm899, %v3650, %v3651
          %v3653 = vrot.slane %v3563, 5
          %v3654 = vrot.slane %v3653, 4
          %v3655 = vrot.slane %v3156, 5
          %v3656 = vsel %vm899, %v3654, %v3655
          %v3657 = vrot.slane %v3564, 5
          %v3658 = vrot.slane %v3657, 4
          %v3659 = vrot.slane %v3158, 5
          %v3660 = vsel %vm899, %v3658, %v3659
          %s3661 = scalar_lea.vmem %s1, 44
          %v3662 = vld [vmem:[%s3661] sm:$0xf]
          %v3663 = vunpack.c.l.b16 %v3600
          %v3664 = vunpack.c.l.b16 %v3604
          %v3665 = vunpack.c.l.b16 %v3608
          %v3666 = vunpack.c.l.b16 %v3612
          %v3667 = vunpack.c.l.b16 %v3616
          %v3668 = vunpack.c.l.b16 %v3620
          %v3669 = vunpack.c.l.b16 %v3624
          %v3670 = vunpack.c.l.b16 %v3628
          %v3671 = vunpack.c.l.b16 %v3632
          %v3672 = vunpack.c.l.b16 %v3636
          %v3673 = vunpack.c.l.b16 %v3640
          %v3674 = vunpack.c.l.b16 %v3644
          %v3675 = vunpack.c.l.b16 %v3648
          %v3676 = vunpack.c.l.b16 %v3652
          %v3677 = vunpack.c.l.b16 %v3656
          %v3678 = vunpack.c.l.b16 %v3660
          %v3679 = vpack.c.b16 %v3664, %v3663
          %v3680 = vpack.c.b16 %v3666, %v3665
          %v3681 = vpack.c.b16 %v3668, %v3667
          %v3682 = vpack.c.b16 %v3670, %v3669
          %v3683 = vpack.c.b16 %v3672, %v3671
          %v3684 = vpack.c.b16 %v3674, %v3673
          %v3685 = vpack.c.b16 %v3676, %v3675
          %v3686 = vpack.c.b16 %v3678, %v3677
          %v3688 = vsel %vm559, %v3679, 0
          %v3691 = vsel %vm559, %v3680, 0
          %v3694 = vsel %vm559, %v3681, 0
          %v3697 = vsel %vm559, %v3682, 0
          %v3700 = vsel %vm559, %v3683, 0
          %v3703 = vsel %vm559, %v3684, 0
          %v3706 = vsel %vm559, %v3685, 0
          %v3709 = vsel %vm559, %v3686, 0
          %v3712 = vsel %vm584, %v3662, 0
          %3714 = vmatprep.subr.bf16.mxu0 0
          %3715 = vmatpush1.bf16.msra.mxu0 %v3712
          %3716 = vmatprep.subr.bf16.mxu0 0
          %3717 = vmatpush1.bf16.msra.mxu0 0
          %3718 = vmatprep.subr.bf16.mxu0 0
          %3719 = vmatpush1.bf16.msra.mxu0 0
          %3720 = vmatprep.subr.bf16.mxu0 0
          %3721 = vmatpush1.bf16.msra.mxu0 0
          %3722 = vmatprep.subr.bf16.mxu0 0
          %3723 = vmatpush1.bf16.msra.mxu0 0
          %3724 = vmatprep.subr.bf16.mxu0 0
          %3725 = vmatpush1.bf16.msra.mxu0 0
          %3726 = vmatprep.subr.bf16.mxu0 0
          %3727 = vmatpush1.bf16.msra.mxu0 0
          %3728 = vmatprep.subr.bf16.mxu0 0
          %3729 = vmatpush1.bf16.msra.mxu0 0
          %3730 = vmatprep.subr.bf16.mxu0 0
          %3731 = vmatpush1.bf16.msra.mxu0 0
          %3732 = vmatprep.subr.bf16.mxu0 0
          %3733 = vmatpush1.bf16.msra.mxu0 0
          %3734 = vmatprep.subr.bf16.mxu0 0
          %3735 = vmatpush1.bf16.msra.mxu0 0
          %3736 = vmatprep.subr.bf16.mxu0 0
          %3737 = vmatpush1.bf16.msra.mxu0 0
          %3738 = vmatprep.subr.bf16.mxu0 0
          %3739 = vmatpush1.bf16.msra.mxu0 0
          %3740 = vmatprep.subr.bf16.mxu0 0
          %3741 = vmatpush1.bf16.msra.mxu0 0
          %3742 = vmatprep.subr.bf16.mxu0 0
          %3743 = vmatpush1.bf16.msra.mxu0 0
          %3744 = vmatprep.subr.bf16.mxu0 0
          %3745 = vmatpush1.bf16.msra.mxu0 0
          %3746 = vmatprep.mubr.bf16.mxu0 0
          %3747 = vmatmul.mubr.bf16.gmra.mrb[0].mxu0 %v3688
          %v3748 = vpop.f32.mrb[0].mxu0
          %v3749 = vadd.f32 0.0, %v3748
          %v3750 = vpop.f32.mrb[0].mxu0
          %v3751 = vpop.f32.mrb[0].mxu0
          %v3752 = vadd.f32 0.0, %v3751
          %v3753 = vpop.f32.mrb[0].mxu0
          %3754 = vmatprep.mubr.bf16.mxu0 0
          %3755 = vmatmul.mubr.bf16.gmra.mrb[0].mxu0 %v3691
          %v3756 = vpop.f32.mrb[0].mxu0
          %v3757 = vadd.f32 0.0, %v3756
          %v3758 = vpop.f32.mrb[0].mxu0
          %v3759 = vpop.f32.mrb[0].mxu0
          %v3760 = vadd.f32 0.0, %v3759
          %v3761 = vpop.f32.mrb[0].mxu0
          %3762 = vmatprep.mubr.bf16.mxu0 0
          %3763 = vmatmul.mubr.bf16.gmra.mrb[0].mxu0 %v3694
          %v3764 = vpop.f32.mrb[0].mxu0
          %v3765 = vadd.f32 0.0, %v3764
          %v3766 = vpop.f32.mrb[0].mxu0
          %v3767 = vpop.f32.mrb[0].mxu0
          %v3768 = vadd.f32 0.0, %v3767
          %v3769 = vpop.f32.mrb[0].mxu0
          %3770 = vmatprep.mubr.bf16.mxu0 0
          %3771 = vmatmul.mubr.bf16.gmra.mrb[0].mxu0 %v3697
          %v3772 = vpop.f32.mrb[0].mxu0
          %v3773 = vadd.f32 0.0, %v3772
          %v3774 = vpop.f32.mrb[0].mxu0
          %v3775 = vpop.f32.mrb[0].mxu0
          %v3776 = vadd.f32 0.0, %v3775
          %v3777 = vpop.f32.mrb[0].mxu0
          %3778 = vmatprep.mubr.bf16.mxu0 0
          %3779 = vmatmul.mubr.bf16.gmra.mrb[0].mxu0 %v3700
          %v3780 = vpop.f32.mrb[0].mxu0
          %v3781 = vadd.f32 0.0, %v3780
          %v3782 = vpop.f32.mrb[0].mxu0
          %v3783 = vpop.f32.mrb[0].mxu0
          %v3784 = vadd.f32 0.0, %v3783
          %v3785 = vpop.f32.mrb[0].mxu0
          %3786 = vmatprep.mubr.bf16.mxu0 0
          %3787 = vmatmul.mubr.bf16.gmra.mrb[0].mxu0 %v3703
          %v3788 = vpop.f32.mrb[0].mxu0
          %v3789 = vadd.f32 0.0, %v3788
          %v3790 = vpop.f32.mrb[0].mxu0
          %v3791 = vpop.f32.mrb[0].mxu0
          %v3792 = vadd.f32 0.0, %v3791
          %v3793 = vpop.f32.mrb[0].mxu0
          %3794 = vmatprep.mubr.bf16.mxu0 0
          %3795 = vmatmul.mubr.bf16.gmra.mrb[0].mxu0 %v3706
          %v3796 = vpop.f32.mrb[0].mxu0
          %v3797 = vadd.f32 0.0, %v3796
          %v3798 = vpop.f32.mrb[0].mxu0
          %v3799 = vpop.f32.mrb[0].mxu0
          %v3800 = vadd.f32 0.0, %v3799
          %v3801 = vpop.f32.mrb[0].mxu0
          %3802 = vmatprep.mubr.bf16.mxu0 0
          %3803 = vmatmul.mubr.bf16.gmra.mrb[0].mxu0 %v3709
          %v3804 = vpop.f32.mrb[0].mxu0
          %v3805 = vadd.f32 0.0, %v3804
          %v3806 = vpop.f32.mrb[0].mxu0
          %v3807 = vpop.f32.mrb[0].mxu0
          %v3808 = vadd.f32 0.0, %v3807
          %v3809 = vpop.f32.mrb[0].mxu0
          %3810 = vdwg.mxu0
          %v3811 = vadd.f32 %v3533, %v3749
          %v3812 = vadd.f32 %v3534, %v3752
          %v3813 = vadd.f32 %v3535, %v3757
          %v3814 = vadd.f32 %v3536, %v3760
          %v3815 = vadd.f32 %v3537, %v3765
          %v3816 = vadd.f32 %v3538, %v3768
          %v3817 = vadd.f32 %v3539, %v3773
          %v3818 = vadd.f32 %v3540, %v3776
          %v3819 = vadd.f32 %v3541, %v3781
          %v3820 = vadd.f32 %v3542, %v3784
          %v3821 = vadd.f32 %v3543, %v3789
          %v3822 = vadd.f32 %v3544, %v3792
          %v3823 = vadd.f32 %v3545, %v3797
          %v3824 = vadd.f32 %v3546, %v3800
          %v3825 = vadd.f32 %v3547, %v3805
          %v3826 = vadd.f32 %v3548, %v3808
          %s3827 = scalar_lea.vmem %s260, 56
          %v3828 = vld [vmem:[%s3827] sm:$0xf]
          %v3829 = vld [vmem:[%s3827 + $0x8] sm:$0xf]
          %v3830 = vld [vmem:[%s3827 + $0x10] sm:$0xf]
          %v3831 = vld [vmem:[%s3827 + $0x18] sm:$0xf]
          %v3832 = vld [vmem:[%s3827 + $0x30] sm:$0xf]
          %v3833 = vld [vmem:[%s3827 + $0x38] sm:$0xf]
          %v3834 = vld [vmem:[%s3827 + $0x40] sm:$0xf]
          %v3835 = vld [vmem:[%s3827 + $0x48] sm:$0xf]
          %v3836 = vld [vmem:[%s3827 + $0x60] sm:$0xf]
          %v3837 = vld [vmem:[%s3827 + $0x68] sm:$0xf]
          %v3838 = vld [vmem:[%s3827 + $0x70] sm:$0xf]
          %v3839 = vld [vmem:[%s3827 + $0x78] sm:$0xf]
          %v3840 = vld [vmem:[%s3827 + $0x90] sm:$0xf]
          %v3841 = vld [vmem:[%s3827 + $0x98] sm:$0xf]
          %v3842 = vld [vmem:[%s3827 + $0xa0] sm:$0xf]
          %v3843 = vld [vmem:[%s3827 + $0xa8] sm:$0xf]
          %s3844 = scalar_lea.vmem %s1, 48
          %v3845 = vld [vmem:[%s3844] sm:$0xf]
          %v3862 = vunpack.c.l.b16 %v3828
          %v3863 = vunpack.c.l.b16 %v3829
          %v3864 = vunpack.c.l.b16 %v3830
          %v3865 = vunpack.c.l.b16 %v3831
          %v3866 = vunpack.c.l.b16 %v3832
          %v3867 = vunpack.c.l.b16 %v3833
          %v3868 = vunpack.c.l.b16 %v3834
          %v3869 = vunpack.c.l.b16 %v3835
          %v3870 = vunpack.c.l.b16 %v3836
          %v3871 = vunpack.c.l.b16 %v3837
          %v3872 = vunpack.c.l.b16 %v3838
          %v3873 = vunpack.c.l.b16 %v3839
          %v3874 = vunpack.c.l.b16 %v3840
          %v3875 = vunpack.c.l.b16 %v3841
          %v3876 = vunpack.c.l.b16 %v3842
          %v3877 = vunpack.c.l.b16 %v3843
          %v3878 = vpack.c.b16 %v3863, %v3862
          %v3879 = vpack.c.b16 %v3865, %v3864
          %v3880 = vpack.c.b16 %v3867, %v3866
          %v3881 = vpack.c.b16 %v3869, %v3868
          %v3882 = vpack.c.b16 %v3871, %v3870
          %v3883 = vpack.c.b16 %v3873, %v3872
          %v3884 = vpack.c.b16 %v3875, %v3874
          %v3885 = vpack.c.b16 %v3877, %v3876
          %v3887 = vsel %vm559, %v3878, 0
          %v3890 = vsel %vm559, %v3879, 0
          %v3893 = vsel %vm559, %v3880, 0
          %v3896 = vsel %vm559, %v3881, 0
          %v3899 = vsel %vm559, %v3882, 0
          %v3902 = vsel %vm559, %v3883, 0
          %v3905 = vsel %vm559, %v3884, 0
          %v3908 = vsel %vm559, %v3885, 0
          %v3911 = vsel %vm584, %v3845, 0
          %3913 = vmatprep.subr.bf16.mxu0 0
          %3914 = vmatpush1.bf16.msra.mxu0 %v3911
          %3915 = vmatprep.subr.bf16.mxu0 0
          %3916 = vmatpush1.bf16.msra.mxu0 0
          %3917 = vmatprep.subr.bf16.mxu0 0
          %3918 = vmatpush1.bf16.msra.mxu0 0
          %3919 = vmatprep.subr.bf16.mxu0 0
          %3920 = vmatpush1.bf16.msra.mxu0 0
          %3921 = vmatprep.subr.bf16.mxu0 0
          %3922 = vmatpush1.bf16.msra.mxu0 0
          %3923 = vmatprep.subr.bf16.mxu0 0
          %3924 = vmatpush1.bf16.msra.mxu0 0
          %3925 = vmatprep.subr.bf16.mxu0 0
          %3926 = vmatpush1.bf16.msra.mxu0 0
          %3927 = vmatprep.subr.bf16.mxu0 0
          %3928 = vmatpush1.bf16.msra.mxu0 0
          %3929 = vmatprep.subr.bf16.mxu0 0
          %3930 = vmatpush1.bf16.msra.mxu0 0
          %3931 = vmatprep.subr.bf16.mxu0 0
          %3932 = vmatpush1.bf16.msra.mxu0 0
          %3933 = vmatprep.subr.bf16.mxu0 0
          %3934 = vmatpush1.bf16.msra.mxu0 0
          %3935 = vmatprep.subr.bf16.mxu0 0
          %3936 = vmatpush1.bf16.msra.mxu0 0
          %3937 = vmatprep.subr.bf16.mxu0 0
          %3938 = vmatpush1.bf16.msra.mxu0 0
          %3939 = vmatprep.subr.bf16.mxu0 0
          %3940 = vmatpush1.bf16.msra.mxu0 0
          %3941 = vmatprep.subr.bf16.mxu0 0
          %3942 = vmatpush1.bf16.msra.mxu0 0
          %3943 = vmatprep.subr.bf16.mxu0 0
          %3944 = vmatpush1.bf16.msra.mxu0 0
          %3945 = vmatprep.mubr.bf16.mxu0 0
          %3946 = vmatmul.mubr.bf16.gmra.mrb[0].mxu0 %v3887
          %v3947 = vpop.f32.mrb[0].mxu0
          %v3948 = vadd.f32 0.0, %v3947
          %v3949 = vpop.f32.mrb[0].mxu0
          %v3950 = vpop.f32.mrb[0].mxu0
          %v3951 = vadd.f32 0.0, %v3950
          %v3952 = vpop.f32.mrb[0].mxu0
          %3953 = vmatprep.mubr.bf16.mxu0 0
          %3954 = vmatmul.mubr.bf16.gmra.mrb[0].mxu0 %v3890
          %v3955 = vpop.f32.mrb[0].mxu0
          %v3956 = vadd.f32 0.0, %v3955
          %v3957 = vpop.f32.mrb[0].mxu0
          %v3958 = vpop.f32.mrb[0].mxu0
          %v3959 = vadd.f32 0.0, %v3958
          %v3960 = vpop.f32.mrb[0].mxu0
          %3961 = vmatprep.mubr.bf16.mxu0 0
          %3962 = vmatmul.mubr.bf16.gmra.mrb[0].mxu0 %v3893
          %v3963 = vpop.f32.mrb[0].mxu0
          %v3964 = vadd.f32 0.0, %v3963
          %v3965 = vpop.f32.mrb[0].mxu0
          %v3966 = vpop.f32.mrb[0].mxu0
          %v3967 = vadd.f32 0.0, %v3966
          %v3968 = vpop.f32.mrb[0].mxu0
          %3969 = vmatprep.mubr.bf16.mxu0 0
          %3970 = vmatmul.mubr.bf16.gmra.mrb[0].mxu0 %v3896
          %v3971 = vpop.f32.mrb[0].mxu0
          %v3972 = vadd.f32 0.0, %v3971
          %v3973 = vpop.f32.mrb[0].mxu0
          %v3974 = vpop.f32.mrb[0].mxu0
          %v3975 = vadd.f32 0.0, %v3974
          %v3976 = vpop.f32.mrb[0].mxu0
          %3977 = vmatprep.mubr.bf16.mxu0 0
          %3978 = vmatmul.mubr.bf16.gmra.mrb[0].mxu0 %v3899
          %v3979 = vpop.f32.mrb[0].mxu0
          %v3980 = vadd.f32 0.0, %v3979
          %v3981 = vpop.f32.mrb[0].mxu0
          %v3982 = vpop.f32.mrb[0].mxu0
          %v3983 = vadd.f32 0.0, %v3982
          %v3984 = vpop.f32.mrb[0].mxu0
          %3985 = vmatprep.mubr.bf16.mxu0 0
          %3986 = vmatmul.mubr.bf16.gmra.mrb[0].mxu0 %v3902
          %v3987 = vpop.f32.mrb[0].mxu0
          %v3988 = vadd.f32 0.0, %v3987
          %v3989 = vpop.f32.mrb[0].mxu0
          %v3990 = vpop.f32.mrb[0].mxu0
          %v3991 = vadd.f32 0.0, %v3990
          %v3992 = vpop.f32.mrb[0].mxu0
          %3993 = vmatprep.mubr.bf16.mxu0 0
          %3994 = vmatmul.mubr.bf16.gmra.mrb[0].mxu0 %v3905
          %v3995 = vpop.f32.mrb[0].mxu0
          %v3996 = vadd.f32 0.0, %v3995
          %v3997 = vpop.f32.mrb[0].mxu0
          %v3998 = vpop.f32.mrb[0].mxu0
          %v3999 = vadd.f32 0.0, %v3998
          %v4000 = vpop.f32.mrb[0].mxu0
          %4001 = vmatprep.mubr.bf16.mxu0 0
          %4002 = vmatmul.mubr.bf16.gmra.mrb[0].mxu0 %v3908
          %v4003 = vpop.f32.mrb[0].mxu0
          %v4004 = vadd.f32 0.0, %v4003
          %v4005 = vpop.f32.mrb[0].mxu0
          %v4006 = vpop.f32.mrb[0].mxu0
          %v4007 = vadd.f32 0.0, %v4006
          %v4008 = vpop.f32.mrb[0].mxu0
          %4009 = vdwg.mxu0
          %v4010 = vadd.f32 %v3811, %v3948
          %v4011 = vadd.f32 %v3812, %v3951
          %v4012 = vadd.f32 %v3813, %v3956
          %v4013 = vadd.f32 %v3814, %v3959
          %v4014 = vadd.f32 %v3815, %v3964
          %v4015 = vadd.f32 %v3816, %v3967
          %v4016 = vadd.f32 %v3817, %v3972
          %v4017 = vadd.f32 %v3818, %v3975
          %v4018 = vadd.f32 %v3819, %v3980
          %v4019 = vadd.f32 %v3820, %v3983
          %v4020 = vadd.f32 %v3821, %v3988
          %v4021 = vadd.f32 %v3822, %v3991
          %v4022 = vadd.f32 %v3823, %v3996
          %v4023 = vadd.f32 %v3824, %v3999
          %v4024 = vadd.f32 %v3825, %v4004
          %v4025 = vadd.f32 %v3826, %v4007
          %v4026 = vld [vmem:[%s3827] sm:$0xf]
          %v4027 = vld [vmem:[%s3827 + $0x4] sm:$0x1]
          %v4028 = vld [vmem:[%s3827 + $0x8] sm:$0xf]
          %v4029 = vld [vmem:[%s3827 + $0xc] sm:$0x1]
          %v4030 = vld [vmem:[%s3827 + $0x10] sm:$0xf]
          %v4031 = vld [vmem:[%s3827 + $0x14] sm:$0x1]
          %v4032 = vld [vmem:[%s3827 + $0x18] sm:$0xf]
          %v4033 = vld [vmem:[%s3827 + $0x1c] sm:$0x1]
          %v4034 = vld [vmem:[%s3827 + $0x30] sm:$0xf]
          %v4035 = vld [vmem:[%s3827 + $0x34] sm:$0x1]
          %v4036 = vld [vmem:[%s3827 + $0x38] sm:$0xf]
          %v4037 = vld [vmem:[%s3827 + $0x3c] sm:$0x1]
          %v4038 = vld [vmem:[%s3827 + $0x40] sm:$0xf]
          %v4039 = vld [vmem:[%s3827 + $0x44] sm:$0x1]
          %v4040 = vld [vmem:[%s3827 + $0x48] sm:$0xf]
          %v4041 = vld [vmem:[%s3827 + $0x4c] sm:$0x1]
          %v4042 = vld [vmem:[%s3827 + $0x60] sm:$0xf]
          %v4043 = vld [vmem:[%s3827 + $0x64] sm:$0x1]
          %v4044 = vld [vmem:[%s3827 + $0x68] sm:$0xf]
          %v4045 = vld [vmem:[%s3827 + $0x6c] sm:$0x1]
          %v4046 = vld [vmem:[%s3827 + $0x70] sm:$0xf]
          %v4047 = vld [vmem:[%s3827 + $0x74] sm:$0x1]
          %v4048 = vld [vmem:[%s3827 + $0x78] sm:$0xf]
          %v4049 = vld [vmem:[%s3827 + $0x7c] sm:$0x1]
          %v4050 = vld [vmem:[%s3827 + $0x90] sm:$0xf]
          %v4051 = vld [vmem:[%s3827 + $0x94] sm:$0x1]
          %v4052 = vld [vmem:[%s3827 + $0x98] sm:$0xf]
          %v4053 = vld [vmem:[%s3827 + $0x9c] sm:$0x1]
          %v4054 = vld [vmem:[%s3827 + $0xa0] sm:$0xf]
          %v4055 = vld [vmem:[%s3827 + $0xa4] sm:$0x1]
          %v4056 = vld [vmem:[%s3827 + $0xa8] sm:$0xf]
          %v4057 = vld [vmem:[%s3827 + $0xac] sm:$0x1]
          %v4059 = vshrl.u32 %v4026, 16
          %v4061 = vrot.slane %v4059, 4
          %v4062 = vshll.u32 %v4026, 16
          %v4064 = vrot.slane %v4062, 5
          %v4065 = vor.u32 %v4061, %v4064
          %v4066 = vrot.slane %v4065, 4
          %v4068 = vshll.u32 %v4027, 16
          %v4070 = vrot.slane %v4068, 5
          %v4071 = vsel %vm308, %v4066, %v4070
          %v4073 = vshrl.u32 %v4028, 16
          %v4075 = vrot.slane %v4073, 4
          %v4076 = vshll.u32 %v4028, 16
          %v4078 = vrot.slane %v4076, 5
          %v4079 = vor.u32 %v4075, %v4078
          %v4080 = vrot.slane %v4079, 4
          %v4082 = vshll.u32 %v4029, 16
          %v4084 = vrot.slane %v4082, 5
          %v4085 = vsel %vm308, %v4080, %v4084
          %v4087 = vshrl.u32 %v4030, 16
          %v4089 = vrot.slane %v4087, 4
          %v4090 = vshll.u32 %v4030, 16
          %v4092 = vrot.slane %v4090, 5
          %v4093 = vor.u32 %v4089, %v4092
          %v4094 = vrot.slane %v4093, 4
          %v4096 = vshll.u32 %v4031, 16
          %v4098 = vrot.slane %v4096, 5
          %v4099 = vsel %vm308, %v4094, %v4098
          %v4101 = vshrl.u32 %v4032, 16
          %v4103 = vrot.slane %v4101, 4
          %v4104 = vshll.u32 %v4032, 16
          %v4106 = vrot.slane %v4104, 5
          %v4107 = vor.u32 %v4103, %v4106
          %v4108 = vrot.slane %v4107, 4
          %v4110 = vshll.u32 %v4033, 16
          %v4112 = vrot.slane %v4110, 5
          %v4113 = vsel %vm308, %v4108, %v4112
          %v4115 = vshrl.u32 %v4034, 16
          %v4117 = vrot.slane %v4115, 4
          %v4118 = vshll.u32 %v4034, 16
          %v4120 = vrot.slane %v4118, 5
          %v4121 = vor.u32 %v4117, %v4120
          %v4122 = vrot.slane %v4121, 4
          %v4124 = vshll.u32 %v4035, 16
          %v4126 = vrot.slane %v4124, 5
          %v4127 = vsel %vm308, %v4122, %v4126
          %v4129 = vshrl.u32 %v4036, 16
          %v4131 = vrot.slane %v4129, 4
          %v4132 = vshll.u32 %v4036, 16
          %v4134 = vrot.slane %v4132, 5
          %v4135 = vor.u32 %v4131, %v4134
          %v4136 = vrot.slane %v4135, 4
          %v4138 = vshll.u32 %v4037, 16
          %v4140 = vrot.slane %v4138, 5
          %v4141 = vsel %vm308, %v4136, %v4140
          %v4143 = vshrl.u32 %v4038, 16
          %v4145 = vrot.slane %v4143, 4
          %v4146 = vshll.u32 %v4038, 16
          %v4148 = vrot.slane %v4146, 5
          %v4149 = vor.u32 %v4145, %v4148
          %v4150 = vrot.slane %v4149, 4
          %v4152 = vshll.u32 %v4039, 16
          %v4154 = vrot.slane %v4152, 5
          %v4155 = vsel %vm308, %v4150, %v4154
          %v4157 = vshrl.u32 %v4040, 16
          %v4159 = vrot.slane %v4157, 4
          %v4160 = vshll.u32 %v4040, 16
          %v4162 = vrot.slane %v4160, 5
          %v4163 = vor.u32 %v4159, %v4162
          %v4164 = vrot.slane %v4163, 4
          %v4166 = vshll.u32 %v4041, 16
          %v4168 = vrot.slane %v4166, 5
          %v4169 = vsel %vm308, %v4164, %v4168
          %v4171 = vshrl.u32 %v4042, 16
          %v4173 = vrot.slane %v4171, 4
          %v4174 = vshll.u32 %v4042, 16
          %v4176 = vrot.slane %v4174, 5
          %v4177 = vor.u32 %v4173, %v4176
          %v4178 = vrot.slane %v4177, 4
          %v4180 = vshll.u32 %v4043, 16
          %v4182 = vrot.slane %v4180, 5
          %v4183 = vsel %vm308, %v4178, %v4182
          %v4185 = vshrl.u32 %v4044, 16
          %v4187 = vrot.slane %v4185, 4
          %v4188 = vshll.u32 %v4044, 16
          %v4190 = vrot.slane %v4188, 5
          %v4191 = vor.u32 %v4187, %v4190
          %v4192 = vrot.slane %v4191, 4
          %v4194 = vshll.u32 %v4045, 16
          %v4196 = vrot.slane %v4194, 5
          %v4197 = vsel %vm308, %v4192, %v4196
          %v4199 = vshrl.u32 %v4046, 16
          %v4201 = vrot.slane %v4199, 4
          %v4202 = vshll.u32 %v4046, 16
          %v4204 = vrot.slane %v4202, 5
          %v4205 = vor.u32 %v4201, %v4204
          %v4206 = vrot.slane %v4205, 4
          %v4208 = vshll.u32 %v4047, 16
          %v4210 = vrot.slane %v4208, 5
          %v4211 = vsel %vm308, %v4206, %v4210
          %v4213 = vshrl.u32 %v4048, 16
          %v4215 = vrot.slane %v4213, 4
          %v4216 = vshll.u32 %v4048, 16
          %v4218 = vrot.slane %v4216, 5
          %v4219 = vor.u32 %v4215, %v4218
          %v4220 = vrot.slane %v4219, 4
          %v4222 = vshll.u32 %v4049, 16
          %v4224 = vrot.slane %v4222, 5
          %v4225 = vsel %vm308, %v4220, %v4224
          %v4227 = vshrl.u32 %v4050, 16
          %v4229 = vrot.slane %v4227, 4
          %v4230 = vshll.u32 %v4050, 16
          %v4232 = vrot.slane %v4230, 5
          %v4233 = vor.u32 %v4229, %v4232
          %v4234 = vrot.slane %v4233, 4
          %v4236 = vshll.u32 %v4051, 16
          %v4238 = vrot.slane %v4236, 5
          %v4239 = vsel %vm308, %v4234, %v4238
          %v4241 = vshrl.u32 %v4052, 16
          %v4243 = vrot.slane %v4241, 4
          %v4244 = vshll.u32 %v4052, 16
          %v4246 = vrot.slane %v4244, 5
          %v4247 = vor.u32 %v4243, %v4246
          %v4248 = vrot.slane %v4247, 4
          %v4250 = vshll.u32 %v4053, 16
          %v4252 = vrot.slane %v4250, 5
          %v4253 = vsel %vm308, %v4248, %v4252
          %v4255 = vshrl.u32 %v4054, 16
          %v4257 = vrot.slane %v4255, 4
          %v4258 = vshll.u32 %v4054, 16
          %v4260 = vrot.slane %v4258, 5
          %v4261 = vor.u32 %v4257, %v4260
          %v4262 = vrot.slane %v4261, 4
          %v4264 = vshll.u32 %v4055, 16
          %v4266 = vrot.slane %v4264, 5
          %v4267 = vsel %vm308, %v4262, %v4266
          %v4269 = vshrl.u32 %v4056, 16
          %v4271 = vrot.slane %v4269, 4
          %v4272 = vshll.u32 %v4056, 16
          %v4274 = vrot.slane %v4272, 5
          %v4275 = vor.u32 %v4271, %v4274
          %v4276 = vrot.slane %v4275, 4
          %v4278 = vshll.u32 %v4057, 16
          %v4280 = vrot.slane %v4278, 5
          %v4281 = vsel %vm308, %v4276, %v4280
          %s4282 = scalar_lea.vmem %s1, 52
          %v4283 = vld [vmem:[%s4282] sm:$0xf]
          %v4284 = vunpack.c.l.b16 %v4071
          %v4285 = vunpack.c.l.b16 %v4085
          %v4286 = vunpack.c.l.b16 %v4099
          %v4287 = vunpack.c.l.b16 %v4113
          %v4288 = vunpack.c.l.b16 %v4127
          %v4289 = vunpack.c.l.b16 %v4141
          %v4290 = vunpack.c.l.b16 %v4155
          %v4291 = vunpack.c.l.b16 %v4169
          %v4292 = vunpack.c.l.b16 %v4183
          %v4293 = vunpack.c.l.b16 %v4197
          %v4294 = vunpack.c.l.b16 %v4211
          %v4295 = vunpack.c.l.b16 %v4225
          %v4296 = vunpack.c.l.b16 %v4239
          %v4297 = vunpack.c.l.b16 %v4253
          %v4298 = vunpack.c.l.b16 %v4267
          %v4299 = vunpack.c.l.b16 %v4281
          %v4300 = vpack.c.b16 %v4285, %v4284
          %v4301 = vpack.c.b16 %v4287, %v4286
          %v4302 = vpack.c.b16 %v4289, %v4288
          %v4303 = vpack.c.b16 %v4291, %v4290
          %v4304 = vpack.c.b16 %v4293, %v4292
          %v4305 = vpack.c.b16 %v4295, %v4294
          %v4306 = vpack.c.b16 %v4297, %v4296
          %v4307 = vpack.c.b16 %v4299, %v4298
          %v4309 = vsel %vm559, %v4300, 0
          %v4312 = vsel %vm559, %v4301, 0
          %v4315 = vsel %vm559, %v4302, 0
          %v4318 = vsel %vm559, %v4303, 0
          %v4321 = vsel %vm559, %v4304, 0
          %v4324 = vsel %vm559, %v4305, 0
          %v4327 = vsel %vm559, %v4306, 0
          %v4330 = vsel %vm559, %v4307, 0
          %v4333 = vsel %vm584, %v4283, 0
          %4335 = vmatprep.subr.bf16.mxu0 0
          %4336 = vmatpush1.bf16.msra.mxu0 %v4333
          %4337 = vmatprep.subr.bf16.mxu0 0
          %4338 = vmatpush1.bf16.msra.mxu0 0
          %4339 = vmatprep.subr.bf16.mxu0 0
          %4340 = vmatpush1.bf16.msra.mxu0 0
          %4341 = vmatprep.subr.bf16.mxu0 0
          %4342 = vmatpush1.bf16.msra.mxu0 0
          %4343 = vmatprep.subr.bf16.mxu0 0
          %4344 = vmatpush1.bf16.msra.mxu0 0
          %4345 = vmatprep.subr.bf16.mxu0 0
          %4346 = vmatpush1.bf16.msra.mxu0 0
          %4347 = vmatprep.subr.bf16.mxu0 0
          %4348 = vmatpush1.bf16.msra.mxu0 0
          %4349 = vmatprep.subr.bf16.mxu0 0
          %4350 = vmatpush1.bf16.msra.mxu0 0
          %4351 = vmatprep.subr.bf16.mxu0 0
          %4352 = vmatpush1.bf16.msra.mxu0 0
          %4353 = vmatprep.subr.bf16.mxu0 0
          %4354 = vmatpush1.bf16.msra.mxu0 0
          %4355 = vmatprep.subr.bf16.mxu0 0
          %4356 = vmatpush1.bf16.msra.mxu0 0
          %4357 = vmatprep.subr.bf16.mxu0 0
          %4358 = vmatpush1.bf16.msra.mxu0 0
          %4359 = vmatprep.subr.bf16.mxu0 0
          %4360 = vmatpush1.bf16.msra.mxu0 0
          %4361 = vmatprep.subr.bf16.mxu0 0
          %4362 = vmatpush1.bf16.msra.mxu0 0
          %4363 = vmatprep.subr.bf16.mxu0 0
          %4364 = vmatpush1.bf16.msra.mxu0 0
          %4365 = vmatprep.subr.bf16.mxu0 0
          %4366 = vmatpush1.bf16.msra.mxu0 0
          %4367 = vmatprep.mubr.bf16.mxu0 0
          %4368 = vmatmul.mubr.bf16.gmra.mrb[0].mxu0 %v4309
          %v4369 = vpop.f32.mrb[0].mxu0
          %v4370 = vadd.f32 0.0, %v4369
          %v4371 = vpop.f32.mrb[0].mxu0
          %v4372 = vpop.f32.mrb[0].mxu0
          %v4373 = vadd.f32 0.0, %v4372
          %v4374 = vpop.f32.mrb[0].mxu0
          %4375 = vmatprep.mubr.bf16.mxu0 0
          %4376 = vmatmul.mubr.bf16.gmra.mrb[0].mxu0 %v4312
          %v4377 = vpop.f32.mrb[0].mxu0
          %v4378 = vadd.f32 0.0, %v4377
          %v4379 = vpop.f32.mrb[0].mxu0
          %v4380 = vpop.f32.mrb[0].mxu0
          %v4381 = vadd.f32 0.0, %v4380
          %v4382 = vpop.f32.mrb[0].mxu0
          %4383 = vmatprep.mubr.bf16.mxu0 0
          %4384 = vmatmul.mubr.bf16.gmra.mrb[0].mxu0 %v4315
          %v4385 = vpop.f32.mrb[0].mxu0
          %v4386 = vadd.f32 0.0, %v4385
          %v4387 = vpop.f32.mrb[0].mxu0
          %v4388 = vpop.f32.mrb[0].mxu0
          %v4389 = vadd.f32 0.0, %v4388
          %v4390 = vpop.f32.mrb[0].mxu0
          %4391 = vmatprep.mubr.bf16.mxu0 0
          %4392 = vmatmul.mubr.bf16.gmra.mrb[0].mxu0 %v4318
          %v4393 = vpop.f32.mrb[0].mxu0
          %v4394 = vadd.f32 0.0, %v4393
          %v4395 = vpop.f32.mrb[0].mxu0
          %v4396 = vpop.f32.mrb[0].mxu0
          %v4397 = vadd.f32 0.0, %v4396
          %v4398 = vpop.f32.mrb[0].mxu0
          %4399 = vmatprep.mubr.bf16.mxu0 0
          %4400 = vmatmul.mubr.bf16.gmra.mrb[0].mxu0 %v4321
          %v4401 = vpop.f32.mrb[0].mxu0
          %v4402 = vadd.f32 0.0, %v4401
          %v4403 = vpop.f32.mrb[0].mxu0
          %v4404 = vpop.f32.mrb[0].mxu0
          %v4405 = vadd.f32 0.0, %v4404
          %v4406 = vpop.f32.mrb[0].mxu0
          %4407 = vmatprep.mubr.bf16.mxu0 0
          %4408 = vmatmul.mubr.bf16.gmra.mrb[0].mxu0 %v4324
          %v4409 = vpop.f32.mrb[0].mxu0
          %v4410 = vadd.f32 0.0, %v4409
          %v4411 = vpop.f32.mrb[0].mxu0
          %v4412 = vpop.f32.mrb[0].mxu0
          %v4413 = vadd.f32 0.0, %v4412
          %v4414 = vpop.f32.mrb[0].mxu0
          %4415 = vmatprep.mubr.bf16.mxu0 0
          %4416 = vmatmul.mubr.bf16.gmra.mrb[0].mxu0 %v4327
          %v4417 = vpop.f32.mrb[0].mxu0
          %v4418 = vadd.f32 0.0, %v4417
          %v4419 = vpop.f32.mrb[0].mxu0
          %v4420 = vpop.f32.mrb[0].mxu0
          %v4421 = vadd.f32 0.0, %v4420
          %v4422 = vpop.f32.mrb[0].mxu0
          %4423 = vmatprep.mubr.bf16.mxu0 0
          %4424 = vmatmul.mubr.bf16.gmra.mrb[0].mxu0 %v4330
          %v4425 = vpop.f32.mrb[0].mxu0
          %v4426 = vadd.f32 0.0, %v4425
          %v4427 = vpop.f32.mrb[0].mxu0
          %v4428 = vpop.f32.mrb[0].mxu0
          %v4429 = vadd.f32 0.0, %v4428
          %v4430 = vpop.f32.mrb[0].mxu0
          %4431 = vdwg.mxu0
          %v4432 = vadd.f32 %v4010, %v4370
          %v4433 = vadd.f32 %v4011, %v4373
          %v4434 = vadd.f32 %v4012, %v4378
          %v4435 = vadd.f32 %v4013, %v4381
          %v4436 = vadd.f32 %v4014, %v4386
          %v4437 = vadd.f32 %v4015, %v4389
          %v4438 = vadd.f32 %v4016, %v4394
          %v4439 = vadd.f32 %v4017, %v4397
          %v4440 = vadd.f32 %v4018, %v4402
          %v4441 = vadd.f32 %v4019, %v4405
          %v4442 = vadd.f32 %v4020, %v4410
          %v4443 = vadd.f32 %v4021, %v4413
          %v4444 = vadd.f32 %v4022, %v4418
          %v4445 = vadd.f32 %v4023, %v4421
          %v4446 = vadd.f32 %v4024, %v4426
          %v4447 = vadd.f32 %v4025, %v4429
          %v4448 = vld [vmem:[%s3827] sm:$0xe]
          %v4449 = vld [vmem:[%s3827 + $0x8] sm:$0xe]
          %v4450 = vld [vmem:[%s3827 + $0x10] sm:$0xe]
          %v4451 = vld [vmem:[%s3827 + $0x18] sm:$0xe]
          %v4452 = vld [vmem:[%s3827 + $0x30] sm:$0xe]
          %v4453 = vld [vmem:[%s3827 + $0x38] sm:$0xe]
          %v4454 = vld [vmem:[%s3827 + $0x40] sm:$0xe]
          %v4455 = vld [vmem:[%s3827 + $0x48] sm:$0xe]
          %v4456 = vld [vmem:[%s3827 + $0x60] sm:$0xe]
          %v4457 = vld [vmem:[%s3827 + $0x68] sm:$0xe]
          %v4458 = vld [vmem:[%s3827 + $0x70] sm:$0xe]
          %v4459 = vld [vmem:[%s3827 + $0x78] sm:$0xe]
          %v4460 = vld [vmem:[%s3827 + $0x90] sm:$0xe]
          %v4461 = vld [vmem:[%s3827 + $0x98] sm:$0xe]
          %v4462 = vld [vmem:[%s3827 + $0xa0] sm:$0xe]
          %v4463 = vld [vmem:[%s3827 + $0xa8] sm:$0xe]
          %v4496 = vrot.slane %v4448, 5
          %v4497 = vrot.slane %v4496, 4
          %v4498 = vrot.slane %v4027, 5
          %v4499 = vsel %vm899, %v4497, %v4498
          %v4500 = vrot.slane %v4449, 5
          %v4501 = vrot.slane %v4500, 4
          %v4502 = vrot.slane %v4029, 5
          %v4503 = vsel %vm899, %v4501, %v4502
          %v4504 = vrot.slane %v4450, 5
          %v4505 = vrot.slane %v4504, 4
          %v4506 = vrot.slane %v4031, 5
          %v4507 = vsel %vm899, %v4505, %v4506
          %v4508 = vrot.slane %v4451, 5
          %v4509 = vrot.slane %v4508, 4
          %v4510 = vrot.slane %v4033, 5
          %v4511 = vsel %vm899, %v4509, %v4510
          %v4512 = vrot.slane %v4452, 5
          %v4513 = vrot.slane %v4512, 4
          %v4514 = vrot.slane %v4035, 5
          %v4515 = vsel %vm899, %v4513, %v4514
          %v4516 = vrot.slane %v4453, 5
          %v4517 = vrot.slane %v4516, 4
          %v4518 = vrot.slane %v4037, 5
          %v4519 = vsel %vm899, %v4517, %v4518
          %v4520 = vrot.slane %v4454, 5
          %v4521 = vrot.slane %v4520, 4
          %v4522 = vrot.slane %v4039, 5
          %v4523 = vsel %vm899, %v4521, %v4522
          %v4524 = vrot.slane %v4455, 5
          %v4525 = vrot.slane %v4524, 4
          %v4526 = vrot.slane %v4041, 5
          %v4527 = vsel %vm899, %v4525, %v4526
          %v4528 = vrot.slane %v4456, 5
          %v4529 = vrot.slane %v4528, 4
          %v4530 = vrot.slane %v4043, 5
          %v4531 = vsel %vm899, %v4529, %v4530
          %v4532 = vrot.slane %v4457, 5
          %v4533 = vrot.slane %v4532, 4
          %v4534 = vrot.slane %v4045, 5
          %v4535 = vsel %vm899, %v4533, %v4534
          %v4536 = vrot.slane %v4458, 5
          %v4537 = vrot.slane %v4536, 4
          %v4538 = vrot.slane %v4047, 5
          %v4539 = vsel %vm899, %v4537, %v4538
          %v4540 = vrot.slane %v4459, 5
          %v4541 = vrot.slane %v4540, 4
          %v4542 = vrot.slane %v4049, 5
          %v4543 = vsel %vm899, %v4541, %v4542
          %v4544 = vrot.slane %v4460, 5
          %v4545 = vrot.slane %v4544, 4
          %v4546 = vrot.slane %v4051, 5
          %v4547 = vsel %vm899, %v4545, %v4546
          %v4548 = vrot.slane %v4461, 5
          %v4549 = vrot.slane %v4548, 4
          %v4550 = vrot.slane %v4053, 5
          %v4551 = vsel %vm899, %v4549, %v4550
          %v4552 = vrot.slane %v4462, 5
          %v4553 = vrot.slane %v4552, 4
          %v4554 = vrot.slane %v4055, 5
          %v4555 = vsel %vm899, %v4553, %v4554
          %v4556 = vrot.slane %v4463, 5
          %v4557 = vrot.slane %v4556, 4
          %v4558 = vrot.slane %v4057, 5
          %v4559 = vsel %vm899, %v4557, %v4558
          %s4560 = scalar_lea.vmem %s1, 56
          %v4561 = vld [vmem:[%s4560] sm:$0xf]
          %v4562 = vunpack.c.l.b16 %v4499
          %v4563 = vunpack.c.l.b16 %v4503
          %v4564 = vunpack.c.l.b16 %v4507
          %v4565 = vunpack.c.l.b16 %v4511
          %v4566 = vunpack.c.l.b16 %v4515
          %v4567 = vunpack.c.l.b16 %v4519
          %v4568 = vunpack.c.l.b16 %v4523
          %v4569 = vunpack.c.l.b16 %v4527
          %v4570 = vunpack.c.l.b16 %v4531
          %v4571 = vunpack.c.l.b16 %v4535
          %v4572 = vunpack.c.l.b16 %v4539
          %v4573 = vunpack.c.l.b16 %v4543
          %v4574 = vunpack.c.l.b16 %v4547
          %v4575 = vunpack.c.l.b16 %v4551
          %v4576 = vunpack.c.l.b16 %v4555
          %v4577 = vunpack.c.l.b16 %v4559
          %v4578 = vpack.c.b16 %v4563, %v4562
          %v4579 = vpack.c.b16 %v4565, %v4564
          %v4580 = vpack.c.b16 %v4567, %v4566
          %v4581 = vpack.c.b16 %v4569, %v4568
          %v4582 = vpack.c.b16 %v4571, %v4570
          %v4583 = vpack.c.b16 %v4573, %v4572
          %v4584 = vpack.c.b16 %v4575, %v4574
          %v4585 = vpack.c.b16 %v4577, %v4576
          %v4587 = vsel %vm559, %v4578, 0
          %v4590 = vsel %vm559, %v4579, 0
          %v4593 = vsel %vm559, %v4580, 0
          %v4596 = vsel %vm559, %v4581, 0
          %v4599 = vsel %vm559, %v4582, 0
          %v4602 = vsel %vm559, %v4583, 0
          %v4605 = vsel %vm559, %v4584, 0
          %v4608 = vsel %vm559, %v4585, 0
          %v4611 = vsel %vm584, %v4561, 0
          %4613 = vmatprep.subr.bf16.mxu0 0
          %4614 = vmatpush1.bf16.msra.mxu0 %v4611
          %4615 = vmatprep.subr.bf16.mxu0 0
          %4616 = vmatpush1.bf16.msra.mxu0 0
          %4617 = vmatprep.subr.bf16.mxu0 0
          %4618 = vmatpush1.bf16.msra.mxu0 0
          %4619 = vmatprep.subr.bf16.mxu0 0
          %4620 = vmatpush1.bf16.msra.mxu0 0
          %4621 = vmatprep.subr.bf16.mxu0 0
          %4622 = vmatpush1.bf16.msra.mxu0 0
          %4623 = vmatprep.subr.bf16.mxu0 0
          %4624 = vmatpush1.bf16.msra.mxu0 0
          %4625 = vmatprep.subr.bf16.mxu0 0
          %4626 = vmatpush1.bf16.msra.mxu0 0
          %4627 = vmatprep.subr.bf16.mxu0 0
          %4628 = vmatpush1.bf16.msra.mxu0 0
          %4629 = vmatprep.subr.bf16.mxu0 0
          %4630 = vmatpush1.bf16.msra.mxu0 0
          %4631 = vmatprep.subr.bf16.mxu0 0
          %4632 = vmatpush1.bf16.msra.mxu0 0
          %4633 = vmatprep.subr.bf16.mxu0 0
          %4634 = vmatpush1.bf16.msra.mxu0 0
          %4635 = vmatprep.subr.bf16.mxu0 0
          %4636 = vmatpush1.bf16.msra.mxu0 0
          %4637 = vmatprep.subr.bf16.mxu0 0
          %4638 = vmatpush1.bf16.msra.mxu0 0
          %4639 = vmatprep.subr.bf16.mxu0 0
          %4640 = vmatpush1.bf16.msra.mxu0 0
          %4641 = vmatprep.subr.bf16.mxu0 0
          %4642 = vmatpush1.bf16.msra.mxu0 0
          %4643 = vmatprep.subr.bf16.mxu0 0
          %4644 = vmatpush1.bf16.msra.mxu0 0
          %4645 = vmatprep.mubr.bf16.mxu0 0
          %4646 = vmatmul.mubr.bf16.gmra.mrb[0].mxu0 %v4587
          %v4647 = vpop.f32.mrb[0].mxu0
          %v4648 = vadd.f32 0.0, %v4647
          %v4649 = vpop.f32.mrb[0].mxu0
          %v4650 = vpop.f32.mrb[0].mxu0
          %v4651 = vadd.f32 0.0, %v4650
          %v4652 = vpop.f32.mrb[0].mxu0
          %4653 = vmatprep.mubr.bf16.mxu0 0
          %4654 = vmatmul.mubr.bf16.gmra.mrb[0].mxu0 %v4590
          %v4655 = vpop.f32.mrb[0].mxu0
          %v4656 = vadd.f32 0.0, %v4655
          %v4657 = vpop.f32.mrb[0].mxu0
          %v4658 = vpop.f32.mrb[0].mxu0
          %v4659 = vadd.f32 0.0, %v4658
          %v4660 = vpop.f32.mrb[0].mxu0
          %4661 = vmatprep.mubr.bf16.mxu0 0
          %4662 = vmatmul.mubr.bf16.gmra.mrb[0].mxu0 %v4593
          %v4663 = vpop.f32.mrb[0].mxu0
          %v4664 = vadd.f32 0.0, %v4663
          %v4665 = vpop.f32.mrb[0].mxu0
          %v4666 = vpop.f32.mrb[0].mxu0
          %v4667 = vadd.f32 0.0, %v4666
          %v4668 = vpop.f32.mrb[0].mxu0
          %4669 = vmatprep.mubr.bf16.mxu0 0
          %4670 = vmatmul.mubr.bf16.gmra.mrb[0].mxu0 %v4596
          %v4671 = vpop.f32.mrb[0].mxu0
          %v4672 = vadd.f32 0.0, %v4671
          %v4673 = vpop.f32.mrb[0].mxu0
          %v4674 = vpop.f32.mrb[0].mxu0
          %v4675 = vadd.f32 0.0, %v4674
          %v4676 = vpop.f32.mrb[0].mxu0
          %4677 = vmatprep.mubr.bf16.mxu0 0
          %4678 = vmatmul.mubr.bf16.gmra.mrb[0].mxu0 %v4599
          %v4679 = vpop.f32.mrb[0].mxu0
          %v4680 = vadd.f32 0.0, %v4679
          %v4681 = vpop.f32.mrb[0].mxu0
          %v4682 = vpop.f32.mrb[0].mxu0
          %v4683 = vadd.f32 0.0, %v4682
          %v4684 = vpop.f32.mrb[0].mxu0
          %4685 = vmatprep.mubr.bf16.mxu0 0
          %4686 = vmatmul.mubr.bf16.gmra.mrb[0].mxu0 %v4602
          %v4687 = vpop.f32.mrb[0].mxu0
          %v4688 = vadd.f32 0.0, %v4687
          %v4689 = vpop.f32.mrb[0].mxu0
          %v4690 = vpop.f32.mrb[0].mxu0
          %v4691 = vadd.f32 0.0, %v4690
          %v4692 = vpop.f32.mrb[0].mxu0
          %4693 = vmatprep.mubr.bf16.mxu0 0
          %4694 = vmatmul.mubr.bf16.gmra.mrb[0].mxu0 %v4605
          %v4695 = vpop.f32.mrb[0].mxu0
          %v4696 = vadd.f32 0.0, %v4695
          %v4697 = vpop.f32.mrb[0].mxu0
          %v4698 = vpop.f32.mrb[0].mxu0
          %v4699 = vadd.f32 0.0, %v4698
          %v4700 = vpop.f32.mrb[0].mxu0
          %4701 = vmatprep.mubr.bf16.mxu0 0
          %4702 = vmatmul.mubr.bf16.gmra.mrb[0].mxu0 %v4608
          %v4703 = vpop.f32.mrb[0].mxu0
          %v4704 = vadd.f32 0.0, %v4703
          %v4705 = vpop.f32.mrb[0].mxu0
          %v4706 = vpop.f32.mrb[0].mxu0
          %v4707 = vadd.f32 0.0, %v4706
          %v4708 = vpop.f32.mrb[0].mxu0
          %4709 = vdwg.mxu0
          %v4710 = vadd.f32 %v4432, %v4648
          %v4711 = vadd.f32 %v4433, %v4651
          %v4712 = vadd.f32 %v4434, %v4656
          %v4713 = vadd.f32 %v4435, %v4659
          %v4714 = vadd.f32 %v4436, %v4664
          %v4715 = vadd.f32 %v4437, %v4667
          %v4716 = vadd.f32 %v4438, %v4672
          %v4717 = vadd.f32 %v4439, %v4675
          %v4718 = vadd.f32 %v4440, %v4680
          %v4719 = vadd.f32 %v4441, %v4683
          %v4720 = vadd.f32 %v4442, %v4688
          %v4721 = vadd.f32 %v4443, %v4691
          %v4722 = vadd.f32 %v4444, %v4696
          %v4723 = vadd.f32 %v4445, %v4699
          %v4724 = vadd.f32 %v4446, %v4704
          %v4725 = vadd.f32 %v4447, %v4707
          %s4726 = scalar_lea.vmem %s260, 64
          %v4727 = vld [vmem:[%s4726] sm:$0xf]
          %v4728 = vld [vmem:[%s4726 + $0x8] sm:$0xf]
          %v4729 = vld [vmem:[%s4726 + $0x10] sm:$0xf]
          %v4730 = vld [vmem:[%s4726 + $0x18] sm:$0xf]
          %v4731 = vld [vmem:[%s4726 + $0x30] sm:$0xf]
          %v4732 = vld [vmem:[%s4726 + $0x38] sm:$0xf]
          %v4733 = vld [vmem:[%s4726 + $0x40] sm:$0xf]
          %v4734 = vld [vmem:[%s4726 + $0x48] sm:$0xf]
          %v4735 = vld [vmem:[%s4726 + $0x60] sm:$0xf]
          %v4736 = vld [vmem:[%s4726 + $0x68] sm:$0xf]
          %v4737 = vld [vmem:[%s4726 + $0x70] sm:$0xf]
          %v4738 = vld [vmem:[%s4726 + $0x78] sm:$0xf]
          %v4739 = vld [vmem:[%s4726 + $0x90] sm:$0xf]
          %v4740 = vld [vmem:[%s4726 + $0x98] sm:$0xf]
          %v4741 = vld [vmem:[%s4726 + $0xa0] sm:$0xf]
          %v4742 = vld [vmem:[%s4726 + $0xa8] sm:$0xf]
          %s4743 = scalar_lea.vmem %s1, 60
          %v4744 = vld [vmem:[%s4743] sm:$0xf]
          %v4761 = vunpack.c.l.b16 %v4727
          %v4762 = vunpack.c.l.b16 %v4728
          %v4763 = vunpack.c.l.b16 %v4729
          %v4764 = vunpack.c.l.b16 %v4730
          %v4765 = vunpack.c.l.b16 %v4731
          %v4766 = vunpack.c.l.b16 %v4732
          %v4767 = vunpack.c.l.b16 %v4733
          %v4768 = vunpack.c.l.b16 %v4734
          %v4769 = vunpack.c.l.b16 %v4735
          %v4770 = vunpack.c.l.b16 %v4736
          %v4771 = vunpack.c.l.b16 %v4737
          %v4772 = vunpack.c.l.b16 %v4738
          %v4773 = vunpack.c.l.b16 %v4739
          %v4774 = vunpack.c.l.b16 %v4740
          %v4775 = vunpack.c.l.b16 %v4741
          %v4776 = vunpack.c.l.b16 %v4742
          %v4777 = vpack.c.b16 %v4762, %v4761
          %v4778 = vpack.c.b16 %v4764, %v4763
          %v4779 = vpack.c.b16 %v4766, %v4765
          %v4780 = vpack.c.b16 %v4768, %v4767
          %v4781 = vpack.c.b16 %v4770, %v4769
          %v4782 = vpack.c.b16 %v4772, %v4771
          %v4783 = vpack.c.b16 %v4774, %v4773
          %v4784 = vpack.c.b16 %v4776, %v4775
          %v4786 = vsel %vm559, %v4777, 0
          %v4789 = vsel %vm559, %v4778, 0
          %v4792 = vsel %vm559, %v4779, 0
          %v4795 = vsel %vm559, %v4780, 0
          %v4798 = vsel %vm559, %v4781, 0
          %v4801 = vsel %vm559, %v4782, 0
          %v4804 = vsel %vm559, %v4783, 0
          %v4807 = vsel %vm559, %v4784, 0
          %v4810 = vsel %vm584, %v4744, 0
          %4812 = vmatprep.subr.bf16.mxu0 0
          %4813 = vmatpush1.bf16.msra.mxu0 %v4810
          %4814 = vmatprep.subr.bf16.mxu0 0
          %4815 = vmatpush1.bf16.msra.mxu0 0
          %4816 = vmatprep.subr.bf16.mxu0 0
          %4817 = vmatpush1.bf16.msra.mxu0 0
          %4818 = vmatprep.subr.bf16.mxu0 0
          %4819 = vmatpush1.bf16.msra.mxu0 0
          %4820 = vmatprep.subr.bf16.mxu0 0
          %4821 = vmatpush1.bf16.msra.mxu0 0
          %4822 = vmatprep.subr.bf16.mxu0 0
          %4823 = vmatpush1.bf16.msra.mxu0 0
          %4824 = vmatprep.subr.bf16.mxu0 0
          %4825 = vmatpush1.bf16.msra.mxu0 0
          %4826 = vmatprep.subr.bf16.mxu0 0
          %4827 = vmatpush1.bf16.msra.mxu0 0
          %4828 = vmatprep.subr.bf16.mxu0 0
          %4829 = vmatpush1.bf16.msra.mxu0 0
          %4830 = vmatprep.subr.bf16.mxu0 0
          %4831 = vmatpush1.bf16.msra.mxu0 0
          %4832 = vmatprep.subr.bf16.mxu0 0
          %4833 = vmatpush1.bf16.msra.mxu0 0
          %4834 = vmatprep.subr.bf16.mxu0 0
          %4835 = vmatpush1.bf16.msra.mxu0 0
          %4836 = vmatprep.subr.bf16.mxu0 0
          %4837 = vmatpush1.bf16.msra.mxu0 0
          %4838 = vmatprep.subr.bf16.mxu0 0
          %4839 = vmatpush1.bf16.msra.mxu0 0
          %4840 = vmatprep.subr.bf16.mxu0 0
          %4841 = vmatpush1.bf16.msra.mxu0 0
          %4842 = vmatprep.subr.bf16.mxu0 0
          %4843 = vmatpush1.bf16.msra.mxu0 0
          %4844 = vmatprep.mubr.bf16.mxu0 0
          %4845 = vmatmul.mubr.bf16.gmra.mrb[0].mxu0 %v4786
          %v4846 = vpop.f32.mrb[0].mxu0
          %v4847 = vadd.f32 0.0, %v4846
          %v4848 = vpop.f32.mrb[0].mxu0
          %v4849 = vpop.f32.mrb[0].mxu0
          %v4850 = vadd.f32 0.0, %v4849
          %v4851 = vpop.f32.mrb[0].mxu0
          %4852 = vmatprep.mubr.bf16.mxu0 0
          %4853 = vmatmul.mubr.bf16.gmra.mrb[0].mxu0 %v4789
          %v4854 = vpop.f32.mrb[0].mxu0
          %v4855 = vadd.f32 0.0, %v4854
          %v4856 = vpop.f32.mrb[0].mxu0
          %v4857 = vpop.f32.mrb[0].mxu0
          %v4858 = vadd.f32 0.0, %v4857
          %v4859 = vpop.f32.mrb[0].mxu0
          %4860 = vmatprep.mubr.bf16.mxu0 0
          %4861 = vmatmul.mubr.bf16.gmra.mrb[0].mxu0 %v4792
          %v4862 = vpop.f32.mrb[0].mxu0
          %v4863 = vadd.f32 0.0, %v4862
          %v4864 = vpop.f32.mrb[0].mxu0
          %v4865 = vpop.f32.mrb[0].mxu0
          %v4866 = vadd.f32 0.0, %v4865
          %v4867 = vpop.f32.mrb[0].mxu0
          %4868 = vmatprep.mubr.bf16.mxu0 0
          %4869 = vmatmul.mubr.bf16.gmra.mrb[0].mxu0 %v4795
          %v4870 = vpop.f32.mrb[0].mxu0
          %v4871 = vadd.f32 0.0, %v4870
          %v4872 = vpop.f32.mrb[0].mxu0
          %v4873 = vpop.f32.mrb[0].mxu0
          %v4874 = vadd.f32 0.0, %v4873
          %v4875 = vpop.f32.mrb[0].mxu0
          %4876 = vmatprep.mubr.bf16.mxu0 0
          %4877 = vmatmul.mubr.bf16.gmra.mrb[0].mxu0 %v4798
          %v4878 = vpop.f32.mrb[0].mxu0
          %v4879 = vadd.f32 0.0, %v4878
          %v4880 = vpop.f32.mrb[0].mxu0
          %v4881 = vpop.f32.mrb[0].mxu0
          %v4882 = vadd.f32 0.0, %v4881
          %v4883 = vpop.f32.mrb[0].mxu0
          %4884 = vmatprep.mubr.bf16.mxu0 0
          %4885 = vmatmul.mubr.bf16.gmra.mrb[0].mxu0 %v4801
          %v4886 = vpop.f32.mrb[0].mxu0
          %v4887 = vadd.f32 0.0, %v4886
          %v4888 = vpop.f32.mrb[0].mxu0
          %v4889 = vpop.f32.mrb[0].mxu0
          %v4890 = vadd.f32 0.0, %v4889
          %v4891 = vpop.f32.mrb[0].mxu0
          %4892 = vmatprep.mubr.bf16.mxu0 0
          %4893 = vmatmul.mubr.bf16.gmra.mrb[0].mxu0 %v4804
          %v4894 = vpop.f32.mrb[0].mxu0
          %v4895 = vadd.f32 0.0, %v4894
          %v4896 = vpop.f32.mrb[0].mxu0
          %v4897 = vpop.f32.mrb[0].mxu0
          %v4898 = vadd.f32 0.0, %v4897
          %v4899 = vpop.f32.mrb[0].mxu0
          %4900 = vmatprep.mubr.bf16.mxu0 0
          %4901 = vmatmul.mubr.bf16.gmra.mrb[0].mxu0 %v4807
          %v4902 = vpop.f32.mrb[0].mxu0
          %v4903 = vadd.f32 0.0, %v4902
          %v4904 = vpop.f32.mrb[0].mxu0
          %v4905 = vpop.f32.mrb[0].mxu0
          %v4906 = vadd.f32 0.0, %v4905
          %v4907 = vpop.f32.mrb[0].mxu0
          %4908 = vdwg.mxu0
          %v4909 = vadd.f32 %v4710, %v4847
          %v4910 = vadd.f32 %v4711, %v4850
          %v4911 = vadd.f32 %v4712, %v4855
          %v4912 = vadd.f32 %v4713, %v4858
          %v4913 = vadd.f32 %v4714, %v4863
          %v4914 = vadd.f32 %v4715, %v4866
          %v4915 = vadd.f32 %v4716, %v4871
          %v4916 = vadd.f32 %v4717, %v4874
          %v4917 = vadd.f32 %v4718, %v4879
          %v4918 = vadd.f32 %v4719, %v4882
          %v4919 = vadd.f32 %v4720, %v4887
          %v4920 = vadd.f32 %v4721, %v4890
          %v4921 = vadd.f32 %v4722, %v4895
          %v4922 = vadd.f32 %v4723, %v4898
          %v4923 = vadd.f32 %v4724, %v4903
          %v4924 = vadd.f32 %v4725, %v4906
          %v4925 = vld [vmem:[%s4726] sm:$0xf]
          %v4926 = vld [vmem:[%s4726 + $0x4] sm:$0x1]
          %v4927 = vld [vmem:[%s4726 + $0x8] sm:$0xf]
          %v4928 = vld [vmem:[%s4726 + $0xc] sm:$0x1]
          %v4929 = vld [vmem:[%s4726 + $0x10] sm:$0xf]
          %v4930 = vld [vmem:[%s4726 + $0x14] sm:$0x1]
          %v4931 = vld [vmem:[%s4726 + $0x18] sm:$0xf]
          %v4932 = vld [vmem:[%s4726 + $0x1c] sm:$0x1]
          %v4933 = vld [vmem:[%s4726 + $0x30] sm:$0xf]
          %v4934 = vld [vmem:[%s4726 + $0x34] sm:$0x1]
          %v4935 = vld [vmem:[%s4726 + $0x38] sm:$0xf]
          %v4936 = vld [vmem:[%s4726 + $0x3c] sm:$0x1]
          %v4937 = vld [vmem:[%s4726 + $0x40] sm:$0xf]
          %v4938 = vld [vmem:[%s4726 + $0x44] sm:$0x1]
          %v4939 = vld [vmem:[%s4726 + $0x48] sm:$0xf]
          %v4940 = vld [vmem:[%s4726 + $0x4c] sm:$0x1]
          %v4941 = vld [vmem:[%s4726 + $0x60] sm:$0xf]
          %v4942 = vld [vmem:[%s4726 + $0x64] sm:$0x1]
          %v4943 = vld [vmem:[%s4726 + $0x68] sm:$0xf]
          %v4944 = vld [vmem:[%s4726 + $0x6c] sm:$0x1]
          %v4945 = vld [vmem:[%s4726 + $0x70] sm:$0xf]
          %v4946 = vld [vmem:[%s4726 + $0x74] sm:$0x1]
          %v4947 = vld [vmem:[%s4726 + $0x78] sm:$0xf]
          %v4948 = vld [vmem:[%s4726 + $0x7c] sm:$0x1]
          %v4949 = vld [vmem:[%s4726 + $0x90] sm:$0xf]
          %v4950 = vld [vmem:[%s4726 + $0x94] sm:$0x1]
          %v4951 = vld [vmem:[%s4726 + $0x98] sm:$0xf]
          %v4952 = vld [vmem:[%s4726 + $0x9c] sm:$0x1]
          %v4953 = vld [vmem:[%s4726 + $0xa0] sm:$0xf]
          %v4954 = vld [vmem:[%s4726 + $0xa4] sm:$0x1]
          %v4955 = vld [vmem:[%s4726 + $0xa8] sm:$0xf]
          %v4956 = vld [vmem:[%s4726 + $0xac] sm:$0x1]
          %v4958 = vshrl.u32 %v4925, 16
          %v4960 = vrot.slane %v4958, 4
          %v4961 = vshll.u32 %v4925, 16
          %v4963 = vrot.slane %v4961, 5
          %v4964 = vor.u32 %v4960, %v4963
          %v4965 = vrot.slane %v4964, 4
          %v4967 = vshll.u32 %v4926, 16
          %v4969 = vrot.slane %v4967, 5
          %v4970 = vsel %vm308, %v4965, %v4969
          %v4972 = vshrl.u32 %v4927, 16
          %v4974 = vrot.slane %v4972, 4
          %v4975 = vshll.u32 %v4927, 16
          %v4977 = vrot.slane %v4975, 5
          %v4978 = vor.u32 %v4974, %v4977
          %v4979 = vrot.slane %v4978, 4
          %v4981 = vshll.u32 %v4928, 16
          %v4983 = vrot.slane %v4981, 5
          %v4984 = vsel %vm308, %v4979, %v4983
          %v4986 = vshrl.u32 %v4929, 16
          %v4988 = vrot.slane %v4986, 4
          %v4989 = vshll.u32 %v4929, 16
          %v4991 = vrot.slane %v4989, 5
          %v4992 = vor.u32 %v4988, %v4991
          %v4993 = vrot.slane %v4992, 4
          %v4995 = vshll.u32 %v4930, 16
          %v4997 = vrot.slane %v4995, 5
          %v4998 = vsel %vm308, %v4993, %v4997
          %v5000 = vshrl.u32 %v4931, 16
          %v5002 = vrot.slane %v5000, 4
          %v5003 = vshll.u32 %v4931, 16
          %v5005 = vrot.slane %v5003, 5
          %v5006 = vor.u32 %v5002, %v5005
          %v5007 = vrot.slane %v5006, 4
          %v5009 = vshll.u32 %v4932, 16
          %v5011 = vrot.slane %v5009, 5
          %v5012 = vsel %vm308, %v5007, %v5011
          %v5014 = vshrl.u32 %v4933, 16
          %v5016 = vrot.slane %v5014, 4
          %v5017 = vshll.u32 %v4933, 16
          %v5019 = vrot.slane %v5017, 5
          %v5020 = vor.u32 %v5016, %v5019
          %v5021 = vrot.slane %v5020, 4
          %v5023 = vshll.u32 %v4934, 16
          %v5025 = vrot.slane %v5023, 5
          %v5026 = vsel %vm308, %v5021, %v5025
          %v5028 = vshrl.u32 %v4935, 16
          %v5030 = vrot.slane %v5028, 4
          %v5031 = vshll.u32 %v4935, 16
          %v5033 = vrot.slane %v5031, 5
          %v5034 = vor.u32 %v5030, %v5033
          %v5035 = vrot.slane %v5034, 4
          %v5037 = vshll.u32 %v4936, 16
          %v5039 = vrot.slane %v5037, 5
          %v5040 = vsel %vm308, %v5035, %v5039
          %v5042 = vshrl.u32 %v4937, 16
          %v5044 = vrot.slane %v5042, 4
          %v5045 = vshll.u32 %v4937, 16
          %v5047 = vrot.slane %v5045, 5
          %v5048 = vor.u32 %v5044, %v5047
          %v5049 = vrot.slane %v5048, 4
          %v5051 = vshll.u32 %v4938, 16
          %v5053 = vrot.slane %v5051, 5
          %v5054 = vsel %vm308, %v5049, %v5053
          %v5056 = vshrl.u32 %v4939, 16
          %v5058 = vrot.slane %v5056, 4
          %v5059 = vshll.u32 %v4939, 16
          %v5061 = vrot.slane %v5059, 5
          %v5062 = vor.u32 %v5058, %v5061
          %v5063 = vrot.slane %v5062, 4
          %v5065 = vshll.u32 %v4940, 16
          %v5067 = vrot.slane %v5065, 5
          %v5068 = vsel %vm308, %v5063, %v5067
          %v5070 = vshrl.u32 %v4941, 16
          %v5072 = vrot.slane %v5070, 4
          %v5073 = vshll.u32 %v4941, 16
          %v5075 = vrot.slane %v5073, 5
          %v5076 = vor.u32 %v5072, %v5075
          %v5077 = vrot.slane %v5076, 4
          %v5079 = vshll.u32 %v4942, 16
          %v5081 = vrot.slane %v5079, 5
          %v5082 = vsel %vm308, %v5077, %v5081
          %v5084 = vshrl.u32 %v4943, 16
          %v5086 = vrot.slane %v5084, 4
          %v5087 = vshll.u32 %v4943, 16
          %v5089 = vrot.slane %v5087, 5
          %v5090 = vor.u32 %v5086, %v5089
          %v5091 = vrot.slane %v5090, 4
          %v5093 = vshll.u32 %v4944, 16
          %v5095 = vrot.slane %v5093, 5
          %v5096 = vsel %vm308, %v5091, %v5095
          %v5098 = vshrl.u32 %v4945, 16
          %v5100 = vrot.slane %v5098, 4
          %v5101 = vshll.u32 %v4945, 16
          %v5103 = vrot.slane %v5101, 5
          %v5104 = vor.u32 %v5100, %v5103
          %v5105 = vrot.slane %v5104, 4
          %v5107 = vshll.u32 %v4946, 16
          %v5109 = vrot.slane %v5107, 5
          %v5110 = vsel %vm308, %v5105, %v5109
          %v5112 = vshrl.u32 %v4947, 16
          %v5114 = vrot.slane %v5112, 4
          %v5115 = vshll.u32 %v4947, 16
          %v5117 = vrot.slane %v5115, 5
          %v5118 = vor.u32 %v5114, %v5117
          %v5119 = vrot.slane %v5118, 4
          %v5121 = vshll.u32 %v4948, 16
          %v5123 = vrot.slane %v5121, 5
          %v5124 = vsel %vm308, %v5119, %v5123
          %v5126 = vshrl.u32 %v4949, 16
          %v5128 = vrot.slane %v5126, 4
          %v5129 = vshll.u32 %v4949, 16
          %v5131 = vrot.slane %v5129, 5
          %v5132 = vor.u32 %v5128, %v5131
          %v5133 = vrot.slane %v5132, 4
          %v5135 = vshll.u32 %v4950, 16
          %v5137 = vrot.slane %v5135, 5
          %v5138 = vsel %vm308, %v5133, %v5137
          %v5140 = vshrl.u32 %v4951, 16
          %v5142 = vrot.slane %v5140, 4
          %v5143 = vshll.u32 %v4951, 16
          %v5145 = vrot.slane %v5143, 5
          %v5146 = vor.u32 %v5142, %v5145
          %v5147 = vrot.slane %v5146, 4
          %v5149 = vshll.u32 %v4952, 16
          %v5151 = vrot.slane %v5149, 5
          %v5152 = vsel %vm308, %v5147, %v5151
          %v5154 = vshrl.u32 %v4953, 16
          %v5156 = vrot.slane %v5154, 4
          %v5157 = vshll.u32 %v4953, 16
          %v5159 = vrot.slane %v5157, 5
          %v5160 = vor.u32 %v5156, %v5159
          %v5161 = vrot.slane %v5160, 4
          %v5163 = vshll.u32 %v4954, 16
          %v5165 = vrot.slane %v5163, 5
          %v5166 = vsel %vm308, %v5161, %v5165
          %v5168 = vshrl.u32 %v4955, 16
          %v5170 = vrot.slane %v5168, 4
          %v5171 = vshll.u32 %v4955, 16
          %v5173 = vrot.slane %v5171, 5
          %v5174 = vor.u32 %v5170, %v5173
          %v5175 = vrot.slane %v5174, 4
          %v5177 = vshll.u32 %v4956, 16
          %v5179 = vrot.slane %v5177, 5
          %v5180 = vsel %vm308, %v5175, %v5179
          %s5181 = scalar_lea.vmem %s1, 64
          %v5182 = vld [vmem:[%s5181] sm:$0xf]
          %v5183 = vunpack.c.l.b16 %v4970
          %v5184 = vunpack.c.l.b16 %v4984
          %v5185 = vunpack.c.l.b16 %v4998
          %v5186 = vunpack.c.l.b16 %v5012
          %v5187 = vunpack.c.l.b16 %v5026
          %v5188 = vunpack.c.l.b16 %v5040
          %v5189 = vunpack.c.l.b16 %v5054
          %v5190 = vunpack.c.l.b16 %v5068
          %v5191 = vunpack.c.l.b16 %v5082
          %v5192 = vunpack.c.l.b16 %v5096
          %v5193 = vunpack.c.l.b16 %v5110
          %v5194 = vunpack.c.l.b16 %v5124
          %v5195 = vunpack.c.l.b16 %v5138
          %v5196 = vunpack.c.l.b16 %v5152
          %v5197 = vunpack.c.l.b16 %v5166
          %v5198 = vunpack.c.l.b16 %v5180
          %v5199 = vpack.c.b16 %v5184, %v5183
          %v5200 = vpack.c.b16 %v5186, %v5185
          %v5201 = vpack.c.b16 %v5188, %v5187
          %v5202 = vpack.c.b16 %v5190, %v5189
          %v5203 = vpack.c.b16 %v5192, %v5191
          %v5204 = vpack.c.b16 %v5194, %v5193
          %v5205 = vpack.c.b16 %v5196, %v5195
          %v5206 = vpack.c.b16 %v5198, %v5197
          %v5208 = vsel %vm559, %v5199, 0
          %v5211 = vsel %vm559, %v5200, 0
          %v5214 = vsel %vm559, %v5201, 0
          %v5217 = vsel %vm559, %v5202, 0
          %v5220 = vsel %vm559, %v5203, 0
          %v5223 = vsel %vm559, %v5204, 0
          %v5226 = vsel %vm559, %v5205, 0
          %v5229 = vsel %vm559, %v5206, 0
          %v5232 = vsel %vm584, %v5182, 0
          %5234 = vmatprep.subr.bf16.mxu0 0
          %5235 = vmatpush1.bf16.msra.mxu0 %v5232
          %5236 = vmatprep.subr.bf16.mxu0 0
          %5237 = vmatpush1.bf16.msra.mxu0 0
          %5238 = vmatprep.subr.bf16.mxu0 0
          %5239 = vmatpush1.bf16.msra.mxu0 0
          %5240 = vmatprep.subr.bf16.mxu0 0
          %5241 = vmatpush1.bf16.msra.mxu0 0
          %5242 = vmatprep.subr.bf16.mxu0 0
          %5243 = vmatpush1.bf16.msra.mxu0 0
          %5244 = vmatprep.subr.bf16.mxu0 0
          %5245 = vmatpush1.bf16.msra.mxu0 0
          %5246 = vmatprep.subr.bf16.mxu0 0
          %5247 = vmatpush1.bf16.msra.mxu0 0
          %5248 = vmatprep.subr.bf16.mxu0 0
          %5249 = vmatpush1.bf16.msra.mxu0 0
          %5250 = vmatprep.subr.bf16.mxu0 0
          %5251 = vmatpush1.bf16.msra.mxu0 0
          %5252 = vmatprep.subr.bf16.mxu0 0
          %5253 = vmatpush1.bf16.msra.mxu0 0
          %5254 = vmatprep.subr.bf16.mxu0 0
          %5255 = vmatpush1.bf16.msra.mxu0 0
          %5256 = vmatprep.subr.bf16.mxu0 0
          %5257 = vmatpush1.bf16.msra.mxu0 0
          %5258 = vmatprep.subr.bf16.mxu0 0
          %5259 = vmatpush1.bf16.msra.mxu0 0
          %5260 = vmatprep.subr.bf16.mxu0 0
          %5261 = vmatpush1.bf16.msra.mxu0 0
          %5262 = vmatprep.subr.bf16.mxu0 0
          %5263 = vmatpush1.bf16.msra.mxu0 0
          %5264 = vmatprep.subr.bf16.mxu0 0
          %5265 = vmatpush1.bf16.msra.mxu0 0
          %5266 = vmatprep.mubr.bf16.mxu0 0
          %5267 = vmatmul.mubr.bf16.gmra.mrb[0].mxu0 %v5208
          %v5268 = vpop.f32.mrb[0].mxu0
          %v5269 = vadd.f32 0.0, %v5268
          %v5270 = vpop.f32.mrb[0].mxu0
          %v5271 = vpop.f32.mrb[0].mxu0
          %v5272 = vadd.f32 0.0, %v5271
          %v5273 = vpop.f32.mrb[0].mxu0
          %5274 = vmatprep.mubr.bf16.mxu0 0
          %5275 = vmatmul.mubr.bf16.gmra.mrb[0].mxu0 %v5211
          %v5276 = vpop.f32.mrb[0].mxu0
          %v5277 = vadd.f32 0.0, %v5276
          %v5278 = vpop.f32.mrb[0].mxu0
          %v5279 = vpop.f32.mrb[0].mxu0
          %v5280 = vadd.f32 0.0, %v5279
          %v5281 = vpop.f32.mrb[0].mxu0
          %5282 = vmatprep.mubr.bf16.mxu0 0
          %5283 = vmatmul.mubr.bf16.gmra.mrb[0].mxu0 %v5214
          %v5284 = vpop.f32.mrb[0].mxu0
          %v5285 = vadd.f32 0.0, %v5284
          %v5286 = vpop.f32.mrb[0].mxu0
          %v5287 = vpop.f32.mrb[0].mxu0
          %v5288 = vadd.f32 0.0, %v5287
          %v5289 = vpop.f32.mrb[0].mxu0
          %5290 = vmatprep.mubr.bf16.mxu0 0
          %5291 = vmatmul.mubr.bf16.gmra.mrb[0].mxu0 %v5217
          %v5292 = vpop.f32.mrb[0].mxu0
          %v5293 = vadd.f32 0.0, %v5292
          %v5294 = vpop.f32.mrb[0].mxu0
          %v5295 = vpop.f32.mrb[0].mxu0
          %v5296 = vadd.f32 0.0, %v5295
          %v5297 = vpop.f32.mrb[0].mxu0
          %5298 = vmatprep.mubr.bf16.mxu0 0
          %5299 = vmatmul.mubr.bf16.gmra.mrb[0].mxu0 %v5220
          %v5300 = vpop.f32.mrb[0].mxu0
          %v5301 = vadd.f32 0.0, %v5300
          %v5302 = vpop.f32.mrb[0].mxu0
          %v5303 = vpop.f32.mrb[0].mxu0
          %v5304 = vadd.f32 0.0, %v5303
          %v5305 = vpop.f32.mrb[0].mxu0
          %5306 = vmatprep.mubr.bf16.mxu0 0
          %5307 = vmatmul.mubr.bf16.gmra.mrb[0].mxu0 %v5223
          %v5308 = vpop.f32.mrb[0].mxu0
          %v5309 = vadd.f32 0.0, %v5308
          %v5310 = vpop.f32.mrb[0].mxu0
          %v5311 = vpop.f32.mrb[0].mxu0
          %v5312 = vadd.f32 0.0, %v5311
          %v5313 = vpop.f32.mrb[0].mxu0
          %5314 = vmatprep.mubr.bf16.mxu0 0
          %5315 = vmatmul.mubr.bf16.gmra.mrb[0].mxu0 %v5226
          %v5316 = vpop.f32.mrb[0].mxu0
          %v5317 = vadd.f32 0.0, %v5316
          %v5318 = vpop.f32.mrb[0].mxu0
          %v5319 = vpop.f32.mrb[0].mxu0
          %v5320 = vadd.f32 0.0, %v5319
          %v5321 = vpop.f32.mrb[0].mxu0
          %5322 = vmatprep.mubr.bf16.mxu0 0
          %5323 = vmatmul.mubr.bf16.gmra.mrb[0].mxu0 %v5229
          %v5324 = vpop.f32.mrb[0].mxu0
          %v5325 = vadd.f32 0.0, %v5324
          %v5326 = vpop.f32.mrb[0].mxu0
          %v5327 = vpop.f32.mrb[0].mxu0
          %v5328 = vadd.f32 0.0, %v5327
          %v5329 = vpop.f32.mrb[0].mxu0
          %5330 = vdwg.mxu0
          %v5331 = vadd.f32 %v4909, %v5269
          %v5332 = vadd.f32 %v4910, %v5272
          %v5333 = vadd.f32 %v4911, %v5277
          %v5334 = vadd.f32 %v4912, %v5280
          %v5335 = vadd.f32 %v4913, %v5285
          %v5336 = vadd.f32 %v4914, %v5288
          %v5337 = vadd.f32 %v4915, %v5293
          %v5338 = vadd.f32 %v4916, %v5296
          %v5339 = vadd.f32 %v4917, %v5301
          %v5340 = vadd.f32 %v4918, %v5304
          %v5341 = vadd.f32 %v4919, %v5309
          %v5342 = vadd.f32 %v4920, %v5312
          %v5343 = vadd.f32 %v4921, %v5317
          %v5344 = vadd.f32 %v4922, %v5320
          %v5345 = vadd.f32 %v4923, %v5325
          %v5346 = vadd.f32 %v4924, %v5328
          %v5347 = vld [vmem:[%s4726] sm:$0xe]
          %v5348 = vld [vmem:[%s4726 + $0x8] sm:$0xe]
          %v5349 = vld [vmem:[%s4726 + $0x10] sm:$0xe]
          %v5350 = vld [vmem:[%s4726 + $0x18] sm:$0xe]
          %v5351 = vld [vmem:[%s4726 + $0x30] sm:$0xe]
          %v5352 = vld [vmem:[%s4726 + $0x38] sm:$0xe]
          %v5353 = vld [vmem:[%s4726 + $0x40] sm:$0xe]
          %v5354 = vld [vmem:[%s4726 + $0x48] sm:$0xe]
          %v5355 = vld [vmem:[%s4726 + $0x60] sm:$0xe]
          %v5356 = vld [vmem:[%s4726 + $0x68] sm:$0xe]
          %v5357 = vld [vmem:[%s4726 + $0x70] sm:$0xe]
          %v5358 = vld [vmem:[%s4726 + $0x78] sm:$0xe]
          %v5359 = vld [vmem:[%s4726 + $0x90] sm:$0xe]
          %v5360 = vld [vmem:[%s4726 + $0x98] sm:$0xe]
          %v5361 = vld [vmem:[%s4726 + $0xa0] sm:$0xe]
          %v5362 = vld [vmem:[%s4726 + $0xa8] sm:$0xe]
          %v5395 = vrot.slane %v5347, 5
          %v5396 = vrot.slane %v5395, 4
          %v5397 = vrot.slane %v4926, 5
          %v5398 = vsel %vm899, %v5396, %v5397
          %v5399 = vrot.slane %v5348, 5
          %v5400 = vrot.slane %v5399, 4
          %v5401 = vrot.slane %v4928, 5
          %v5402 = vsel %vm899, %v5400, %v5401
          %v5403 = vrot.slane %v5349, 5
          %v5404 = vrot.slane %v5403, 4
          %v5405 = vrot.slane %v4930, 5
          %v5406 = vsel %vm899, %v5404, %v5405
          %v5407 = vrot.slane %v5350, 5
          %v5408 = vrot.slane %v5407, 4
          %v5409 = vrot.slane %v4932, 5
          %v5410 = vsel %vm899, %v5408, %v5409
          %v5411 = vrot.slane %v5351, 5
          %v5412 = vrot.slane %v5411, 4
          %v5413 = vrot.slane %v4934, 5
          %v5414 = vsel %vm899, %v5412, %v5413
          %v5415 = vrot.slane %v5352, 5
          %v5416 = vrot.slane %v5415, 4
          %v5417 = vrot.slane %v4936, 5
          %v5418 = vsel %vm899, %v5416, %v5417
          %v5419 = vrot.slane %v5353, 5
          %v5420 = vrot.slane %v5419, 4
          %v5421 = vrot.slane %v4938, 5
          %v5422 = vsel %vm899, %v5420, %v5421
          %v5423 = vrot.slane %v5354, 5
          %v5424 = vrot.slane %v5423, 4
          %v5425 = vrot.slane %v4940, 5
          %v5426 = vsel %vm899, %v5424, %v5425
          %v5427 = vrot.slane %v5355, 5
          %v5428 = vrot.slane %v5427, 4
          %v5429 = vrot.slane %v4942, 5
          %v5430 = vsel %vm899, %v5428, %v5429
          %v5431 = vrot.slane %v5356, 5
          %v5432 = vrot.slane %v5431, 4
          %v5433 = vrot.slane %v4944, 5
          %v5434 = vsel %vm899, %v5432, %v5433
          %v5435 = vrot.slane %v5357, 5
          %v5436 = vrot.slane %v5435, 4
          %v5437 = vrot.slane %v4946, 5
          %v5438 = vsel %vm899, %v5436, %v5437
          %v5439 = vrot.slane %v5358, 5
          %v5440 = vrot.slane %v5439, 4
          %v5441 = vrot.slane %v4948, 5
          %v5442 = vsel %vm899, %v5440, %v5441
          %v5443 = vrot.slane %v5359, 5
          %v5444 = vrot.slane %v5443, 4
          %v5445 = vrot.slane %v4950, 5
          %v5446 = vsel %vm899, %v5444, %v5445
          %v5447 = vrot.slane %v5360, 5
          %v5448 = vrot.slane %v5447, 4
          %v5449 = vrot.slane %v4952, 5
          %v5450 = vsel %vm899, %v5448, %v5449
          %v5451 = vrot.slane %v5361, 5
          %v5452 = vrot.slane %v5451, 4
          %v5453 = vrot.slane %v4954, 5
          %v5454 = vsel %vm899, %v5452, %v5453
          %v5455 = vrot.slane %v5362, 5
          %v5456 = vrot.slane %v5455, 4
          %v5457 = vrot.slane %v4956, 5
          %v5458 = vsel %vm899, %v5456, %v5457
          %s5459 = scalar_lea.vmem %s1, 68
          %v5460 = vld [vmem:[%s5459] sm:$0xf]
          %v5461 = vunpack.c.l.b16 %v5398
          %v5462 = vunpack.c.l.b16 %v5402
          %v5463 = vunpack.c.l.b16 %v5406
          %v5464 = vunpack.c.l.b16 %v5410
          %v5465 = vunpack.c.l.b16 %v5414
          %v5466 = vunpack.c.l.b16 %v5418
          %v5467 = vunpack.c.l.b16 %v5422
          %v5468 = vunpack.c.l.b16 %v5426
          %v5469 = vunpack.c.l.b16 %v5430
          %v5470 = vunpack.c.l.b16 %v5434
          %v5471 = vunpack.c.l.b16 %v5438
          %v5472 = vunpack.c.l.b16 %v5442
          %v5473 = vunpack.c.l.b16 %v5446
          %v5474 = vunpack.c.l.b16 %v5450
          %v5475 = vunpack.c.l.b16 %v5454
          %v5476 = vunpack.c.l.b16 %v5458
          %v5477 = vpack.c.b16 %v5462, %v5461
          %v5478 = vpack.c.b16 %v5464, %v5463
          %v5479 = vpack.c.b16 %v5466, %v5465
          %v5480 = vpack.c.b16 %v5468, %v5467
          %v5481 = vpack.c.b16 %v5470, %v5469
          %v5482 = vpack.c.b16 %v5472, %v5471
          %v5483 = vpack.c.b16 %v5474, %v5473
          %v5484 = vpack.c.b16 %v5476, %v5475
          %v5486 = vsel %vm559, %v5477, 0
          %v5489 = vsel %vm559, %v5478, 0
          %v5492 = vsel %vm559, %v5479, 0
          %v5495 = vsel %vm559, %v5480, 0
          %v5498 = vsel %vm559, %v5481, 0
          %v5501 = vsel %vm559, %v5482, 0
          %v5504 = vsel %vm559, %v5483, 0
          %v5507 = vsel %vm559, %v5484, 0
          %v5510 = vsel %vm584, %v5460, 0
          %5512 = vmatprep.subr.bf16.mxu0 0
          %5513 = vmatpush1.bf16.msra.mxu0 %v5510
          %5514 = vmatprep.subr.bf16.mxu0 0
          %5515 = vmatpush1.bf16.msra.mxu0 0
          %5516 = vmatprep.subr.bf16.mxu0 0
          %5517 = vmatpush1.bf16.msra.mxu0 0
          %5518 = vmatprep.subr.bf16.mxu0 0
          %5519 = vmatpush1.bf16.msra.mxu0 0
          %5520 = vmatprep.subr.bf16.mxu0 0
          %5521 = vmatpush1.bf16.msra.mxu0 0
          %5522 = vmatprep.subr.bf16.mxu0 0
          %5523 = vmatpush1.bf16.msra.mxu0 0
          %5524 = vmatprep.subr.bf16.mxu0 0
          %5525 = vmatpush1.bf16.msra.mxu0 0
          %5526 = vmatprep.subr.bf16.mxu0 0
          %5527 = vmatpush1.bf16.msra.mxu0 0
          %5528 = vmatprep.subr.bf16.mxu0 0
          %5529 = vmatpush1.bf16.msra.mxu0 0
          %5530 = vmatprep.subr.bf16.mxu0 0
          %5531 = vmatpush1.bf16.msra.mxu0 0
          %5532 = vmatprep.subr.bf16.mxu0 0
          %5533 = vmatpush1.bf16.msra.mxu0 0
          %5534 = vmatprep.subr.bf16.mxu0 0
          %5535 = vmatpush1.bf16.msra.mxu0 0
          %5536 = vmatprep.subr.bf16.mxu0 0
          %5537 = vmatpush1.bf16.msra.mxu0 0
          %5538 = vmatprep.subr.bf16.mxu0 0
          %5539 = vmatpush1.bf16.msra.mxu0 0
          %5540 = vmatprep.subr.bf16.mxu0 0
          %5541 = vmatpush1.bf16.msra.mxu0 0
          %5542 = vmatprep.subr.bf16.mxu0 0
          %5543 = vmatpush1.bf16.msra.mxu0 0
          %5544 = vmatprep.mubr.bf16.mxu0 0
          %5545 = vmatmul.mubr.bf16.gmra.mrb[0].mxu0 %v5486
          %v5546 = vpop.f32.mrb[0].mxu0
          %v5547 = vadd.f32 0.0, %v5546
          %v5548 = vpop.f32.mrb[0].mxu0
          %v5549 = vpop.f32.mrb[0].mxu0
          %v5550 = vadd.f32 0.0, %v5549
          %v5551 = vpop.f32.mrb[0].mxu0
          %5552 = vmatprep.mubr.bf16.mxu0 0
          %5553 = vmatmul.mubr.bf16.gmra.mrb[0].mxu0 %v5489
          %v5554 = vpop.f32.mrb[0].mxu0
          %v5555 = vadd.f32 0.0, %v5554
          %v5556 = vpop.f32.mrb[0].mxu0
          %v5557 = vpop.f32.mrb[0].mxu0
          %v5558 = vadd.f32 0.0, %v5557
          %v5559 = vpop.f32.mrb[0].mxu0
          %5560 = vmatprep.mubr.bf16.mxu0 0
          %5561 = vmatmul.mubr.bf16.gmra.mrb[0].mxu0 %v5492
          %v5562 = vpop.f32.mrb[0].mxu0
          %v5563 = vadd.f32 0.0, %v5562
          %v5564 = vpop.f32.mrb[0].mxu0
          %v5565 = vpop.f32.mrb[0].mxu0
          %v5566 = vadd.f32 0.0, %v5565
          %v5567 = vpop.f32.mrb[0].mxu0
          %5568 = vmatprep.mubr.bf16.mxu0 0
          %5569 = vmatmul.mubr.bf16.gmra.mrb[0].mxu0 %v5495
          %v5570 = vpop.f32.mrb[0].mxu0
          %v5571 = vadd.f32 0.0, %v5570
          %v5572 = vpop.f32.mrb[0].mxu0
          %v5573 = vpop.f32.mrb[0].mxu0
          %v5574 = vadd.f32 0.0, %v5573
          %v5575 = vpop.f32.mrb[0].mxu0
          %5576 = vmatprep.mubr.bf16.mxu0 0
          %5577 = vmatmul.mubr.bf16.gmra.mrb[0].mxu0 %v5498
          %v5578 = vpop.f32.mrb[0].mxu0
          %v5579 = vadd.f32 0.0, %v5578
          %v5580 = vpop.f32.mrb[0].mxu0
          %v5581 = vpop.f32.mrb[0].mxu0
          %v5582 = vadd.f32 0.0, %v5581
          %v5583 = vpop.f32.mrb[0].mxu0
          %5584 = vmatprep.mubr.bf16.mxu0 0
          %5585 = vmatmul.mubr.bf16.gmra.mrb[0].mxu0 %v5501
          %v5586 = vpop.f32.mrb[0].mxu0
          %v5587 = vadd.f32 0.0, %v5586
          %v5588 = vpop.f32.mrb[0].mxu0
          %v5589 = vpop.f32.mrb[0].mxu0
          %v5590 = vadd.f32 0.0, %v5589
          %v5591 = vpop.f32.mrb[0].mxu0
          %5592 = vmatprep.mubr.bf16.mxu0 0
          %5593 = vmatmul.mubr.bf16.gmra.mrb[0].mxu0 %v5504
          %v5594 = vpop.f32.mrb[0].mxu0
          %v5595 = vadd.f32 0.0, %v5594
          %v5596 = vpop.f32.mrb[0].mxu0
          %v5597 = vpop.f32.mrb[0].mxu0
          %v5598 = vadd.f32 0.0, %v5597
          %v5599 = vpop.f32.mrb[0].mxu0
          %5600 = vmatprep.mubr.bf16.mxu0 0
          %5601 = vmatmul.mubr.bf16.gmra.mrb[0].mxu0 %v5507
          %v5602 = vpop.f32.mrb[0].mxu0
          %v5603 = vadd.f32 0.0, %v5602
          %v5604 = vpop.f32.mrb[0].mxu0
          %v5605 = vpop.f32.mrb[0].mxu0
          %v5606 = vadd.f32 0.0, %v5605
          %v5607 = vpop.f32.mrb[0].mxu0
          %5608 = vdwg.mxu0
          %v5609 = vadd.f32 %v5331, %v5547
          %v5610 = vadd.f32 %v5332, %v5550
          %v5611 = vadd.f32 %v5333, %v5555
          %v5612 = vadd.f32 %v5334, %v5558
          %v5613 = vadd.f32 %v5335, %v5563
          %v5614 = vadd.f32 %v5336, %v5566
          %v5615 = vadd.f32 %v5337, %v5571
          %v5616 = vadd.f32 %v5338, %v5574
          %v5617 = vadd.f32 %v5339, %v5579
          %v5618 = vadd.f32 %v5340, %v5582
          %v5619 = vadd.f32 %v5341, %v5587
          %v5620 = vadd.f32 %v5342, %v5590
          %v5621 = vadd.f32 %v5343, %v5595
          %v5622 = vadd.f32 %v5344, %v5598
          %v5623 = vadd.f32 %v5345, %v5603
          %v5624 = vadd.f32 %v5346, %v5606
          %s5625 = scalar_lea.vmem %s260, 96
          %v5626 = vld [vmem:[%s5625] sm:$0xf]
          %v5627 = vld [vmem:[%s5625 + $0x8] sm:$0xf]
          %v5628 = vld [vmem:[%s5625 + $0x10] sm:$0xf]
          %v5629 = vld [vmem:[%s5625 + $0x18] sm:$0xf]
          %v5630 = vld [vmem:[%s5625 + $0x30] sm:$0xf]
          %v5631 = vld [vmem:[%s5625 + $0x38] sm:$0xf]
          %v5632 = vld [vmem:[%s5625 + $0x40] sm:$0xf]
          %v5633 = vld [vmem:[%s5625 + $0x48] sm:$0xf]
          %v5634 = vld [vmem:[%s5625 + $0x60] sm:$0xf]
          %v5635 = vld [vmem:[%s5625 + $0x68] sm:$0xf]
          %v5636 = vld [vmem:[%s5625 + $0x70] sm:$0xf]
          %v5637 = vld [vmem:[%s5625 + $0x78] sm:$0xf]
          %v5638 = vld [vmem:[%s5625 + $0x90] sm:$0xf]
          %v5639 = vld [vmem:[%s5625 + $0x98] sm:$0xf]
          %v5640 = vld [vmem:[%s5625 + $0xa0] sm:$0xf]
          %v5641 = vld [vmem:[%s5625 + $0xa8] sm:$0xf]
          %s5642 = scalar_lea.vmem %s1, 72
          %v5643 = vld [vmem:[%s5642] sm:$0xf]
          %v5660 = vunpack.c.l.b16 %v5626
          %v5661 = vunpack.c.l.b16 %v5627
          %v5662 = vunpack.c.l.b16 %v5628
          %v5663 = vunpack.c.l.b16 %v5629
          %v5664 = vunpack.c.l.b16 %v5630
          %v5665 = vunpack.c.l.b16 %v5631
          %v5666 = vunpack.c.l.b16 %v5632
          %v5667 = vunpack.c.l.b16 %v5633
          %v5668 = vunpack.c.l.b16 %v5634
          %v5669 = vunpack.c.l.b16 %v5635
          %v5670 = vunpack.c.l.b16 %v5636
          %v5671 = vunpack.c.l.b16 %v5637
          %v5672 = vunpack.c.l.b16 %v5638
          %v5673 = vunpack.c.l.b16 %v5639
          %v5674 = vunpack.c.l.b16 %v5640
          %v5675 = vunpack.c.l.b16 %v5641
          %v5676 = vpack.c.b16 %v5661, %v5660
          %v5677 = vpack.c.b16 %v5663, %v5662
          %v5678 = vpack.c.b16 %v5665, %v5664
          %v5679 = vpack.c.b16 %v5667, %v5666
          %v5680 = vpack.c.b16 %v5669, %v5668
          %v5681 = vpack.c.b16 %v5671, %v5670
          %v5682 = vpack.c.b16 %v5673, %v5672
          %v5683 = vpack.c.b16 %v5675, %v5674
          %v5685 = vsel %vm559, %v5676, 0
          %v5688 = vsel %vm559, %v5677, 0
          %v5691 = vsel %vm559, %v5678, 0
          %v5694 = vsel %vm559, %v5679, 0
          %v5697 = vsel %vm559, %v5680, 0
          %v5700 = vsel %vm559, %v5681, 0
          %v5703 = vsel %vm559, %v5682, 0
          %v5706 = vsel %vm559, %v5683, 0
          %v5709 = vsel %vm584, %v5643, 0
          %5711 = vmatprep.subr.bf16.mxu0 0
          %5712 = vmatpush1.bf16.msra.mxu0 %v5709
          %5713 = vmatprep.subr.bf16.mxu0 0
          %5714 = vmatpush1.bf16.msra.mxu0 0
          %5715 = vmatprep.subr.bf16.mxu0 0
          %5716 = vmatpush1.bf16.msra.mxu0 0
          %5717 = vmatprep.subr.bf16.mxu0 0
          %5718 = vmatpush1.bf16.msra.mxu0 0
          %5719 = vmatprep.subr.bf16.mxu0 0
          %5720 = vmatpush1.bf16.msra.mxu0 0
          %5721 = vmatprep.subr.bf16.mxu0 0
          %5722 = vmatpush1.bf16.msra.mxu0 0
          %5723 = vmatprep.subr.bf16.mxu0 0
          %5724 = vmatpush1.bf16.msra.mxu0 0
          %5725 = vmatprep.subr.bf16.mxu0 0
          %5726 = vmatpush1.bf16.msra.mxu0 0
          %5727 = vmatprep.subr.bf16.mxu0 0
          %5728 = vmatpush1.bf16.msra.mxu0 0
          %5729 = vmatprep.subr.bf16.mxu0 0
          %5730 = vmatpush1.bf16.msra.mxu0 0
          %5731 = vmatprep.subr.bf16.mxu0 0
          %5732 = vmatpush1.bf16.msra.mxu0 0
          %5733 = vmatprep.subr.bf16.mxu0 0
          %5734 = vmatpush1.bf16.msra.mxu0 0
          %5735 = vmatprep.subr.bf16.mxu0 0
          %5736 = vmatpush1.bf16.msra.mxu0 0
          %5737 = vmatprep.subr.bf16.mxu0 0
          %5738 = vmatpush1.bf16.msra.mxu0 0
          %5739 = vmatprep.subr.bf16.mxu0 0
          %5740 = vmatpush1.bf16.msra.mxu0 0
          %5741 = vmatprep.subr.bf16.mxu0 0
          %5742 = vmatpush1.bf16.msra.mxu0 0
          %5743 = vmatprep.mubr.bf16.mxu0 0
          %5744 = vmatmul.mubr.bf16.gmra.mrb[0].mxu0 %v5685
          %v5745 = vpop.f32.mrb[0].mxu0
          %v5746 = vadd.f32 0.0, %v5745
          %v5747 = vpop.f32.mrb[0].mxu0
          %v5748 = vpop.f32.mrb[0].mxu0
          %v5749 = vadd.f32 0.0, %v5748
          %v5750 = vpop.f32.mrb[0].mxu0
          %5751 = vmatprep.mubr.bf16.mxu0 0
          %5752 = vmatmul.mubr.bf16.gmra.mrb[0].mxu0 %v5688
          %v5753 = vpop.f32.mrb[0].mxu0
          %v5754 = vadd.f32 0.0, %v5753
          %v5755 = vpop.f32.mrb[0].mxu0
          %v5756 = vpop.f32.mrb[0].mxu0
          %v5757 = vadd.f32 0.0, %v5756
          %v5758 = vpop.f32.mrb[0].mxu0
          %5759 = vmatprep.mubr.bf16.mxu0 0
          %5760 = vmatmul.mubr.bf16.gmra.mrb[0].mxu0 %v5691
          %v5761 = vpop.f32.mrb[0].mxu0
          %v5762 = vadd.f32 0.0, %v5761
          %v5763 = vpop.f32.mrb[0].mxu0
          %v5764 = vpop.f32.mrb[0].mxu0
          %v5765 = vadd.f32 0.0, %v5764
          %v5766 = vpop.f32.mrb[0].mxu0
          %5767 = vmatprep.mubr.bf16.mxu0 0
          %5768 = vmatmul.mubr.bf16.gmra.mrb[0].mxu0 %v5694
          %v5769 = vpop.f32.mrb[0].mxu0
          %v5770 = vadd.f32 0.0, %v5769
          %v5771 = vpop.f32.mrb[0].mxu0
          %v5772 = vpop.f32.mrb[0].mxu0
          %v5773 = vadd.f32 0.0, %v5772
          %v5774 = vpop.f32.mrb[0].mxu0
          %5775 = vmatprep.mubr.bf16.mxu0 0
          %5776 = vmatmul.mubr.bf16.gmra.mrb[0].mxu0 %v5697
          %v5777 = vpop.f32.mrb[0].mxu0
          %v5778 = vadd.f32 0.0, %v5777
          %v5779 = vpop.f32.mrb[0].mxu0
          %v5780 = vpop.f32.mrb[0].mxu0
          %v5781 = vadd.f32 0.0, %v5780
          %v5782 = vpop.f32.mrb[0].mxu0
          %5783 = vmatprep.mubr.bf16.mxu0 0
          %5784 = vmatmul.mubr.bf16.gmra.mrb[0].mxu0 %v5700
          %v5785 = vpop.f32.mrb[0].mxu0
          %v5786 = vadd.f32 0.0, %v5785
          %v5787 = vpop.f32.mrb[0].mxu0
          %v5788 = vpop.f32.mrb[0].mxu0
          %v5789 = vadd.f32 0.0, %v5788
          %v5790 = vpop.f32.mrb[0].mxu0
          %5791 = vmatprep.mubr.bf16.mxu0 0
          %5792 = vmatmul.mubr.bf16.gmra.mrb[0].mxu0 %v5703
          %v5793 = vpop.f32.mrb[0].mxu0
          %v5794 = vadd.f32 0.0, %v5793
          %v5795 = vpop.f32.mrb[0].mxu0
          %v5796 = vpop.f32.mrb[0].mxu0
          %v5797 = vadd.f32 0.0, %v5796
          %v5798 = vpop.f32.mrb[0].mxu0
          %5799 = vmatprep.mubr.bf16.mxu0 0
          %5800 = vmatmul.mubr.bf16.gmra.mrb[0].mxu0 %v5706
          %v5801 = vpop.f32.mrb[0].mxu0
          %v5802 = vadd.f32 0.0, %v5801
          %v5803 = vpop.f32.mrb[0].mxu0
          %v5804 = vpop.f32.mrb[0].mxu0
          %v5805 = vadd.f32 0.0, %v5804
          %v5806 = vpop.f32.mrb[0].mxu0
          %5807 = vdwg.mxu0
          %v5808 = vadd.f32 %v5609, %v5746
          %v5809 = vadd.f32 %v5610, %v5749
          %v5810 = vadd.f32 %v5611, %v5754
          %v5811 = vadd.f32 %v5612, %v5757
          %v5812 = vadd.f32 %v5613, %v5762
          %v5813 = vadd.f32 %v5614, %v5765
          %v5814 = vadd.f32 %v5615, %v5770
          %v5815 = vadd.f32 %v5616, %v5773
          %v5816 = vadd.f32 %v5617, %v5778
          %v5817 = vadd.f32 %v5618, %v5781
          %v5818 = vadd.f32 %v5619, %v5786
          %v5819 = vadd.f32 %v5620, %v5789
          %v5820 = vadd.f32 %v5621, %v5794
          %v5821 = vadd.f32 %v5622, %v5797
          %v5822 = vadd.f32 %v5623, %v5802
          %v5823 = vadd.f32 %v5624, %v5805
          %v5824 = vld [vmem:[%s5625] sm:$0xf]
          %v5825 = vld [vmem:[%s5625 + $0x4] sm:$0x1]
          %v5826 = vld [vmem:[%s5625 + $0x8] sm:$0xf]
          %v5827 = vld [vmem:[%s5625 + $0xc] sm:$0x1]
          %v5828 = vld [vmem:[%s5625 + $0x10] sm:$0xf]
          %v5829 = vld [vmem:[%s5625 + $0x14] sm:$0x1]
          %v5830 = vld [vmem:[%s5625 + $0x18] sm:$0xf]
          %v5831 = vld [vmem:[%s5625 + $0x1c] sm:$0x1]
          %v5832 = vld [vmem:[%s5625 + $0x30] sm:$0xf]
          %v5833 = vld [vmem:[%s5625 + $0x34] sm:$0x1]
          %v5834 = vld [vmem:[%s5625 + $0x38] sm:$0xf]
          %v5835 = vld [vmem:[%s5625 + $0x3c] sm:$0x1]
          %v5836 = vld [vmem:[%s5625 + $0x40] sm:$0xf]
          %v5837 = vld [vmem:[%s5625 + $0x44] sm:$0x1]
          %v5838 = vld [vmem:[%s5625 + $0x48] sm:$0xf]
          %v5839 = vld [vmem:[%s5625 + $0x4c] sm:$0x1]
          %v5840 = vld [vmem:[%s5625 + $0x60] sm:$0xf]
          %v5841 = vld [vmem:[%s5625 + $0x64] sm:$0x1]
          %v5842 = vld [vmem:[%s5625 + $0x68] sm:$0xf]
          %v5843 = vld [vmem:[%s5625 + $0x6c] sm:$0x1]
          %v5844 = vld [vmem:[%s5625 + $0x70] sm:$0xf]
          %v5845 = vld [vmem:[%s5625 + $0x74] sm:$0x1]
          %v5846 = vld [vmem:[%s5625 + $0x78] sm:$0xf]
          %v5847 = vld [vmem:[%s5625 + $0x7c] sm:$0x1]
          %v5848 = vld [vmem:[%s5625 + $0x90] sm:$0xf]
          %v5849 = vld [vmem:[%s5625 + $0x94] sm:$0x1]
          %v5850 = vld [vmem:[%s5625 + $0x98] sm:$0xf]
          %v5851 = vld [vmem:[%s5625 + $0x9c] sm:$0x1]
          %v5852 = vld [vmem:[%s5625 + $0xa0] sm:$0xf]
          %v5853 = vld [vmem:[%s5625 + $0xa4] sm:$0x1]
          %v5854 = vld [vmem:[%s5625 + $0xa8] sm:$0xf]
          %v5855 = vld [vmem:[%s5625 + $0xac] sm:$0x1]
          %v5857 = vshrl.u32 %v5824, 16
          %v5859 = vrot.slane %v5857, 4
          %v5860 = vshll.u32 %v5824, 16
          %v5862 = vrot.slane %v5860, 5
          %v5863 = vor.u32 %v5859, %v5862
          %v5864 = vrot.slane %v5863, 4
          %v5866 = vshll.u32 %v5825, 16
          %v5868 = vrot.slane %v5866, 5
          %v5869 = vsel %vm308, %v5864, %v5868
          %v5871 = vshrl.u32 %v5826, 16
          %v5873 = vrot.slane %v5871, 4
          %v5874 = vshll.u32 %v5826, 16
          %v5876 = vrot.slane %v5874, 5
          %v5877 = vor.u32 %v5873, %v5876
          %v5878 = vrot.slane %v5877, 4
          %v5880 = vshll.u32 %v5827, 16
          %v5882 = vrot.slane %v5880, 5
          %v5883 = vsel %vm308, %v5878, %v5882
          %v5885 = vshrl.u32 %v5828, 16
          %v5887 = vrot.slane %v5885, 4
          %v5888 = vshll.u32 %v5828, 16
          %v5890 = vrot.slane %v5888, 5
          %v5891 = vor.u32 %v5887, %v5890
          %v5892 = vrot.slane %v5891, 4
          %v5894 = vshll.u32 %v5829, 16
          %v5896 = vrot.slane %v5894, 5
          %v5897 = vsel %vm308, %v5892, %v5896
          %v5899 = vshrl.u32 %v5830, 16
          %v5901 = vrot.slane %v5899, 4
          %v5902 = vshll.u32 %v5830, 16
          %v5904 = vrot.slane %v5902, 5
          %v5905 = vor.u32 %v5901, %v5904
          %v5906 = vrot.slane %v5905, 4
          %v5908 = vshll.u32 %v5831, 16
          %v5910 = vrot.slane %v5908, 5
          %v5911 = vsel %vm308, %v5906, %v5910
          %v5913 = vshrl.u32 %v5832, 16
          %v5915 = vrot.slane %v5913, 4
          %v5916 = vshll.u32 %v5832, 16
          %v5918 = vrot.slane %v5916, 5
          %v5919 = vor.u32 %v5915, %v5918
          %v5920 = vrot.slane %v5919, 4
          %v5922 = vshll.u32 %v5833, 16
          %v5924 = vrot.slane %v5922, 5
          %v5925 = vsel %vm308, %v5920, %v5924
          %v5927 = vshrl.u32 %v5834, 16
          %v5929 = vrot.slane %v5927, 4
          %v5930 = vshll.u32 %v5834, 16
          %v5932 = vrot.slane %v5930, 5
          %v5933 = vor.u32 %v5929, %v5932
          %v5934 = vrot.slane %v5933, 4
          %v5936 = vshll.u32 %v5835, 16
          %v5938 = vrot.slane %v5936, 5
          %v5939 = vsel %vm308, %v5934, %v5938
          %v5941 = vshrl.u32 %v5836, 16
          %v5943 = vrot.slane %v5941, 4
          %v5944 = vshll.u32 %v5836, 16
          %v5946 = vrot.slane %v5944, 5
          %v5947 = vor.u32 %v5943, %v5946
          %v5948 = vrot.slane %v5947, 4
          %v5950 = vshll.u32 %v5837, 16
          %v5952 = vrot.slane %v5950, 5
          %v5953 = vsel %vm308, %v5948, %v5952
          %v5955 = vshrl.u32 %v5838, 16
          %v5957 = vrot.slane %v5955, 4
          %v5958 = vshll.u32 %v5838, 16
          %v5960 = vrot.slane %v5958, 5
          %v5961 = vor.u32 %v5957, %v5960
          %v5962 = vrot.slane %v5961, 4
          %v5964 = vshll.u32 %v5839, 16
          %v5966 = vrot.slane %v5964, 5
          %v5967 = vsel %vm308, %v5962, %v5966
          %v5969 = vshrl.u32 %v5840, 16
          %v5971 = vrot.slane %v5969, 4
          %v5972 = vshll.u32 %v5840, 16
          %v5974 = vrot.slane %v5972, 5
          %v5975 = vor.u32 %v5971, %v5974
          %v5976 = vrot.slane %v5975, 4
          %v5978 = vshll.u32 %v5841, 16
          %v5980 = vrot.slane %v5978, 5
          %v5981 = vsel %vm308, %v5976, %v5980
          %v5983 = vshrl.u32 %v5842, 16
          %v5985 = vrot.slane %v5983, 4
          %v5986 = vshll.u32 %v5842, 16
          %v5988 = vrot.slane %v5986, 5
          %v5989 = vor.u32 %v5985, %v5988
          %v5990 = vrot.slane %v5989, 4
          %v5992 = vshll.u32 %v5843, 16
          %v5994 = vrot.slane %v5992, 5
          %v5995 = vsel %vm308, %v5990, %v5994
          %v5997 = vshrl.u32 %v5844, 16
          %v5999 = vrot.slane %v5997, 4
          %v6000 = vshll.u32 %v5844, 16
          %v6002 = vrot.slane %v6000, 5
          %v6003 = vor.u32 %v5999, %v6002
          %v6004 = vrot.slane %v6003, 4
          %v6006 = vshll.u32 %v5845, 16
          %v6008 = vrot.slane %v6006, 5
          %v6009 = vsel %vm308, %v6004, %v6008
          %v6011 = vshrl.u32 %v5846, 16
          %v6013 = vrot.slane %v6011, 4
          %v6014 = vshll.u32 %v5846, 16
          %v6016 = vrot.slane %v6014, 5
          %v6017 = vor.u32 %v6013, %v6016
          %v6018 = vrot.slane %v6017, 4
          %v6020 = vshll.u32 %v5847, 16
          %v6022 = vrot.slane %v6020, 5
          %v6023 = vsel %vm308, %v6018, %v6022
          %v6025 = vshrl.u32 %v5848, 16
          %v6027 = vrot.slane %v6025, 4
          %v6028 = vshll.u32 %v5848, 16
          %v6030 = vrot.slane %v6028, 5
          %v6031 = vor.u32 %v6027, %v6030
          %v6032 = vrot.slane %v6031, 4
          %v6034 = vshll.u32 %v5849, 16
          %v6036 = vrot.slane %v6034, 5
          %v6037 = vsel %vm308, %v6032, %v6036
          %v6039 = vshrl.u32 %v5850, 16
          %v6041 = vrot.slane %v6039, 4
          %v6042 = vshll.u32 %v5850, 16
          %v6044 = vrot.slane %v6042, 5
          %v6045 = vor.u32 %v6041, %v6044
          %v6046 = vrot.slane %v6045, 4
          %v6048 = vshll.u32 %v5851, 16
          %v6050 = vrot.slane %v6048, 5
          %v6051 = vsel %vm308, %v6046, %v6050
          %v6053 = vshrl.u32 %v5852, 16
          %v6055 = vrot.slane %v6053, 4
          %v6056 = vshll.u32 %v5852, 16
          %v6058 = vrot.slane %v6056, 5
          %v6059 = vor.u32 %v6055, %v6058
          %v6060 = vrot.slane %v6059, 4
          %v6062 = vshll.u32 %v5853, 16
          %v6064 = vrot.slane %v6062, 5
          %v6065 = vsel %vm308, %v6060, %v6064
          %v6067 = vshrl.u32 %v5854, 16
          %v6069 = vrot.slane %v6067, 4
          %v6070 = vshll.u32 %v5854, 16
          %v6072 = vrot.slane %v6070, 5
          %v6073 = vor.u32 %v6069, %v6072
          %v6074 = vrot.slane %v6073, 4
          %v6076 = vshll.u32 %v5855, 16
          %v6078 = vrot.slane %v6076, 5
          %v6079 = vsel %vm308, %v6074, %v6078
          %s6080 = scalar_lea.vmem %s1, 76
          %v6081 = vld [vmem:[%s6080] sm:$0xf]
          %v6082 = vunpack.c.l.b16 %v5869
          %v6083 = vunpack.c.l.b16 %v5883
          %v6084 = vunpack.c.l.b16 %v5897
          %v6085 = vunpack.c.l.b16 %v5911
          %v6086 = vunpack.c.l.b16 %v5925
          %v6087 = vunpack.c.l.b16 %v5939
          %v6088 = vunpack.c.l.b16 %v5953
          %v6089 = vunpack.c.l.b16 %v5967
          %v6090 = vunpack.c.l.b16 %v5981
          %v6091 = vunpack.c.l.b16 %v5995
          %v6092 = vunpack.c.l.b16 %v6009
          %v6093 = vunpack.c.l.b16 %v6023
          %v6094 = vunpack.c.l.b16 %v6037
          %v6095 = vunpack.c.l.b16 %v6051
          %v6096 = vunpack.c.l.b16 %v6065
          %v6097 = vunpack.c.l.b16 %v6079
          %v6098 = vpack.c.b16 %v6083, %v6082
          %v6099 = vpack.c.b16 %v6085, %v6084
          %v6100 = vpack.c.b16 %v6087, %v6086
          %v6101 = vpack.c.b16 %v6089, %v6088
          %v6102 = vpack.c.b16 %v6091, %v6090
          %v6103 = vpack.c.b16 %v6093, %v6092
          %v6104 = vpack.c.b16 %v6095, %v6094
          %v6105 = vpack.c.b16 %v6097, %v6096
          %v6107 = vsel %vm559, %v6098, 0
          %v6110 = vsel %vm559, %v6099, 0
          %v6113 = vsel %vm559, %v6100, 0
          %v6116 = vsel %vm559, %v6101, 0
          %v6119 = vsel %vm559, %v6102, 0
          %v6122 = vsel %vm559, %v6103, 0
          %v6125 = vsel %vm559, %v6104, 0
          %v6128 = vsel %vm559, %v6105, 0
          %v6131 = vsel %vm584, %v6081, 0
          %6133 = vmatprep.subr.bf16.mxu0 0
          %6134 = vmatpush1.bf16.msra.mxu0 %v6131
          %6135 = vmatprep.subr.bf16.mxu0 0
          %6136 = vmatpush1.bf16.msra.mxu0 0
          %6137 = vmatprep.subr.bf16.mxu0 0
          %6138 = vmatpush1.bf16.msra.mxu0 0
          %6139 = vmatprep.subr.bf16.mxu0 0
          %6140 = vmatpush1.bf16.msra.mxu0 0
          %6141 = vmatprep.subr.bf16.mxu0 0
          %6142 = vmatpush1.bf16.msra.mxu0 0
          %6143 = vmatprep.subr.bf16.mxu0 0
          %6144 = vmatpush1.bf16.msra.mxu0 0
          %6145 = vmatprep.subr.bf16.mxu0 0
          %6146 = vmatpush1.bf16.msra.mxu0 0
          %6147 = vmatprep.subr.bf16.mxu0 0
          %6148 = vmatpush1.bf16.msra.mxu0 0
          %6149 = vmatprep.subr.bf16.mxu0 0
          %6150 = vmatpush1.bf16.msra.mxu0 0
          %6151 = vmatprep.subr.bf16.mxu0 0
          %6152 = vmatpush1.bf16.msra.mxu0 0
          %6153 = vmatprep.subr.bf16.mxu0 0
          %6154 = vmatpush1.bf16.msra.mxu0 0
          %6155 = vmatprep.subr.bf16.mxu0 0
          %6156 = vmatpush1.bf16.msra.mxu0 0
          %6157 = vmatprep.subr.bf16.mxu0 0
          %6158 = vmatpush1.bf16.msra.mxu0 0
          %6159 = vmatprep.subr.bf16.mxu0 0
          %6160 = vmatpush1.bf16.msra.mxu0 0
          %6161 = vmatprep.subr.bf16.mxu0 0
          %6162 = vmatpush1.bf16.msra.mxu0 0
          %6163 = vmatprep.subr.bf16.mxu0 0
          %6164 = vmatpush1.bf16.msra.mxu0 0
          %6165 = vmatprep.mubr.bf16.mxu0 0
          %6166 = vmatmul.mubr.bf16.gmra.mrb[0].mxu0 %v6107
          %v6167 = vpop.f32.mrb[0].mxu0
          %v6168 = vadd.f32 0.0, %v6167
          %v6169 = vpop.f32.mrb[0].mxu0
          %v6170 = vpop.f32.mrb[0].mxu0
          %v6171 = vadd.f32 0.0, %v6170
          %v6172 = vpop.f32.mrb[0].mxu0
          %6173 = vmatprep.mubr.bf16.mxu0 0
          %6174 = vmatmul.mubr.bf16.gmra.mrb[0].mxu0 %v6110
          %v6175 = vpop.f32.mrb[0].mxu0
          %v6176 = vadd.f32 0.0, %v6175
          %v6177 = vpop.f32.mrb[0].mxu0
          %v6178 = vpop.f32.mrb[0].mxu0
          %v6179 = vadd.f32 0.0, %v6178
          %v6180 = vpop.f32.mrb[0].mxu0
          %6181 = vmatprep.mubr.bf16.mxu0 0
          %6182 = vmatmul.mubr.bf16.gmra.mrb[0].mxu0 %v6113
          %v6183 = vpop.f32.mrb[0].mxu0
          %v6184 = vadd.f32 0.0, %v6183
          %v6185 = vpop.f32.mrb[0].mxu0
          %v6186 = vpop.f32.mrb[0].mxu0
          %v6187 = vadd.f32 0.0, %v6186
          %v6188 = vpop.f32.mrb[0].mxu0
          %6189 = vmatprep.mubr.bf16.mxu0 0
          %6190 = vmatmul.mubr.bf16.gmra.mrb[0].mxu0 %v6116
          %v6191 = vpop.f32.mrb[0].mxu0
          %v6192 = vadd.f32 0.0, %v6191
          %v6193 = vpop.f32.mrb[0].mxu0
          %v6194 = vpop.f32.mrb[0].mxu0
          %v6195 = vadd.f32 0.0, %v6194
          %v6196 = vpop.f32.mrb[0].mxu0
          %6197 = vmatprep.mubr.bf16.mxu0 0
          %6198 = vmatmul.mubr.bf16.gmra.mrb[0].mxu0 %v6119
          %v6199 = vpop.f32.mrb[0].mxu0
          %v6200 = vadd.f32 0.0, %v6199
          %v6201 = vpop.f32.mrb[0].mxu0
          %v6202 = vpop.f32.mrb[0].mxu0
          %v6203 = vadd.f32 0.0, %v6202
          %v6204 = vpop.f32.mrb[0].mxu0
          %6205 = vmatprep.mubr.bf16.mxu0 0
          %6206 = vmatmul.mubr.bf16.gmra.mrb[0].mxu0 %v6122
          %v6207 = vpop.f32.mrb[0].mxu0
          %v6208 = vadd.f32 0.0, %v6207
          %v6209 = vpop.f32.mrb[0].mxu0
          %v6210 = vpop.f32.mrb[0].mxu0
          %v6211 = vadd.f32 0.0, %v6210
          %v6212 = vpop.f32.mrb[0].mxu0
          %6213 = vmatprep.mubr.bf16.mxu0 0
          %6214 = vmatmul.mubr.bf16.gmra.mrb[0].mxu0 %v6125
          %v6215 = vpop.f32.mrb[0].mxu0
          %v6216 = vadd.f32 0.0, %v6215
          %v6217 = vpop.f32.mrb[0].mxu0
          %v6218 = vpop.f32.mrb[0].mxu0
          %v6219 = vadd.f32 0.0, %v6218
          %v6220 = vpop.f32.mrb[0].mxu0
          %6221 = vmatprep.mubr.bf16.mxu0 0
          %6222 = vmatmul.mubr.bf16.gmra.mrb[0].mxu0 %v6128
          %v6223 = vpop.f32.mrb[0].mxu0
          %v6224 = vadd.f32 0.0, %v6223
          %v6225 = vpop.f32.mrb[0].mxu0
          %v6226 = vpop.f32.mrb[0].mxu0
          %v6227 = vadd.f32 0.0, %v6226
          %v6228 = vpop.f32.mrb[0].mxu0
          %6229 = vdwg.mxu0
          %v6230 = vadd.f32 %v5808, %v6168
          %v6231 = vadd.f32 %v5809, %v6171
          %v6232 = vadd.f32 %v5810, %v6176
          %v6233 = vadd.f32 %v5811, %v6179
          %v6234 = vadd.f32 %v5812, %v6184
          %v6235 = vadd.f32 %v5813, %v6187
          %v6236 = vadd.f32 %v5814, %v6192
          %v6237 = vadd.f32 %v5815, %v6195
          %v6238 = vadd.f32 %v5816, %v6200
          %v6239 = vadd.f32 %v5817, %v6203
          %v6240 = vadd.f32 %v5818, %v6208
          %v6241 = vadd.f32 %v5819, %v6211
          %v6242 = vadd.f32 %v5820, %v6216
          %v6243 = vadd.f32 %v5821, %v6219
          %v6244 = vadd.f32 %v5822, %v6224
          %v6245 = vadd.f32 %v5823, %v6227
          %v6246 = vld [vmem:[%s5625] sm:$0xe]
          %v6247 = vld [vmem:[%s5625 + $0x8] sm:$0xe]
          %v6248 = vld [vmem:[%s5625 + $0x10] sm:$0xe]
          %v6249 = vld [vmem:[%s5625 + $0x18] sm:$0xe]
          %v6250 = vld [vmem:[%s5625 + $0x30] sm:$0xe]
          %v6251 = vld [vmem:[%s5625 + $0x38] sm:$0xe]
          %v6252 = vld [vmem:[%s5625 + $0x40] sm:$0xe]
          %v6253 = vld [vmem:[%s5625 + $0x48] sm:$0xe]
          %v6254 = vld [vmem:[%s5625 + $0x60] sm:$0xe]
          %v6255 = vld [vmem:[%s5625 + $0x68] sm:$0xe]
          %v6256 = vld [vmem:[%s5625 + $0x70] sm:$0xe]
          %v6257 = vld [vmem:[%s5625 + $0x78] sm:$0xe]
          %v6258 = vld [vmem:[%s5625 + $0x90] sm:$0xe]
          %v6259 = vld [vmem:[%s5625 + $0x98] sm:$0xe]
          %v6260 = vld [vmem:[%s5625 + $0xa0] sm:$0xe]
          %v6261 = vld [vmem:[%s5625 + $0xa8] sm:$0xe]
          %v6294 = vrot.slane %v6246, 5
          %v6295 = vrot.slane %v6294, 4
          %v6296 = vrot.slane %v5825, 5
          %v6297 = vsel %vm899, %v6295, %v6296
          %v6298 = vrot.slane %v6247, 5
          %v6299 = vrot.slane %v6298, 4
          %v6300 = vrot.slane %v5827, 5
          %v6301 = vsel %vm899, %v6299, %v6300
          %v6302 = vrot.slane %v6248, 5
          %v6303 = vrot.slane %v6302, 4
          %v6304 = vrot.slane %v5829, 5
          %v6305 = vsel %vm899, %v6303, %v6304
          %v6306 = vrot.slane %v6249, 5
          %v6307 = vrot.slane %v6306, 4
          %v6308 = vrot.slane %v5831, 5
          %v6309 = vsel %vm899, %v6307, %v6308
          %v6310 = vrot.slane %v6250, 5
          %v6311 = vrot.slane %v6310, 4
          %v6312 = vrot.slane %v5833, 5
          %v6313 = vsel %vm899, %v6311, %v6312
          %v6314 = vrot.slane %v6251, 5
          %v6315 = vrot.slane %v6314, 4
          %v6316 = vrot.slane %v5835, 5
          %v6317 = vsel %vm899, %v6315, %v6316
          %v6318 = vrot.slane %v6252, 5
          %v6319 = vrot.slane %v6318, 4
          %v6320 = vrot.slane %v5837, 5
          %v6321 = vsel %vm899, %v6319, %v6320
          %v6322 = vrot.slane %v6253, 5
          %v6323 = vrot.slane %v6322, 4
          %v6324 = vrot.slane %v5839, 5
          %v6325 = vsel %vm899, %v6323, %v6324
          %v6326 = vrot.slane %v6254, 5
          %v6327 = vrot.slane %v6326, 4
          %v6328 = vrot.slane %v5841, 5
          %v6329 = vsel %vm899, %v6327, %v6328
          %v6330 = vrot.slane %v6255, 5
          %v6331 = vrot.slane %v6330, 4
          %v6332 = vrot.slane %v5843, 5
          %v6333 = vsel %vm899, %v6331, %v6332
          %v6334 = vrot.slane %v6256, 5
          %v6335 = vrot.slane %v6334, 4
          %v6336 = vrot.slane %v5845, 5
          %v6337 = vsel %vm899, %v6335, %v6336
          %v6338 = vrot.slane %v6257, 5
          %v6339 = vrot.slane %v6338, 4
          %v6340 = vrot.slane %v5847, 5
          %v6341 = vsel %vm899, %v6339, %v6340
          %v6342 = vrot.slane %v6258, 5
          %v6343 = vrot.slane %v6342, 4
          %v6344 = vrot.slane %v5849, 5
          %v6345 = vsel %vm899, %v6343, %v6344
          %v6346 = vrot.slane %v6259, 5
          %v6347 = vrot.slane %v6346, 4
          %v6348 = vrot.slane %v5851, 5
          %v6349 = vsel %vm899, %v6347, %v6348
          %v6350 = vrot.slane %v6260, 5
          %v6351 = vrot.slane %v6350, 4
          %v6352 = vrot.slane %v5853, 5
          %v6353 = vsel %vm899, %v6351, %v6352
          %v6354 = vrot.slane %v6261, 5
          %v6355 = vrot.slane %v6354, 4
          %v6356 = vrot.slane %v5855, 5
          %v6357 = vsel %vm899, %v6355, %v6356
          %s6358 = scalar_lea.vmem %s1, 80
          %v6359 = vld [vmem:[%s6358] sm:$0xf]
          %v6360 = vunpack.c.l.b16 %v6297
          %v6361 = vunpack.c.l.b16 %v6301
          %v6362 = vunpack.c.l.b16 %v6305
          %v6363 = vunpack.c.l.b16 %v6309
          %v6364 = vunpack.c.l.b16 %v6313
          %v6365 = vunpack.c.l.b16 %v6317
          %v6366 = vunpack.c.l.b16 %v6321
          %v6367 = vunpack.c.l.b16 %v6325
          %v6368 = vunpack.c.l.b16 %v6329
          %v6369 = vunpack.c.l.b16 %v6333
          %v6370 = vunpack.c.l.b16 %v6337
          %v6371 = vunpack.c.l.b16 %v6341
          %v6372 = vunpack.c.l.b16 %v6345
          %v6373 = vunpack.c.l.b16 %v6349
          %v6374 = vunpack.c.l.b16 %v6353
          %v6375 = vunpack.c.l.b16 %v6357
          %v6376 = vpack.c.b16 %v6361, %v6360
          %v6377 = vpack.c.b16 %v6363, %v6362
          %v6378 = vpack.c.b16 %v6365, %v6364
          %v6379 = vpack.c.b16 %v6367, %v6366
          %v6380 = vpack.c.b16 %v6369, %v6368
          %v6381 = vpack.c.b16 %v6371, %v6370
          %v6382 = vpack.c.b16 %v6373, %v6372
          %v6383 = vpack.c.b16 %v6375, %v6374
          %v6385 = vsel %vm559, %v6376, 0
          %v6388 = vsel %vm559, %v6377, 0
          %v6391 = vsel %vm559, %v6378, 0
          %v6394 = vsel %vm559, %v6379, 0
          %v6397 = vsel %vm559, %v6380, 0
          %v6400 = vsel %vm559, %v6381, 0
          %v6403 = vsel %vm559, %v6382, 0
          %v6406 = vsel %vm559, %v6383, 0
          %v6409 = vsel %vm584, %v6359, 0
          %6411 = vmatprep.subr.bf16.mxu0 0
          %6412 = vmatpush1.bf16.msra.mxu0 %v6409
          %6413 = vmatprep.subr.bf16.mxu0 0
          %6414 = vmatpush1.bf16.msra.mxu0 0
          %6415 = vmatprep.subr.bf16.mxu0 0
          %6416 = vmatpush1.bf16.msra.mxu0 0
          %6417 = vmatprep.subr.bf16.mxu0 0
          %6418 = vmatpush1.bf16.msra.mxu0 0
          %6419 = vmatprep.subr.bf16.mxu0 0
          %6420 = vmatpush1.bf16.msra.mxu0 0
          %6421 = vmatprep.subr.bf16.mxu0 0
          %6422 = vmatpush1.bf16.msra.mxu0 0
          %6423 = vmatprep.subr.bf16.mxu0 0
          %6424 = vmatpush1.bf16.msra.mxu0 0
          %6425 = vmatprep.subr.bf16.mxu0 0
          %6426 = vmatpush1.bf16.msra.mxu0 0
          %6427 = vmatprep.subr.bf16.mxu0 0
          %6428 = vmatpush1.bf16.msra.mxu0 0
          %6429 = vmatprep.subr.bf16.mxu0 0
          %6430 = vmatpush1.bf16.msra.mxu0 0
          %6431 = vmatprep.subr.bf16.mxu0 0
          %6432 = vmatpush1.bf16.msra.mxu0 0
          %6433 = vmatprep.subr.bf16.mxu0 0
          %6434 = vmatpush1.bf16.msra.mxu0 0
          %6435 = vmatprep.subr.bf16.mxu0 0
          %6436 = vmatpush1.bf16.msra.mxu0 0
          %6437 = vmatprep.subr.bf16.mxu0 0
          %6438 = vmatpush1.bf16.msra.mxu0 0
          %6439 = vmatprep.subr.bf16.mxu0 0
          %6440 = vmatpush1.bf16.msra.mxu0 0
          %6441 = vmatprep.subr.bf16.mxu0 0
          %6442 = vmatpush1.bf16.msra.mxu0 0
          %6443 = vmatprep.mubr.bf16.mxu0 0
          %6444 = vmatmul.mubr.bf16.gmra.mrb[0].mxu0 %v6385
          %v6445 = vpop.f32.mrb[0].mxu0
          %v6446 = vadd.f32 0.0, %v6445
          %v6447 = vpop.f32.mrb[0].mxu0
          %v6448 = vpop.f32.mrb[0].mxu0
          %v6449 = vadd.f32 0.0, %v6448
          %v6450 = vpop.f32.mrb[0].mxu0
          %6451 = vmatprep.mubr.bf16.mxu0 0
          %6452 = vmatmul.mubr.bf16.gmra.mrb[0].mxu0 %v6388
          %v6453 = vpop.f32.mrb[0].mxu0
          %v6454 = vadd.f32 0.0, %v6453
          %v6455 = vpop.f32.mrb[0].mxu0
          %v6456 = vpop.f32.mrb[0].mxu0
          %v6457 = vadd.f32 0.0, %v6456
          %v6458 = vpop.f32.mrb[0].mxu0
          %6459 = vmatprep.mubr.bf16.mxu0 0
          %6460 = vmatmul.mubr.bf16.gmra.mrb[0].mxu0 %v6391
          %v6461 = vpop.f32.mrb[0].mxu0
          %v6462 = vadd.f32 0.0, %v6461
          %v6463 = vpop.f32.mrb[0].mxu0
          %v6464 = vpop.f32.mrb[0].mxu0
          %v6465 = vadd.f32 0.0, %v6464
          %v6466 = vpop.f32.mrb[0].mxu0
          %6467 = vmatprep.mubr.bf16.mxu0 0
          %6468 = vmatmul.mubr.bf16.gmra.mrb[0].mxu0 %v6394
          %v6469 = vpop.f32.mrb[0].mxu0
          %v6470 = vadd.f32 0.0, %v6469
          %v6471 = vpop.f32.mrb[0].mxu0
          %v6472 = vpop.f32.mrb[0].mxu0
          %v6473 = vadd.f32 0.0, %v6472
          %v6474 = vpop.f32.mrb[0].mxu0
          %6475 = vmatprep.mubr.bf16.mxu0 0
          %6476 = vmatmul.mubr.bf16.gmra.mrb[0].mxu0 %v6397
          %v6477 = vpop.f32.mrb[0].mxu0
          %v6478 = vadd.f32 0.0, %v6477
          %v6479 = vpop.f32.mrb[0].mxu0
          %v6480 = vpop.f32.mrb[0].mxu0
          %v6481 = vadd.f32 0.0, %v6480
          %v6482 = vpop.f32.mrb[0].mxu0
          %6483 = vmatprep.mubr.bf16.mxu0 0
          %6484 = vmatmul.mubr.bf16.gmra.mrb[0].mxu0 %v6400
          %v6485 = vpop.f32.mrb[0].mxu0
          %v6486 = vadd.f32 0.0, %v6485
          %v6487 = vpop.f32.mrb[0].mxu0
          %v6488 = vpop.f32.mrb[0].mxu0
          %v6489 = vadd.f32 0.0, %v6488
          %v6490 = vpop.f32.mrb[0].mxu0
          %6491 = vmatprep.mubr.bf16.mxu0 0
          %6492 = vmatmul.mubr.bf16.gmra.mrb[0].mxu0 %v6403
          %v6493 = vpop.f32.mrb[0].mxu0
          %v6494 = vadd.f32 0.0, %v6493
          %v6495 = vpop.f32.mrb[0].mxu0
          %v6496 = vpop.f32.mrb[0].mxu0
          %v6497 = vadd.f32 0.0, %v6496
          %v6498 = vpop.f32.mrb[0].mxu0
          %6499 = vmatprep.mubr.bf16.mxu0 0
          %6500 = vmatmul.mubr.bf16.gmra.mrb[0].mxu0 %v6406
          %v6501 = vpop.f32.mrb[0].mxu0
          %v6502 = vadd.f32 0.0, %v6501
          %v6503 = vpop.f32.mrb[0].mxu0
          %v6504 = vpop.f32.mrb[0].mxu0
          %v6505 = vadd.f32 0.0, %v6504
          %v6506 = vpop.f32.mrb[0].mxu0
          %6507 = vdwg.mxu0
          %v6508 = vadd.f32 %v6230, %v6446
          %v6509 = vadd.f32 %v6231, %v6449
          %v6510 = vadd.f32 %v6232, %v6454
          %v6511 = vadd.f32 %v6233, %v6457
          %v6512 = vadd.f32 %v6234, %v6462
          %v6513 = vadd.f32 %v6235, %v6465
          %v6514 = vadd.f32 %v6236, %v6470
          %v6515 = vadd.f32 %v6237, %v6473
          %v6516 = vadd.f32 %v6238, %v6478
          %v6517 = vadd.f32 %v6239, %v6481
          %v6518 = vadd.f32 %v6240, %v6486
          %v6519 = vadd.f32 %v6241, %v6489
          %v6520 = vadd.f32 %v6242, %v6494
          %v6521 = vadd.f32 %v6243, %v6497
          %v6522 = vadd.f32 %v6244, %v6502
          %v6523 = vadd.f32 %v6245, %v6505
          %s6524 = scalar_lea.vmem %s260, 104
          %v6525 = vld [vmem:[%s6524] sm:$0xf]
          %v6526 = vld [vmem:[%s6524 + $0x8] sm:$0xf]
          %v6527 = vld [vmem:[%s6524 + $0x10] sm:$0xf]
          %v6528 = vld [vmem:[%s6524 + $0x18] sm:$0xf]
          %v6529 = vld [vmem:[%s6524 + $0x30] sm:$0xf]
          %v6530 = vld [vmem:[%s6524 + $0x38] sm:$0xf]
          %v6531 = vld [vmem:[%s6524 + $0x40] sm:$0xf]
          %v6532 = vld [vmem:[%s6524 + $0x48] sm:$0xf]
          %v6533 = vld [vmem:[%s6524 + $0x60] sm:$0xf]
          %v6534 = vld [vmem:[%s6524 + $0x68] sm:$0xf]
          %v6535 = vld [vmem:[%s6524 + $0x70] sm:$0xf]
          %v6536 = vld [vmem:[%s6524 + $0x78] sm:$0xf]
          %v6537 = vld [vmem:[%s6524 + $0x90] sm:$0xf]
          %v6538 = vld [vmem:[%s6524 + $0x98] sm:$0xf]
          %v6539 = vld [vmem:[%s6524 + $0xa0] sm:$0xf]
          %v6540 = vld [vmem:[%s6524 + $0xa8] sm:$0xf]
          %s6541 = scalar_lea.vmem %s1, 84
          %v6542 = vld [vmem:[%s6541] sm:$0xf]
          %v6559 = vunpack.c.l.b16 %v6525
          %v6560 = vunpack.c.l.b16 %v6526
          %v6561 = vunpack.c.l.b16 %v6527
          %v6562 = vunpack.c.l.b16 %v6528
          %v6563 = vunpack.c.l.b16 %v6529
          %v6564 = vunpack.c.l.b16 %v6530
          %v6565 = vunpack.c.l.b16 %v6531
          %v6566 = vunpack.c.l.b16 %v6532
          %v6567 = vunpack.c.l.b16 %v6533
          %v6568 = vunpack.c.l.b16 %v6534
          %v6569 = vunpack.c.l.b16 %v6535
          %v6570 = vunpack.c.l.b16 %v6536
          %v6571 = vunpack.c.l.b16 %v6537
          %v6572 = vunpack.c.l.b16 %v6538
          %v6573 = vunpack.c.l.b16 %v6539
          %v6574 = vunpack.c.l.b16 %v6540
          %v6575 = vpack.c.b16 %v6560, %v6559
          %v6576 = vpack.c.b16 %v6562, %v6561
          %v6577 = vpack.c.b16 %v6564, %v6563
          %v6578 = vpack.c.b16 %v6566, %v6565
          %v6579 = vpack.c.b16 %v6568, %v6567
          %v6580 = vpack.c.b16 %v6570, %v6569
          %v6581 = vpack.c.b16 %v6572, %v6571
          %v6582 = vpack.c.b16 %v6574, %v6573
          %v6584 = vsel %vm559, %v6575, 0
          %v6587 = vsel %vm559, %v6576, 0
          %v6590 = vsel %vm559, %v6577, 0
          %v6593 = vsel %vm559, %v6578, 0
          %v6596 = vsel %vm559, %v6579, 0
          %v6599 = vsel %vm559, %v6580, 0
          %v6602 = vsel %vm559, %v6581, 0
          %v6605 = vsel %vm559, %v6582, 0
          %v6608 = vsel %vm584, %v6542, 0
          %6610 = vmatprep.subr.bf16.mxu0 0
          %6611 = vmatpush1.bf16.msra.mxu0 %v6608
          %6612 = vmatprep.subr.bf16.mxu0 0
          %6613 = vmatpush1.bf16.msra.mxu0 0
          %6614 = vmatprep.subr.bf16.mxu0 0
          %6615 = vmatpush1.bf16.msra.mxu0 0
          %6616 = vmatprep.subr.bf16.mxu0 0
          %6617 = vmatpush1.bf16.msra.mxu0 0
          %6618 = vmatprep.subr.bf16.mxu0 0
          %6619 = vmatpush1.bf16.msra.mxu0 0
          %6620 = vmatprep.subr.bf16.mxu0 0
          %6621 = vmatpush1.bf16.msra.mxu0 0
          %6622 = vmatprep.subr.bf16.mxu0 0
          %6623 = vmatpush1.bf16.msra.mxu0 0
          %6624 = vmatprep.subr.bf16.mxu0 0
          %6625 = vmatpush1.bf16.msra.mxu0 0
          %6626 = vmatprep.subr.bf16.mxu0 0
          %6627 = vmatpush1.bf16.msra.mxu0 0
          %6628 = vmatprep.subr.bf16.mxu0 0
          %6629 = vmatpush1.bf16.msra.mxu0 0
          %6630 = vmatprep.subr.bf16.mxu0 0
          %6631 = vmatpush1.bf16.msra.mxu0 0
          %6632 = vmatprep.subr.bf16.mxu0 0
          %6633 = vmatpush1.bf16.msra.mxu0 0
          %6634 = vmatprep.subr.bf16.mxu0 0
          %6635 = vmatpush1.bf16.msra.mxu0 0
          %6636 = vmatprep.subr.bf16.mxu0 0
          %6637 = vmatpush1.bf16.msra.mxu0 0
          %6638 = vmatprep.subr.bf16.mxu0 0
          %6639 = vmatpush1.bf16.msra.mxu0 0
          %6640 = vmatprep.subr.bf16.mxu0 0
          %6641 = vmatpush1.bf16.msra.mxu0 0
          %6642 = vmatprep.mubr.bf16.mxu0 0
          %6643 = vmatmul.mubr.bf16.gmra.mrb[0].mxu0 %v6584
          %v6644 = vpop.f32.mrb[0].mxu0
          %v6645 = vadd.f32 0.0, %v6644
          %v6646 = vpop.f32.mrb[0].mxu0
          %v6647 = vpop.f32.mrb[0].mxu0
          %v6648 = vadd.f32 0.0, %v6647
          %v6649 = vpop.f32.mrb[0].mxu0
          %6650 = vmatprep.mubr.bf16.mxu0 0
          %6651 = vmatmul.mubr.bf16.gmra.mrb[0].mxu0 %v6587
          %v6652 = vpop.f32.mrb[0].mxu0
          %v6653 = vadd.f32 0.0, %v6652
          %v6654 = vpop.f32.mrb[0].mxu0
          %v6655 = vpop.f32.mrb[0].mxu0
          %v6656 = vadd.f32 0.0, %v6655
          %v6657 = vpop.f32.mrb[0].mxu0
          %6658 = vmatprep.mubr.bf16.mxu0 0
          %6659 = vmatmul.mubr.bf16.gmra.mrb[0].mxu0 %v6590
          %v6660 = vpop.f32.mrb[0].mxu0
          %v6661 = vadd.f32 0.0, %v6660
          %v6662 = vpop.f32.mrb[0].mxu0
          %v6663 = vpop.f32.mrb[0].mxu0
          %v6664 = vadd.f32 0.0, %v6663
          %v6665 = vpop.f32.mrb[0].mxu0
          %6666 = vmatprep.mubr.bf16.mxu0 0
          %6667 = vmatmul.mubr.bf16.gmra.mrb[0].mxu0 %v6593
          %v6668 = vpop.f32.mrb[0].mxu0
          %v6669 = vadd.f32 0.0, %v6668
          %v6670 = vpop.f32.mrb[0].mxu0
          %v6671 = vpop.f32.mrb[0].mxu0
          %v6672 = vadd.f32 0.0, %v6671
          %v6673 = vpop.f32.mrb[0].mxu0
          %6674 = vmatprep.mubr.bf16.mxu0 0
          %6675 = vmatmul.mubr.bf16.gmra.mrb[0].mxu0 %v6596
          %v6676 = vpop.f32.mrb[0].mxu0
          %v6677 = vadd.f32 0.0, %v6676
          %v6678 = vpop.f32.mrb[0].mxu0
          %v6679 = vpop.f32.mrb[0].mxu0
          %v6680 = vadd.f32 0.0, %v6679
          %v6681 = vpop.f32.mrb[0].mxu0
          %6682 = vmatprep.mubr.bf16.mxu0 0
          %6683 = vmatmul.mubr.bf16.gmra.mrb[0].mxu0 %v6599
          %v6684 = vpop.f32.mrb[0].mxu0
          %v6685 = vadd.f32 0.0, %v6684
          %v6686 = vpop.f32.mrb[0].mxu0
          %v6687 = vpop.f32.mrb[0].mxu0
          %v6688 = vadd.f32 0.0, %v6687
          %v6689 = vpop.f32.mrb[0].mxu0
          %6690 = vmatprep.mubr.bf16.mxu0 0
          %6691 = vmatmul.mubr.bf16.gmra.mrb[0].mxu0 %v6602
          %v6692 = vpop.f32.mrb[0].mxu0
          %v6693 = vadd.f32 0.0, %v6692
          %v6694 = vpop.f32.mrb[0].mxu0
          %v6695 = vpop.f32.mrb[0].mxu0
          %v6696 = vadd.f32 0.0, %v6695
          %v6697 = vpop.f32.mrb[0].mxu0
          %6698 = vmatprep.mubr.bf16.mxu0 0
          %6699 = vmatmul.mubr.bf16.gmra.mrb[0].mxu0 %v6605
          %v6700 = vpop.f32.mrb[0].mxu0
          %v6701 = vadd.f32 0.0, %v6700
          %v6702 = vpop.f32.mrb[0].mxu0
          %v6703 = vpop.f32.mrb[0].mxu0
          %v6704 = vadd.f32 0.0, %v6703
          %v6705 = vpop.f32.mrb[0].mxu0
          %6706 = vdwg.mxu0
          %v6707 = vadd.f32 %v6508, %v6645
          %v6708 = vadd.f32 %v6509, %v6648
          %v6709 = vadd.f32 %v6510, %v6653
          %v6710 = vadd.f32 %v6511, %v6656
          %v6711 = vadd.f32 %v6512, %v6661
          %v6712 = vadd.f32 %v6513, %v6664
          %v6713 = vadd.f32 %v6514, %v6669
          %v6714 = vadd.f32 %v6515, %v6672
          %v6715 = vadd.f32 %v6516, %v6677
          %v6716 = vadd.f32 %v6517, %v6680
          %v6717 = vadd.f32 %v6518, %v6685
          %v6718 = vadd.f32 %v6519, %v6688
          %v6719 = vadd.f32 %v6520, %v6693
          %v6720 = vadd.f32 %v6521, %v6696
          %v6721 = vadd.f32 %v6522, %v6701
          %v6722 = vadd.f32 %v6523, %v6704
          %v6723 = vld [vmem:[%s6524] sm:$0xf]
          %v6724 = vld [vmem:[%s6524 + $0x4] sm:$0x1]
          %v6725 = vld [vmem:[%s6524 + $0x8] sm:$0xf]
          %v6726 = vld [vmem:[%s6524 + $0xc] sm:$0x1]
          %v6727 = vld [vmem:[%s6524 + $0x10] sm:$0xf]
          %v6728 = vld [vmem:[%s6524 + $0x14] sm:$0x1]
          %v6729 = vld [vmem:[%s6524 + $0x18] sm:$0xf]
          %v6730 = vld [vmem:[%s6524 + $0x1c] sm:$0x1]
          %v6731 = vld [vmem:[%s6524 + $0x30] sm:$0xf]
          %v6732 = vld [vmem:[%s6524 + $0x34] sm:$0x1]
          %v6733 = vld [vmem:[%s6524 + $0x38] sm:$0xf]
          %v6734 = vld [vmem:[%s6524 + $0x3c] sm:$0x1]
          %v6735 = vld [vmem:[%s6524 + $0x40] sm:$0xf]
          %v6736 = vld [vmem:[%s6524 + $0x44] sm:$0x1]
          %v6737 = vld [vmem:[%s6524 + $0x48] sm:$0xf]
          %v6738 = vld [vmem:[%s6524 + $0x4c] sm:$0x1]
          %v6739 = vld [vmem:[%s6524 + $0x60] sm:$0xf]
          %v6740 = vld [vmem:[%s6524 + $0x64] sm:$0x1]
          %v6741 = vld [vmem:[%s6524 + $0x68] sm:$0xf]
          %v6742 = vld [vmem:[%s6524 + $0x6c] sm:$0x1]
          %v6743 = vld [vmem:[%s6524 + $0x70] sm:$0xf]
          %v6744 = vld [vmem:[%s6524 + $0x74] sm:$0x1]
          %v6745 = vld [vmem:[%s6524 + $0x78] sm:$0xf]
          %v6746 = vld [vmem:[%s6524 + $0x7c] sm:$0x1]
          %v6747 = vld [vmem:[%s6524 + $0x90] sm:$0xf]
          %v6748 = vld [vmem:[%s6524 + $0x94] sm:$0x1]
          %v6749 = vld [vmem:[%s6524 + $0x98] sm:$0xf]
          %v6750 = vld [vmem:[%s6524 + $0x9c] sm:$0x1]
          %v6751 = vld [vmem:[%s6524 + $0xa0] sm:$0xf]
          %v6752 = vld [vmem:[%s6524 + $0xa4] sm:$0x1]
          %v6753 = vld [vmem:[%s6524 + $0xa8] sm:$0xf]
          %v6754 = vld [vmem:[%s6524 + $0xac] sm:$0x1]
          %v6756 = vshrl.u32 %v6723, 16
          %v6758 = vrot.slane %v6756, 4
          %v6759 = vshll.u32 %v6723, 16
          %v6761 = vrot.slane %v6759, 5
          %v6762 = vor.u32 %v6758, %v6761
          %v6763 = vrot.slane %v6762, 4
          %v6765 = vshll.u32 %v6724, 16
          %v6767 = vrot.slane %v6765, 5
          %v6768 = vsel %vm308, %v6763, %v6767
          %v6770 = vshrl.u32 %v6725, 16
          %v6772 = vrot.slane %v6770, 4
          %v6773 = vshll.u32 %v6725, 16
          %v6775 = vrot.slane %v6773, 5
          %v6776 = vor.u32 %v6772, %v6775
          %v6777 = vrot.slane %v6776, 4
          %v6779 = vshll.u32 %v6726, 16
          %v6781 = vrot.slane %v6779, 5
          %v6782 = vsel %vm308, %v6777, %v6781
          %v6784 = vshrl.u32 %v6727, 16
          %v6786 = vrot.slane %v6784, 4
          %v6787 = vshll.u32 %v6727, 16
          %v6789 = vrot.slane %v6787, 5
          %v6790 = vor.u32 %v6786, %v6789
          %v6791 = vrot.slane %v6790, 4
          %v6793 = vshll.u32 %v6728, 16
          %v6795 = vrot.slane %v6793, 5
          %v6796 = vsel %vm308, %v6791, %v6795
          %v6798 = vshrl.u32 %v6729, 16
          %v6800 = vrot.slane %v6798, 4
          %v6801 = vshll.u32 %v6729, 16
          %v6803 = vrot.slane %v6801, 5
          %v6804 = vor.u32 %v6800, %v6803
          %v6805 = vrot.slane %v6804, 4
          %v6807 = vshll.u32 %v6730, 16
          %v6809 = vrot.slane %v6807, 5
          %v6810 = vsel %vm308, %v6805, %v6809
          %v6812 = vshrl.u32 %v6731, 16
          %v6814 = vrot.slane %v6812, 4
          %v6815 = vshll.u32 %v6731, 16
          %v6817 = vrot.slane %v6815, 5
          %v6818 = vor.u32 %v6814, %v6817
          %v6819 = vrot.slane %v6818, 4
          %v6821 = vshll.u32 %v6732, 16
          %v6823 = vrot.slane %v6821, 5
          %v6824 = vsel %vm308, %v6819, %v6823
          %v6826 = vshrl.u32 %v6733, 16
          %v6828 = vrot.slane %v6826, 4
          %v6829 = vshll.u32 %v6733, 16
          %v6831 = vrot.slane %v6829, 5
          %v6832 = vor.u32 %v6828, %v6831
          %v6833 = vrot.slane %v6832, 4
          %v6835 = vshll.u32 %v6734, 16
          %v6837 = vrot.slane %v6835, 5
          %v6838 = vsel %vm308, %v6833, %v6837
          %v6840 = vshrl.u32 %v6735, 16
          %v6842 = vrot.slane %v6840, 4
          %v6843 = vshll.u32 %v6735, 16
          %v6845 = vrot.slane %v6843, 5
          %v6846 = vor.u32 %v6842, %v6845
          %v6847 = vrot.slane %v6846, 4
          %v6849 = vshll.u32 %v6736, 16
          %v6851 = vrot.slane %v6849, 5
          %v6852 = vsel %vm308, %v6847, %v6851
          %v6854 = vshrl.u32 %v6737, 16
          %v6856 = vrot.slane %v6854, 4
          %v6857 = vshll.u32 %v6737, 16
          %v6859 = vrot.slane %v6857, 5
          %v6860 = vor.u32 %v6856, %v6859
          %v6861 = vrot.slane %v6860, 4
          %v6863 = vshll.u32 %v6738, 16
          %v6865 = vrot.slane %v6863, 5
          %v6866 = vsel %vm308, %v6861, %v6865
          %v6868 = vshrl.u32 %v6739, 16
          %v6870 = vrot.slane %v6868, 4
          %v6871 = vshll.u32 %v6739, 16
          %v6873 = vrot.slane %v6871, 5
          %v6874 = vor.u32 %v6870, %v6873
          %v6875 = vrot.slane %v6874, 4
          %v6877 = vshll.u32 %v6740, 16
          %v6879 = vrot.slane %v6877, 5
          %v6880 = vsel %vm308, %v6875, %v6879
          %v6882 = vshrl.u32 %v6741, 16
          %v6884 = vrot.slane %v6882, 4
          %v6885 = vshll.u32 %v6741, 16
          %v6887 = vrot.slane %v6885, 5
          %v6888 = vor.u32 %v6884, %v6887
          %v6889 = vrot.slane %v6888, 4
          %v6891 = vshll.u32 %v6742, 16
          %v6893 = vrot.slane %v6891, 5
          %v6894 = vsel %vm308, %v6889, %v6893
          %v6896 = vshrl.u32 %v6743, 16
          %v6898 = vrot.slane %v6896, 4
          %v6899 = vshll.u32 %v6743, 16
          %v6901 = vrot.slane %v6899, 5
          %v6902 = vor.u32 %v6898, %v6901
          %v6903 = vrot.slane %v6902, 4
          %v6905 = vshll.u32 %v6744, 16
          %v6907 = vrot.slane %v6905, 5
          %v6908 = vsel %vm308, %v6903, %v6907
          %v6910 = vshrl.u32 %v6745, 16
          %v6912 = vrot.slane %v6910, 4
          %v6913 = vshll.u32 %v6745, 16
          %v6915 = vrot.slane %v6913, 5
          %v6916 = vor.u32 %v6912, %v6915
          %v6917 = vrot.slane %v6916, 4
          %v6919 = vshll.u32 %v6746, 16
          %v6921 = vrot.slane %v6919, 5
          %v6922 = vsel %vm308, %v6917, %v6921
          %v6924 = vshrl.u32 %v6747, 16
          %v6926 = vrot.slane %v6924, 4
          %v6927 = vshll.u32 %v6747, 16
          %v6929 = vrot.slane %v6927, 5
          %v6930 = vor.u32 %v6926, %v6929
          %v6931 = vrot.slane %v6930, 4
          %v6933 = vshll.u32 %v6748, 16
          %v6935 = vrot.slane %v6933, 5
          %v6936 = vsel %vm308, %v6931, %v6935
          %v6938 = vshrl.u32 %v6749, 16
          %v6940 = vrot.slane %v6938, 4
          %v6941 = vshll.u32 %v6749, 16
          %v6943 = vrot.slane %v6941, 5
          %v6944 = vor.u32 %v6940, %v6943
          %v6945 = vrot.slane %v6944, 4
          %v6947 = vshll.u32 %v6750, 16
          %v6949 = vrot.slane %v6947, 5
          %v6950 = vsel %vm308, %v6945, %v6949
          %v6952 = vshrl.u32 %v6751, 16
          %v6954 = vrot.slane %v6952, 4
          %v6955 = vshll.u32 %v6751, 16
          %v6957 = vrot.slane %v6955, 5
          %v6958 = vor.u32 %v6954, %v6957
          %v6959 = vrot.slane %v6958, 4
          %v6961 = vshll.u32 %v6752, 16
          %v6963 = vrot.slane %v6961, 5
          %v6964 = vsel %vm308, %v6959, %v6963
          %v6966 = vshrl.u32 %v6753, 16
          %v6968 = vrot.slane %v6966, 4
          %v6969 = vshll.u32 %v6753, 16
          %v6971 = vrot.slane %v6969, 5
          %v6972 = vor.u32 %v6968, %v6971
          %v6973 = vrot.slane %v6972, 4
          %v6975 = vshll.u32 %v6754, 16
          %v6977 = vrot.slane %v6975, 5
          %v6978 = vsel %vm308, %v6973, %v6977
          %s6979 = scalar_lea.vmem %s1, 88
          %v6980 = vld [vmem:[%s6979] sm:$0xf]
          %v6981 = vunpack.c.l.b16 %v6768
          %v6982 = vunpack.c.l.b16 %v6782
          %v6983 = vunpack.c.l.b16 %v6796
          %v6984 = vunpack.c.l.b16 %v6810
          %v6985 = vunpack.c.l.b16 %v6824
          %v6986 = vunpack.c.l.b16 %v6838
          %v6987 = vunpack.c.l.b16 %v6852
          %v6988 = vunpack.c.l.b16 %v6866
          %v6989 = vunpack.c.l.b16 %v6880
          %v6990 = vunpack.c.l.b16 %v6894
          %v6991 = vunpack.c.l.b16 %v6908
          %v6992 = vunpack.c.l.b16 %v6922
          %v6993 = vunpack.c.l.b16 %v6936
          %v6994 = vunpack.c.l.b16 %v6950
          %v6995 = vunpack.c.l.b16 %v6964
          %v6996 = vunpack.c.l.b16 %v6978
          %v6997 = vpack.c.b16 %v6982, %v6981
          %v6998 = vpack.c.b16 %v6984, %v6983
          %v6999 = vpack.c.b16 %v6986, %v6985
          %v7000 = vpack.c.b16 %v6988, %v6987
          %v7001 = vpack.c.b16 %v6990, %v6989
          %v7002 = vpack.c.b16 %v6992, %v6991
          %v7003 = vpack.c.b16 %v6994, %v6993
          %v7004 = vpack.c.b16 %v6996, %v6995
          %v7006 = vsel %vm559, %v6997, 0
          %v7009 = vsel %vm559, %v6998, 0
          %v7012 = vsel %vm559, %v6999, 0
          %v7015 = vsel %vm559, %v7000, 0
          %v7018 = vsel %vm559, %v7001, 0
          %v7021 = vsel %vm559, %v7002, 0
          %v7024 = vsel %vm559, %v7003, 0
          %v7027 = vsel %vm559, %v7004, 0
          %v7030 = vsel %vm584, %v6980, 0
          %7032 = vmatprep.subr.bf16.mxu0 0
          %7033 = vmatpush1.bf16.msra.mxu0 %v7030
          %7034 = vmatprep.subr.bf16.mxu0 0
          %7035 = vmatpush1.bf16.msra.mxu0 0
          %7036 = vmatprep.subr.bf16.mxu0 0
          %7037 = vmatpush1.bf16.msra.mxu0 0
          %7038 = vmatprep.subr.bf16.mxu0 0
          %7039 = vmatpush1.bf16.msra.mxu0 0
          %7040 = vmatprep.subr.bf16.mxu0 0
          %7041 = vmatpush1.bf16.msra.mxu0 0
          %7042 = vmatprep.subr.bf16.mxu0 0
          %7043 = vmatpush1.bf16.msra.mxu0 0
          %7044 = vmatprep.subr.bf16.mxu0 0
          %7045 = vmatpush1.bf16.msra.mxu0 0
          %7046 = vmatprep.subr.bf16.mxu0 0
          %7047 = vmatpush1.bf16.msra.mxu0 0
          %7048 = vmatprep.subr.bf16.mxu0 0
          %7049 = vmatpush1.bf16.msra.mxu0 0
          %7050 = vmatprep.subr.bf16.mxu0 0
          %7051 = vmatpush1.bf16.msra.mxu0 0
          %7052 = vmatprep.subr.bf16.mxu0 0
          %7053 = vmatpush1.bf16.msra.mxu0 0
          %7054 = vmatprep.subr.bf16.mxu0 0
          %7055 = vmatpush1.bf16.msra.mxu0 0
          %7056 = vmatprep.subr.bf16.mxu0 0
          %7057 = vmatpush1.bf16.msra.mxu0 0
          %7058 = vmatprep.subr.bf16.mxu0 0
          %7059 = vmatpush1.bf16.msra.mxu0 0
          %7060 = vmatprep.subr.bf16.mxu0 0
          %7061 = vmatpush1.bf16.msra.mxu0 0
          %7062 = vmatprep.subr.bf16.mxu0 0
          %7063 = vmatpush1.bf16.msra.mxu0 0
          %7064 = vmatprep.mubr.bf16.mxu0 0
          %7065 = vmatmul.mubr.bf16.gmra.mrb[0].mxu0 %v7006
          %v7066 = vpop.f32.mrb[0].mxu0
          %v7067 = vadd.f32 0.0, %v7066
          %v7068 = vpop.f32.mrb[0].mxu0
          %v7069 = vpop.f32.mrb[0].mxu0
          %v7070 = vadd.f32 0.0, %v7069
          %v7071 = vpop.f32.mrb[0].mxu0
          %7072 = vmatprep.mubr.bf16.mxu0 0
          %7073 = vmatmul.mubr.bf16.gmra.mrb[0].mxu0 %v7009
          %v7074 = vpop.f32.mrb[0].mxu0
          %v7075 = vadd.f32 0.0, %v7074
          %v7076 = vpop.f32.mrb[0].mxu0
          %v7077 = vpop.f32.mrb[0].mxu0
          %v7078 = vadd.f32 0.0, %v7077
          %v7079 = vpop.f32.mrb[0].mxu0
          %7080 = vmatprep.mubr.bf16.mxu0 0
          %7081 = vmatmul.mubr.bf16.gmra.mrb[0].mxu0 %v7012
          %v7082 = vpop.f32.mrb[0].mxu0
          %v7083 = vadd.f32 0.0, %v7082
          %v7084 = vpop.f32.mrb[0].mxu0
          %v7085 = vpop.f32.mrb[0].mxu0
          %v7086 = vadd.f32 0.0, %v7085
          %v7087 = vpop.f32.mrb[0].mxu0
          %7088 = vmatprep.mubr.bf16.mxu0 0
          %7089 = vmatmul.mubr.bf16.gmra.mrb[0].mxu0 %v7015
          %v7090 = vpop.f32.mrb[0].mxu0
          %v7091 = vadd.f32 0.0, %v7090
          %v7092 = vpop.f32.mrb[0].mxu0
          %v7093 = vpop.f32.mrb[0].mxu0
          %v7094 = vadd.f32 0.0, %v7093
          %v7095 = vpop.f32.mrb[0].mxu0
          %7096 = vmatprep.mubr.bf16.mxu0 0
          %7097 = vmatmul.mubr.bf16.gmra.mrb[0].mxu0 %v7018
          %v7098 = vpop.f32.mrb[0].mxu0
          %v7099 = vadd.f32 0.0, %v7098
          %v7100 = vpop.f32.mrb[0].mxu0
          %v7101 = vpop.f32.mrb[0].mxu0
          %v7102 = vadd.f32 0.0, %v7101
          %v7103 = vpop.f32.mrb[0].mxu0
          %7104 = vmatprep.mubr.bf16.mxu0 0
          %7105 = vmatmul.mubr.bf16.gmra.mrb[0].mxu0 %v7021
          %v7106 = vpop.f32.mrb[0].mxu0
          %v7107 = vadd.f32 0.0, %v7106
          %v7108 = vpop.f32.mrb[0].mxu0
          %v7109 = vpop.f32.mrb[0].mxu0
          %v7110 = vadd.f32 0.0, %v7109
          %v7111 = vpop.f32.mrb[0].mxu0
          %7112 = vmatprep.mubr.bf16.mxu0 0
          %7113 = vmatmul.mubr.bf16.gmra.mrb[0].mxu0 %v7024
          %v7114 = vpop.f32.mrb[0].mxu0
          %v7115 = vadd.f32 0.0, %v7114
          %v7116 = vpop.f32.mrb[0].mxu0
          %v7117 = vpop.f32.mrb[0].mxu0
          %v7118 = vadd.f32 0.0, %v7117
          %v7119 = vpop.f32.mrb[0].mxu0
          %7120 = vmatprep.mubr.bf16.mxu0 0
          %7121 = vmatmul.mubr.bf16.gmra.mrb[0].mxu0 %v7027
          %v7122 = vpop.f32.mrb[0].mxu0
          %v7123 = vadd.f32 0.0, %v7122
          %v7124 = vpop.f32.mrb[0].mxu0
          %v7125 = vpop.f32.mrb[0].mxu0
          %v7126 = vadd.f32 0.0, %v7125
          %v7127 = vpop.f32.mrb[0].mxu0
          %7128 = vdwg.mxu0
          %v7129 = vadd.f32 %v6707, %v7067
          %v7130 = vadd.f32 %v6708, %v7070
          %v7131 = vadd.f32 %v6709, %v7075
          %v7132 = vadd.f32 %v6710, %v7078
          %v7133 = vadd.f32 %v6711, %v7083
          %v7134 = vadd.f32 %v6712, %v7086
          %v7135 = vadd.f32 %v6713, %v7091
          %v7136 = vadd.f32 %v6714, %v7094
          %v7137 = vadd.f32 %v6715, %v7099
          %v7138 = vadd.f32 %v6716, %v7102
          %v7139 = vadd.f32 %v6717, %v7107
          %v7140 = vadd.f32 %v6718, %v7110
          %v7141 = vadd.f32 %v6719, %v7115
          %v7142 = vadd.f32 %v6720, %v7118
          %v7143 = vadd.f32 %v6721, %v7123
          %v7144 = vadd.f32 %v6722, %v7126
          %v7145 = vld [vmem:[%s6524] sm:$0xe]
          %v7146 = vld [vmem:[%s6524 + $0x8] sm:$0xe]
          %v7147 = vld [vmem:[%s6524 + $0x10] sm:$0xe]
          %v7148 = vld [vmem:[%s6524 + $0x18] sm:$0xe]
          %v7149 = vld [vmem:[%s6524 + $0x30] sm:$0xe]
          %v7150 = vld [vmem:[%s6524 + $0x38] sm:$0xe]
          %v7151 = vld [vmem:[%s6524 + $0x40] sm:$0xe]
          %v7152 = vld [vmem:[%s6524 + $0x48] sm:$0xe]
          %v7153 = vld [vmem:[%s6524 + $0x60] sm:$0xe]
          %v7154 = vld [vmem:[%s6524 + $0x68] sm:$0xe]
          %v7155 = vld [vmem:[%s6524 + $0x70] sm:$0xe]
          %v7156 = vld [vmem:[%s6524 + $0x78] sm:$0xe]
          %v7157 = vld [vmem:[%s6524 + $0x90] sm:$0xe]
          %v7158 = vld [vmem:[%s6524 + $0x98] sm:$0xe]
          %v7159 = vld [vmem:[%s6524 + $0xa0] sm:$0xe]
          %v7160 = vld [vmem:[%s6524 + $0xa8] sm:$0xe]
          %v7193 = vrot.slane %v7145, 5
          %v7194 = vrot.slane %v7193, 4
          %v7195 = vrot.slane %v6724, 5
          %v7196 = vsel %vm899, %v7194, %v7195
          %v7197 = vrot.slane %v7146, 5
          %v7198 = vrot.slane %v7197, 4
          %v7199 = vrot.slane %v6726, 5
          %v7200 = vsel %vm899, %v7198, %v7199
          %v7201 = vrot.slane %v7147, 5
          %v7202 = vrot.slane %v7201, 4
          %v7203 = vrot.slane %v6728, 5
          %v7204 = vsel %vm899, %v7202, %v7203
          %v7205 = vrot.slane %v7148, 5
          %v7206 = vrot.slane %v7205, 4
          %v7207 = vrot.slane %v6730, 5
          %v7208 = vsel %vm899, %v7206, %v7207
          %v7209 = vrot.slane %v7149, 5
          %v7210 = vrot.slane %v7209, 4
          %v7211 = vrot.slane %v6732, 5
          %v7212 = vsel %vm899, %v7210, %v7211
          %v7213 = vrot.slane %v7150, 5
          %v7214 = vrot.slane %v7213, 4
          %v7215 = vrot.slane %v6734, 5
          %v7216 = vsel %vm899, %v7214, %v7215
          %v7217 = vrot.slane %v7151, 5
          %v7218 = vrot.slane %v7217, 4
          %v7219 = vrot.slane %v6736, 5
          %v7220 = vsel %vm899, %v7218, %v7219
          %v7221 = vrot.slane %v7152, 5
          %v7222 = vrot.slane %v7221, 4
          %v7223 = vrot.slane %v6738, 5
          %v7224 = vsel %vm899, %v7222, %v7223
          %v7225 = vrot.slane %v7153, 5
          %v7226 = vrot.slane %v7225, 4
          %v7227 = vrot.slane %v6740, 5
          %v7228 = vsel %vm899, %v7226, %v7227
          %v7229 = vrot.slane %v7154, 5
          %v7230 = vrot.slane %v7229, 4
          %v7231 = vrot.slane %v6742, 5
          %v7232 = vsel %vm899, %v7230, %v7231
          %v7233 = vrot.slane %v7155, 5
          %v7234 = vrot.slane %v7233, 4
          %v7235 = vrot.slane %v6744, 5
          %v7236 = vsel %vm899, %v7234, %v7235
          %v7237 = vrot.slane %v7156, 5
          %v7238 = vrot.slane %v7237, 4
          %v7239 = vrot.slane %v6746, 5
          %v7240 = vsel %vm899, %v7238, %v7239
          %v7241 = vrot.slane %v7157, 5
          %v7242 = vrot.slane %v7241, 4
          %v7243 = vrot.slane %v6748, 5
          %v7244 = vsel %vm899, %v7242, %v7243
          %v7245 = vrot.slane %v7158, 5
          %v7246 = vrot.slane %v7245, 4
          %v7247 = vrot.slane %v6750, 5
          %v7248 = vsel %vm899, %v7246, %v7247
          %v7249 = vrot.slane %v7159, 5
          %v7250 = vrot.slane %v7249, 4
          %v7251 = vrot.slane %v6752, 5
          %v7252 = vsel %vm899, %v7250, %v7251
          %v7253 = vrot.slane %v7160, 5
          %v7254 = vrot.slane %v7253, 4
          %v7255 = vrot.slane %v6754, 5
          %v7256 = vsel %vm899, %v7254, %v7255
          %s7257 = scalar_lea.vmem %s1, 92
          %v7258 = vld [vmem:[%s7257] sm:$0xf]
          %v7259 = vunpack.c.l.b16 %v7196
          %v7260 = vunpack.c.l.b16 %v7200
          %v7261 = vunpack.c.l.b16 %v7204
          %v7262 = vunpack.c.l.b16 %v7208
          %v7263 = vunpack.c.l.b16 %v7212
          %v7264 = vunpack.c.l.b16 %v7216
          %v7265 = vunpack.c.l.b16 %v7220
          %v7266 = vunpack.c.l.b16 %v7224
          %v7267 = vunpack.c.l.b16 %v7228
          %v7268 = vunpack.c.l.b16 %v7232
          %v7269 = vunpack.c.l.b16 %v7236
          %v7270 = vunpack.c.l.b16 %v7240
          %v7271 = vunpack.c.l.b16 %v7244
          %v7272 = vunpack.c.l.b16 %v7248
          %v7273 = vunpack.c.l.b16 %v7252
          %v7274 = vunpack.c.l.b16 %v7256
          %v7275 = vpack.c.b16 %v7260, %v7259
          %v7276 = vpack.c.b16 %v7262, %v7261
          %v7277 = vpack.c.b16 %v7264, %v7263
          %v7278 = vpack.c.b16 %v7266, %v7265
          %v7279 = vpack.c.b16 %v7268, %v7267
          %v7280 = vpack.c.b16 %v7270, %v7269
          %v7281 = vpack.c.b16 %v7272, %v7271
          %v7282 = vpack.c.b16 %v7274, %v7273
          %v7284 = vsel %vm559, %v7275, 0
          %v7287 = vsel %vm559, %v7276, 0
          %v7290 = vsel %vm559, %v7277, 0
          %v7293 = vsel %vm559, %v7278, 0
          %v7296 = vsel %vm559, %v7279, 0
          %v7299 = vsel %vm559, %v7280, 0
          %v7302 = vsel %vm559, %v7281, 0
          %v7305 = vsel %vm559, %v7282, 0
          %v7308 = vsel %vm584, %v7258, 0
          %7310 = vmatprep.subr.bf16.mxu0 0
          %7311 = vmatpush1.bf16.msra.mxu0 %v7308
          %7312 = vmatprep.subr.bf16.mxu0 0
          %7313 = vmatpush1.bf16.msra.mxu0 0
          %7314 = vmatprep.subr.bf16.mxu0 0
          %7315 = vmatpush1.bf16.msra.mxu0 0
          %7316 = vmatprep.subr.bf16.mxu0 0
          %7317 = vmatpush1.bf16.msra.mxu0 0
          %7318 = vmatprep.subr.bf16.mxu0 0
          %7319 = vmatpush1.bf16.msra.mxu0 0
          %7320 = vmatprep.subr.bf16.mxu0 0
          %7321 = vmatpush1.bf16.msra.mxu0 0
          %7322 = vmatprep.subr.bf16.mxu0 0
          %7323 = vmatpush1.bf16.msra.mxu0 0
          %7324 = vmatprep.subr.bf16.mxu0 0
          %7325 = vmatpush1.bf16.msra.mxu0 0
          %7326 = vmatprep.subr.bf16.mxu0 0
          %7327 = vmatpush1.bf16.msra.mxu0 0
          %7328 = vmatprep.subr.bf16.mxu0 0
          %7329 = vmatpush1.bf16.msra.mxu0 0
          %7330 = vmatprep.subr.bf16.mxu0 0
          %7331 = vmatpush1.bf16.msra.mxu0 0
          %7332 = vmatprep.subr.bf16.mxu0 0
          %7333 = vmatpush1.bf16.msra.mxu0 0
          %7334 = vmatprep.subr.bf16.mxu0 0
          %7335 = vmatpush1.bf16.msra.mxu0 0
          %7336 = vmatprep.subr.bf16.mxu0 0
          %7337 = vmatpush1.bf16.msra.mxu0 0
          %7338 = vmatprep.subr.bf16.mxu0 0
          %7339 = vmatpush1.bf16.msra.mxu0 0
          %7340 = vmatprep.subr.bf16.mxu0 0
          %7341 = vmatpush1.bf16.msra.mxu0 0
          %7342 = vmatprep.mubr.bf16.mxu0 0
          %7343 = vmatmul.mubr.bf16.gmra.mrb[0].mxu0 %v7284
          %v7344 = vpop.f32.mrb[0].mxu0
          %v7345 = vadd.f32 0.0, %v7344
          %v7346 = vpop.f32.mrb[0].mxu0
          %v7347 = vpop.f32.mrb[0].mxu0
          %v7348 = vadd.f32 0.0, %v7347
          %v7349 = vpop.f32.mrb[0].mxu0
          %7350 = vmatprep.mubr.bf16.mxu0 0
          %7351 = vmatmul.mubr.bf16.gmra.mrb[0].mxu0 %v7287
          %v7352 = vpop.f32.mrb[0].mxu0
          %v7353 = vadd.f32 0.0, %v7352
          %v7354 = vpop.f32.mrb[0].mxu0
          %v7355 = vpop.f32.mrb[0].mxu0
          %v7356 = vadd.f32 0.0, %v7355
          %v7357 = vpop.f32.mrb[0].mxu0
          %7358 = vmatprep.mubr.bf16.mxu0 0
          %7359 = vmatmul.mubr.bf16.gmra.mrb[0].mxu0 %v7290
          %v7360 = vpop.f32.mrb[0].mxu0
          %v7361 = vadd.f32 0.0, %v7360
          %v7362 = vpop.f32.mrb[0].mxu0
          %v7363 = vpop.f32.mrb[0].mxu0
          %v7364 = vadd.f32 0.0, %v7363
          %v7365 = vpop.f32.mrb[0].mxu0
          %7366 = vmatprep.mubr.bf16.mxu0 0
          %7367 = vmatmul.mubr.bf16.gmra.mrb[0].mxu0 %v7293
          %v7368 = vpop.f32.mrb[0].mxu0
          %v7369 = vadd.f32 0.0, %v7368
          %v7370 = vpop.f32.mrb[0].mxu0
          %v7371 = vpop.f32.mrb[0].mxu0
          %v7372 = vadd.f32 0.0, %v7371
          %v7373 = vpop.f32.mrb[0].mxu0
          %7374 = vmatprep.mubr.bf16.mxu0 0
          %7375 = vmatmul.mubr.bf16.gmra.mrb[0].mxu0 %v7296
          %v7376 = vpop.f32.mrb[0].mxu0
          %v7377 = vadd.f32 0.0, %v7376
          %v7378 = vpop.f32.mrb[0].mxu0
          %v7379 = vpop.f32.mrb[0].mxu0
          %v7380 = vadd.f32 0.0, %v7379
          %v7381 = vpop.f32.mrb[0].mxu0
          %7382 = vmatprep.mubr.bf16.mxu0 0
          %7383 = vmatmul.mubr.bf16.gmra.mrb[0].mxu0 %v7299
          %v7384 = vpop.f32.mrb[0].mxu0
          %v7385 = vadd.f32 0.0, %v7384
          %v7386 = vpop.f32.mrb[0].mxu0
          %v7387 = vpop.f32.mrb[0].mxu0
          %v7388 = vadd.f32 0.0, %v7387
          %v7389 = vpop.f32.mrb[0].mxu0
          %7390 = vmatprep.mubr.bf16.mxu0 0
          %7391 = vmatmul.mubr.bf16.gmra.mrb[0].mxu0 %v7302
          %v7392 = vpop.f32.mrb[0].mxu0
          %v7393 = vadd.f32 0.0, %v7392
          %v7394 = vpop.f32.mrb[0].mxu0
          %v7395 = vpop.f32.mrb[0].mxu0
          %v7396 = vadd.f32 0.0, %v7395
          %v7397 = vpop.f32.mrb[0].mxu0
          %7398 = vmatprep.mubr.bf16.mxu0 0
          %7399 = vmatmul.mubr.bf16.gmra.mrb[0].mxu0 %v7305
          %v7400 = vpop.f32.mrb[0].mxu0
          %v7401 = vadd.f32 0.0, %v7400
          %v7402 = vpop.f32.mrb[0].mxu0
          %v7403 = vpop.f32.mrb[0].mxu0
          %v7404 = vadd.f32 0.0, %v7403
          %v7405 = vpop.f32.mrb[0].mxu0
          %7406 = vdwg.mxu0
          %v7407 = vadd.f32 %v7129, %v7345
          %v7408 = vadd.f32 %v7130, %v7348
          %v7409 = vadd.f32 %v7131, %v7353
          %v7410 = vadd.f32 %v7132, %v7356
          %v7411 = vadd.f32 %v7133, %v7361
          %v7412 = vadd.f32 %v7134, %v7364
          %v7413 = vadd.f32 %v7135, %v7369
          %v7414 = vadd.f32 %v7136, %v7372
          %v7415 = vadd.f32 %v7137, %v7377
          %v7416 = vadd.f32 %v7138, %v7380
          %v7417 = vadd.f32 %v7139, %v7385
          %v7418 = vadd.f32 %v7140, %v7388
          %v7419 = vadd.f32 %v7141, %v7393
          %v7420 = vadd.f32 %v7142, %v7396
          %v7421 = vadd.f32 %v7143, %v7401
          %v7422 = vadd.f32 %v7144, %v7404
          %s7423 = scalar_lea.vmem %s260, 112
          %v7424 = vld [vmem:[%s7423] sm:$0xf]
          %v7425 = vld [vmem:[%s7423 + $0x8] sm:$0xf]
          %v7426 = vld [vmem:[%s7423 + $0x10] sm:$0xf]
          %v7427 = vld [vmem:[%s7423 + $0x18] sm:$0xf]
          %v7428 = vld [vmem:[%s7423 + $0x30] sm:$0xf]
          %v7429 = vld [vmem:[%s7423 + $0x38] sm:$0xf]
          %v7430 = vld [vmem:[%s7423 + $0x40] sm:$0xf]
          %v7431 = vld [vmem:[%s7423 + $0x48] sm:$0xf]
          %v7432 = vld [vmem:[%s7423 + $0x60] sm:$0xf]
          %v7433 = vld [vmem:[%s7423 + $0x68] sm:$0xf]
          %v7434 = vld [vmem:[%s7423 + $0x70] sm:$0xf]
          %v7435 = vld [vmem:[%s7423 + $0x78] sm:$0xf]
          %v7436 = vld [vmem:[%s7423 + $0x90] sm:$0xf]
          %v7437 = vld [vmem:[%s7423 + $0x98] sm:$0xf]
          %v7438 = vld [vmem:[%s7423 + $0xa0] sm:$0xf]
          %v7439 = vld [vmem:[%s7423 + $0xa8] sm:$0xf]
          %s7440 = scalar_lea.vmem %s1, 96
          %v7441 = vld [vmem:[%s7440] sm:$0xf]
          %v7458 = vunpack.c.l.b16 %v7424
          %v7459 = vunpack.c.l.b16 %v7425
          %v7460 = vunpack.c.l.b16 %v7426
          %v7461 = vunpack.c.l.b16 %v7427
          %v7462 = vunpack.c.l.b16 %v7428
          %v7463 = vunpack.c.l.b16 %v7429
          %v7464 = vunpack.c.l.b16 %v7430
          %v7465 = vunpack.c.l.b16 %v7431
          %v7466 = vunpack.c.l.b16 %v7432
          %v7467 = vunpack.c.l.b16 %v7433
          %v7468 = vunpack.c.l.b16 %v7434
          %v7469 = vunpack.c.l.b16 %v7435
          %v7470 = vunpack.c.l.b16 %v7436
          %v7471 = vunpack.c.l.b16 %v7437
          %v7472 = vunpack.c.l.b16 %v7438
          %v7473 = vunpack.c.l.b16 %v7439
          %v7474 = vpack.c.b16 %v7459, %v7458
          %v7475 = vpack.c.b16 %v7461, %v7460
          %v7476 = vpack.c.b16 %v7463, %v7462
          %v7477 = vpack.c.b16 %v7465, %v7464
          %v7478 = vpack.c.b16 %v7467, %v7466
          %v7479 = vpack.c.b16 %v7469, %v7468
          %v7480 = vpack.c.b16 %v7471, %v7470
          %v7481 = vpack.c.b16 %v7473, %v7472
          %v7483 = vsel %vm559, %v7474, 0
          %v7486 = vsel %vm559, %v7475, 0
          %v7489 = vsel %vm559, %v7476, 0
          %v7492 = vsel %vm559, %v7477, 0
          %v7495 = vsel %vm559, %v7478, 0
          %v7498 = vsel %vm559, %v7479, 0
          %v7501 = vsel %vm559, %v7480, 0
          %v7504 = vsel %vm559, %v7481, 0
          %v7507 = vsel %vm584, %v7441, 0
          %7509 = vmatprep.subr.bf16.mxu0 0
          %7510 = vmatpush1.bf16.msra.mxu0 %v7507
          %7511 = vmatprep.subr.bf16.mxu0 0
          %7512 = vmatpush1.bf16.msra.mxu0 0
          %7513 = vmatprep.subr.bf16.mxu0 0
          %7514 = vmatpush1.bf16.msra.mxu0 0
          %7515 = vmatprep.subr.bf16.mxu0 0
          %7516 = vmatpush1.bf16.msra.mxu0 0
          %7517 = vmatprep.subr.bf16.mxu0 0
          %7518 = vmatpush1.bf16.msra.mxu0 0
          %7519 = vmatprep.subr.bf16.mxu0 0
          %7520 = vmatpush1.bf16.msra.mxu0 0
          %7521 = vmatprep.subr.bf16.mxu0 0
          %7522 = vmatpush1.bf16.msra.mxu0 0
          %7523 = vmatprep.subr.bf16.mxu0 0
          %7524 = vmatpush1.bf16.msra.mxu0 0
          %7525 = vmatprep.subr.bf16.mxu0 0
          %7526 = vmatpush1.bf16.msra.mxu0 0
          %7527 = vmatprep.subr.bf16.mxu0 0
          %7528 = vmatpush1.bf16.msra.mxu0 0
          %7529 = vmatprep.subr.bf16.mxu0 0
          %7530 = vmatpush1.bf16.msra.mxu0 0
          %7531 = vmatprep.subr.bf16.mxu0 0
          %7532 = vmatpush1.bf16.msra.mxu0 0
          %7533 = vmatprep.subr.bf16.mxu0 0
          %7534 = vmatpush1.bf16.msra.mxu0 0
          %7535 = vmatprep.subr.bf16.mxu0 0
          %7536 = vmatpush1.bf16.msra.mxu0 0
          %7537 = vmatprep.subr.bf16.mxu0 0
          %7538 = vmatpush1.bf16.msra.mxu0 0
          %7539 = vmatprep.subr.bf16.mxu0 0
          %7540 = vmatpush1.bf16.msra.mxu0 0
          %7541 = vmatprep.mubr.bf16.mxu0 0
          %7542 = vmatmul.mubr.bf16.gmra.mrb[0].mxu0 %v7483
          %v7543 = vpop.f32.mrb[0].mxu0
          %v7544 = vadd.f32 0.0, %v7543
          %v7545 = vpop.f32.mrb[0].mxu0
          %v7546 = vpop.f32.mrb[0].mxu0
          %v7547 = vadd.f32 0.0, %v7546
          %v7548 = vpop.f32.mrb[0].mxu0
          %7549 = vmatprep.mubr.bf16.mxu0 0
          %7550 = vmatmul.mubr.bf16.gmra.mrb[0].mxu0 %v7486
          %v7551 = vpop.f32.mrb[0].mxu0
          %v7552 = vadd.f32 0.0, %v7551
          %v7553 = vpop.f32.mrb[0].mxu0
          %v7554 = vpop.f32.mrb[0].mxu0
          %v7555 = vadd.f32 0.0, %v7554
          %v7556 = vpop.f32.mrb[0].mxu0
          %7557 = vmatprep.mubr.bf16.mxu0 0
          %7558 = vmatmul.mubr.bf16.gmra.mrb[0].mxu0 %v7489
          %v7559 = vpop.f32.mrb[0].mxu0
          %v7560 = vadd.f32 0.0, %v7559
          %v7561 = vpop.f32.mrb[0].mxu0
          %v7562 = vpop.f32.mrb[0].mxu0
          %v7563 = vadd.f32 0.0, %v7562
          %v7564 = vpop.f32.mrb[0].mxu0
          %7565 = vmatprep.mubr.bf16.mxu0 0
          %7566 = vmatmul.mubr.bf16.gmra.mrb[0].mxu0 %v7492
          %v7567 = vpop.f32.mrb[0].mxu0
          %v7568 = vadd.f32 0.0, %v7567
          %v7569 = vpop.f32.mrb[0].mxu0
          %v7570 = vpop.f32.mrb[0].mxu0
          %v7571 = vadd.f32 0.0, %v7570
          %v7572 = vpop.f32.mrb[0].mxu0
          %7573 = vmatprep.mubr.bf16.mxu0 0
          %7574 = vmatmul.mubr.bf16.gmra.mrb[0].mxu0 %v7495
          %v7575 = vpop.f32.mrb[0].mxu0
          %v7576 = vadd.f32 0.0, %v7575
          %v7577 = vpop.f32.mrb[0].mxu0
          %v7578 = vpop.f32.mrb[0].mxu0
          %v7579 = vadd.f32 0.0, %v7578
          %v7580 = vpop.f32.mrb[0].mxu0
          %7581 = vmatprep.mubr.bf16.mxu0 0
          %7582 = vmatmul.mubr.bf16.gmra.mrb[0].mxu0 %v7498
          %v7583 = vpop.f32.mrb[0].mxu0
          %v7584 = vadd.f32 0.0, %v7583
          %v7585 = vpop.f32.mrb[0].mxu0
          %v7586 = vpop.f32.mrb[0].mxu0
          %v7587 = vadd.f32 0.0, %v7586
          %v7588 = vpop.f32.mrb[0].mxu0
          %7589 = vmatprep.mubr.bf16.mxu0 0
          %7590 = vmatmul.mubr.bf16.gmra.mrb[0].mxu0 %v7501
          %v7591 = vpop.f32.mrb[0].mxu0
          %v7592 = vadd.f32 0.0, %v7591
          %v7593 = vpop.f32.mrb[0].mxu0
          %v7594 = vpop.f32.mrb[0].mxu0
          %v7595 = vadd.f32 0.0, %v7594
          %v7596 = vpop.f32.mrb[0].mxu0
          %7597 = vmatprep.mubr.bf16.mxu0 0
          %7598 = vmatmul.mubr.bf16.gmra.mrb[0].mxu0 %v7504
          %v7599 = vpop.f32.mrb[0].mxu0
          %v7600 = vadd.f32 0.0, %v7599
          %v7601 = vpop.f32.mrb[0].mxu0
          %v7602 = vpop.f32.mrb[0].mxu0
          %v7603 = vadd.f32 0.0, %v7602
          %v7604 = vpop.f32.mrb[0].mxu0
          %7605 = vdwg.mxu0
          %v7606 = vadd.f32 %v7407, %v7544
          %v7607 = vadd.f32 %v7408, %v7547
          %v7608 = vadd.f32 %v7409, %v7552
          %v7609 = vadd.f32 %v7410, %v7555
          %v7610 = vadd.f32 %v7411, %v7560
          %v7611 = vadd.f32 %v7412, %v7563
          %v7612 = vadd.f32 %v7413, %v7568
          %v7613 = vadd.f32 %v7414, %v7571
          %v7614 = vadd.f32 %v7415, %v7576
          %v7615 = vadd.f32 %v7416, %v7579
          %v7616 = vadd.f32 %v7417, %v7584
          %v7617 = vadd.f32 %v7418, %v7587
          %v7618 = vadd.f32 %v7419, %v7592
          %v7619 = vadd.f32 %v7420, %v7595
          %v7620 = vadd.f32 %v7421, %v7600
          %v7621 = vadd.f32 %v7422, %v7603
          %v7622 = vld [vmem:[%s7423] sm:$0xf]
          %v7623 = vld [vmem:[%s7423 + $0x4] sm:$0x1]
          %v7624 = vld [vmem:[%s7423 + $0x8] sm:$0xf]
          %v7625 = vld [vmem:[%s7423 + $0xc] sm:$0x1]
          %v7626 = vld [vmem:[%s7423 + $0x10] sm:$0xf]
          %v7627 = vld [vmem:[%s7423 + $0x14] sm:$0x1]
          %v7628 = vld [vmem:[%s7423 + $0x18] sm:$0xf]
          %v7629 = vld [vmem:[%s7423 + $0x1c] sm:$0x1]
          %v7630 = vld [vmem:[%s7423 + $0x30] sm:$0xf]
          %v7631 = vld [vmem:[%s7423 + $0x34] sm:$0x1]
          %v7632 = vld [vmem:[%s7423 + $0x38] sm:$0xf]
          %v7633 = vld [vmem:[%s7423 + $0x3c] sm:$0x1]
          %v7634 = vld [vmem:[%s7423 + $0x40] sm:$0xf]
          %v7635 = vld [vmem:[%s7423 + $0x44] sm:$0x1]
          %v7636 = vld [vmem:[%s7423 + $0x48] sm:$0xf]
          %v7637 = vld [vmem:[%s7423 + $0x4c] sm:$0x1]
          %v7638 = vld [vmem:[%s7423 + $0x60] sm:$0xf]
          %v7639 = vld [vmem:[%s7423 + $0x64] sm:$0x1]
          %v7640 = vld [vmem:[%s7423 + $0x68] sm:$0xf]
          %v7641 = vld [vmem:[%s7423 + $0x6c] sm:$0x1]
          %v7642 = vld [vmem:[%s7423 + $0x70] sm:$0xf]
          %v7643 = vld [vmem:[%s7423 + $0x74] sm:$0x1]
          %v7644 = vld [vmem:[%s7423 + $0x78] sm:$0xf]
          %v7645 = vld [vmem:[%s7423 + $0x7c] sm:$0x1]
          %v7646 = vld [vmem:[%s7423 + $0x90] sm:$0xf]
          %v7647 = vld [vmem:[%s7423 + $0x94] sm:$0x1]
          %v7648 = vld [vmem:[%s7423 + $0x98] sm:$0xf]
          %v7649 = vld [vmem:[%s7423 + $0x9c] sm:$0x1]
          %v7650 = vld [vmem:[%s7423 + $0xa0] sm:$0xf]
          %v7651 = vld [vmem:[%s7423 + $0xa4] sm:$0x1]
          %v7652 = vld [vmem:[%s7423 + $0xa8] sm:$0xf]
          %v7653 = vld [vmem:[%s7423 + $0xac] sm:$0x1]
          %v7655 = vshrl.u32 %v7622, 16
          %v7657 = vrot.slane %v7655, 4
          %v7658 = vshll.u32 %v7622, 16
          %v7660 = vrot.slane %v7658, 5
          %v7661 = vor.u32 %v7657, %v7660
          %v7662 = vrot.slane %v7661, 4
          %v7664 = vshll.u32 %v7623, 16
          %v7666 = vrot.slane %v7664, 5
          %v7667 = vsel %vm308, %v7662, %v7666
          %v7669 = vshrl.u32 %v7624, 16
          %v7671 = vrot.slane %v7669, 4
          %v7672 = vshll.u32 %v7624, 16
          %v7674 = vrot.slane %v7672, 5
          %v7675 = vor.u32 %v7671, %v7674
          %v7676 = vrot.slane %v7675, 4
          %v7678 = vshll.u32 %v7625, 16
          %v7680 = vrot.slane %v7678, 5
          %v7681 = vsel %vm308, %v7676, %v7680
          %v7683 = vshrl.u32 %v7626, 16
          %v7685 = vrot.slane %v7683, 4
          %v7686 = vshll.u32 %v7626, 16
          %v7688 = vrot.slane %v7686, 5
          %v7689 = vor.u32 %v7685, %v7688
          %v7690 = vrot.slane %v7689, 4
          %v7692 = vshll.u32 %v7627, 16
          %v7694 = vrot.slane %v7692, 5
          %v7695 = vsel %vm308, %v7690, %v7694
          %v7697 = vshrl.u32 %v7628, 16
          %v7699 = vrot.slane %v7697, 4
          %v7700 = vshll.u32 %v7628, 16
          %v7702 = vrot.slane %v7700, 5
          %v7703 = vor.u32 %v7699, %v7702
          %v7704 = vrot.slane %v7703, 4
          %v7706 = vshll.u32 %v7629, 16
          %v7708 = vrot.slane %v7706, 5
          %v7709 = vsel %vm308, %v7704, %v7708
          %v7711 = vshrl.u32 %v7630, 16
          %v7713 = vrot.slane %v7711, 4
          %v7714 = vshll.u32 %v7630, 16
          %v7716 = vrot.slane %v7714, 5
          %v7717 = vor.u32 %v7713, %v7716
          %v7718 = vrot.slane %v7717, 4
          %v7720 = vshll.u32 %v7631, 16
          %v7722 = vrot.slane %v7720, 5
          %v7723 = vsel %vm308, %v7718, %v7722
          %v7725 = vshrl.u32 %v7632, 16
          %v7727 = vrot.slane %v7725, 4
          %v7728 = vshll.u32 %v7632, 16
          %v7730 = vrot.slane %v7728, 5
          %v7731 = vor.u32 %v7727, %v7730
          %v7732 = vrot.slane %v7731, 4
          %v7734 = vshll.u32 %v7633, 16
          %v7736 = vrot.slane %v7734, 5
          %v7737 = vsel %vm308, %v7732, %v7736
          %v7739 = vshrl.u32 %v7634, 16
          %v7741 = vrot.slane %v7739, 4
          %v7742 = vshll.u32 %v7634, 16
          %v7744 = vrot.slane %v7742, 5
          %v7745 = vor.u32 %v7741, %v7744
          %v7746 = vrot.slane %v7745, 4
          %v7748 = vshll.u32 %v7635, 16
          %v7750 = vrot.slane %v7748, 5
          %v7751 = vsel %vm308, %v7746, %v7750
          %v7753 = vshrl.u32 %v7636, 16
          %v7755 = vrot.slane %v7753, 4
          %v7756 = vshll.u32 %v7636, 16
          %v7758 = vrot.slane %v7756, 5
          %v7759 = vor.u32 %v7755, %v7758
          %v7760 = vrot.slane %v7759, 4
          %v7762 = vshll.u32 %v7637, 16
          %v7764 = vrot.slane %v7762, 5
          %v7765 = vsel %vm308, %v7760, %v7764
          %v7767 = vshrl.u32 %v7638, 16
          %v7769 = vrot.slane %v7767, 4
          %v7770 = vshll.u32 %v7638, 16
          %v7772 = vrot.slane %v7770, 5
          %v7773 = vor.u32 %v7769, %v7772
          %v7774 = vrot.slane %v7773, 4
          %v7776 = vshll.u32 %v7639, 16
          %v7778 = vrot.slane %v7776, 5
          %v7779 = vsel %vm308, %v7774, %v7778
          %v7781 = vshrl.u32 %v7640, 16
          %v7783 = vrot.slane %v7781, 4
          %v7784 = vshll.u32 %v7640, 16
          %v7786 = vrot.slane %v7784, 5
          %v7787 = vor.u32 %v7783, %v7786
          %v7788 = vrot.slane %v7787, 4
          %v7790 = vshll.u32 %v7641, 16
          %v7792 = vrot.slane %v7790, 5
          %v7793 = vsel %vm308, %v7788, %v7792
          %v7795 = vshrl.u32 %v7642, 16
          %v7797 = vrot.slane %v7795, 4
          %v7798 = vshll.u32 %v7642, 16
          %v7800 = vrot.slane %v7798, 5
          %v7801 = vor.u32 %v7797, %v7800
          %v7802 = vrot.slane %v7801, 4
          %v7804 = vshll.u32 %v7643, 16
          %v7806 = vrot.slane %v7804, 5
          %v7807 = vsel %vm308, %v7802, %v7806
          %v7809 = vshrl.u32 %v7644, 16
          %v7811 = vrot.slane %v7809, 4
          %v7812 = vshll.u32 %v7644, 16
          %v7814 = vrot.slane %v7812, 5
          %v7815 = vor.u32 %v7811, %v7814
          %v7816 = vrot.slane %v7815, 4
          %v7818 = vshll.u32 %v7645, 16
          %v7820 = vrot.slane %v7818, 5
          %v7821 = vsel %vm308, %v7816, %v7820
          %v7823 = vshrl.u32 %v7646, 16
          %v7825 = vrot.slane %v7823, 4
          %v7826 = vshll.u32 %v7646, 16
          %v7828 = vrot.slane %v7826, 5
          %v7829 = vor.u32 %v7825, %v7828
          %v7830 = vrot.slane %v7829, 4
          %v7832 = vshll.u32 %v7647, 16
          %v7834 = vrot.slane %v7832, 5
          %v7835 = vsel %vm308, %v7830, %v7834
          %v7837 = vshrl.u32 %v7648, 16
          %v7839 = vrot.slane %v7837, 4
          %v7840 = vshll.u32 %v7648, 16
          %v7842 = vrot.slane %v7840, 5
          %v7843 = vor.u32 %v7839, %v7842
          %v7844 = vrot.slane %v7843, 4
          %v7846 = vshll.u32 %v7649, 16
          %v7848 = vrot.slane %v7846, 5
          %v7849 = vsel %vm308, %v7844, %v7848
          %v7851 = vshrl.u32 %v7650, 16
          %v7853 = vrot.slane %v7851, 4
          %v7854 = vshll.u32 %v7650, 16
          %v7856 = vrot.slane %v7854, 5
          %v7857 = vor.u32 %v7853, %v7856
          %v7858 = vrot.slane %v7857, 4
          %v7860 = vshll.u32 %v7651, 16
          %v7862 = vrot.slane %v7860, 5
          %v7863 = vsel %vm308, %v7858, %v7862
          %v7865 = vshrl.u32 %v7652, 16
          %v7867 = vrot.slane %v7865, 4
          %v7868 = vshll.u32 %v7652, 16
          %v7870 = vrot.slane %v7868, 5
          %v7871 = vor.u32 %v7867, %v7870
          %v7872 = vrot.slane %v7871, 4
          %v7874 = vshll.u32 %v7653, 16
          %v7876 = vrot.slane %v7874, 5
          %v7877 = vsel %vm308, %v7872, %v7876
          %s7878 = scalar_lea.vmem %s1, 100
          %v7879 = vld [vmem:[%s7878] sm:$0xf]
          %v7880 = vunpack.c.l.b16 %v7667
          %v7881 = vunpack.c.l.b16 %v7681
          %v7882 = vunpack.c.l.b16 %v7695
          %v7883 = vunpack.c.l.b16 %v7709
          %v7884 = vunpack.c.l.b16 %v7723
          %v7885 = vunpack.c.l.b16 %v7737
          %v7886 = vunpack.c.l.b16 %v7751
          %v7887 = vunpack.c.l.b16 %v7765
          %v7888 = vunpack.c.l.b16 %v7779
          %v7889 = vunpack.c.l.b16 %v7793
          %v7890 = vunpack.c.l.b16 %v7807
          %v7891 = vunpack.c.l.b16 %v7821
          %v7892 = vunpack.c.l.b16 %v7835
          %v7893 = vunpack.c.l.b16 %v7849
          %v7894 = vunpack.c.l.b16 %v7863
          %v7895 = vunpack.c.l.b16 %v7877
          %v7896 = vpack.c.b16 %v7881, %v7880
          %v7897 = vpack.c.b16 %v7883, %v7882
          %v7898 = vpack.c.b16 %v7885, %v7884
          %v7899 = vpack.c.b16 %v7887, %v7886
          %v7900 = vpack.c.b16 %v7889, %v7888
          %v7901 = vpack.c.b16 %v7891, %v7890
          %v7902 = vpack.c.b16 %v7893, %v7892
          %v7903 = vpack.c.b16 %v7895, %v7894
          %v7905 = vsel %vm559, %v7896, 0
          %v7908 = vsel %vm559, %v7897, 0
          %v7911 = vsel %vm559, %v7898, 0
          %v7914 = vsel %vm559, %v7899, 0
          %v7917 = vsel %vm559, %v7900, 0
          %v7920 = vsel %vm559, %v7901, 0
          %v7923 = vsel %vm559, %v7902, 0
          %v7926 = vsel %vm559, %v7903, 0
          %v7929 = vsel %vm584, %v7879, 0
          %7931 = vmatprep.subr.bf16.mxu0 0
          %7932 = vmatpush1.bf16.msra.mxu0 %v7929
          %7933 = vmatprep.subr.bf16.mxu0 0
          %7934 = vmatpush1.bf16.msra.mxu0 0
          %7935 = vmatprep.subr.bf16.mxu0 0
          %7936 = vmatpush1.bf16.msra.mxu0 0
          %7937 = vmatprep.subr.bf16.mxu0 0
          %7938 = vmatpush1.bf16.msra.mxu0 0
          %7939 = vmatprep.subr.bf16.mxu0 0
          %7940 = vmatpush1.bf16.msra.mxu0 0
          %7941 = vmatprep.subr.bf16.mxu0 0
          %7942 = vmatpush1.bf16.msra.mxu0 0
          %7943 = vmatprep.subr.bf16.mxu0 0
          %7944 = vmatpush1.bf16.msra.mxu0 0
          %7945 = vmatprep.subr.bf16.mxu0 0
          %7946 = vmatpush1.bf16.msra.mxu0 0
          %7947 = vmatprep.subr.bf16.mxu0 0
          %7948 = vmatpush1.bf16.msra.mxu0 0
          %7949 = vmatprep.subr.bf16.mxu0 0
          %7950 = vmatpush1.bf16.msra.mxu0 0
          %7951 = vmatprep.subr.bf16.mxu0 0
          %7952 = vmatpush1.bf16.msra.mxu0 0
          %7953 = vmatprep.subr.bf16.mxu0 0
          %7954 = vmatpush1.bf16.msra.mxu0 0
          %7955 = vmatprep.subr.bf16.mxu0 0
          %7956 = vmatpush1.bf16.msra.mxu0 0
          %7957 = vmatprep.subr.bf16.mxu0 0
          %7958 = vmatpush1.bf16.msra.mxu0 0
          %7959 = vmatprep.subr.bf16.mxu0 0
          %7960 = vmatpush1.bf16.msra.mxu0 0
          %7961 = vmatprep.subr.bf16.mxu0 0
          %7962 = vmatpush1.bf16.msra.mxu0 0
          %7963 = vmatprep.mubr.bf16.mxu0 0
          %7964 = vmatmul.mubr.bf16.gmra.mrb[0].mxu0 %v7905
          %v7965 = vpop.f32.mrb[0].mxu0
          %v7966 = vadd.f32 0.0, %v7965
          %v7967 = vpop.f32.mrb[0].mxu0
          %v7968 = vpop.f32.mrb[0].mxu0
          %v7969 = vadd.f32 0.0, %v7968
          %v7970 = vpop.f32.mrb[0].mxu0
          %7971 = vmatprep.mubr.bf16.mxu0 0
          %7972 = vmatmul.mubr.bf16.gmra.mrb[0].mxu0 %v7908
          %v7973 = vpop.f32.mrb[0].mxu0
          %v7974 = vadd.f32 0.0, %v7973
          %v7975 = vpop.f32.mrb[0].mxu0
          %v7976 = vpop.f32.mrb[0].mxu0
          %v7977 = vadd.f32 0.0, %v7976
          %v7978 = vpop.f32.mrb[0].mxu0
          %7979 = vmatprep.mubr.bf16.mxu0 0
          %7980 = vmatmul.mubr.bf16.gmra.mrb[0].mxu0 %v7911
          %v7981 = vpop.f32.mrb[0].mxu0
          %v7982 = vadd.f32 0.0, %v7981
          %v7983 = vpop.f32.mrb[0].mxu0
          %v7984 = vpop.f32.mrb[0].mxu0
          %v7985 = vadd.f32 0.0, %v7984
          %v7986 = vpop.f32.mrb[0].mxu0
          %7987 = vmatprep.mubr.bf16.mxu0 0
          %7988 = vmatmul.mubr.bf16.gmra.mrb[0].mxu0 %v7914
          %v7989 = vpop.f32.mrb[0].mxu0
          %v7990 = vadd.f32 0.0, %v7989
          %v7991 = vpop.f32.mrb[0].mxu0
          %v7992 = vpop.f32.mrb[0].mxu0
          %v7993 = vadd.f32 0.0, %v7992
          %v7994 = vpop.f32.mrb[0].mxu0
          %7995 = vmatprep.mubr.bf16.mxu0 0
          %7996 = vmatmul.mubr.bf16.gmra.mrb[0].mxu0 %v7917
          %v7997 = vpop.f32.mrb[0].mxu0
          %v7998 = vadd.f32 0.0, %v7997
          %v7999 = vpop.f32.mrb[0].mxu0
          %v8000 = vpop.f32.mrb[0].mxu0
          %v8001 = vadd.f32 0.0, %v8000
          %v8002 = vpop.f32.mrb[0].mxu0
          %8003 = vmatprep.mubr.bf16.mxu0 0
          %8004 = vmatmul.mubr.bf16.gmra.mrb[0].mxu0 %v7920
          %v8005 = vpop.f32.mrb[0].mxu0
          %v8006 = vadd.f32 0.0, %v8005
          %v8007 = vpop.f32.mrb[0].mxu0
          %v8008 = vpop.f32.mrb[0].mxu0
          %v8009 = vadd.f32 0.0, %v8008
          %v8010 = vpop.f32.mrb[0].mxu0
          %8011 = vmatprep.mubr.bf16.mxu0 0
          %8012 = vmatmul.mubr.bf16.gmra.mrb[0].mxu0 %v7923
          %v8013 = vpop.f32.mrb[0].mxu0
          %v8014 = vadd.f32 0.0, %v8013
          %v8015 = vpop.f32.mrb[0].mxu0
          %v8016 = vpop.f32.mrb[0].mxu0
          %v8017 = vadd.f32 0.0, %v8016
          %v8018 = vpop.f32.mrb[0].mxu0
          %8019 = vmatprep.mubr.bf16.mxu0 0
          %8020 = vmatmul.mubr.bf16.gmra.mrb[0].mxu0 %v7926
          %v8021 = vpop.f32.mrb[0].mxu0
          %v8022 = vadd.f32 0.0, %v8021
          %v8023 = vpop.f32.mrb[0].mxu0
          %v8024 = vpop.f32.mrb[0].mxu0
          %v8025 = vadd.f32 0.0, %v8024
          %v8026 = vpop.f32.mrb[0].mxu0
          %8027 = vdwg.mxu0
          %v8028 = vadd.f32 %v7606, %v7966
          %v8029 = vadd.f32 %v7607, %v7969
          %v8030 = vadd.f32 %v7608, %v7974
          %v8031 = vadd.f32 %v7609, %v7977
          %v8032 = vadd.f32 %v7610, %v7982
          %v8033 = vadd.f32 %v7611, %v7985
          %v8034 = vadd.f32 %v7612, %v7990
          %v8035 = vadd.f32 %v7613, %v7993
          %v8036 = vadd.f32 %v7614, %v7998
          %v8037 = vadd.f32 %v7615, %v8001
          %v8038 = vadd.f32 %v7616, %v8006
          %v8039 = vadd.f32 %v7617, %v8009
          %v8040 = vadd.f32 %v7618, %v8014
          %v8041 = vadd.f32 %v7619, %v8017
          %v8042 = vadd.f32 %v7620, %v8022
          %v8043 = vadd.f32 %v7621, %v8025
          %v8044 = vld [vmem:[%s7423] sm:$0xe]
          %v8045 = vld [vmem:[%s7423 + $0x8] sm:$0xe]
          %v8046 = vld [vmem:[%s7423 + $0x10] sm:$0xe]
          %v8047 = vld [vmem:[%s7423 + $0x18] sm:$0xe]
          %v8048 = vld [vmem:[%s7423 + $0x30] sm:$0xe]
          %v8049 = vld [vmem:[%s7423 + $0x38] sm:$0xe]
          %v8050 = vld [vmem:[%s7423 + $0x40] sm:$0xe]
          %v8051 = vld [vmem:[%s7423 + $0x48] sm:$0xe]
          %v8052 = vld [vmem:[%s7423 + $0x60] sm:$0xe]
          %v8053 = vld [vmem:[%s7423 + $0x68] sm:$0xe]
          %v8054 = vld [vmem:[%s7423 + $0x70] sm:$0xe]
          %v8055 = vld [vmem:[%s7423 + $0x78] sm:$0xe]
          %v8056 = vld [vmem:[%s7423 + $0x90] sm:$0xe]
          %v8057 = vld [vmem:[%s7423 + $0x98] sm:$0xe]
          %v8058 = vld [vmem:[%s7423 + $0xa0] sm:$0xe]
          %v8059 = vld [vmem:[%s7423 + $0xa8] sm:$0xe]
          %v8092 = vrot.slane %v8044, 5
          %v8093 = vrot.slane %v8092, 4
          %v8094 = vrot.slane %v7623, 5
          %v8095 = vsel %vm899, %v8093, %v8094
          %v8096 = vrot.slane %v8045, 5
          %v8097 = vrot.slane %v8096, 4
          %v8098 = vrot.slane %v7625, 5
          %v8099 = vsel %vm899, %v8097, %v8098
          %v8100 = vrot.slane %v8046, 5
          %v8101 = vrot.slane %v8100, 4
          %v8102 = vrot.slane %v7627, 5
          %v8103 = vsel %vm899, %v8101, %v8102
          %v8104 = vrot.slane %v8047, 5
          %v8105 = vrot.slane %v8104, 4
          %v8106 = vrot.slane %v7629, 5
          %v8107 = vsel %vm899, %v8105, %v8106
          %v8108 = vrot.slane %v8048, 5
          %v8109 = vrot.slane %v8108, 4
          %v8110 = vrot.slane %v7631, 5
          %v8111 = vsel %vm899, %v8109, %v8110
          %v8112 = vrot.slane %v8049, 5
          %v8113 = vrot.slane %v8112, 4
          %v8114 = vrot.slane %v7633, 5
          %v8115 = vsel %vm899, %v8113, %v8114
          %v8116 = vrot.slane %v8050, 5
          %v8117 = vrot.slane %v8116, 4
          %v8118 = vrot.slane %v7635, 5
          %v8119 = vsel %vm899, %v8117, %v8118
          %v8120 = vrot.slane %v8051, 5
          %v8121 = vrot.slane %v8120, 4
          %v8122 = vrot.slane %v7637, 5
          %v8123 = vsel %vm899, %v8121, %v8122
          %v8124 = vrot.slane %v8052, 5
          %v8125 = vrot.slane %v8124, 4
          %v8126 = vrot.slane %v7639, 5
          %v8127 = vsel %vm899, %v8125, %v8126
          %v8128 = vrot.slane %v8053, 5
          %v8129 = vrot.slane %v8128, 4
          %v8130 = vrot.slane %v7641, 5
          %v8131 = vsel %vm899, %v8129, %v8130
          %v8132 = vrot.slane %v8054, 5
          %v8133 = vrot.slane %v8132, 4
          %v8134 = vrot.slane %v7643, 5
          %v8135 = vsel %vm899, %v8133, %v8134
          %v8136 = vrot.slane %v8055, 5
          %v8137 = vrot.slane %v8136, 4
          %v8138 = vrot.slane %v7645, 5
          %v8139 = vsel %vm899, %v8137, %v8138
          %v8140 = vrot.slane %v8056, 5
          %v8141 = vrot.slane %v8140, 4
          %v8142 = vrot.slane %v7647, 5
          %v8143 = vsel %vm899, %v8141, %v8142
          %v8144 = vrot.slane %v8057, 5
          %v8145 = vrot.slane %v8144, 4
          %v8146 = vrot.slane %v7649, 5
          %v8147 = vsel %vm899, %v8145, %v8146
          %v8148 = vrot.slane %v8058, 5
          %v8149 = vrot.slane %v8148, 4
          %v8150 = vrot.slane %v7651, 5
          %v8151 = vsel %vm899, %v8149, %v8150
          %v8152 = vrot.slane %v8059, 5
          %v8153 = vrot.slane %v8152, 4
          %v8154 = vrot.slane %v7653, 5
          %v8155 = vsel %vm899, %v8153, %v8154
          %s8156 = scalar_lea.vmem %s1, 104
          %v8157 = vld [vmem:[%s8156] sm:$0xf]
          %v8158 = vunpack.c.l.b16 %v8095
          %v8159 = vunpack.c.l.b16 %v8099
          %v8160 = vunpack.c.l.b16 %v8103
          %v8161 = vunpack.c.l.b16 %v8107
          %v8162 = vunpack.c.l.b16 %v8111
          %v8163 = vunpack.c.l.b16 %v8115
          %v8164 = vunpack.c.l.b16 %v8119
          %v8165 = vunpack.c.l.b16 %v8123
          %v8166 = vunpack.c.l.b16 %v8127
          %v8167 = vunpack.c.l.b16 %v8131
          %v8168 = vunpack.c.l.b16 %v8135
          %v8169 = vunpack.c.l.b16 %v8139
          %v8170 = vunpack.c.l.b16 %v8143
          %v8171 = vunpack.c.l.b16 %v8147
          %v8172 = vunpack.c.l.b16 %v8151
          %v8173 = vunpack.c.l.b16 %v8155
          %v8174 = vpack.c.b16 %v8159, %v8158
          %v8175 = vpack.c.b16 %v8161, %v8160
          %v8176 = vpack.c.b16 %v8163, %v8162
          %v8177 = vpack.c.b16 %v8165, %v8164
          %v8178 = vpack.c.b16 %v8167, %v8166
          %v8179 = vpack.c.b16 %v8169, %v8168
          %v8180 = vpack.c.b16 %v8171, %v8170
          %v8181 = vpack.c.b16 %v8173, %v8172
          %v8183 = vsel %vm559, %v8174, 0
          %v8186 = vsel %vm559, %v8175, 0
          %v8189 = vsel %vm559, %v8176, 0
          %v8192 = vsel %vm559, %v8177, 0
          %v8195 = vsel %vm559, %v8178, 0
          %v8198 = vsel %vm559, %v8179, 0
          %v8201 = vsel %vm559, %v8180, 0
          %v8204 = vsel %vm559, %v8181, 0
          %v8207 = vsel %vm584, %v8157, 0
          %8209 = vmatprep.subr.bf16.mxu0 0
          %8210 = vmatpush1.bf16.msra.mxu0 %v8207
          %8211 = vmatprep.subr.bf16.mxu0 0
          %8212 = vmatpush1.bf16.msra.mxu0 0
          %8213 = vmatprep.subr.bf16.mxu0 0
          %8214 = vmatpush1.bf16.msra.mxu0 0
          %8215 = vmatprep.subr.bf16.mxu0 0
          %8216 = vmatpush1.bf16.msra.mxu0 0
          %8217 = vmatprep.subr.bf16.mxu0 0
          %8218 = vmatpush1.bf16.msra.mxu0 0
          %8219 = vmatprep.subr.bf16.mxu0 0
          %8220 = vmatpush1.bf16.msra.mxu0 0
          %8221 = vmatprep.subr.bf16.mxu0 0
          %8222 = vmatpush1.bf16.msra.mxu0 0
          %8223 = vmatprep.subr.bf16.mxu0 0
          %8224 = vmatpush1.bf16.msra.mxu0 0
          %8225 = vmatprep.subr.bf16.mxu0 0
          %8226 = vmatpush1.bf16.msra.mxu0 0
          %8227 = vmatprep.subr.bf16.mxu0 0
          %8228 = vmatpush1.bf16.msra.mxu0 0
          %8229 = vmatprep.subr.bf16.mxu0 0
          %8230 = vmatpush1.bf16.msra.mxu0 0
          %8231 = vmatprep.subr.bf16.mxu0 0
          %8232 = vmatpush1.bf16.msra.mxu0 0
          %8233 = vmatprep.subr.bf16.mxu0 0
          %8234 = vmatpush1.bf16.msra.mxu0 0
          %8235 = vmatprep.subr.bf16.mxu0 0
          %8236 = vmatpush1.bf16.msra.mxu0 0
          %8237 = vmatprep.subr.bf16.mxu0 0
          %8238 = vmatpush1.bf16.msra.mxu0 0
          %8239 = vmatprep.subr.bf16.mxu0 0
          %8240 = vmatpush1.bf16.msra.mxu0 0
          %8241 = vmatprep.mubr.bf16.mxu0 0
          %8242 = vmatmul.mubr.bf16.gmra.mrb[0].mxu0 %v8183
          %v8243 = vpop.f32.mrb[0].mxu0
          %v8244 = vadd.f32 0.0, %v8243
          %v8245 = vpop.f32.mrb[0].mxu0
          %v8246 = vpop.f32.mrb[0].mxu0
          %v8247 = vadd.f32 0.0, %v8246
          %v8248 = vpop.f32.mrb[0].mxu0
          %8249 = vmatprep.mubr.bf16.mxu0 0
          %8250 = vmatmul.mubr.bf16.gmra.mrb[0].mxu0 %v8186
          %v8251 = vpop.f32.mrb[0].mxu0
          %v8252 = vadd.f32 0.0, %v8251
          %v8253 = vpop.f32.mrb[0].mxu0
          %v8254 = vpop.f32.mrb[0].mxu0
          %v8255 = vadd.f32 0.0, %v8254
          %v8256 = vpop.f32.mrb[0].mxu0
          %8257 = vmatprep.mubr.bf16.mxu0 0
          %8258 = vmatmul.mubr.bf16.gmra.mrb[0].mxu0 %v8189
          %v8259 = vpop.f32.mrb[0].mxu0
          %v8260 = vadd.f32 0.0, %v8259
          %v8261 = vpop.f32.mrb[0].mxu0
          %v8262 = vpop.f32.mrb[0].mxu0
          %v8263 = vadd.f32 0.0, %v8262
          %v8264 = vpop.f32.mrb[0].mxu0
          %8265 = vmatprep.mubr.bf16.mxu0 0
          %8266 = vmatmul.mubr.bf16.gmra.mrb[0].mxu0 %v8192
          %v8267 = vpop.f32.mrb[0].mxu0
          %v8268 = vadd.f32 0.0, %v8267
          %v8269 = vpop.f32.mrb[0].mxu0
          %v8270 = vpop.f32.mrb[0].mxu0
          %v8271 = vadd.f32 0.0, %v8270
          %v8272 = vpop.f32.mrb[0].mxu0
          %8273 = vmatprep.mubr.bf16.mxu0 0
          %8274 = vmatmul.mubr.bf16.gmra.mrb[0].mxu0 %v8195
          %v8275 = vpop.f32.mrb[0].mxu0
          %v8276 = vadd.f32 0.0, %v8275
          %v8277 = vpop.f32.mrb[0].mxu0
          %v8278 = vpop.f32.mrb[0].mxu0
          %v8279 = vadd.f32 0.0, %v8278
          %v8280 = vpop.f32.mrb[0].mxu0
          %8281 = vmatprep.mubr.bf16.mxu0 0
          %8282 = vmatmul.mubr.bf16.gmra.mrb[0].mxu0 %v8198
          %v8283 = vpop.f32.mrb[0].mxu0
          %v8284 = vadd.f32 0.0, %v8283
          %v8285 = vpop.f32.mrb[0].mxu0
          %v8286 = vpop.f32.mrb[0].mxu0
          %v8287 = vadd.f32 0.0, %v8286
          %v8288 = vpop.f32.mrb[0].mxu0
          %8289 = vmatprep.mubr.bf16.mxu0 0
          %8290 = vmatmul.mubr.bf16.gmra.mrb[0].mxu0 %v8201
          %v8291 = vpop.f32.mrb[0].mxu0
          %v8292 = vadd.f32 0.0, %v8291
          %v8293 = vpop.f32.mrb[0].mxu0
          %v8294 = vpop.f32.mrb[0].mxu0
          %v8295 = vadd.f32 0.0, %v8294
          %v8296 = vpop.f32.mrb[0].mxu0
          %8297 = vmatprep.mubr.bf16.mxu0 0
          %8298 = vmatmul.mubr.bf16.gmra.mrb[0].mxu0 %v8204
          %v8299 = vpop.f32.mrb[0].mxu0
          %v8300 = vadd.f32 0.0, %v8299
          %v8301 = vpop.f32.mrb[0].mxu0
          %v8302 = vpop.f32.mrb[0].mxu0
          %v8303 = vadd.f32 0.0, %v8302
          %v8304 = vpop.f32.mrb[0].mxu0
          %8305 = vdwg.mxu0
          %v8306 = vadd.f32 %v8028, %v8244
          %v8307 = vadd.f32 %v8029, %v8247
          %v8308 = vadd.f32 %v8030, %v8252
          %v8309 = vadd.f32 %v8031, %v8255
          %v8310 = vadd.f32 %v8032, %v8260
          %v8311 = vadd.f32 %v8033, %v8263
          %v8312 = vadd.f32 %v8034, %v8268
          %v8313 = vadd.f32 %v8035, %v8271
          %v8314 = vadd.f32 %v8036, %v8276
          %v8315 = vadd.f32 %v8037, %v8279
          %v8316 = vadd.f32 %v8038, %v8284
          %v8317 = vadd.f32 %v8039, %v8287
          %v8318 = vadd.f32 %v8040, %v8292
          %v8319 = vadd.f32 %v8041, %v8295
          %v8320 = vadd.f32 %v8042, %v8300
          %v8321 = vadd.f32 %v8043, %v8303
          %v8322 = vld [vmem:[%s2] sm:$0x1]
          %v8324 = vlaneseq
          %v8325 = vshrl.u32 %v8324, 7
          %v8326 = vsub.s32 0, %v8325
          %v8327 = vrot.slane %v8322, %v8326
          %v8329 = vadd.f32 %v8306, %v8327
          %v8330 = vadd.f32 %v8307, %v8327
          %v8331 = vadd.f32 %v8308, %v8327
          %v8332 = vadd.f32 %v8309, %v8327
          %v8333 = vadd.f32 %v8310, %v8327
          %v8334 = vadd.f32 %v8311, %v8327
          %v8335 = vadd.f32 %v8312, %v8327
          %v8336 = vadd.f32 %v8313, %v8327
          %v8337 = vadd.f32 %v8314, %v8327
          %v8338 = vadd.f32 %v8315, %v8327
          %v8339 = vadd.f32 %v8316, %v8327
          %v8340 = vadd.f32 %v8317, %v8327
          %v8341 = vadd.f32 %v8318, %v8327
          %v8342 = vadd.f32 %v8319, %v8327
          %v8343 = vadd.f32 %v8320, %v8327
          %v8344 = vadd.f32 %v8321, %v8327
          %v8345 = vpack.c.bf16 %v8330, %v8329
          %v8346 = vpack.c.bf16 %v8332, %v8331
          %v8347 = vpack.c.bf16 %v8334, %v8333
          %v8348 = vpack.c.bf16 %v8336, %v8335
          %v8349 = vpack.c.bf16 %v8338, %v8337
          %v8350 = vpack.c.bf16 %v8340, %v8339
          %v8351 = vpack.c.bf16 %v8342, %v8341
          %v8352 = vpack.c.bf16 %v8344, %v8343
          %8353 = vxpose.xlu0.b32.start [1/16] %v8329, 128
          %8354 = vxpose.xlu0.b32.cont [2/16] %v8330, 128
          %8355 = vxpose.xlu0.b32.cont [3/16] %v8331, 128
          %8356 = vxpose.xlu0.b32.cont [4/16] %v8332, 128
          %8357 = vxpose.xlu0.b32.cont [5/16] %v8333, 128
          %8358 = vxpose.xlu0.b32.cont [6/16] %v8334, 128
          %8359 = vxpose.xlu0.b32.cont [7/16] %v8335, 128
          %8360 = vxpose.xlu0.b32.cont [8/16] %v8336, 128
          %8361 = vxpose.xlu0.b32.cont [9/16] %v8337, 128
          %8362 = vxpose.xlu0.b32.cont [10/16] %v8338, 128
          %8363 = vxpose.xlu0.b32.cont [11/16] %v8339, 128
          %8364 = vxpose.xlu0.b32.cont [12/16] %v8340, 128
          %8365 = vxpose.xlu0.b32.cont [13/16] %v8341, 128
          %8366 = vxpose.xlu0.b32.cont [14/16] %v8342, 128
          %8367 = vxpose.xlu0.b32.cont [15/16] %v8343, 128
          %8368 = vxpose.xlu0.b32.end [16/16] %v8344, 128
          %v8369 = vpop.trf.xlu0
          %v8370 = vpop.trf.xlu0
          %v8371 = vpop.trf.xlu0
          %v8372 = vpop.trf.xlu0
          %v8373 = vpop.trf.xlu0
          %v8374 = vpop.trf.xlu0
          %v8375 = vpop.trf.xlu0
          %v8376 = vpop.trf.xlu0
          %v8377 = vpop.trf.xlu0
          %v8378 = vpop.trf.xlu0
          %v8379 = vpop.trf.xlu0
          %v8380 = vpop.trf.xlu0
          %v8381 = vpop.trf.xlu0
          %v8382 = vpop.trf.xlu0
          %v8383 = vpop.trf.xlu0
          %v8384 = vpop.trf.xlu0
          %v8385 = vpack.c.bf16 %v8369, %v8369
          %8386 = vmatprep.subr.bf16.mxu0 0
          %8387 = vmatpush1.bf16.msra.mxu0 %v8345
          %8388 = vmatprep.subr.bf16.mxu0 0
          %8389 = vmatpush1.bf16.msra.mxu0 %v8346
          %8390 = vmatprep.subr.bf16.mxu0 0
          %8391 = vmatpush1.bf16.msra.mxu0 %v8347
          %8392 = vmatprep.subr.bf16.mxu0 0
          %8393 = vmatpush1.bf16.msra.mxu0 %v8348
          %8394 = vmatprep.subr.bf16.mxu0 0
          %8395 = vmatpush1.bf16.msra.mxu0 %v8349
          %8396 = vmatprep.subr.bf16.mxu0 0
          %8397 = vmatpush1.bf16.msra.mxu0 %v8350
          %8398 = vmatprep.subr.bf16.mxu0 0
          %8399 = vmatpush1.bf16.msra.mxu0 %v8351
          %8400 = vmatprep.subr.bf16.mxu0 0
          %8401 = vmatpush1.bf16.msra.mxu0 %v8352
          %8402 = vmatprep.subr.bf16.mxu0 0
          %8403 = vmatpush1.bf16.msra.mxu0 0
          %8404 = vmatprep.subr.bf16.mxu0 0
          %8405 = vmatpush1.bf16.msra.mxu0 0
          %8406 = vmatprep.subr.bf16.mxu0 0
          %8407 = vmatpush1.bf16.msra.mxu0 0
          %8408 = vmatprep.subr.bf16.mxu0 0
          %8409 = vmatpush1.bf16.msra.mxu0 0
          %8410 = vmatprep.subr.bf16.mxu0 0
          %8411 = vmatpush1.bf16.msra.mxu0 0
          %8412 = vmatprep.subr.bf16.mxu0 0
          %8413 = vmatpush1.bf16.msra.mxu0 0
          %8414 = vmatprep.subr.bf16.mxu0 0
          %8415 = vmatpush1.bf16.msra.mxu0 0
          %8416 = vmatprep.subr.bf16.mxu0 0
          %8417 = vmatpush1.bf16.msra.mxu0 0
          %8418 = vmatprep.mubr.bf16.mxu0 0
          %8419 = vmatmul.mubr.bf16.gmra.mrb[0].mxu0 %v8385
          %v8420 = vpop.f32.mrb[0].mxu0
          %v8421 = vadd.f32 0.0, %v8420
          %v8422 = vpop.f32.mrb[0].mxu0
          %v8423 = vpop.f32.mrb[0].mxu0
          %v8424 = vpop.f32.mrb[0].mxu0
          %8425 = vdwg.mxu0
          %v8426 = vmul.f32 %v8421, 0.088388346
          %v8427 = vsel %vm559, %v8426, -inf
          %8428 = vmax.xlane.f32.xlu0 %v8427
          %v8429 = vpop.xlane.xlu0 %8428
          %v8430 = vsub.f32 %v8426, %v8429
          %v8431 = vmul.f32 %v8430, 1.442695
          %v8432 = vpow.pop %v8431
          %v8433 = vsel %vm559, %v8432, 0.0
          %8434 = vadd.xlane.f32.xlu0 %v8433
          %v8435 = vpop.xlane.xlu0 %8434
          %v8436 = vrcp.pop %v8435
          %v8437 = vmul.f32 %v8432, %v8436
          %v8438 = vpack.c.bf16 %v8437, %v8437
          %v8440 = vsel %vm559, %v8438, 0
          %v8443 = vsel %vm584, %v8385, 0
          %8445 = vmatprep.subr.bf16.mxu0 0
          %8446 = vmatpush1.bf16.msra.mxu0 %v8443
          %8447 = vmatprep.subr.bf16.mxu0 0
          %8448 = vmatpush1.bf16.msra.mxu0 0
          %8449 = vmatprep.subr.bf16.mxu0 0
          %8450 = vmatpush1.bf16.msra.mxu0 0
          %8451 = vmatprep.subr.bf16.mxu0 0
          %8452 = vmatpush1.bf16.msra.mxu0 0
          %8453 = vmatprep.subr.bf16.mxu0 0
          %8454 = vmatpush1.bf16.msra.mxu0 0
          %8455 = vmatprep.subr.bf16.mxu0 0
          %8456 = vmatpush1.bf16.msra.mxu0 0
          %8457 = vmatprep.subr.bf16.mxu0 0
          %8458 = vmatpush1.bf16.msra.mxu0 0
          %8459 = vmatprep.subr.bf16.mxu0 0
          %8460 = vmatpush1.bf16.msra.mxu0 0
          %8461 = vmatprep.subr.bf16.mxu0 0
          %8462 = vmatpush1.bf16.msra.mxu0 0
          %8463 = vmatprep.subr.bf16.mxu0 0
          %8464 = vmatpush1.bf16.msra.mxu0 0
          %8465 = vmatprep.subr.bf16.mxu0 0
          %8466 = vmatpush1.bf16.msra.mxu0 0
          %8467 = vmatprep.subr.bf16.mxu0 0
          %8468 = vmatpush1.bf16.msra.mxu0 0
          %8469 = vmatprep.subr.bf16.mxu0 0
          %8470 = vmatpush1.bf16.msra.mxu0 0
          %8471 = vmatprep.subr.bf16.mxu0 0
          %8472 = vmatpush1.bf16.msra.mxu0 0
          %8473 = vmatprep.subr.bf16.mxu0 0
          %8474 = vmatpush1.bf16.msra.mxu0 0
          %8475 = vmatprep.subr.bf16.mxu0 0
          %8476 = vmatpush1.bf16.msra.mxu0 0
          %8477 = vmatprep.mubr.bf16.mxu0 0
          %8478 = vmatmul.mubr.bf16.gmra.mrb[0].mxu0 %v8440
          %v8479 = vpop.f32.mrb[0].mxu0
          %v8480 = vadd.f32 0.0, %v8479
          %v8481 = vpop.f32.mrb[0].mxu0
          %v8482 = vpop.f32.mrb[0].mxu0
          %v8483 = vpop.f32.mrb[0].mxu0
          %8484 = vdwg.mxu0
          %v8485 = vpack.c.bf16 %v8480, %v8480
          %8486 = vst [vmem:[#allocation2] sm:$0xf] %v8485
        $region44: #{tpu_custom_call.1} parent=39 // pred_fallthru
          _
        %v8487 = vld [vmem:[#allocation2] sm:$0xf]
        %v8488 = vld [vmem:[%s264] sm:$0xf]
        %v8489 = vld [vmem:[%s264 + $0x4] sm:$0xf]
        %v8490 = vld [vmem:[%s264 + $0x8] sm:$0xf]
        %v8491 = vld [vmem:[%s264 + $0xc] sm:$0xf]
        %v8492 = vld [vmem:[%s264 + $0x10] sm:$0xf]
        %v8493 = vld [vmem:[%s264 + $0x14] sm:$0xf]
        %v8494 = vld [vmem:[%s264 + $0x18] sm:$0xf]
        %v8495 = vld [vmem:[%s264 + $0x1c] sm:$0xf]
        %v8496 = vld [vmem:[%s264 + $0x20] sm:$0xf]
        %v8497 = vld [vmem:[%s264 + $0x24] sm:$0xf]
        %v8498 = vld [vmem:[%s264 + $0x28] sm:$0xf]
        %v8499 = vld [vmem:[%s264 + $0x2c] sm:$0xf]
        %v8500 = vld [vmem:[%s264 + $0x30] sm:$0xf]
        %v8501 = vld [vmem:[%s264 + $0x34] sm:$0xf]
        %v8502 = vld [vmem:[%s264 + $0x38] sm:$0xf]
        %v8503 = vld [vmem:[%s264 + $0x3c] sm:$0xf]
        %v8504 = vld [vmem:[%s267] sm:$0x1]
        %v8506 = vlaneseq
        %v8507 = vshrl.u32 %v8506, 7
        %v8508 = vsub.s32 0, %v8507
        %v8509 = vrot.slane %v8504, %v8508
        %v8527 = vunpack.c.l.b16 %v8488
        %v8528 = vunpack.c.l.b16 %v8489
        %v8529 = vunpack.c.l.b16 %v8490
        %v8530 = vunpack.c.l.b16 %v8491
        %v8531 = vunpack.c.l.b16 %v8492
        %v8532 = vunpack.c.l.b16 %v8493
        %v8533 = vunpack.c.l.b16 %v8494
        %v8534 = vunpack.c.l.b16 %v8495
        %v8535 = vunpack.c.l.b16 %v8496
        %v8536 = vunpack.c.l.b16 %v8497
        %v8537 = vunpack.c.l.b16 %v8498
        %v8538 = vunpack.c.l.b16 %v8499
        %v8539 = vunpack.c.l.b16 %v8500
        %v8540 = vunpack.c.l.b16 %v8501
        %v8541 = vunpack.c.l.b16 %v8502
        %v8542 = vunpack.c.l.b16 %v8503
        %v8543 = vpack.c.b16 %v8528, %v8527
        %v8544 = vpack.c.b16 %v8530, %v8529
        %v8545 = vpack.c.b16 %v8532, %v8531
        %v8546 = vpack.c.b16 %v8534, %v8533
        %v8547 = vpack.c.b16 %v8536, %v8535
        %v8548 = vpack.c.b16 %v8538, %v8537
        %v8549 = vpack.c.b16 %v8540, %v8539
        %v8550 = vpack.c.b16 %v8542, %v8541
        %8559 = vmatprep.subr.bf16.mxu0 0
        %8560 = vmatpush1.bf16.msra.mxu0 %v8543
        %8561 = vmatprep.subr.bf16.mxu0 0
        %8562 = vmatpush1.bf16.msra.mxu0 %v8544
        %8563 = vmatprep.subr.bf16.mxu0 0
        %8564 = vmatpush1.bf16.msra.mxu0 %v8545
        %8565 = vmatprep.subr.bf16.mxu0 0
        %8566 = vmatpush1.bf16.msra.mxu0 %v8546
        %8567 = vmatprep.subr.bf16.mxu0 0
        %8568 = vmatpush1.bf16.msra.mxu0 %v8547
        %8569 = vmatprep.subr.bf16.mxu0 0
        %8570 = vmatpush1.bf16.msra.mxu0 %v8548
        %8571 = vmatprep.subr.bf16.mxu0 0
        %8572 = vmatpush1.bf16.msra.mxu0 %v8549
        %8573 = vmatprep.subr.bf16.mxu0 0
        %8574 = vmatpush1.bf16.msra.mxu0 %v8550
        %8575 = vmatprep.subr.bf16.mxu0 0
        %8576 = vmatpush1.bf16.msra.mxu0 0
        %8577 = vmatprep.subr.bf16.mxu0 0
        %8578 = vmatpush1.bf16.msra.mxu0 0
        %8579 = vmatprep.subr.bf16.mxu0 0
        %8580 = vmatpush1.bf16.msra.mxu0 0
        %8581 = vmatprep.subr.bf16.mxu0 0
        %8582 = vmatpush1.bf16.msra.mxu0 0
        %8583 = vmatprep.subr.bf16.mxu0 0
        %8584 = vmatpush1.bf16.msra.mxu0 0
        %8585 = vmatprep.subr.bf16.mxu0 0
        %8586 = vmatpush1.bf16.msra.mxu0 0
        %8587 = vmatprep.subr.bf16.mxu0 0
        %8588 = vmatpush1.bf16.msra.mxu0 0
        %8589 = vmatprep.subr.bf16.mxu0 0
        %8590 = vmatpush1.bf16.msra.mxu0 0
        %8591 = vmatprep.mubr.bf16.mxu0 0
        %8592 = vmatmul.mubr.bf16.gmra.mrb[0].mxu0 %v8487
        %v8593 = vpop.f32.mrb[0].mxu0
        %v8594 = vadd.f32 %v8509, %v8593
        %v8595 = vpop.f32.mrb[0].mxu0
        %v8596 = vpop.f32.mrb[0].mxu0
        %v8597 = vpop.f32.mrb[0].mxu0
        %8598 = vdwg.mxu0
        %8599 = vst [vmem:[%s255] sm:$0xff] %v8594
        %s8600 = sand.u32 %s161, 1
        %s8601 = scalar_lea.sflag [#allocation4], %s8600
        %s8602 = sand.u32 %s161, 1
        %s8603 = smul.addr %s8602, 8
        %s8604 = scalar_lea.vmem [#allocation3], %s8603
        // Predicated region
        $region45: #{tpu_custom_call.1} parent=39 // pred_check
          %p8605 = pneg %p171
        $region46: #{tpu_custom_call.1} parent=39 // pred_check_branch
          %8607 = sbr.rel (%p8605) target = $region48
        $region47: #{tpu_custom_call.1} parent=39 // pred_region
          %s8609 = ssub.s32 128, 128
          %8610 = vsyncadd %s8601, %s8609
          %s8611 = sadd.s32 %s24, %s23
          %s8612 = smul.addr %s8611, 128
          %s8613 = scalar_lea.hbm %s5, %s8612
          %s8615 = sshll.u32 %s8604, 4
          %s8616 = int_to_ptr.vmem [resolvable:$true] %s8615
          %8618 = dma.vmem_to_hbm [thread:$0]  %s8616, 128, %s8613, %s8601
        $region48: #{tpu_custom_call.1} parent=39 // pred_fallthru
          _
      $region40: #{tpu_custom_call.1} parent=5 // pred_fallthru
        _
      %p8619 = scmp.le.s32.totalorder 2, %s14
      // Predicated region
      $region49: #{tpu_custom_call.1} parent=5 // pred_check
        %p8620 = pneg %p8619
      $region50: #{tpu_custom_call.1} parent=5 // pred_check_branch
        %8622 = sbr.rel (%p8620) target = $region52
      $region51: #{tpu_custom_call.1} parent=5 // pred_region
        %s8623 = ssub.s32 %s14, 2
        // Predicated region
        $region53: #{tpu_custom_call.1} parent=51 // pred_check
          %p8624 = pneg %p177
        $region54: #{tpu_custom_call.1} parent=51 // pred_check_branch
          %8626 = sbr.rel (%p8624) target = $region56
        $region55: #{tpu_custom_call.1} parent=51 // pred_region
          %s8627 = sand.u32 %s162, 1
          %s8628 = scalar_lea.sflag [#allocation4], %s8627
          %s8629 = sand.u32 %s162, 1
          %s8630 = smul.addr %s8629, 8
          %s8631 = scalar_lea.vmem [#allocation3], %s8630
          %8632 = dma.done %s8628, 128
        $region56: #{tpu_custom_call.1} parent=51 // pred_fallthru
          _
      $region52: #{tpu_custom_call.1} parent=5 // pred_fallthru
        _
    $region6: #{tpu_custom_call.1} parent=1 // loop_footer
      %s18 = sadd.s32 1, %s14
    $region7: #{tpu_custom_call.1} parent=1 // loop_footer_branch
      %13 = sbr.rel target = $region3
    $region8: #{tpu_custom_call.1} parent=1 // loop_exit
      _
    %8633 = vsyncpa [#allocation4], 1
    %s8634 = scalar_lea.sflag [#allocation4], 1
    %8635 = vsyncpa %s8634, 1

</llo_original>
